<compile_context>
chip_gen: v5e
topology: v5e:2x2
jax: 0.10.0
libtpu: 0.0.40
codegen_flags: <defaults>
</compile_context>

<pallas_src>
import math

import jax
import jax.numpy as jnp
from jax.experimental import pallas as pl
from jax.experimental.pallas import tpu as pltpu

HIDDEN_DIMS = [8, 16, 32, 64, 128, 256, 512, 1024]  # hidden_dims reversed
BN_EPS = 1e-5
LRELU_SLOPE = 0.01
COUT_TILE = 128          # lane tile: matches v5e MXU width, fine on v6e/v7x
_MiB = 1024 * 1024


# ---------------------------------------------------------------------------
# small helpers
# ---------------------------------------------------------------------------
def _out_size(n):
    # Conv2d(kernel=3, stride=2, padding=1) output spatial size.
    return (n + 2 - 3) // 2 + 1


def _tap_live(d, in_size, out_size):
    # True iff kernel offset d (0..2) ever reads a real (non-padding) pixel.
    return any(0 <= 2 * o + d - 1 < in_size for o in range(out_size))


def _nbytes(shape, itemsize):
    return math.prod(shape) * itemsize


def _vmem_limit(block_bytes):
    # double-buffered blocks + generous headroom, capped well below 64 MiB (v7x).
    return int(min(32 * _MiB, max(8 * _MiB, 4 * block_bytes)))


def _bn_lrelu(acc, gamma, beta):
    # Training-mode BatchNorm (biased variance over rows) + LeakyReLU, in f32.
    mean = jnp.mean(acc, axis=0, keepdims=True)
    cen = acc - mean
    var = jnp.mean(cen * cen, axis=0, keepdims=True)
    y = cen * jax.lax.rsqrt(var + BN_EPS) * gamma + beta
    return jnp.where(y >= 0, y, LRELU_SLOPE * y)


# ---------------------------------------------------------------------------
# kernels
# ---------------------------------------------------------------------------
def _layer_kernel(p_ref, w_ref, g_ref, b_ref, o_ref):
    # p_ref: (M, K) bf16 patches, w_ref: (K, Ct) bf16, g/b: (1, Ct) f32.
    acc = jnp.dot(p_ref[...], w_ref[...], preferred_element_type=jnp.float32)
    o_ref[...] = _bn_lrelu(acc, g_ref[...], b_ref[...])


def _make_tail_kernel(n_tail):
    # Fused chain of n_tail [matmul -> BN -> lrelu] layers, all in VMEM.
    # refs = (patches, (w, gamma, beta) * n_tail, out). The last layer's
    # w/gamma/beta/out are Cout-tiled by the grid; earlier ones are resident.
    def kernel(*refs):
        p_ref, o_ref = refs[0], refs[-1]
        a = p_ref[...]
        for li in range(n_tail):
            w_ref, g_ref, b_ref = refs[1 + 3 * li: 4 + 3 * li]
            acc = jnp.dot(a, w_ref[...], preferred_element_type=jnp.float32)
            y = _bn_lrelu(acc, g_ref[...], b_ref[...])
            a = y.astype(jnp.bfloat16) if li + 1 < n_tail else y
        o_ref[...] = a
    return kernel


# ---------------------------------------------------------------------------
# per-layer call (layers whose input is larger than 2x2)
# ---------------------------------------------------------------------------
def conv_bn_lrelu(x_nhwc, layer):
    w, gamma, beta, live = layer["w"], layer["gamma"], layer["beta"], layer["live"]
    N, H, W, Cin = x_nhwc.shape
    Cout = w.shape[1]
    Ho, Wo = _out_size(H), _out_size(W)

    # im2col over live taps (plain-JAX glue on tiny tensors), bf16 patches.
    xp = jnp.pad(x_nhwc.astype(jnp.bfloat16), ((0, 0), (1, 1), (1, 1), (0, 0)))
    cols = [xp[:, dy:dy + 2 * (Ho - 1) + 1:2, dx:dx + 2 * (Wo - 1) + 1:2, :]
            for dy, dx in live]
    patches = jnp.stack(cols, axis=3).reshape(N * Ho * Wo, len(live) * Cin)

    M, K = patches.shape
    tile = min(Cout, COUT_TILE)
    grid = (Cout // tile,)
    blk = (_nbytes((M, K), 2) + _nbytes((K, tile), 2)
           + 2 * _nbytes((1, tile), 4) + _nbytes((M, tile), 4))

    out = pl.pallas_call(
        _layer_kernel,
        grid=grid,
        out_shape=jax.ShapeDtypeStruct((M, Cout), jnp.float32),
        in_specs=[
            pl.BlockSpec((M, K), lambda j: (0, 0)),
            pl.BlockSpec((K, tile), lambda j: (0, j)),
            pl.BlockSpec((1, tile), lambda j: (0, j)),
            pl.BlockSpec((1, tile), lambda j: (0, j)),
        ],
        out_specs=pl.BlockSpec((M, tile), lambda j: (0, j)),
        compiler_params=pltpu.CompilerParams(
            dimension_semantics=("parallel",),
            vmem_limit_bytes=_vmem_limit(blk)),
    )(patches, w, gamma, beta)
    return out.reshape(N, Ho, Wo, Cout)


# ---------------------------------------------------------------------------
# fused tail (layers whose input spatial size is <= 2x2: im2col == reshape)
# ---------------------------------------------------------------------------
def tail_fused(x_nhwc, tail_layers):
    for layer in tail_layers:
        assert max(layer["in_hw"]) <= 2
    N = x_nhwc.shape[0]
    p = x_nhwc.astype(jnp.bfloat16).reshape(N, -1)
    Clast = tail_layers[-1]["w"].shape[1]
    tile = min(Clast, COUT_TILE)
    grid = (Clast // tile,)
    n_tail = len(tail_layers)

    inputs = [p]
    in_specs = [pl.BlockSpec(p.shape, lambda j: (0, 0))]
    blk = _nbytes(p.shape, 2)
    for li, layer in enumerate(tail_layers):
        K, C = layer["w"].shape
        last = li == n_tail - 1
        c_blk = tile if last else C
        idx = (lambda j: (0, j)) if last else (lambda j: (0, 0))
        in_specs += [pl.BlockSpec((K, c_blk), idx),
                     pl.BlockSpec((1, c_blk), idx),
                     pl.BlockSpec((1, c_blk), idx)]
        inputs += [layer["w"], layer["gamma"], layer["beta"]]
        blk += _nbytes((K, c_blk), 2) + 2 * _nbytes((1, c_blk), 4)
    blk += _nbytes((N, tile), 4)

    out = pl.pallas_call(
        _make_tail_kernel(n_tail),
        grid=grid,
        out_shape=jax.ShapeDtypeStruct((N, Clast), jnp.float32),
        in_specs=in_specs,
        out_specs=pl.BlockSpec((N, tile), lambda j: (0, j)),
        compiler_params=pltpu.CompilerParams(
            dimension_semantics=("parallel",),
            vmem_limit_bytes=_vmem_limit(blk)),
    )(*inputs)
    return out.reshape(N, 1, 1, Clast)


# ---------------------------------------------------------------------------
# parameter init (PyTorch-default-like) and one-time packing
# ---------------------------------------------------------------------------
def init_encoder_params(key):
    params = []
    cin = 3
    for i, cout in enumerate(HIDDEN_DIMS):
        kw = jax.random.fold_in(key, 2 * i)
        kb = jax.random.fold_in(key, 2 * i + 1)
        bound = 1.0 / math.sqrt(cin * 9)          # kaiming_uniform(a=sqrt(5)) bound
        w = jax.random.uniform(kw, (3, 3, cin, cout), jnp.float32, -bound, bound)
        b = jax.random.uniform(kb, (cout,), jnp.float32, -bound, bound)
        gamma = jnp.ones((cout,), jnp.float32)    # BatchNorm2d default weight
        beta = jnp.zeros((cout,), jnp.float32)    # BatchNorm2d default bias
        params.append((w, b, gamma, beta))
        cin = cout
    return params


def pack_encoder_params(params, in_hw):
    """Pack weights once for the given input size: keep only live taps,
    (K, Cout) matmul layout, bf16; drop conv bias (cancelled by batch-stat BN)."""
    H, W = in_hw
    packed = []
    for (w, _b, gamma, beta) in params:
        Ho, Wo = _out_size(H), _out_size(W)
        live = tuple((dy, dx) for dy in range(3) for dx in range(3)
                     if _tap_live(dy, H, Ho) and _tap_live(dx, W, Wo))
        w_packed = jnp.concatenate([w[dy, dx] for dy, dx in live], axis=0)
        packed.append(dict(
            w=w_packed.astype(jnp.bfloat16),
            gamma=gamma.reshape(1, -1),
            beta=beta.reshape(1, -1),
            live=live,
            in_hw=(H, W),
        ))
        H, W = Ho, Wo
    return packed


# ---------------------------------------------------------------------------
# full encoder forward (NCHW in, NCHW out — matching PyTorch)
# ---------------------------------------------------------------------------
def encoder_forward(x_nchw, packed):
    x = jnp.transpose(x_nchw, (0, 2, 3, 1))  # NCHW -> NHWC
    n = len(packed)
    tail_start = n
    while tail_start > 0 and max(packed[tail_start - 1]["in_hw"]) <= 2:
        tail_start -= 1
    for i in range(tail_start):
        x = conv_bn_lrelu(x, packed[i])
    if tail_start < n:
        x = tail_fused(x, packed[tail_start:])
    return jnp.transpose(x, (0, 3, 1, 2))    # NHWC -> NCHW


if __name__ == "__main__":
    key = jax.random.PRNGKey(0)
    x = jax.random.normal(jax.random.fold_in(key, 1234), (2, 3, 64, 64), jnp.float32)

    params = init_encoder_params(key)
    packed = pack_encoder_params(params, in_hw=(64, 64))

    fwd = jax.jit(lambda inp: encoder_forward(inp, packed))
    out = jax.block_until_ready(fwd(x))

    assert out.shape == (2, 1024, 1, 1), out.shape
    assert bool(jnp.all(jnp.isfinite(out)))
    print("KERNEL_OK")
</pallas_src>

<mosaic_0001>
module attributes {stable_mosaic.version = 11 : i64} {
  func.func @_layer_kernel(%arg0: i32, %arg1: memref<2048x27xbf16, #tpu.memory_space<vmem>>, %arg2: memref<27x8xbf16, #tpu.memory_space<vmem>>, %arg3: memref<1x8xf32, #tpu.memory_space<vmem>>, %arg4: memref<1x8xf32, #tpu.memory_space<vmem>>, %arg5: memref<2048x8xf32, #tpu.memory_space<vmem>>) attributes {dimension_semantics = [#tpu.dimension_semantics<parallel>], iteration_bounds = array<i64: 1>, scalar_prefetch = 0 : i64, scratch_operands = 0 : i64, tpu.core_type = #tpu.core_type<tc>, window_params = [{pipeline_mode = #tpu.pipeline_mode<synchronous>, transform_indices = @transform_0, window_bounds = array<i64: 2048, 27>}, {transform_indices = @transform_1, window_bounds = array<i64: 27, 8>}, {transform_indices = @transform_2, window_bounds = array<i64: 1, 8>}, {transform_indices = @transform_3, window_bounds = array<i64: 1, 8>}, {transform_indices = @transform_4, window_bounds = array<i64: 2048, 8>}]} {
    %c0 = arith.constant 0 : index
    %c0_0 = arith.constant 0 : index
    %0 = vector.load %arg1[%c0, %c0_0] : memref<2048x27xbf16, #tpu.memory_space<vmem>>, vector<2048x27xbf16>
    %c0_1 = arith.constant 0 : index
    %c0_2 = arith.constant 0 : index
    %1 = vector.load %arg2[%c0_1, %c0_2] : memref<27x8xbf16, #tpu.memory_space<vmem>>, vector<27x8xbf16>
    %cst = arith.constant dense<0.000000e+00> : vector<2048x8xf32>
    %2 = tpu.matmul %0, %1, %cst {dimension_numbers = #tpu.dot_dimension_numbers<[1], [0], [0], [1], [0, 0, 1, 1], [], []>} : vector<2048x27xbf16>, vector<27x8xbf16>, vector<2048x8xf32> -> vector<2048x8xf32>
    %c0_3 = arith.constant 0 : index
    %c0_4 = arith.constant 0 : index
    %3 = vector.load %arg3[%c0_3, %c0_4] : memref<1x8xf32, #tpu.memory_space<vmem>>, vector<1x8xf32>
    %c0_5 = arith.constant 0 : index
    %c0_6 = arith.constant 0 : index
    %4 = vector.load %arg4[%c0_5, %c0_6] : memref<1x8xf32, #tpu.memory_space<vmem>>, vector<1x8xf32>
    %cst_7 = arith.constant dense<0.000000e+00> : vector<8xf32>
    %5 = vector.multi_reduction <add>, %2, %cst_7 [0] : vector<2048x8xf32> to vector<8xf32>
    %6 = vector.shape_cast %5 : vector<8xf32> to vector<1x8xf32>
    %cst_8 = arith.constant 2.048000e+03 : f32
    %7 = vector.broadcast %cst_8 : f32 to vector<1x8xf32>
    %8 = arith.divf %6, %7 : vector<1x8xf32>
    %9 = vector.broadcast %8 : vector<1x8xf32> to vector<2048x8xf32>
    %10 = arith.subf %2, %9 : vector<2048x8xf32>
    %11 = arith.mulf %10, %10 : vector<2048x8xf32>
    %cst_9 = arith.constant dense<0.000000e+00> : vector<8xf32>
    %12 = vector.multi_reduction <add>, %11, %cst_9 [0] : vector<2048x8xf32> to vector<8xf32>
    %13 = vector.shape_cast %12 : vector<8xf32> to vector<1x8xf32>
    %cst_10 = arith.constant 2.048000e+03 : f32
    %14 = vector.broadcast %cst_10 : f32 to vector<1x8xf32>
    %15 = arith.divf %13, %14 : vector<1x8xf32>
    %cst_11 = arith.constant 9.99999974E-6 : f32
    %16 = vector.broadcast %cst_11 : f32 to vector<1x8xf32>
    %17 = arith.addf %15, %16 : vector<1x8xf32>
    %18 = math.rsqrt %17 : vector<1x8xf32>
    %19 = vector.broadcast %18 : vector<1x8xf32> to vector<2048x8xf32>
    %20 = arith.mulf %10, %19 : vector<2048x8xf32>
    %21 = vector.broadcast %3 : vector<1x8xf32> to vector<2048x8xf32>
    %22 = arith.mulf %20, %21 : vector<2048x8xf32>
    %23 = vector.broadcast %4 : vector<1x8xf32> to vector<2048x8xf32>
    %24 = arith.addf %22, %23 : vector<2048x8xf32>
    %cst_12 = arith.constant 0.000000e+00 : f32
    %25 = vector.broadcast %cst_12 : f32 to vector<2048x8xf32>
    %26 = arith.cmpf oge, %24, %25 : vector<2048x8xf32>
    %cst_13 = arith.constant 0.00999999977 : f32
    %27 = vector.broadcast %cst_13 : f32 to vector<2048x8xf32>
    %28 = arith.mulf %27, %24 : vector<2048x8xf32>
    %29 = arith.select %26, %24, %28 : vector<2048x8xi1>, vector<2048x8xf32>
    %c0_14 = arith.constant 0 : index
    %c0_15 = arith.constant 0 : index
    %30 = vector.load %arg5[%c0_14, %c0_15] : memref<2048x8xf32, #tpu.memory_space<vmem>>, vector<2048x8xf32>
    tpu.vector_store %arg5[%c0_14, %c0_15], %29 {strides = array<i32>} : memref<2048x8xf32, #tpu.memory_space<vmem>>, vector<2048x8xf32>,
    return
  }
  func.func @transform_0(%arg0: i32) -> (i32, i32) {
    %c0_i32 = arith.constant 0 : i32
    %c0_i32_0 = arith.constant 0 : i32
    %c0_i32_1 = arith.constant 0 : i32
    return %c0_i32, %c0_i32_0 : i32, i32
  }
  func.func @transform_1(%arg0: i32) -> (i32, i32) {
    %c0_i32 = arith.constant 0 : i32
    %c0_i32_0 = arith.constant 0 : i32
    return %c0_i32, %arg0 : i32, i32
  }
  func.func @transform_2(%arg0: i32) -> (i32, i32) {
    %c0_i32 = arith.constant 0 : i32
    %c0_i32_0 = arith.constant 0 : i32
    return %c0_i32, %arg0 : i32, i32
  }
  func.func @transform_3(%arg0: i32) -> (i32, i32) {
    %c0_i32 = arith.constant 0 : i32
    %c0_i32_0 = arith.constant 0 : i32
    return %c0_i32, %arg0 : i32, i32
  }
  func.func @transform_4(%arg0: i32) -> (i32, i32) {
    %c0_i32 = arith.constant 0 : i32
    %c0_i32_0 = arith.constant 0 : i32
    return %c0_i32, %arg0 : i32, i32
  }
}

module attributes {stable_mosaic.version = 11 : i64} {
  func.func @_layer_kernel(%arg0: i32, %arg1: memref<512x72xbf16, #tpu.memory_space<vmem>>, %arg2: memref<72x16xbf16, #tpu.memory_space<vmem>>, %arg3: memref<1x16xf32, #tpu.memory_space<vmem>>, %arg4: memref<1x16xf32, #tpu.memory_space<vmem>>, %arg5: memref<512x16xf32, #tpu.memory_space<vmem>>) attributes {dimension_semantics = [#tpu.dimension_semantics<parallel>], iteration_bounds = array<i64: 1>, scalar_prefetch = 0 : i64, scratch_operands = 0 : i64, tpu.core_type = #tpu.core_type<tc>, window_params = [{pipeline_mode = #tpu.pipeline_mode<synchronous>, transform_indices = @transform_0, window_bounds = array<i64: 512, 72>}, {transform_indices = @transform_1, window_bounds = array<i64: 72, 16>}, {transform_indices = @transform_2, window_bounds = array<i64: 1, 16>}, {transform_indices = @transform_3, window_bounds = array<i64: 1, 16>}, {transform_indices = @transform_4, window_bounds = array<i64: 512, 16>}]} {
    %c0 = arith.constant 0 : index
    %c0_0 = arith.constant 0 : index
    %0 = vector.load %arg1[%c0, %c0_0] : memref<512x72xbf16, #tpu.memory_space<vmem>>, vector<512x72xbf16>
    %c0_1 = arith.constant 0 : index
    %c0_2 = arith.constant 0 : index
    %1 = vector.load %arg2[%c0_1, %c0_2] : memref<72x16xbf16, #tpu.memory_space<vmem>>, vector<72x16xbf16>
    %cst = arith.constant dense<0.000000e+00> : vector<512x16xf32>
    %2 = tpu.matmul %0, %1, %cst {dimension_numbers = #tpu.dot_dimension_numbers<[1], [0], [0], [1], [0, 0, 1, 1], [], []>} : vector<512x72xbf16>, vector<72x16xbf16>, vector<512x16xf32> -> vector<512x16xf32>
    %c0_3 = arith.constant 0 : index
    %c0_4 = arith.constant 0 : index
    %3 = vector.load %arg3[%c0_3, %c0_4] : memref<1x16xf32, #tpu.memory_space<vmem>>, vector<1x16xf32>
    %c0_5 = arith.constant 0 : index
    %c0_6 = arith.constant 0 : index
    %4 = vector.load %arg4[%c0_5, %c0_6] : memref<1x16xf32, #tpu.memory_space<vmem>>, vector<1x16xf32>
    %cst_7 = arith.constant dense<0.000000e+00> : vector<16xf32>
    %5 = vector.multi_reduction <add>, %2, %cst_7 [0] : vector<512x16xf32> to vector<16xf32>
    %6 = vector.shape_cast %5 : vector<16xf32> to vector<1x16xf32>
    %cst_8 = arith.constant 5.120000e+02 : f32
    %7 = vector.broadcast %cst_8 : f32 to vector<1x16xf32>
    %8 = arith.divf %6, %7 : vector<1x16xf32>
    %9 = vector.broadcast %8 : vector<1x16xf32> to vector<512x16xf32>
    %10 = arith.subf %2, %9 : vector<512x16xf32>
    %11 = arith.mulf %10, %10 : vector<512x16xf32>
    %cst_9 = arith.constant dense<0.000000e+00> : vector<16xf32>
    %12 = vector.multi_reduction <add>, %11, %cst_9 [0] : vector<512x16xf32> to vector<16xf32>
    %13 = vector.shape_cast %12 : vector<16xf32> to vector<1x16xf32>
    %cst_10 = arith.constant 5.120000e+02 : f32
    %14 = vector.broadcast %cst_10 : f32 to vector<1x16xf32>
    %15 = arith.divf %13, %14 : vector<1x16xf32>
    %cst_11 = arith.constant 9.99999974E-6 : f32
    %16 = vector.broadcast %cst_11 : f32 to vector<1x16xf32>
    %17 = arith.addf %15, %16 : vector<1x16xf32>
    %18 = math.rsqrt %17 : vector<1x16xf32>
    %19 = vector.broadcast %18 : vector<1x16xf32> to vector<512x16xf32>
    %20 = arith.mulf %10, %19 : vector<512x16xf32>
    %21 = vector.broadcast %3 : vector<1x16xf32> to vector<512x16xf32>
    %22 = arith.mulf %20, %21 : vector<512x16xf32>
    %23 = vector.broadcast %4 : vector<1x16xf32> to vector<512x16xf32>
    %24 = arith.addf %22, %23 : vector<512x16xf32>
    %cst_12 = arith.constant 0.000000e+00 : f32
    %25 = vector.broadcast %cst_12 : f32 to vector<512x16xf32>
    %26 = arith.cmpf oge, %24, %25 : vector<512x16xf32>
    %cst_13 = arith.constant 0.00999999977 : f32
    %27 = vector.broadcast %cst_13 : f32 to vector<512x16xf32>
    %28 = arith.mulf %27, %24 : vector<512x16xf32>
    %29 = arith.select %26, %24, %28 : vector<512x16xi1>, vector<512x16xf32>
    %c0_14 = arith.constant 0 : index
    %c0_15 = arith.constant 0 : index
    %30 = vector.load %arg5[%c0_14, %c0_15] : memref<512x16xf32, #tpu.memory_space<vmem>>, vector<512x16xf32>
    tpu.vector_store %arg5[%c0_14, %c0_15], %29 {strides = array<i32>} : memref<512x16xf32, #tpu.memory_space<vmem>>, vector<512x16xf32>,
    return
  }
  func.func @transform_0(%arg0: i32) -> (i32, i32) {
    %c0_i32 = arith.constant 0 : i32
    %c0_i32_0 = arith.constant 0 : i32
    %c0_i32_1 = arith.constant 0 : i32
    return %c0_i32, %c0_i32_0 : i32, i32
  }
  func.func @transform_1(%arg0: i32) -> (i32, i32) {
    %c0_i32 = arith.constant 0 : i32
    %c0_i32_0 = arith.constant 0 : i32
    return %c0_i32, %arg0 : i32, i32
  }
  func.func @transform_2(%arg0: i32) -> (i32, i32) {
    %c0_i32 = arith.constant 0 : i32
    %c0_i32_0 = arith.constant 0 : i32
    return %c0_i32, %arg0 : i32, i32
  }
  func.func @transform_3(%arg0: i32) -> (i32, i32) {
    %c0_i32 = arith.constant 0 : i32
    %c0_i32_0 = arith.constant 0 : i32
    return %c0_i32, %arg0 : i32, i32
  }
  func.func @transform_4(%arg0: i32) -> (i32, i32) {
    %c0_i32 = arith.constant 0 : i32
    %c0_i32_0 = arith.constant 0 : i32
    return %c0_i32, %arg0 : i32, i32
  }
}

module attributes {stable_mosaic.version = 11 : i64} {
  func.func @_layer_kernel(%arg0: i32, %arg1: memref<128x144xbf16, #tpu.memory_space<vmem>>, %arg2: memref<144x32xbf16, #tpu.memory_space<vmem>>, %arg3: memref<1x32xf32, #tpu.memory_space<vmem>>, %arg4: memref<1x32xf32, #tpu.memory_space<vmem>>, %arg5: memref<128x32xf32, #tpu.memory_space<vmem>>) attributes {dimension_semantics = [#tpu.dimension_semantics<parallel>], iteration_bounds = array<i64: 1>, scalar_prefetch = 0 : i64, scratch_operands = 0 : i64, tpu.core_type = #tpu.core_type<tc>, window_params = [{pipeline_mode = #tpu.pipeline_mode<synchronous>, transform_indices = @transform_0, window_bounds = array<i64: 128, 144>}, {transform_indices = @transform_1, window_bounds = array<i64: 144, 32>}, {transform_indices = @transform_2, window_bounds = array<i64: 1, 32>}, {transform_indices = @transform_3, window_bounds = array<i64: 1, 32>}, {transform_indices = @transform_4, window_bounds = array<i64: 128, 32>}]} {
    %c0 = arith.constant 0 : index
    %c0_0 = arith.constant 0 : index
    %0 = vector.load %arg1[%c0, %c0_0] : memref<128x144xbf16, #tpu.memory_space<vmem>>, vector<128x144xbf16>
    %c0_1 = arith.constant 0 : index
    %c0_2 = arith.constant 0 : index
    %1 = vector.load %arg2[%c0_1, %c0_2] : memref<144x32xbf16, #tpu.memory_space<vmem>>, vector<144x32xbf16>
    %cst = arith.constant dense<0.000000e+00> : vector<128x32xf32>
    %2 = tpu.matmul %0, %1, %cst {dimension_numbers = #tpu.dot_dimension_numbers<[1], [0], [0], [1], [0, 0, 1, 1], [], []>} : vector<128x144xbf16>, vector<144x32xbf16>, vector<128x32xf32> -> vector<128x32xf32>
    %c0_3 = arith.constant 0 : index
    %c0_4 = arith.constant 0 : index
    %3 = vector.load %arg3[%c0_3, %c0_4] : memref<1x32xf32, #tpu.memory_space<vmem>>, vector<1x32xf32>
    %c0_5 = arith.constant 0 : index
    %c0_6 = arith.constant 0 : index
    %4 = vector.load %arg4[%c0_5, %c0_6] : memref<1x32xf32, #tpu.memory_space<vmem>>, vector<1x32xf32>
    %cst_7 = arith.constant dense<0.000000e+00> : vector<32xf32>
    %5 = vector.multi_reduction <add>, %2, %cst_7 [0] : vector<128x32xf32> to vector<32xf32>
    %6 = vector.shape_cast %5 : vector<32xf32> to vector<1x32xf32>
    %cst_8 = arith.constant 1.280000e+02 : f32
    %7 = vector.broadcast %cst_8 : f32 to vector<1x32xf32>
    %8 = arith.divf %6, %7 : vector<1x32xf32>
    %9 = vector.broadcast %8 : vector<1x32xf32> to vector<128x32xf32>
    %10 = arith.subf %2, %9 : vector<128x32xf32>
    %11 = arith.mulf %10, %10 : vector<128x32xf32>
    %cst_9 = arith.constant dense<0.000000e+00> : vector<32xf32>
    %12 = vector.multi_reduction <add>, %11, %cst_9 [0] : vector<128x32xf32> to vector<32xf32>
    %13 = vector.shape_cast %12 : vector<32xf32> to vector<1x32xf32>
    %cst_10 = arith.constant 1.280000e+02 : f32
    %14 = vector.broadcast %cst_10 : f32 to vector<1x32xf32>
    %15 = arith.divf %13, %14 : vector<1x32xf32>
    %cst_11 = arith.constant 9.99999974E-6 : f32
    %16 = vector.broadcast %cst_11 : f32 to vector<1x32xf32>
    %17 = arith.addf %15, %16 : vector<1x32xf32>
    %18 = math.rsqrt %17 : vector<1x32xf32>
    %19 = vector.broadcast %18 : vector<1x32xf32> to vector<128x32xf32>
    %20 = arith.mulf %10, %19 : vector<128x32xf32>
    %21 = vector.broadcast %3 : vector<1x32xf32> to vector<128x32xf32>
    %22 = arith.mulf %20, %21 : vector<128x32xf32>
    %23 = vector.broadcast %4 : vector<1x32xf32> to vector<128x32xf32>
    %24 = arith.addf %22, %23 : vector<128x32xf32>
    %cst_12 = arith.constant 0.000000e+00 : f32
    %25 = vector.broadcast %cst_12 : f32 to vector<128x32xf32>
    %26 = arith.cmpf oge, %24, %25 : vector<128x32xf32>
    %cst_13 = arith.constant 0.00999999977 : f32
    %27 = vector.broadcast %cst_13 : f32 to vector<128x32xf32>
    %28 = arith.mulf %27, %24 : vector<128x32xf32>
    %29 = arith.select %26, %24, %28 : vector<128x32xi1>, vector<128x32xf32>
    %c0_14 = arith.constant 0 : index
    %c0_15 = arith.constant 0 : index
    %30 = vector.load %arg5[%c0_14, %c0_15] : memref<128x32xf32, #tpu.memory_space<vmem>>, vector<128x32xf32>
    tpu.vector_store %arg5[%c0_14, %c0_15], %29 {strides = array<i32>} : memref<128x32xf32, #tpu.memory_space<vmem>>, vector<128x32xf32>,
    return
  }
  func.func @transform_0(%arg0: i32) -> (i32, i32) {
    %c0_i32 = arith.constant 0 : i32
    %c0_i32_0 = arith.constant 0 : i32
    %c0_i32_1 = arith.constant 0 : i32
    return %c0_i32, %c0_i32_0 : i32, i32
  }
  func.func @transform_1(%arg0: i32) -> (i32, i32) {
    %c0_i32 = arith.constant 0 : i32
    %c0_i32_0 = arith.constant 0 : i32
    return %c0_i32, %arg0 : i32, i32
  }
  func.func @transform_2(%arg0: i32) -> (i32, i32) {
    %c0_i32 = arith.constant 0 : i32
    %c0_i32_0 = arith.constant 0 : i32
    return %c0_i32, %arg0 : i32, i32
  }
  func.func @transform_3(%arg0: i32) -> (i32, i32) {
    %c0_i32 = arith.constant 0 : i32
    %c0_i32_0 = arith.constant 0 : i32
    return %c0_i32, %arg0 : i32, i32
  }
  func.func @transform_4(%arg0: i32) -> (i32, i32) {
    %c0_i32 = arith.constant 0 : i32
    %c0_i32_0 = arith.constant 0 : i32
    return %c0_i32, %arg0 : i32, i32
  }
}

module attributes {stable_mosaic.version = 11 : i64} {
  func.func @_layer_kernel(%arg0: i32, %arg1: memref<32x288xbf16, #tpu.memory_space<vmem>>, %arg2: memref<288x64xbf16, #tpu.memory_space<vmem>>, %arg3: memref<1x64xf32, #tpu.memory_space<vmem>>, %arg4: memref<1x64xf32, #tpu.memory_space<vmem>>, %arg5: memref<32x64xf32, #tpu.memory_space<vmem>>) attributes {dimension_semantics = [#tpu.dimension_semantics<parallel>], iteration_bounds = array<i64: 1>, scalar_prefetch = 0 : i64, scratch_operands = 0 : i64, tpu.core_type = #tpu.core_type<tc>, window_params = [{pipeline_mode = #tpu.pipeline_mode<synchronous>, transform_indices = @transform_0, window_bounds = array<i64: 32, 288>}, {transform_indices = @transform_1, window_bounds = array<i64: 288, 64>}, {transform_indices = @transform_2, window_bounds = array<i64: 1, 64>}, {transform_indices = @transform_3, window_bounds = array<i64: 1, 64>}, {transform_indices = @transform_4, window_bounds = array<i64: 32, 64>}]} {
    %c0 = arith.constant 0 : index
    %c0_0 = arith.constant 0 : index
    %0 = vector.load %arg1[%c0, %c0_0] : memref<32x288xbf16, #tpu.memory_space<vmem>>, vector<32x288xbf16>
    %c0_1 = arith.constant 0 : index
    %c0_2 = arith.constant 0 : index
    %1 = vector.load %arg2[%c0_1, %c0_2] : memref<288x64xbf16, #tpu.memory_space<vmem>>, vector<288x64xbf16>
    %cst = arith.constant dense<0.000000e+00> : vector<32x64xf32>
    %2 = tpu.matmul %0, %1, %cst {dimension_numbers = #tpu.dot_dimension_numbers<[1], [0], [0], [1], [0, 0, 1, 1], [], []>} : vector<32x288xbf16>, vector<288x64xbf16>, vector<32x64xf32> -> vector<32x64xf32>
    %c0_3 = arith.constant 0 : index
    %c0_4 = arith.constant 0 : index
    %3 = vector.load %arg3[%c0_3, %c0_4] : memref<1x64xf32, #tpu.memory_space<vmem>>, vector<1x64xf32>
    %c0_5 = arith.constant 0 : index
    %c0_6 = arith.constant 0 : index
    %4 = vector.load %arg4[%c0_5, %c0_6] : memref<1x64xf32, #tpu.memory_space<vmem>>, vector<1x64xf32>
    %cst_7 = arith.constant dense<0.000000e+00> : vector<64xf32>
    %5 = vector.multi_reduction <add>, %2, %cst_7 [0] : vector<32x64xf32> to vector<64xf32>
    %6 = vector.shape_cast %5 : vector<64xf32> to vector<1x64xf32>
    %cst_8 = arith.constant 3.200000e+01 : f32
    %7 = vector.broadcast %cst_8 : f32 to vector<1x64xf32>
    %8 = arith.divf %6, %7 : vector<1x64xf32>
    %9 = vector.broadcast %8 : vector<1x64xf32> to vector<32x64xf32>
    %10 = arith.subf %2, %9 : vector<32x64xf32>
    %11 = arith.mulf %10, %10 : vector<32x64xf32>
    %cst_9 = arith.constant dense<0.000000e+00> : vector<64xf32>
    %12 = vector.multi_reduction <add>, %11, %cst_9 [0] : vector<32x64xf32> to vector<64xf32>
    %13 = vector.shape_cast %12 : vector<64xf32> to vector<1x64xf32>
    %cst_10 = arith.constant 3.200000e+01 : f32
    %14 = vector.broadcast %cst_10 : f32 to vector<1x64xf32>
    %15 = arith.divf %13, %14 : vector<1x64xf32>
    %cst_11 = arith.constant 9.99999974E-6 : f32
    %16 = vector.broadcast %cst_11 : f32 to vector<1x64xf32>
    %17 = arith.addf %15, %16 : vector<1x64xf32>
    %18 = math.rsqrt %17 : vector<1x64xf32>
    %19 = vector.broadcast %18 : vector<1x64xf32> to vector<32x64xf32>
    %20 = arith.mulf %10, %19 : vector<32x64xf32>
    %21 = vector.broadcast %3 : vector<1x64xf32> to vector<32x64xf32>
    %22 = arith.mulf %20, %21 : vector<32x64xf32>
    %23 = vector.broadcast %4 : vector<1x64xf32> to vector<32x64xf32>
    %24 = arith.addf %22, %23 : vector<32x64xf32>
    %cst_12 = arith.constant 0.000000e+00 : f32
    %25 = vector.broadcast %cst_12 : f32 to vector<32x64xf32>
    %26 = arith.cmpf oge, %24, %25 : vector<32x64xf32>
    %cst_13 = arith.constant 0.00999999977 : f32
    %27 = vector.broadcast %cst_13 : f32 to vector<32x64xf32>
    %28 = arith.mulf %27, %24 : vector<32x64xf32>
    %29 = arith.select %26, %24, %28 : vector<32x64xi1>, vector<32x64xf32>
    %c0_14 = arith.constant 0 : index
    %c0_15 = arith.constant 0 : index
    %30 = vector.load %arg5[%c0_14, %c0_15] : memref<32x64xf32, #tpu.memory_space<vmem>>, vector<32x64xf32>
    tpu.vector_store %arg5[%c0_14, %c0_15], %29 {strides = array<i32>} : memref<32x64xf32, #tpu.memory_space<vmem>>, vector<32x64xf32>,
    return
  }
  func.func @transform_0(%arg0: i32) -> (i32, i32) {
    %c0_i32 = arith.constant 0 : i32
    %c0_i32_0 = arith.constant 0 : i32
    %c0_i32_1 = arith.constant 0 : i32
    return %c0_i32, %c0_i32_0 : i32, i32
  }
  func.func @transform_1(%arg0: i32) -> (i32, i32) {
    %c0_i32 = arith.constant 0 : i32
    %c0_i32_0 = arith.constant 0 : i32
    return %c0_i32, %arg0 : i32, i32
  }
  func.func @transform_2(%arg0: i32) -> (i32, i32) {
    %c0_i32 = arith.constant 0 : i32
    %c0_i32_0 = arith.constant 0 : i32
    return %c0_i32, %arg0 : i32, i32
  }
  func.func @transform_3(%arg0: i32) -> (i32, i32) {
    %c0_i32 = arith.constant 0 : i32
    %c0_i32_0 = arith.constant 0 : i32
    return %c0_i32, %arg0 : i32, i32
  }
  func.func @transform_4(%arg0: i32) -> (i32, i32) {
    %c0_i32 = arith.constant 0 : i32
    %c0_i32_0 = arith.constant 0 : i32
    return %c0_i32, %arg0 : i32, i32
  }
}

module attributes {stable_mosaic.version = 11 : i64} {
  func.func @kernel(%arg0: i32, %arg1: memref<2x512xbf16, #tpu.memory_space<vmem>>, %arg2: memref<512x256xbf16, #tpu.memory_space<vmem>>, %arg3: memref<1x256xf32, #tpu.memory_space<vmem>>, %arg4: memref<1x256xf32, #tpu.memory_space<vmem>>, %arg5: memref<256x512xbf16, #tpu.memory_space<vmem>>, %arg6: memref<1x512xf32, #tpu.memory_space<vmem>>, %arg7: memref<1x512xf32, #tpu.memory_space<vmem>>, %arg8: memref<512x128xbf16, #tpu.memory_space<vmem>>, %arg9: memref<1x128xf32, #tpu.memory_space<vmem>>, %arg10: memref<1x128xf32, #tpu.memory_space<vmem>>, %arg11: memref<2x128xf32, #tpu.memory_space<vmem>>) attributes {dimension_semantics = [#tpu.dimension_semantics<parallel>], iteration_bounds = array<i64: 8>, scalar_prefetch = 0 : i64, scratch_operands = 0 : i64, tpu.core_type = #tpu.core_type<tc>, window_params = [{pipeline_mode = #tpu.pipeline_mode<synchronous>, transform_indices = @transform_0, window_bounds = array<i64: 2, 512>}, {pipeline_mode = #tpu.pipeline_mode<synchronous>, transform_indices = @transform_1, window_bounds = array<i64: 512, 256>}, {pipeline_mode = #tpu.pipeline_mode<synchronous>, transform_indices = @transform_2, window_bounds = array<i64: 1, 256>}, {pipeline_mode = #tpu.pipeline_mode<synchronous>, transform_indices = @transform_3, window_bounds = array<i64: 1, 256>}, {pipeline_mode = #tpu.pipeline_mode<synchronous>, transform_indices = @transform_4, window_bounds = array<i64: 256, 512>}, {pipeline_mode = #tpu.pipeline_mode<synchronous>, transform_indices = @transform_5, window_bounds = array<i64: 1, 512>}, {pipeline_mode = #tpu.pipeline_mode<synchronous>, transform_indices = @transform_6, window_bounds = array<i64: 1, 512>}, {transform_indices = @transform_7, window_bounds = array<i64: 512, 128>}, {transform_indices = @transform_8, window_bounds = array<i64: 1, 128>}, {transform_indices = @transform_9, window_bounds = array<i64: 1, 128>}, {transform_indices = @transform_10, window_bounds = array<i64: 2, 128>}]} {
    %c0 = arith.constant 0 : index
    %c0_0 = arith.constant 0 : index
    %0 = vector.load %arg1[%c0, %c0_0] : memref<2x512xbf16, #tpu.memory_space<vmem>>, vector<2x512xbf16>
    %c0_1 = arith.constant 0 : index
    %c0_2 = arith.constant 0 : index
    %1 = vector.load %arg2[%c0_1, %c0_2] : memref<512x256xbf16, #tpu.memory_space<vmem>>, vector<512x256xbf16>
    %cst = arith.constant dense<0.000000e+00> : vector<2x256xf32>
    %2 = tpu.matmul %0, %1, %cst {dimension_numbers = #tpu.dot_dimension_numbers<[1], [0], [0], [1], [0, 0, 1, 1], [], []>} : vector<2x512xbf16>, vector<512x256xbf16>, vector<2x256xf32> -> vector<2x256xf32>
    %c0_3 = arith.constant 0 : index
    %c0_4 = arith.constant 0 : index
    %3 = vector.load %arg3[%c0_3, %c0_4] : memref<1x256xf32, #tpu.memory_space<vmem>>, vector<1x256xf32>
    %c0_5 = arith.constant 0 : index
    %c0_6 = arith.constant 0 : index
    %4 = vector.load %arg4[%c0_5, %c0_6] : memref<1x256xf32, #tpu.memory_space<vmem>>, vector<1x256xf32>
    %cst_7 = arith.constant dense<0.000000e+00> : vector<256xf32>
    %5 = vector.multi_reduction <add>, %2, %cst_7 [0] : vector<2x256xf32> to vector<256xf32>
    %6 = vector.shape_cast %5 : vector<256xf32> to vector<1x256xf32>
    %cst_8 = arith.constant 2.000000e+00 : f32
    %7 = vector.broadcast %cst_8 : f32 to vector<1x256xf32>
    %8 = arith.divf %6, %7 : vector<1x256xf32>
    %9 = vector.broadcast %8 : vector<1x256xf32> to vector<2x256xf32>
    %10 = arith.subf %2, %9 : vector<2x256xf32>
    %11 = arith.mulf %10, %10 : vector<2x256xf32>
    %cst_9 = arith.constant dense<0.000000e+00> : vector<256xf32>
    %12 = vector.multi_reduction <add>, %11, %cst_9 [0] : vector<2x256xf32> to vector<256xf32>
    %13 = vector.shape_cast %12 : vector<256xf32> to vector<1x256xf32>
    %cst_10 = arith.constant 2.000000e+00 : f32
    %14 = vector.broadcast %cst_10 : f32 to vector<1x256xf32>
    %15 = arith.divf %13, %14 : vector<1x256xf32>
    %cst_11 = arith.constant 9.99999974E-6 : f32
    %16 = vector.broadcast %cst_11 : f32 to vector<1x256xf32>
    %17 = arith.addf %15, %16 : vector<1x256xf32>
    %18 = math.rsqrt %17 : vector<1x256xf32>
    %19 = vector.broadcast %18 : vector<1x256xf32> to vector<2x256xf32>
    %20 = arith.mulf %10, %19 : vector<2x256xf32>
    %21 = vector.broadcast %3 : vector<1x256xf32> to vector<2x256xf32>
    %22 = arith.mulf %20, %21 : vector<2x256xf32>
    %23 = vector.broadcast %4 : vector<1x256xf32> to vector<2x256xf32>
    %24 = arith.addf %22, %23 : vector<2x256xf32>
    %cst_12 = arith.constant 0.000000e+00 : f32
    %25 = vector.broadcast %cst_12 : f32 to vector<2x256xf32>
    %26 = arith.cmpf oge, %24, %25 : vector<2x256xf32>
    %cst_13 = arith.constant 0.00999999977 : f32
    %27 = vector.broadcast %cst_13 : f32 to vector<2x256xf32>
    %28 = arith.mulf %27, %24 : vector<2x256xf32>
    %29 = arith.select %26, %24, %28 : vector<2x256xi1>, vector<2x256xf32>
    %30 = arith.truncf %29 : vector<2x256xf32> to vector<2x256xbf16>
    %c0_14 = arith.constant 0 : index
    %c0_15 = arith.constant 0 : index
    %31 = vector.load %arg5[%c0_14, %c0_15] : memref<256x512xbf16, #tpu.memory_space<vmem>>, vector<256x512xbf16>
    %cst_16 = arith.constant dense<0.000000e+00> : vector<2x512xf32>
    %32 = tpu.matmul %30, %31, %cst_16 {dimension_numbers = #tpu.dot_dimension_numbers<[1], [0], [0], [1], [0, 0, 1, 1], [], []>} : vector<2x256xbf16>, vector<256x512xbf16>, vector<2x512xf32> -> vector<2x512xf32>
    %c0_17 = arith.constant 0 : index
    %c0_18 = arith.constant 0 : index
    %33 = vector.load %arg6[%c0_17, %c0_18] : memref<1x512xf32, #tpu.memory_space<vmem>>, vector<1x512xf32>
    %c0_19 = arith.constant 0 : index
    %c0_20 = arith.constant 0 : index
    %34 = vector.load %arg7[%c0_19, %c0_20] : memref<1x512xf32, #tpu.memory_space<vmem>>, vector<1x512xf32>
    %cst_21 = arith.constant dense<0.000000e+00> : vector<512xf32>
    %35 = vector.multi_reduction <add>, %32, %cst_21 [0] : vector<2x512xf32> to vector<512xf32>
    %36 = vector.shape_cast %35 : vector<512xf32> to vector<1x512xf32>
    %cst_22 = arith.constant 2.000000e+00 : f32
    %37 = vector.broadcast %cst_22 : f32 to vector<1x512xf32>
    %38 = arith.divf %36, %37 : vector<1x512xf32>
    %39 = vector.broadcast %38 : vector<1x512xf32> to vector<2x512xf32>
    %40 = arith.subf %32, %39 : vector<2x512xf32>
    %41 = arith.mulf %40, %40 : vector<2x512xf32>
    %cst_23 = arith.constant dense<0.000000e+00> : vector<512xf32>
    %42 = vector.multi_reduction <add>, %41, %cst_23 [0] : vector<2x512xf32> to vector<512xf32>
    %43 = vector.shape_cast %42 : vector<512xf32> to vector<1x512xf32>
    %cst_24 = arith.constant 2.000000e+00 : f32
    %44 = vector.broadcast %cst_24 : f32 to vector<1x512xf32>
    %45 = arith.divf %43, %44 : vector<1x512xf32>
    %cst_25 = arith.constant 9.99999974E-6 : f32
    %46 = vector.broadcast %cst_25 : f32 to vector<1x512xf32>
    %47 = arith.addf %45, %46 : vector<1x512xf32>
    %48 = math.rsqrt %47 : vector<1x512xf32>
    %49 = vector.broadcast %48 : vector<1x512xf32> to vector<2x512xf32>
    %50 = arith.mulf %40, %49 : vector<2x512xf32>
    %51 = vector.broadcast %33 : vector<1x512xf32> to vector<2x512xf32>
    %52 = arith.mulf %50, %51 : vector<2x512xf32>
    %53 = vector.broadcast %34 : vector<1x512xf32> to vector<2x512xf32>
    %54 = arith.addf %52, %53 : vector<2x512xf32>
    %cst_26 = arith.constant 0.000000e+00 : f32
    %55 = vector.broadcast %cst_26 : f32 to vector<2x512xf32>
    %56 = arith.cmpf oge, %54, %55 : vector<2x512xf32>
    %cst_27 = arith.constant 0.00999999977 : f32
    %57 = vector.broadcast %cst_27 : f32 to vector<2x512xf32>
    %58 = arith.mulf %57, %54 : vector<2x512xf32>
    %59 = arith.select %56, %54, %58 : vector<2x512xi1>, vector<2x512xf32>
    %60 = arith.truncf %59 : vector<2x512xf32> to vector<2x512xbf16>
    %c0_28 = arith.constant 0 : index
    %c0_29 = arith.constant 0 : index
    %61 = vector.load %arg8[%c0_28, %c0_29] : memref<512x128xbf16, #tpu.memory_space<vmem>>, vector<512x128xbf16>
    %cst_30 = arith.constant dense<0.000000e+00> : vector<2x128xf32>
    %62 = tpu.matmul %60, %61, %cst_30 {dimension_numbers = #tpu.dot_dimension_numbers<[1], [0], [0], [1], [0, 0, 1, 1], [], []>} : vector<2x512xbf16>, vector<512x128xbf16>, vector<2x128xf32> -> vector<2x128xf32>
    %c0_31 = arith.constant 0 : index
    %c0_32 = arith.constant 0 : index
    %63 = vector.load %arg9[%c0_31, %c0_32] : memref<1x128xf32, #tpu.memory_space<vmem>>, vector<1x128xf32>
    %c0_33 = arith.constant 0 : index
    %c0_34 = arith.constant 0 : index
    %64 = vector.load %arg10[%c0_33, %c0_34] : memref<1x128xf32, #tpu.memory_space<vmem>>, vector<1x128xf32>
    %cst_35 = arith.constant dense<0.000000e+00> : vector<128xf32>
    %65 = vector.multi_reduction <add>, %62, %cst_35 [0] : vector<2x128xf32> to vector<128xf32>
    %66 = vector.shape_cast %65 : vector<128xf32> to vector<1x128xf32>
    %cst_36 = arith.constant 2.000000e+00 : f32
    %67 = vector.broadcast %cst_36 : f32 to vector<1x128xf32>
    %68 = arith.divf %66, %67 : vector<1x128xf32>
    %69 = vector.broadcast %68 : vector<1x128xf32> to vector<2x128xf32>
    %70 = arith.subf %62, %69 : vector<2x128xf32>
    %71 = arith.mulf %70, %70 : vector<2x128xf32>
    %cst_37 = arith.constant dense<0.000000e+00> : vector<128xf32>
    %72 = vector.multi_reduction <add>, %71, %cst_37 [0] : vector<2x128xf32> to vector<128xf32>
    %73 = vector.shape_cast %72 : vector<128xf32> to vector<1x128xf32>
    %cst_38 = arith.constant 2.000000e+00 : f32
    %74 = vector.broadcast %cst_38 : f32 to vector<1x128xf32>
    %75 = arith.divf %73, %74 : vector<1x128xf32>
    %cst_39 = arith.constant 9.99999974E-6 : f32
    %76 = vector.broadcast %cst_39 : f32 to vector<1x128xf32>
    %77 = arith.addf %75, %76 : vector<1x128xf32>
    %78 = math.rsqrt %77 : vector<1x128xf32>
    %79 = vector.broadcast %78 : vector<1x128xf32> to vector<2x128xf32>
    %80 = arith.mulf %70, %79 : vector<2x128xf32>
    %81 = vector.broadcast %63 : vector<1x128xf32> to vector<2x128xf32>
    %82 = arith.mulf %80, %81 : vector<2x128xf32>
    %83 = vector.broadcast %64 : vector<1x128xf32> to vector<2x128xf32>
    %84 = arith.addf %82, %83 : vector<2x128xf32>
    %cst_40 = arith.constant 0.000000e+00 : f32
    %85 = vector.broadcast %cst_40 : f32 to vector<2x128xf32>
    %86 = arith.cmpf oge, %84, %85 : vector<2x128xf32>
    %cst_41 = arith.constant 0.00999999977 : f32
    %87 = vector.broadcast %cst_41 : f32 to vector<2x128xf32>
    %88 = arith.mulf %87, %84 : vector<2x128xf32>
    %89 = arith.select %86, %84, %88 : vector<2x128xi1>, vector<2x128xf32>
    %c0_42 = arith.constant 0 : index
    %c0_43 = arith.constant 0 : index
    %90 = vector.load %arg11[%c0_42, %c0_43] : memref<2x128xf32, #tpu.memory_space<vmem>>, vector<2x128xf32>
    tpu.vector_store %arg11[%c0_42, %c0_43], %89 {strides = array<i32>} : memref<2x128xf32, #tpu.memory_space<vmem>>, vector<2x128xf32>,
    return
  }
  func.func @transform_0(%arg0: i32) -> (i32, i32) {
    %c0_i32 = arith.constant 0 : i32
    %c0_i32_0 = arith.constant 0 : i32
    %c0_i32_1 = arith.constant 0 : i32
    return %c0_i32, %c0_i32_0 : i32, i32
  }
  func.func @transform_1(%arg0: i32) -> (i32, i32) {
    %c0_i32 = arith.constant 0 : i32
    %c0_i32_0 = arith.constant 0 : i32
    %c0_i32_1 = arith.constant 0 : i32
    return %c0_i32, %c0_i32_0 : i32, i32
  }
  func.func @transform_2(%arg0: i32) -> (i32, i32) {
    %c0_i32 = arith.constant 0 : i32
    %c0_i32_0 = arith.constant 0 : i32
    %c0_i32_1 = arith.constant 0 : i32
    return %c0_i32, %c0_i32_0 : i32, i32
  }
  func.func @transform_3(%arg0: i32) -> (i32, i32) {
    %c0_i32 = arith.constant 0 : i32
    %c0_i32_0 = arith.constant 0 : i32
    %c0_i32_1 = arith.constant 0 : i32
    return %c0_i32, %c0_i32_0 : i32, i32
  }
  func.func @transform_4(%arg0: i32) -> (i32, i32) {
    %c0_i32 = arith.constant 0 : i32
    %c0_i32_0 = arith.constant 0 : i32
    %c0_i32_1 = arith.constant 0 : i32
    return %c0_i32, %c0_i32_0 : i32, i32
  }
  func.func @transform_5(%arg0: i32) -> (i32, i32) {
    %c0_i32 = arith.constant 0 : i32
    %c0_i32_0 = arith.constant 0 : i32
    %c0_i32_1 = arith.constant 0 : i32
    return %c0_i32, %c0_i32_0 : i32, i32
  }
  func.func @transform_6(%arg0: i32) -> (i32, i32) {
    %c0_i32 = arith.constant 0 : i32
    %c0_i32_0 = arith.constant 0 : i32
    %c0_i32_1 = arith.constant 0 : i32
    return %c0_i32, %c0_i32_0 : i32, i32
  }
  func.func @transform_7(%arg0: i32) -> (i32, i32) {
    %c0_i32 = arith.constant 0 : i32
    %c0_i32_0 = arith.constant 0 : i32
    return %c0_i32, %arg0 : i32, i32
  }
  func.func @transform_8(%arg0: i32) -> (i32, i32) {
    %c0_i32 = arith.constant 0 : i32
    %c0_i32_0 = arith.constant 0 : i32
    return %c0_i32, %arg0 : i32, i32
  }
  func.func @transform_9(%arg0: i32) -> (i32, i32) {
    %c0_i32 = arith.constant 0 : i32
    %c0_i32_0 = arith.constant 0 : i32
    return %c0_i32, %arg0 : i32, i32
  }
  func.func @transform_10(%arg0: i32) -> (i32, i32) {
    %c0_i32 = arith.constant 0 : i32
    %c0_i32_0 = arith.constant 0 : i32
    return %c0_i32, %arg0 : i32, i32
  }
}

module attributes {stable_mosaic.version = 11 : i64} {
  func.func @_layer_kernel(%arg0: i32, %arg1: memref<8x576xbf16, #tpu.memory_space<vmem>>, %arg2: memref<576x128xbf16, #tpu.memory_space<vmem>>, %arg3: memref<1x128xf32, #tpu.memory_space<vmem>>, %arg4: memref<1x128xf32, #tpu.memory_space<vmem>>, %arg5: memref<8x128xf32, #tpu.memory_space<vmem>>) attributes {dimension_semantics = [#tpu.dimension_semantics<parallel>], iteration_bounds = array<i64: 1>, scalar_prefetch = 0 : i64, scratch_operands = 0 : i64, tpu.core_type = #tpu.core_type<tc>, window_params = [{pipeline_mode = #tpu.pipeline_mode<synchronous>, transform_indices = @transform_0, window_bounds = array<i64: 8, 576>}, {transform_indices = @transform_1, window_bounds = array<i64: 576, 128>}, {transform_indices = @transform_2, window_bounds = array<i64: 1, 128>}, {transform_indices = @transform_3, window_bounds = array<i64: 1, 128>}, {transform_indices = @transform_4, window_bounds = array<i64: 8, 128>}]} {
    %c0 = arith.constant 0 : index
    %c0_0 = arith.constant 0 : index
    %0 = vector.load %arg1[%c0, %c0_0] : memref<8x576xbf16, #tpu.memory_space<vmem>>, vector<8x576xbf16>
    %c0_1 = arith.constant 0 : index
    %c0_2 = arith.constant 0 : index
    %1 = vector.load %arg2[%c0_1, %c0_2] : memref<576x128xbf16, #tpu.memory_space<vmem>>, vector<576x128xbf16>
    %cst = arith.constant dense<0.000000e+00> : vector<8x128xf32>
    %2 = tpu.matmul %0, %1, %cst {dimension_numbers = #tpu.dot_dimension_numbers<[1], [0], [0], [1], [0, 0, 1, 1], [], []>} : vector<8x576xbf16>, vector<576x128xbf16>, vector<8x128xf32> -> vector<8x128xf32>
    %c0_3 = arith.constant 0 : index
    %c0_4 = arith.constant 0 : index
    %3 = vector.load %arg3[%c0_3, %c0_4] : memref<1x128xf32, #tpu.memory_space<vmem>>, vector<1x128xf32>
    %c0_5 = arith.constant 0 : index
    %c0_6 = arith.constant 0 : index
    %4 = vector.load %arg4[%c0_5, %c0_6] : memref<1x128xf32, #tpu.memory_space<vmem>>, vector<1x128xf32>
    %cst_7 = arith.constant dense<0.000000e+00> : vector<128xf32>
    %5 = vector.multi_reduction <add>, %2, %cst_7 [0] : vector<8x128xf32> to vector<128xf32>
    %6 = vector.shape_cast %5 : vector<128xf32> to vector<1x128xf32>
    %cst_8 = arith.constant 8.000000e+00 : f32
    %7 = vector.broadcast %cst_8 : f32 to vector<1x128xf32>
    %8 = arith.divf %6, %7 : vector<1x128xf32>
    %9 = vector.broadcast %8 : vector<1x128xf32> to vector<8x128xf32>
    %10 = arith.subf %2, %9 : vector<8x128xf32>
    %11 = arith.mulf %10, %10 : vector<8x128xf32>
    %cst_9 = arith.constant dense<0.000000e+00> : vector<128xf32>
    %12 = vector.multi_reduction <add>, %11, %cst_9 [0] : vector<8x128xf32> to vector<128xf32>
    %13 = vector.shape_cast %12 : vector<128xf32> to vector<1x128xf32>
    %cst_10 = arith.constant 8.000000e+00 : f32
    %14 = vector.broadcast %cst_10 : f32 to vector<1x128xf32>
    %15 = arith.divf %13, %14 : vector<1x128xf32>
    %cst_11 = arith.constant 9.99999974E-6 : f32
    %16 = vector.broadcast %cst_11 : f32 to vector<1x128xf32>
    %17 = arith.addf %15, %16 : vector<1x128xf32>
    %18 = math.rsqrt %17 : vector<1x128xf32>
    %19 = vector.broadcast %18 : vector<1x128xf32> to vector<8x128xf32>
    %20 = arith.mulf %10, %19 : vector<8x128xf32>
    %21 = vector.broadcast %3 : vector<1x128xf32> to vector<8x128xf32>
    %22 = arith.mulf %20, %21 : vector<8x128xf32>
    %23 = vector.broadcast %4 : vector<1x128xf32> to vector<8x128xf32>
    %24 = arith.addf %22, %23 : vector<8x128xf32>
    %cst_12 = arith.constant 0.000000e+00 : f32
    %25 = vector.broadcast %cst_12 : f32 to vector<8x128xf32>
    %26 = arith.cmpf oge, %24, %25 : vector<8x128xf32>
    %cst_13 = arith.constant 0.00999999977 : f32
    %27 = vector.broadcast %cst_13 : f32 to vector<8x128xf32>
    %28 = arith.mulf %27, %24 : vector<8x128xf32>
    %29 = arith.select %26, %24, %28 : vector<8x128xi1>, vector<8x128xf32>
    %c0_14 = arith.constant 0 : index
    %c0_15 = arith.constant 0 : index
    %30 = vector.load %arg5[%c0_14, %c0_15] : memref<8x128xf32, #tpu.memory_space<vmem>>, vector<8x128xf32>
    tpu.vector_store %arg5[%c0_14, %c0_15], %29 {strides = array<i32>} : memref<8x128xf32, #tpu.memory_space<vmem>>, vector<8x128xf32>,
    return
  }
  func.func @transform_0(%arg0: i32) -> (i32, i32) {
    %c0_i32 = arith.constant 0 : i32
    %c0_i32_0 = arith.constant 0 : i32
    %c0_i32_1 = arith.constant 0 : i32
    return %c0_i32, %c0_i32_0 : i32, i32
  }
  func.func @transform_1(%arg0: i32) -> (i32, i32) {
    %c0_i32 = arith.constant 0 : i32
    %c0_i32_0 = arith.constant 0 : i32
    return %c0_i32, %arg0 : i32, i32
  }
  func.func @transform_2(%arg0: i32) -> (i32, i32) {
    %c0_i32 = arith.constant 0 : i32
    %c0_i32_0 = arith.constant 0 : i32
    return %c0_i32, %arg0 : i32, i32
  }
  func.func @transform_3(%arg0: i32) -> (i32, i32) {
    %c0_i32 = arith.constant 0 : i32
    %c0_i32_0 = arith.constant 0 : i32
    return %c0_i32, %arg0 : i32, i32
  }
  func.func @transform_4(%arg0: i32) -> (i32, i32) {
    %c0_i32 = arith.constant 0 : i32
    %c0_i32_0 = arith.constant 0 : i32
    return %c0_i32, %arg0 : i32, i32
  }
}

</mosaic_0001>

<llo_original>
// kernel: _lambda_.6
$region0: #{_lambda_.6}
  #allocation0 [shape = 'u32[]', space=smem, size = 0x4, offset = 0x4, fixed_abs, tag = 'smem constant byte address 0x4 - core index']
  #allocation1 [shape = 'u32[72,128]{1,0:T(1,128)}', space=vmem, size = 0x9000, scoped, tag = 'internal scratch']
  %s0 = inlined_call_operand.vmem [shape: bf16[2048,27], index: 0, kind: input, shape index: {}]
  %s1 = inlined_call_operand.vmem [shape: bf16[27,8], index: 1, kind: input, shape index: {}]
  %s2 = inlined_call_operand.vmem [shape: f32[1,8], index: 2, kind: input, shape index: {}]
  %s3 = inlined_call_operand.vmem [shape: f32[1,8], index: 3, kind: input, shape index: {}]
  %s4 = inlined_call_operand.vmem [shape: f32[2048,8], index: 4, kind: output, shape index: {}]
  %s5 = sld [smem:[#allocation0]]
  $region26: #{_lambda_.6} parent=0
    _
  %s7 = ssub.s32 1, %s5
  %s8 = scalar_select 0, %s7, %s5
  // Predicated region
  $region2: #{_lambda_.6} parent=0 // pred_check
    _
  $region3: #{_lambda_.6} parent=0 // pred_check_branch
    %10 = sbr.rel (0) target = $region5
  $region4: #{_lambda_.6} parent=0 // pred_region
    _
  $region5: #{_lambda_.6} parent=0 // pred_fallthru
    _
  // Predicated region
  $region6: #{_lambda_.6} parent=0 // pred_check
    _
  $region7: #{_lambda_.6} parent=0 // pred_check_branch
    %12 = sbr.rel (0) target = $region9
  $region8: #{_lambda_.6} parent=0 // pred_region
    _
  $region9: #{_lambda_.6} parent=0 // pred_fallthru
    _
  // Predicated region
  $region10: #{_lambda_.6} parent=0 // pred_check
    _
  $region11: #{_lambda_.6} parent=0 // pred_check_branch
    %14 = sbr.rel (0) target = $region13
  $region12: #{_lambda_.6} parent=0 // pred_region
    _
  $region13: #{_lambda_.6} parent=0 // pred_fallthru
    _
  // Predicated region
  $region14: #{_lambda_.6} parent=0 // pred_check
    _
  $region15: #{_lambda_.6} parent=0 // pred_check_branch
    %16 = sbr.rel (0) target = $region17
  $region16: #{_lambda_.6} parent=0 // pred_region
    _
  $region17: #{_lambda_.6} parent=0 // pred_fallthru
    _
  %v18 = vld [vmem:[%s0] sm:$0xf]
  %v19 = vld [vmem:[%s0 + $0x4] sm:$0xf]
  %v20 = vld [vmem:[%s0 + $0x8] sm:$0xf]
  %v21 = vld [vmem:[%s0 + $0xc] sm:$0xf]
  %v22 = vld [vmem:[%s0 + $0x10] sm:$0xf]
  %v23 = vld [vmem:[%s0 + $0x14] sm:$0xf]
  %v24 = vld [vmem:[%s0 + $0x18] sm:$0xf]
  %v25 = vld [vmem:[%s0 + $0x1c] sm:$0xf]
  %v26 = vld [vmem:[%s0 + $0x20] sm:$0xf]
  %v27 = vld [vmem:[%s0 + $0x24] sm:$0xf]
  %v28 = vld [vmem:[%s0 + $0x28] sm:$0xf]
  %v29 = vld [vmem:[%s0 + $0x2c] sm:$0xf]
  %v30 = vld [vmem:[%s0 + $0x30] sm:$0xf]
  %v31 = vld [vmem:[%s0 + $0x34] sm:$0xf]
  %v32 = vld [vmem:[%s0 + $0x38] sm:$0xf]
  %v33 = vld [vmem:[%s0 + $0x3c] sm:$0xf]
  %v34 = vld [vmem:[%s0 + $0x40] sm:$0xf]
  %v35 = vld [vmem:[%s0 + $0x44] sm:$0xf]
  %v36 = vld [vmem:[%s0 + $0x48] sm:$0xf]
  %v37 = vld [vmem:[%s0 + $0x4c] sm:$0xf]
  %v38 = vld [vmem:[%s0 + $0x50] sm:$0xf]
  %v39 = vld [vmem:[%s0 + $0x54] sm:$0xf]
  %v40 = vld [vmem:[%s0 + $0x58] sm:$0xf]
  %v41 = vld [vmem:[%s0 + $0x5c] sm:$0xf]
  %v42 = vld [vmem:[%s0 + $0x60] sm:$0xf]
  %v43 = vld [vmem:[%s0 + $0x64] sm:$0xf]
  %v44 = vld [vmem:[%s0 + $0x68] sm:$0xf]
  %v45 = vld [vmem:[%s0 + $0x6c] sm:$0xf]
  %v46 = vld [vmem:[%s0 + $0x70] sm:$0xf]
  %v47 = vld [vmem:[%s0 + $0x74] sm:$0xf]
  %v48 = vld [vmem:[%s0 + $0x78] sm:$0xf]
  %v49 = vld [vmem:[%s0 + $0x7c] sm:$0xf]
  %v50 = vld [vmem:[%s0 + $0x80] sm:$0xf]
  %v51 = vld [vmem:[%s0 + $0x84] sm:$0xf]
  %v52 = vld [vmem:[%s0 + $0x88] sm:$0xf]
  %v53 = vld [vmem:[%s0 + $0x8c] sm:$0xf]
  %v54 = vld [vmem:[%s0 + $0x90] sm:$0xf]
  %v55 = vld [vmem:[%s0 + $0x94] sm:$0xf]
  %v56 = vld [vmem:[%s0 + $0x98] sm:$0xf]
  %v57 = vld [vmem:[%s0 + $0x9c] sm:$0xf]
  %v58 = vld [vmem:[%s0 + $0xa0] sm:$0xf]
  %v59 = vld [vmem:[%s0 + $0xa4] sm:$0xf]
  %v60 = vld [vmem:[%s0 + $0xa8] sm:$0xf]
  %v61 = vld [vmem:[%s0 + $0xac] sm:$0xf]
  %v62 = vld [vmem:[%s0 + $0xb0] sm:$0xf]
  %v63 = vld [vmem:[%s0 + $0xb4] sm:$0xf]
  %v64 = vld [vmem:[%s0 + $0xb8] sm:$0xf]
  %v65 = vld [vmem:[%s0 + $0xbc] sm:$0xf]
  %v66 = vld [vmem:[%s0 + $0xc0] sm:$0xf]
  %v67 = vld [vmem:[%s0 + $0xc4] sm:$0xf]
  %v68 = vld [vmem:[%s0 + $0xc8] sm:$0xf]
  %v69 = vld [vmem:[%s0 + $0xcc] sm:$0xf]
  %v70 = vld [vmem:[%s0 + $0xd0] sm:$0xf]
  %v71 = vld [vmem:[%s0 + $0xd4] sm:$0xf]
  %v72 = vld [vmem:[%s0 + $0xd8] sm:$0xf]
  %v73 = vld [vmem:[%s0 + $0xdc] sm:$0xf]
  %v74 = vld [vmem:[%s0 + $0xe0] sm:$0xf]
  %v75 = vld [vmem:[%s0 + $0xe4] sm:$0xf]
  %v76 = vld [vmem:[%s0 + $0xe8] sm:$0xf]
  %v77 = vld [vmem:[%s0 + $0xec] sm:$0xf]
  %v78 = vld [vmem:[%s0 + $0xf0] sm:$0xf]
  %v79 = vld [vmem:[%s0 + $0xf4] sm:$0xf]
  %v80 = vld [vmem:[%s0 + $0xf8] sm:$0xf]
  %v81 = vld [vmem:[%s0 + $0xfc] sm:$0xf]
  %v82 = vld [vmem:[%s0 + $0x100] sm:$0xf]
  %v83 = vld [vmem:[%s0 + $0x104] sm:$0xf]
  %v84 = vld [vmem:[%s0 + $0x108] sm:$0xf]
  %v85 = vld [vmem:[%s0 + $0x10c] sm:$0xf]
  %v86 = vld [vmem:[%s0 + $0x110] sm:$0xf]
  %v87 = vld [vmem:[%s0 + $0x114] sm:$0xf]
  %v88 = vld [vmem:[%s0 + $0x118] sm:$0xf]
  %v89 = vld [vmem:[%s0 + $0x11c] sm:$0xf]
  %v90 = vld [vmem:[%s0 + $0x120] sm:$0xf]
  %v91 = vld [vmem:[%s0 + $0x124] sm:$0xf]
  %v92 = vld [vmem:[%s0 + $0x128] sm:$0xf]
  %v93 = vld [vmem:[%s0 + $0x12c] sm:$0xf]
  %v94 = vld [vmem:[%s0 + $0x130] sm:$0xf]
  %v95 = vld [vmem:[%s0 + $0x134] sm:$0xf]
  %v96 = vld [vmem:[%s0 + $0x138] sm:$0xf]
  %v97 = vld [vmem:[%s0 + $0x13c] sm:$0xf]
  %v98 = vld [vmem:[%s0 + $0x140] sm:$0xf]
  %v99 = vld [vmem:[%s0 + $0x144] sm:$0xf]
  %v100 = vld [vmem:[%s0 + $0x148] sm:$0xf]
  %v101 = vld [vmem:[%s0 + $0x14c] sm:$0xf]
  %v102 = vld [vmem:[%s0 + $0x150] sm:$0xf]
  %v103 = vld [vmem:[%s0 + $0x154] sm:$0xf]
  %v104 = vld [vmem:[%s0 + $0x158] sm:$0xf]
  %v105 = vld [vmem:[%s0 + $0x15c] sm:$0xf]
  %v106 = vld [vmem:[%s0 + $0x160] sm:$0xf]
  %v107 = vld [vmem:[%s0 + $0x164] sm:$0xf]
  %v108 = vld [vmem:[%s0 + $0x168] sm:$0xf]
  %v109 = vld [vmem:[%s0 + $0x16c] sm:$0xf]
  %v110 = vld [vmem:[%s0 + $0x170] sm:$0xf]
  %v111 = vld [vmem:[%s0 + $0x174] sm:$0xf]
  %v112 = vld [vmem:[%s0 + $0x178] sm:$0xf]
  %v113 = vld [vmem:[%s0 + $0x17c] sm:$0xf]
  %v114 = vld [vmem:[%s0 + $0x180] sm:$0xf]
  %v115 = vld [vmem:[%s0 + $0x184] sm:$0xf]
  %v116 = vld [vmem:[%s0 + $0x188] sm:$0xf]
  %v117 = vld [vmem:[%s0 + $0x18c] sm:$0xf]
  %v118 = vld [vmem:[%s0 + $0x190] sm:$0xf]
  %v119 = vld [vmem:[%s0 + $0x194] sm:$0xf]
  %v120 = vld [vmem:[%s0 + $0x198] sm:$0xf]
  %v121 = vld [vmem:[%s0 + $0x19c] sm:$0xf]
  %v122 = vld [vmem:[%s0 + $0x1a0] sm:$0xf]
  %v123 = vld [vmem:[%s0 + $0x1a4] sm:$0xf]
  %v124 = vld [vmem:[%s0 + $0x1a8] sm:$0xf]
  %v125 = vld [vmem:[%s0 + $0x1ac] sm:$0xf]
  %v126 = vld [vmem:[%s0 + $0x1b0] sm:$0xf]
  %v127 = vld [vmem:[%s0 + $0x1b4] sm:$0xf]
  %v128 = vld [vmem:[%s0 + $0x1b8] sm:$0xf]
  %v129 = vld [vmem:[%s0 + $0x1bc] sm:$0xf]
  %v130 = vld [vmem:[%s0 + $0x1c0] sm:$0xf]
  %v131 = vld [vmem:[%s0 + $0x1c4] sm:$0xf]
  %v132 = vld [vmem:[%s0 + $0x1c8] sm:$0xf]
  %v133 = vld [vmem:[%s0 + $0x1cc] sm:$0xf]
  %v134 = vld [vmem:[%s0 + $0x1d0] sm:$0xf]
  %v135 = vld [vmem:[%s0 + $0x1d4] sm:$0xf]
  %v136 = vld [vmem:[%s0 + $0x1d8] sm:$0xf]
  %v137 = vld [vmem:[%s0 + $0x1dc] sm:$0xf]
  %v138 = vld [vmem:[%s0 + $0x1e0] sm:$0xf]
  %v139 = vld [vmem:[%s0 + $0x1e4] sm:$0xf]
  %v140 = vld [vmem:[%s0 + $0x1e8] sm:$0xf]
  %v141 = vld [vmem:[%s0 + $0x1ec] sm:$0xf]
  %v142 = vld [vmem:[%s0 + $0x1f0] sm:$0xf]
  %v143 = vld [vmem:[%s0 + $0x1f4] sm:$0xf]
  %v144 = vld [vmem:[%s0 + $0x1f8] sm:$0xf]
  %v145 = vld [vmem:[%s0 + $0x1fc] sm:$0xf]
  %v146 = vld [vmem:[%s0 + $0x200] sm:$0xf]
  %v147 = vld [vmem:[%s0 + $0x204] sm:$0xf]
  %v148 = vld [vmem:[%s0 + $0x208] sm:$0xf]
  %v149 = vld [vmem:[%s0 + $0x20c] sm:$0xf]
  %v150 = vld [vmem:[%s0 + $0x210] sm:$0xf]
  %v151 = vld [vmem:[%s0 + $0x214] sm:$0xf]
  %v152 = vld [vmem:[%s0 + $0x218] sm:$0xf]
  %v153 = vld [vmem:[%s0 + $0x21c] sm:$0xf]
  %v154 = vld [vmem:[%s0 + $0x220] sm:$0xf]
  %v155 = vld [vmem:[%s0 + $0x224] sm:$0xf]
  %v156 = vld [vmem:[%s0 + $0x228] sm:$0xf]
  %v157 = vld [vmem:[%s0 + $0x22c] sm:$0xf]
  %v158 = vld [vmem:[%s0 + $0x230] sm:$0xf]
  %v159 = vld [vmem:[%s0 + $0x234] sm:$0xf]
  %v160 = vld [vmem:[%s0 + $0x238] sm:$0xf]
  %v161 = vld [vmem:[%s0 + $0x23c] sm:$0xf]
  %v162 = vld [vmem:[%s0 + $0x240] sm:$0xf]
  %v163 = vld [vmem:[%s0 + $0x244] sm:$0xf]
  %v164 = vld [vmem:[%s0 + $0x248] sm:$0xf]
  %v165 = vld [vmem:[%s0 + $0x24c] sm:$0xf]
  %v166 = vld [vmem:[%s0 + $0x250] sm:$0xf]
  %v167 = vld [vmem:[%s0 + $0x254] sm:$0xf]
  %v168 = vld [vmem:[%s0 + $0x258] sm:$0xf]
  %v169 = vld [vmem:[%s0 + $0x25c] sm:$0xf]
  %v170 = vld [vmem:[%s0 + $0x260] sm:$0xf]
  %v171 = vld [vmem:[%s0 + $0x264] sm:$0xf]
  %v172 = vld [vmem:[%s0 + $0x268] sm:$0xf]
  %v173 = vld [vmem:[%s0 + $0x26c] sm:$0xf]
  %v174 = vld [vmem:[%s0 + $0x270] sm:$0xf]
  %v175 = vld [vmem:[%s0 + $0x274] sm:$0xf]
  %v176 = vld [vmem:[%s0 + $0x278] sm:$0xf]
  %v177 = vld [vmem:[%s0 + $0x27c] sm:$0xf]
  %v178 = vld [vmem:[%s0 + $0x280] sm:$0xf]
  %v179 = vld [vmem:[%s0 + $0x284] sm:$0xf]
  %v180 = vld [vmem:[%s0 + $0x288] sm:$0xf]
  %v181 = vld [vmem:[%s0 + $0x28c] sm:$0xf]
  %v182 = vld [vmem:[%s0 + $0x290] sm:$0xf]
  %v183 = vld [vmem:[%s0 + $0x294] sm:$0xf]
  %v184 = vld [vmem:[%s0 + $0x298] sm:$0xf]
  %v185 = vld [vmem:[%s0 + $0x29c] sm:$0xf]
  %v186 = vld [vmem:[%s0 + $0x2a0] sm:$0xf]
  %v187 = vld [vmem:[%s0 + $0x2a4] sm:$0xf]
  %v188 = vld [vmem:[%s0 + $0x2a8] sm:$0xf]
  %v189 = vld [vmem:[%s0 + $0x2ac] sm:$0xf]
  %v190 = vld [vmem:[%s0 + $0x2b0] sm:$0xf]
  %v191 = vld [vmem:[%s0 + $0x2b4] sm:$0xf]
  %v192 = vld [vmem:[%s0 + $0x2b8] sm:$0xf]
  %v193 = vld [vmem:[%s0 + $0x2bc] sm:$0xf]
  %v194 = vld [vmem:[%s0 + $0x2c0] sm:$0xf]
  %v195 = vld [vmem:[%s0 + $0x2c4] sm:$0xf]
  %v196 = vld [vmem:[%s0 + $0x2c8] sm:$0xf]
  %v197 = vld [vmem:[%s0 + $0x2cc] sm:$0xf]
  %v198 = vld [vmem:[%s0 + $0x2d0] sm:$0xf]
  %v199 = vld [vmem:[%s0 + $0x2d4] sm:$0xf]
  %v200 = vld [vmem:[%s0 + $0x2d8] sm:$0xf]
  %v201 = vld [vmem:[%s0 + $0x2dc] sm:$0xf]
  %v202 = vld [vmem:[%s0 + $0x2e0] sm:$0xf]
  %v203 = vld [vmem:[%s0 + $0x2e4] sm:$0xf]
  %v204 = vld [vmem:[%s0 + $0x2e8] sm:$0xf]
  %v205 = vld [vmem:[%s0 + $0x2ec] sm:$0xf]
  %v206 = vld [vmem:[%s0 + $0x2f0] sm:$0xf]
  %v207 = vld [vmem:[%s0 + $0x2f4] sm:$0xf]
  %v208 = vld [vmem:[%s0 + $0x2f8] sm:$0xf]
  %v209 = vld [vmem:[%s0 + $0x2fc] sm:$0xf]
  %v210 = vld [vmem:[%s0 + $0x300] sm:$0xf]
  %v211 = vld [vmem:[%s0 + $0x304] sm:$0xf]
  %v212 = vld [vmem:[%s0 + $0x308] sm:$0xf]
  %v213 = vld [vmem:[%s0 + $0x30c] sm:$0xf]
  %v214 = vld [vmem:[%s0 + $0x310] sm:$0xf]
  %v215 = vld [vmem:[%s0 + $0x314] sm:$0xf]
  %v216 = vld [vmem:[%s0 + $0x318] sm:$0xf]
  %v217 = vld [vmem:[%s0 + $0x31c] sm:$0xf]
  %v218 = vld [vmem:[%s0 + $0x320] sm:$0xf]
  %v219 = vld [vmem:[%s0 + $0x324] sm:$0xf]
  %v220 = vld [vmem:[%s0 + $0x328] sm:$0xf]
  %v221 = vld [vmem:[%s0 + $0x32c] sm:$0xf]
  %v222 = vld [vmem:[%s0 + $0x330] sm:$0xf]
  %v223 = vld [vmem:[%s0 + $0x334] sm:$0xf]
  %v224 = vld [vmem:[%s0 + $0x338] sm:$0xf]
  %v225 = vld [vmem:[%s0 + $0x33c] sm:$0xf]
  %v226 = vld [vmem:[%s0 + $0x340] sm:$0xf]
  %v227 = vld [vmem:[%s0 + $0x344] sm:$0xf]
  %v228 = vld [vmem:[%s0 + $0x348] sm:$0xf]
  %v229 = vld [vmem:[%s0 + $0x34c] sm:$0xf]
  %v230 = vld [vmem:[%s0 + $0x350] sm:$0xf]
  %v231 = vld [vmem:[%s0 + $0x354] sm:$0xf]
  %v232 = vld [vmem:[%s0 + $0x358] sm:$0xf]
  %v233 = vld [vmem:[%s0 + $0x35c] sm:$0xf]
  %v234 = vld [vmem:[%s0 + $0x360] sm:$0xf]
  %v235 = vld [vmem:[%s0 + $0x364] sm:$0xf]
  %v236 = vld [vmem:[%s0 + $0x368] sm:$0xf]
  %v237 = vld [vmem:[%s0 + $0x36c] sm:$0xf]
  %v238 = vld [vmem:[%s0 + $0x370] sm:$0xf]
  %v239 = vld [vmem:[%s0 + $0x374] sm:$0xf]
  %v240 = vld [vmem:[%s0 + $0x378] sm:$0xf]
  %v241 = vld [vmem:[%s0 + $0x37c] sm:$0xf]
  %v242 = vld [vmem:[%s0 + $0x380] sm:$0xf]
  %v243 = vld [vmem:[%s0 + $0x384] sm:$0xf]
  %v244 = vld [vmem:[%s0 + $0x388] sm:$0xf]
  %v245 = vld [vmem:[%s0 + $0x38c] sm:$0xf]
  %v246 = vld [vmem:[%s0 + $0x390] sm:$0xf]
  %v247 = vld [vmem:[%s0 + $0x394] sm:$0xf]
  %v248 = vld [vmem:[%s0 + $0x398] sm:$0xf]
  %v249 = vld [vmem:[%s0 + $0x39c] sm:$0xf]
  %v250 = vld [vmem:[%s0 + $0x3a0] sm:$0xf]
  %v251 = vld [vmem:[%s0 + $0x3a4] sm:$0xf]
  %v252 = vld [vmem:[%s0 + $0x3a8] sm:$0xf]
  %v253 = vld [vmem:[%s0 + $0x3ac] sm:$0xf]
  %v254 = vld [vmem:[%s0 + $0x3b0] sm:$0xf]
  %v255 = vld [vmem:[%s0 + $0x3b4] sm:$0xf]
  %v256 = vld [vmem:[%s0 + $0x3b8] sm:$0xf]
  %v257 = vld [vmem:[%s0 + $0x3bc] sm:$0xf]
  %v258 = vld [vmem:[%s0 + $0x3c0] sm:$0xf]
  %v259 = vld [vmem:[%s0 + $0x3c4] sm:$0xf]
  %v260 = vld [vmem:[%s0 + $0x3c8] sm:$0xf]
  %v261 = vld [vmem:[%s0 + $0x3cc] sm:$0xf]
  %v262 = vld [vmem:[%s0 + $0x3d0] sm:$0xf]
  %v263 = vld [vmem:[%s0 + $0x3d4] sm:$0xf]
  %v264 = vld [vmem:[%s0 + $0x3d8] sm:$0xf]
  %v265 = vld [vmem:[%s0 + $0x3dc] sm:$0xf]
  %v266 = vld [vmem:[%s0 + $0x3e0] sm:$0xf]
  %v267 = vld [vmem:[%s0 + $0x3e4] sm:$0xf]
  %v268 = vld [vmem:[%s0 + $0x3e8] sm:$0xf]
  %v269 = vld [vmem:[%s0 + $0x3ec] sm:$0xf]
  %v270 = vld [vmem:[%s0 + $0x3f0] sm:$0xf]
  %v271 = vld [vmem:[%s0 + $0x3f4] sm:$0xf]
  %v272 = vld [vmem:[%s0 + $0x3f8] sm:$0xf]
  %v273 = vld [vmem:[%s0 + $0x3fc] sm:$0xf]
  %v274 = vld [vmem:[%s1] sm:$0xf]
  %v275 = vld [vmem:[%s1 + $0x4] sm:$0xf]
  %v276 = vld [vmem:[%s1 + $0x8] sm:$0xf]
  %v277 = vld [vmem:[%s1 + $0xc] sm:$0x3]
  %v534 = vunpack.c.l.b16 %v18
  %v535 = vunpack.c.l.b16 %v19
  %v536 = vunpack.c.l.b16 %v20
  %v537 = vunpack.c.l.b16 %v21
  %v538 = vunpack.c.l.b16 %v22
  %v539 = vunpack.c.l.b16 %v23
  %v540 = vunpack.c.l.b16 %v24
  %v541 = vunpack.c.l.b16 %v25
  %v542 = vunpack.c.l.b16 %v26
  %v543 = vunpack.c.l.b16 %v27
  %v544 = vunpack.c.l.b16 %v28
  %v545 = vunpack.c.l.b16 %v29
  %v546 = vunpack.c.l.b16 %v30
  %v547 = vunpack.c.l.b16 %v31
  %v548 = vunpack.c.l.b16 %v32
  %v549 = vunpack.c.l.b16 %v33
  %v550 = vunpack.c.l.b16 %v34
  %v551 = vunpack.c.l.b16 %v35
  %v552 = vunpack.c.l.b16 %v36
  %v553 = vunpack.c.l.b16 %v37
  %v554 = vunpack.c.l.b16 %v38
  %v555 = vunpack.c.l.b16 %v39
  %v556 = vunpack.c.l.b16 %v40
  %v557 = vunpack.c.l.b16 %v41
  %v558 = vunpack.c.l.b16 %v42
  %v559 = vunpack.c.l.b16 %v43
  %v560 = vunpack.c.l.b16 %v44
  %v561 = vunpack.c.l.b16 %v45
  %v562 = vunpack.c.l.b16 %v46
  %v563 = vunpack.c.l.b16 %v47
  %v564 = vunpack.c.l.b16 %v48
  %v565 = vunpack.c.l.b16 %v49
  %v566 = vunpack.c.l.b16 %v50
  %v567 = vunpack.c.l.b16 %v51
  %v568 = vunpack.c.l.b16 %v52
  %v569 = vunpack.c.l.b16 %v53
  %v570 = vunpack.c.l.b16 %v54
  %v571 = vunpack.c.l.b16 %v55
  %v572 = vunpack.c.l.b16 %v56
  %v573 = vunpack.c.l.b16 %v57
  %v574 = vunpack.c.l.b16 %v58
  %v575 = vunpack.c.l.b16 %v59
  %v576 = vunpack.c.l.b16 %v60
  %v577 = vunpack.c.l.b16 %v61
  %v578 = vunpack.c.l.b16 %v62
  %v579 = vunpack.c.l.b16 %v63
  %v580 = vunpack.c.l.b16 %v64
  %v581 = vunpack.c.l.b16 %v65
  %v582 = vunpack.c.l.b16 %v66
  %v583 = vunpack.c.l.b16 %v67
  %v584 = vunpack.c.l.b16 %v68
  %v585 = vunpack.c.l.b16 %v69
  %v586 = vunpack.c.l.b16 %v70
  %v587 = vunpack.c.l.b16 %v71
  %v588 = vunpack.c.l.b16 %v72
  %v589 = vunpack.c.l.b16 %v73
  %v590 = vunpack.c.l.b16 %v74
  %v591 = vunpack.c.l.b16 %v75
  %v592 = vunpack.c.l.b16 %v76
  %v593 = vunpack.c.l.b16 %v77
  %v594 = vunpack.c.l.b16 %v78
  %v595 = vunpack.c.l.b16 %v79
  %v596 = vunpack.c.l.b16 %v80
  %v597 = vunpack.c.l.b16 %v81
  %v598 = vunpack.c.l.b16 %v82
  %v599 = vunpack.c.l.b16 %v83
  %v600 = vunpack.c.l.b16 %v84
  %v601 = vunpack.c.l.b16 %v85
  %v602 = vunpack.c.l.b16 %v86
  %v603 = vunpack.c.l.b16 %v87
  %v604 = vunpack.c.l.b16 %v88
  %v605 = vunpack.c.l.b16 %v89
  %v606 = vunpack.c.l.b16 %v90
  %v607 = vunpack.c.l.b16 %v91
  %v608 = vunpack.c.l.b16 %v92
  %v609 = vunpack.c.l.b16 %v93
  %v610 = vunpack.c.l.b16 %v94
  %v611 = vunpack.c.l.b16 %v95
  %v612 = vunpack.c.l.b16 %v96
  %v613 = vunpack.c.l.b16 %v97
  %v614 = vunpack.c.l.b16 %v98
  %v615 = vunpack.c.l.b16 %v99
  %v616 = vunpack.c.l.b16 %v100
  %v617 = vunpack.c.l.b16 %v101
  %v618 = vunpack.c.l.b16 %v102
  %v619 = vunpack.c.l.b16 %v103
  %v620 = vunpack.c.l.b16 %v104
  %v621 = vunpack.c.l.b16 %v105
  %v622 = vunpack.c.l.b16 %v106
  %v623 = vunpack.c.l.b16 %v107
  %v624 = vunpack.c.l.b16 %v108
  %v625 = vunpack.c.l.b16 %v109
  %v626 = vunpack.c.l.b16 %v110
  %v627 = vunpack.c.l.b16 %v111
  %v628 = vunpack.c.l.b16 %v112
  %v629 = vunpack.c.l.b16 %v113
  %v630 = vunpack.c.l.b16 %v114
  %v631 = vunpack.c.l.b16 %v115
  %v632 = vunpack.c.l.b16 %v116
  %v633 = vunpack.c.l.b16 %v117
  %v634 = vunpack.c.l.b16 %v118
  %v635 = vunpack.c.l.b16 %v119
  %v636 = vunpack.c.l.b16 %v120
  %v637 = vunpack.c.l.b16 %v121
  %v638 = vunpack.c.l.b16 %v122
  %v639 = vunpack.c.l.b16 %v123
  %v640 = vunpack.c.l.b16 %v124
  %v641 = vunpack.c.l.b16 %v125
  %v642 = vunpack.c.l.b16 %v126
  %v643 = vunpack.c.l.b16 %v127
  %v644 = vunpack.c.l.b16 %v128
  %v645 = vunpack.c.l.b16 %v129
  %v646 = vunpack.c.l.b16 %v130
  %v647 = vunpack.c.l.b16 %v131
  %v648 = vunpack.c.l.b16 %v132
  %v649 = vunpack.c.l.b16 %v133
  %v650 = vunpack.c.l.b16 %v134
  %v651 = vunpack.c.l.b16 %v135
  %v652 = vunpack.c.l.b16 %v136
  %v653 = vunpack.c.l.b16 %v137
  %v654 = vunpack.c.l.b16 %v138
  %v655 = vunpack.c.l.b16 %v139
  %v656 = vunpack.c.l.b16 %v140
  %v657 = vunpack.c.l.b16 %v141
  %v658 = vunpack.c.l.b16 %v142
  %v659 = vunpack.c.l.b16 %v143
  %v660 = vunpack.c.l.b16 %v144
  %v661 = vunpack.c.l.b16 %v145
  %v662 = vunpack.c.l.b16 %v146
  %v663 = vunpack.c.l.b16 %v147
  %v664 = vunpack.c.l.b16 %v148
  %v665 = vunpack.c.l.b16 %v149
  %v666 = vunpack.c.l.b16 %v150
  %v667 = vunpack.c.l.b16 %v151
  %v668 = vunpack.c.l.b16 %v152
  %v669 = vunpack.c.l.b16 %v153
  %v670 = vunpack.c.l.b16 %v154
  %v671 = vunpack.c.l.b16 %v155
  %v672 = vunpack.c.l.b16 %v156
  %v673 = vunpack.c.l.b16 %v157
  %v674 = vunpack.c.l.b16 %v158
  %v675 = vunpack.c.l.b16 %v159
  %v676 = vunpack.c.l.b16 %v160
  %v677 = vunpack.c.l.b16 %v161
  %v678 = vunpack.c.l.b16 %v162
  %v679 = vunpack.c.l.b16 %v163
  %v680 = vunpack.c.l.b16 %v164
  %v681 = vunpack.c.l.b16 %v165
  %v682 = vunpack.c.l.b16 %v166
  %v683 = vunpack.c.l.b16 %v167
  %v684 = vunpack.c.l.b16 %v168
  %v685 = vunpack.c.l.b16 %v169
  %v686 = vunpack.c.l.b16 %v170
  %v687 = vunpack.c.l.b16 %v171
  %v688 = vunpack.c.l.b16 %v172
  %v689 = vunpack.c.l.b16 %v173
  %v690 = vunpack.c.l.b16 %v174
  %v691 = vunpack.c.l.b16 %v175
  %v692 = vunpack.c.l.b16 %v176
  %v693 = vunpack.c.l.b16 %v177
  %v694 = vunpack.c.l.b16 %v178
  %v695 = vunpack.c.l.b16 %v179
  %v696 = vunpack.c.l.b16 %v180
  %v697 = vunpack.c.l.b16 %v181
  %v698 = vunpack.c.l.b16 %v182
  %v699 = vunpack.c.l.b16 %v183
  %v700 = vunpack.c.l.b16 %v184
  %v701 = vunpack.c.l.b16 %v185
  %v702 = vunpack.c.l.b16 %v186
  %v703 = vunpack.c.l.b16 %v187
  %v704 = vunpack.c.l.b16 %v188
  %v705 = vunpack.c.l.b16 %v189
  %v706 = vunpack.c.l.b16 %v190
  %v707 = vunpack.c.l.b16 %v191
  %v708 = vunpack.c.l.b16 %v192
  %v709 = vunpack.c.l.b16 %v193
  %v710 = vunpack.c.l.b16 %v194
  %v711 = vunpack.c.l.b16 %v195
  %v712 = vunpack.c.l.b16 %v196
  %v713 = vunpack.c.l.b16 %v197
  %v714 = vunpack.c.l.b16 %v198
  %v715 = vunpack.c.l.b16 %v199
  %v716 = vunpack.c.l.b16 %v200
  %v717 = vunpack.c.l.b16 %v201
  %v718 = vunpack.c.l.b16 %v202
  %v719 = vunpack.c.l.b16 %v203
  %v720 = vunpack.c.l.b16 %v204
  %v721 = vunpack.c.l.b16 %v205
  %v722 = vunpack.c.l.b16 %v206
  %v723 = vunpack.c.l.b16 %v207
  %v724 = vunpack.c.l.b16 %v208
  %v725 = vunpack.c.l.b16 %v209
  %v726 = vunpack.c.l.b16 %v210
  %v727 = vunpack.c.l.b16 %v211
  %v728 = vunpack.c.l.b16 %v212
  %v729 = vunpack.c.l.b16 %v213
  %v730 = vunpack.c.l.b16 %v214
  %v731 = vunpack.c.l.b16 %v215
  %v732 = vunpack.c.l.b16 %v216
  %v733 = vunpack.c.l.b16 %v217
  %v734 = vunpack.c.l.b16 %v218
  %v735 = vunpack.c.l.b16 %v219
  %v736 = vunpack.c.l.b16 %v220
  %v737 = vunpack.c.l.b16 %v221
  %v738 = vunpack.c.l.b16 %v222
  %v739 = vunpack.c.l.b16 %v223
  %v740 = vunpack.c.l.b16 %v224
  %v741 = vunpack.c.l.b16 %v225
  %v742 = vunpack.c.l.b16 %v226
  %v743 = vunpack.c.l.b16 %v227
  %v744 = vunpack.c.l.b16 %v228
  %v745 = vunpack.c.l.b16 %v229
  %v746 = vunpack.c.l.b16 %v230
  %v747 = vunpack.c.l.b16 %v231
  %v748 = vunpack.c.l.b16 %v232
  %v749 = vunpack.c.l.b16 %v233
  %v750 = vunpack.c.l.b16 %v234
  %v751 = vunpack.c.l.b16 %v235
  %v752 = vunpack.c.l.b16 %v236
  %v753 = vunpack.c.l.b16 %v237
  %v754 = vunpack.c.l.b16 %v238
  %v755 = vunpack.c.l.b16 %v239
  %v756 = vunpack.c.l.b16 %v240
  %v757 = vunpack.c.l.b16 %v241
  %v758 = vunpack.c.l.b16 %v242
  %v759 = vunpack.c.l.b16 %v243
  %v760 = vunpack.c.l.b16 %v244
  %v761 = vunpack.c.l.b16 %v245
  %v762 = vunpack.c.l.b16 %v246
  %v763 = vunpack.c.l.b16 %v247
  %v764 = vunpack.c.l.b16 %v248
  %v765 = vunpack.c.l.b16 %v249
  %v766 = vunpack.c.l.b16 %v250
  %v767 = vunpack.c.l.b16 %v251
  %v768 = vunpack.c.l.b16 %v252
  %v769 = vunpack.c.l.b16 %v253
  %v770 = vunpack.c.l.b16 %v254
  %v771 = vunpack.c.l.b16 %v255
  %v772 = vunpack.c.l.b16 %v256
  %v773 = vunpack.c.l.b16 %v257
  %v774 = vunpack.c.l.b16 %v258
  %v775 = vunpack.c.l.b16 %v259
  %v776 = vunpack.c.l.b16 %v260
  %v777 = vunpack.c.l.b16 %v261
  %v778 = vunpack.c.l.b16 %v262
  %v779 = vunpack.c.l.b16 %v263
  %v780 = vunpack.c.l.b16 %v264
  %v781 = vunpack.c.l.b16 %v265
  %v782 = vunpack.c.l.b16 %v266
  %v783 = vunpack.c.l.b16 %v267
  %v784 = vunpack.c.l.b16 %v268
  %v785 = vunpack.c.l.b16 %v269
  %v786 = vunpack.c.l.b16 %v270
  %v787 = vunpack.c.l.b16 %v271
  %v788 = vunpack.c.l.b16 %v272
  %v789 = vunpack.c.l.b16 %v273
  %v790 = vpack.c.b16 %v535, %v534
  %v791 = vpack.c.b16 %v537, %v536
  %v792 = vpack.c.b16 %v539, %v538
  %v793 = vpack.c.b16 %v541, %v540
  %v794 = vpack.c.b16 %v543, %v542
  %v795 = vpack.c.b16 %v545, %v544
  %v796 = vpack.c.b16 %v547, %v546
  %v797 = vpack.c.b16 %v549, %v548
  %v798 = vpack.c.b16 %v551, %v550
  %v799 = vpack.c.b16 %v553, %v552
  %v800 = vpack.c.b16 %v555, %v554
  %v801 = vpack.c.b16 %v557, %v556
  %v802 = vpack.c.b16 %v559, %v558
  %v803 = vpack.c.b16 %v561, %v560
  %v804 = vpack.c.b16 %v563, %v562
  %v805 = vpack.c.b16 %v565, %v564
  %v806 = vpack.c.b16 %v567, %v566
  %v807 = vpack.c.b16 %v569, %v568
  %v808 = vpack.c.b16 %v571, %v570
  %v809 = vpack.c.b16 %v573, %v572
  %v810 = vpack.c.b16 %v575, %v574
  %v811 = vpack.c.b16 %v577, %v576
  %v812 = vpack.c.b16 %v579, %v578
  %v813 = vpack.c.b16 %v581, %v580
  %v814 = vpack.c.b16 %v583, %v582
  %v815 = vpack.c.b16 %v585, %v584
  %v816 = vpack.c.b16 %v587, %v586
  %v817 = vpack.c.b16 %v589, %v588
  %v818 = vpack.c.b16 %v591, %v590
  %v819 = vpack.c.b16 %v593, %v592
  %v820 = vpack.c.b16 %v595, %v594
  %v821 = vpack.c.b16 %v597, %v596
  %v822 = vpack.c.b16 %v599, %v598
  %v823 = vpack.c.b16 %v601, %v600
  %v824 = vpack.c.b16 %v603, %v602
  %v825 = vpack.c.b16 %v605, %v604
  %v826 = vpack.c.b16 %v607, %v606
  %v827 = vpack.c.b16 %v609, %v608
  %v828 = vpack.c.b16 %v611, %v610
  %v829 = vpack.c.b16 %v613, %v612
  %v830 = vpack.c.b16 %v615, %v614
  %v831 = vpack.c.b16 %v617, %v616
  %v832 = vpack.c.b16 %v619, %v618
  %v833 = vpack.c.b16 %v621, %v620
  %v834 = vpack.c.b16 %v623, %v622
  %v835 = vpack.c.b16 %v625, %v624
  %v836 = vpack.c.b16 %v627, %v626
  %v837 = vpack.c.b16 %v629, %v628
  %v838 = vpack.c.b16 %v631, %v630
  %v839 = vpack.c.b16 %v633, %v632
  %v840 = vpack.c.b16 %v635, %v634
  %v841 = vpack.c.b16 %v637, %v636
  %v842 = vpack.c.b16 %v639, %v638
  %v843 = vpack.c.b16 %v641, %v640
  %v844 = vpack.c.b16 %v643, %v642
  %v845 = vpack.c.b16 %v645, %v644
  %v846 = vpack.c.b16 %v647, %v646
  %v847 = vpack.c.b16 %v649, %v648
  %v848 = vpack.c.b16 %v651, %v650
  %v849 = vpack.c.b16 %v653, %v652
  %v850 = vpack.c.b16 %v655, %v654
  %v851 = vpack.c.b16 %v657, %v656
  %v852 = vpack.c.b16 %v659, %v658
  %v853 = vpack.c.b16 %v661, %v660
  %v854 = vpack.c.b16 %v663, %v662
  %v855 = vpack.c.b16 %v665, %v664
  %v856 = vpack.c.b16 %v667, %v666
  %v857 = vpack.c.b16 %v669, %v668
  %v858 = vpack.c.b16 %v671, %v670
  %v859 = vpack.c.b16 %v673, %v672
  %v860 = vpack.c.b16 %v675, %v674
  %v861 = vpack.c.b16 %v677, %v676
  %v862 = vpack.c.b16 %v679, %v678
  %v863 = vpack.c.b16 %v681, %v680
  %v864 = vpack.c.b16 %v683, %v682
  %v865 = vpack.c.b16 %v685, %v684
  %v866 = vpack.c.b16 %v687, %v686
  %v867 = vpack.c.b16 %v689, %v688
  %v868 = vpack.c.b16 %v691, %v690
  %v869 = vpack.c.b16 %v693, %v692
  %v870 = vpack.c.b16 %v695, %v694
  %v871 = vpack.c.b16 %v697, %v696
  %v872 = vpack.c.b16 %v699, %v698
  %v873 = vpack.c.b16 %v701, %v700
  %v874 = vpack.c.b16 %v703, %v702
  %v875 = vpack.c.b16 %v705, %v704
  %v876 = vpack.c.b16 %v707, %v706
  %v877 = vpack.c.b16 %v709, %v708
  %v878 = vpack.c.b16 %v711, %v710
  %v879 = vpack.c.b16 %v713, %v712
  %v880 = vpack.c.b16 %v715, %v714
  %v881 = vpack.c.b16 %v717, %v716
  %v882 = vpack.c.b16 %v719, %v718
  %v883 = vpack.c.b16 %v721, %v720
  %v884 = vpack.c.b16 %v723, %v722
  %v885 = vpack.c.b16 %v725, %v724
  %v886 = vpack.c.b16 %v727, %v726
  %v887 = vpack.c.b16 %v729, %v728
  %v888 = vpack.c.b16 %v731, %v730
  %v889 = vpack.c.b16 %v733, %v732
  %v890 = vpack.c.b16 %v735, %v734
  %v891 = vpack.c.b16 %v737, %v736
  %v892 = vpack.c.b16 %v739, %v738
  %v893 = vpack.c.b16 %v741, %v740
  %v894 = vpack.c.b16 %v743, %v742
  %v895 = vpack.c.b16 %v745, %v744
  %v896 = vpack.c.b16 %v747, %v746
  %v897 = vpack.c.b16 %v749, %v748
  %v898 = vpack.c.b16 %v751, %v750
  %v899 = vpack.c.b16 %v753, %v752
  %v900 = vpack.c.b16 %v755, %v754
  %v901 = vpack.c.b16 %v757, %v756
  %v902 = vpack.c.b16 %v759, %v758
  %v903 = vpack.c.b16 %v761, %v760
  %v904 = vpack.c.b16 %v763, %v762
  %v905 = vpack.c.b16 %v765, %v764
  %v906 = vpack.c.b16 %v767, %v766
  %v907 = vpack.c.b16 %v769, %v768
  %v908 = vpack.c.b16 %v771, %v770
  %v909 = vpack.c.b16 %v773, %v772
  %v910 = vpack.c.b16 %v775, %v774
  %v911 = vpack.c.b16 %v777, %v776
  %v912 = vpack.c.b16 %v779, %v778
  %v913 = vpack.c.b16 %v781, %v780
  %v914 = vpack.c.b16 %v783, %v782
  %v915 = vpack.c.b16 %v785, %v784
  %v916 = vpack.c.b16 %v787, %v786
  %v917 = vpack.c.b16 %v789, %v788
  %v922 = vunpack.c.l.b16 %v274
  %v923 = vunpack.c.l.b16 %v275
  %v924 = vunpack.c.l.b16 %v276
  %v925 = vunpack.c.l.b16 %v277
  %v926 = vpack.c.b16 %v923, %v922
  %v927 = vpack.c.b16 %v925, %v924
  %vm929 = vcmask 220160
  %v931 = vsel %vm929, %v790, 0
  %v934 = vsel %vm929, %v791, 0
  %v937 = vsel %vm929, %v792, 0
  %v940 = vsel %vm929, %v793, 0
  %v943 = vsel %vm929, %v794, 0
  %v946 = vsel %vm929, %v795, 0
  %v949 = vsel %vm929, %v796, 0
  %v952 = vsel %vm929, %v797, 0
  %v955 = vsel %vm929, %v798, 0
  %v958 = vsel %vm929, %v799, 0
  %v961 = vsel %vm929, %v800, 0
  %v964 = vsel %vm929, %v801, 0
  %v967 = vsel %vm929, %v802, 0
  %v970 = vsel %vm929, %v803, 0
  %v973 = vsel %vm929, %v804, 0
  %v976 = vsel %vm929, %v805, 0
  %v979 = vsel %vm929, %v806, 0
  %v982 = vsel %vm929, %v807, 0
  %v985 = vsel %vm929, %v808, 0
  %v988 = vsel %vm929, %v809, 0
  %v991 = vsel %vm929, %v810, 0
  %v994 = vsel %vm929, %v811, 0
  %v997 = vsel %vm929, %v812, 0
  %v1000 = vsel %vm929, %v813, 0
  %v1003 = vsel %vm929, %v814, 0
  %v1006 = vsel %vm929, %v815, 0
  %v1009 = vsel %vm929, %v816, 0
  %v1012 = vsel %vm929, %v817, 0
  %v1015 = vsel %vm929, %v818, 0
  %v1018 = vsel %vm929, %v819, 0
  %v1021 = vsel %vm929, %v820, 0
  %v1024 = vsel %vm929, %v821, 0
  %v1027 = vsel %vm929, %v822, 0
  %v1030 = vsel %vm929, %v823, 0
  %v1033 = vsel %vm929, %v824, 0
  %v1036 = vsel %vm929, %v825, 0
  %v1039 = vsel %vm929, %v826, 0
  %v1042 = vsel %vm929, %v827, 0
  %v1045 = vsel %vm929, %v828, 0
  %v1048 = vsel %vm929, %v829, 0
  %v1051 = vsel %vm929, %v830, 0
  %v1054 = vsel %vm929, %v831, 0
  %v1057 = vsel %vm929, %v832, 0
  %v1060 = vsel %vm929, %v833, 0
  %v1063 = vsel %vm929, %v834, 0
  %v1066 = vsel %vm929, %v835, 0
  %v1069 = vsel %vm929, %v836, 0
  %v1072 = vsel %vm929, %v837, 0
  %v1075 = vsel %vm929, %v838, 0
  %v1078 = vsel %vm929, %v839, 0
  %v1081 = vsel %vm929, %v840, 0
  %v1084 = vsel %vm929, %v841, 0
  %v1087 = vsel %vm929, %v842, 0
  %v1090 = vsel %vm929, %v843, 0
  %v1093 = vsel %vm929, %v844, 0
  %v1096 = vsel %vm929, %v845, 0
  %v1099 = vsel %vm929, %v846, 0
  %v1102 = vsel %vm929, %v847, 0
  %v1105 = vsel %vm929, %v848, 0
  %v1108 = vsel %vm929, %v849, 0
  %v1111 = vsel %vm929, %v850, 0
  %v1114 = vsel %vm929, %v851, 0
  %v1117 = vsel %vm929, %v852, 0
  %v1120 = vsel %vm929, %v853, 0
  %v1123 = vsel %vm929, %v854, 0
  %v1126 = vsel %vm929, %v855, 0
  %v1129 = vsel %vm929, %v856, 0
  %v1132 = vsel %vm929, %v857, 0
  %v1135 = vsel %vm929, %v858, 0
  %v1138 = vsel %vm929, %v859, 0
  %v1141 = vsel %vm929, %v860, 0
  %v1144 = vsel %vm929, %v861, 0
  %v1147 = vsel %vm929, %v862, 0
  %v1150 = vsel %vm929, %v863, 0
  %v1153 = vsel %vm929, %v864, 0
  %v1156 = vsel %vm929, %v865, 0
  %v1159 = vsel %vm929, %v866, 0
  %v1162 = vsel %vm929, %v867, 0
  %v1165 = vsel %vm929, %v868, 0
  %v1168 = vsel %vm929, %v869, 0
  %v1171 = vsel %vm929, %v870, 0
  %v1174 = vsel %vm929, %v871, 0
  %v1177 = vsel %vm929, %v872, 0
  %v1180 = vsel %vm929, %v873, 0
  %v1183 = vsel %vm929, %v874, 0
  %v1186 = vsel %vm929, %v875, 0
  %v1189 = vsel %vm929, %v876, 0
  %v1192 = vsel %vm929, %v877, 0
  %v1195 = vsel %vm929, %v878, 0
  %v1198 = vsel %vm929, %v879, 0
  %v1201 = vsel %vm929, %v880, 0
  %v1204 = vsel %vm929, %v881, 0
  %v1207 = vsel %vm929, %v882, 0
  %v1210 = vsel %vm929, %v883, 0
  %v1213 = vsel %vm929, %v884, 0
  %v1216 = vsel %vm929, %v885, 0
  %v1219 = vsel %vm929, %v886, 0
  %v1222 = vsel %vm929, %v887, 0
  %v1225 = vsel %vm929, %v888, 0
  %v1228 = vsel %vm929, %v889, 0
  %v1231 = vsel %vm929, %v890, 0
  %v1234 = vsel %vm929, %v891, 0
  %v1237 = vsel %vm929, %v892, 0
  %v1240 = vsel %vm929, %v893, 0
  %v1243 = vsel %vm929, %v894, 0
  %v1246 = vsel %vm929, %v895, 0
  %v1249 = vsel %vm929, %v896, 0
  %v1252 = vsel %vm929, %v897, 0
  %v1255 = vsel %vm929, %v898, 0
  %v1258 = vsel %vm929, %v899, 0
  %v1261 = vsel %vm929, %v900, 0
  %v1264 = vsel %vm929, %v901, 0
  %v1267 = vsel %vm929, %v902, 0
  %v1270 = vsel %vm929, %v903, 0
  %v1273 = vsel %vm929, %v904, 0
  %v1276 = vsel %vm929, %v905, 0
  %v1279 = vsel %vm929, %v906, 0
  %v1282 = vsel %vm929, %v907, 0
  %v1285 = vsel %vm929, %v908, 0
  %v1288 = vsel %vm929, %v909, 0
  %v1291 = vsel %vm929, %v910, 0
  %v1294 = vsel %vm929, %v911, 0
  %v1297 = vsel %vm929, %v912, 0
  %v1300 = vsel %vm929, %v913, 0
  %v1303 = vsel %vm929, %v914, 0
  %v1306 = vsel %vm929, %v915, 0
  %v1309 = vsel %vm929, %v916, 0
  %v1312 = vsel %vm929, %v917, 0
  %vm1314 = vcmask 1044480
  %vm1315 = vcmask 1045504
  %v1316 = vsel %vm1314, 4294967295, 65535
  %v1317 = vsel %vm1315, %v1316, 0
  %v1319 = vand.u32 %v927, %v1317
  %1321 = vmatpush.bf16.msra.mxu0 0
  %1322 = vmatpush.bf16.msra.mxu0 0
  %1323 = vmatpush.bf16.msra.mxu0 0
  %1324 = vmatpush.bf16.msra.mxu0 0
  %1325 = vmatpush.bf16.msra.mxu0 0
  %1326 = vmatpush.bf16.msra.mxu0 0
  %1327 = vmatpush.bf16.msra.mxu0 %v1319
  %1328 = vmatpush.bf16.msra.mxu0 %v926
  %1329 = vmatmul.bf16.gmra.mxu0 %v931
  %v1330 = vpop.f32.mrf.mxu0
  %v1331 = vadd.f32 0.0, %v1330
  %v1332 = vpop.f32.mrf.mxu0
  %v1333 = vadd.f32 0.0, %v1332
  %1334 = vmatmul.bf16.gmra.mxu0 %v934
  %v1335 = vpop.f32.mrf.mxu0
  %v1336 = vadd.f32 0.0, %v1335
  %v1337 = vpop.f32.mrf.mxu0
  %v1338 = vadd.f32 0.0, %v1337
  %1339 = vmatmul.bf16.gmra.mxu0 %v937
  %v1340 = vpop.f32.mrf.mxu0
  %v1341 = vadd.f32 0.0, %v1340
  %v1342 = vpop.f32.mrf.mxu0
  %v1343 = vadd.f32 0.0, %v1342
  %1344 = vmatmul.bf16.gmra.mxu0 %v940
  %v1345 = vpop.f32.mrf.mxu0
  %v1346 = vadd.f32 0.0, %v1345
  %v1347 = vpop.f32.mrf.mxu0
  %v1348 = vadd.f32 0.0, %v1347
  %1349 = vmatmul.bf16.gmra.mxu0 %v943
  %v1350 = vpop.f32.mrf.mxu0
  %v1351 = vadd.f32 0.0, %v1350
  %v1352 = vpop.f32.mrf.mxu0
  %v1353 = vadd.f32 0.0, %v1352
  %1354 = vmatmul.bf16.gmra.mxu0 %v946
  %v1355 = vpop.f32.mrf.mxu0
  %v1356 = vadd.f32 0.0, %v1355
  %v1357 = vpop.f32.mrf.mxu0
  %v1358 = vadd.f32 0.0, %v1357
  %1359 = vmatmul.bf16.gmra.mxu0 %v949
  %v1360 = vpop.f32.mrf.mxu0
  %v1361 = vadd.f32 0.0, %v1360
  %v1362 = vpop.f32.mrf.mxu0
  %v1363 = vadd.f32 0.0, %v1362
  %1364 = vmatmul.bf16.gmra.mxu0 %v952
  %v1365 = vpop.f32.mrf.mxu0
  %v1366 = vadd.f32 0.0, %v1365
  %v1367 = vpop.f32.mrf.mxu0
  %v1368 = vadd.f32 0.0, %v1367
  %1369 = vmatmul.bf16.gmra.mxu0 %v955
  %v1370 = vpop.f32.mrf.mxu0
  %v1371 = vadd.f32 0.0, %v1370
  %v1372 = vpop.f32.mrf.mxu0
  %v1373 = vadd.f32 0.0, %v1372
  %1374 = vmatmul.bf16.gmra.mxu0 %v958
  %v1375 = vpop.f32.mrf.mxu0
  %v1376 = vadd.f32 0.0, %v1375
  %v1377 = vpop.f32.mrf.mxu0
  %v1378 = vadd.f32 0.0, %v1377
  %1379 = vmatmul.bf16.gmra.mxu0 %v961
  %v1380 = vpop.f32.mrf.mxu0
  %v1381 = vadd.f32 0.0, %v1380
  %v1382 = vpop.f32.mrf.mxu0
  %v1383 = vadd.f32 0.0, %v1382
  %1384 = vmatmul.bf16.gmra.mxu0 %v964
  %v1385 = vpop.f32.mrf.mxu0
  %v1386 = vadd.f32 0.0, %v1385
  %v1387 = vpop.f32.mrf.mxu0
  %v1388 = vadd.f32 0.0, %v1387
  %1389 = vmatmul.bf16.gmra.mxu0 %v967
  %v1390 = vpop.f32.mrf.mxu0
  %v1391 = vadd.f32 0.0, %v1390
  %v1392 = vpop.f32.mrf.mxu0
  %v1393 = vadd.f32 0.0, %v1392
  %1394 = vmatmul.bf16.gmra.mxu0 %v970
  %v1395 = vpop.f32.mrf.mxu0
  %v1396 = vadd.f32 0.0, %v1395
  %v1397 = vpop.f32.mrf.mxu0
  %v1398 = vadd.f32 0.0, %v1397
  %1399 = vmatmul.bf16.gmra.mxu0 %v973
  %v1400 = vpop.f32.mrf.mxu0
  %v1401 = vadd.f32 0.0, %v1400
  %v1402 = vpop.f32.mrf.mxu0
  %v1403 = vadd.f32 0.0, %v1402
  %1404 = vmatmul.bf16.gmra.mxu0 %v976
  %v1405 = vpop.f32.mrf.mxu0
  %v1406 = vadd.f32 0.0, %v1405
  %v1407 = vpop.f32.mrf.mxu0
  %v1408 = vadd.f32 0.0, %v1407
  %1409 = vmatmul.bf16.gmra.mxu0 %v979
  %v1410 = vpop.f32.mrf.mxu0
  %v1411 = vadd.f32 0.0, %v1410
  %v1412 = vpop.f32.mrf.mxu0
  %v1413 = vadd.f32 0.0, %v1412
  %1414 = vmatmul.bf16.gmra.mxu0 %v982
  %v1415 = vpop.f32.mrf.mxu0
  %v1416 = vadd.f32 0.0, %v1415
  %v1417 = vpop.f32.mrf.mxu0
  %v1418 = vadd.f32 0.0, %v1417
  %1419 = vmatmul.bf16.gmra.mxu0 %v985
  %v1420 = vpop.f32.mrf.mxu0
  %v1421 = vadd.f32 0.0, %v1420
  %v1422 = vpop.f32.mrf.mxu0
  %v1423 = vadd.f32 0.0, %v1422
  %1424 = vmatmul.bf16.gmra.mxu0 %v988
  %v1425 = vpop.f32.mrf.mxu0
  %v1426 = vadd.f32 0.0, %v1425
  %v1427 = vpop.f32.mrf.mxu0
  %v1428 = vadd.f32 0.0, %v1427
  %1429 = vmatmul.bf16.gmra.mxu0 %v991
  %v1430 = vpop.f32.mrf.mxu0
  %v1431 = vadd.f32 0.0, %v1430
  %v1432 = vpop.f32.mrf.mxu0
  %v1433 = vadd.f32 0.0, %v1432
  %1434 = vmatmul.bf16.gmra.mxu0 %v994
  %v1435 = vpop.f32.mrf.mxu0
  %v1436 = vadd.f32 0.0, %v1435
  %v1437 = vpop.f32.mrf.mxu0
  %v1438 = vadd.f32 0.0, %v1437
  %1439 = vmatmul.bf16.gmra.mxu0 %v997
  %v1440 = vpop.f32.mrf.mxu0
  %v1441 = vadd.f32 0.0, %v1440
  %v1442 = vpop.f32.mrf.mxu0
  %v1443 = vadd.f32 0.0, %v1442
  %1444 = vmatmul.bf16.gmra.mxu0 %v1000
  %v1445 = vpop.f32.mrf.mxu0
  %v1446 = vadd.f32 0.0, %v1445
  %v1447 = vpop.f32.mrf.mxu0
  %v1448 = vadd.f32 0.0, %v1447
  %1449 = vmatmul.bf16.gmra.mxu0 %v1003
  %v1450 = vpop.f32.mrf.mxu0
  %v1451 = vadd.f32 0.0, %v1450
  %v1452 = vpop.f32.mrf.mxu0
  %v1453 = vadd.f32 0.0, %v1452
  %1454 = vmatmul.bf16.gmra.mxu0 %v1006
  %v1455 = vpop.f32.mrf.mxu0
  %v1456 = vadd.f32 0.0, %v1455
  %v1457 = vpop.f32.mrf.mxu0
  %v1458 = vadd.f32 0.0, %v1457
  %1459 = vmatmul.bf16.gmra.mxu0 %v1009
  %v1460 = vpop.f32.mrf.mxu0
  %v1461 = vadd.f32 0.0, %v1460
  %v1462 = vpop.f32.mrf.mxu0
  %v1463 = vadd.f32 0.0, %v1462
  %1464 = vmatmul.bf16.gmra.mxu0 %v1012
  %v1465 = vpop.f32.mrf.mxu0
  %v1466 = vadd.f32 0.0, %v1465
  %v1467 = vpop.f32.mrf.mxu0
  %v1468 = vadd.f32 0.0, %v1467
  %1469 = vmatmul.bf16.gmra.mxu0 %v1015
  %v1470 = vpop.f32.mrf.mxu0
  %v1471 = vadd.f32 0.0, %v1470
  %v1472 = vpop.f32.mrf.mxu0
  %v1473 = vadd.f32 0.0, %v1472
  %1474 = vmatmul.bf16.gmra.mxu0 %v1018
  %v1475 = vpop.f32.mrf.mxu0
  %v1476 = vadd.f32 0.0, %v1475
  %v1477 = vpop.f32.mrf.mxu0
  %v1478 = vadd.f32 0.0, %v1477
  %1479 = vmatmul.bf16.gmra.mxu0 %v1021
  %v1480 = vpop.f32.mrf.mxu0
  %v1481 = vadd.f32 0.0, %v1480
  %v1482 = vpop.f32.mrf.mxu0
  %v1483 = vadd.f32 0.0, %v1482
  %1484 = vmatmul.bf16.gmra.mxu0 %v1024
  %v1485 = vpop.f32.mrf.mxu0
  %v1486 = vadd.f32 0.0, %v1485
  %v1487 = vpop.f32.mrf.mxu0
  %v1488 = vadd.f32 0.0, %v1487
  %1489 = vmatmul.bf16.gmra.mxu0 %v1027
  %v1490 = vpop.f32.mrf.mxu0
  %v1491 = vadd.f32 0.0, %v1490
  %v1492 = vpop.f32.mrf.mxu0
  %v1493 = vadd.f32 0.0, %v1492
  %1494 = vmatmul.bf16.gmra.mxu0 %v1030
  %v1495 = vpop.f32.mrf.mxu0
  %v1496 = vadd.f32 0.0, %v1495
  %v1497 = vpop.f32.mrf.mxu0
  %v1498 = vadd.f32 0.0, %v1497
  %1499 = vmatmul.bf16.gmra.mxu0 %v1033
  %v1500 = vpop.f32.mrf.mxu0
  %v1501 = vadd.f32 0.0, %v1500
  %v1502 = vpop.f32.mrf.mxu0
  %v1503 = vadd.f32 0.0, %v1502
  %1504 = vmatmul.bf16.gmra.mxu0 %v1036
  %v1505 = vpop.f32.mrf.mxu0
  %v1506 = vadd.f32 0.0, %v1505
  %v1507 = vpop.f32.mrf.mxu0
  %v1508 = vadd.f32 0.0, %v1507
  %1509 = vmatmul.bf16.gmra.mxu0 %v1039
  %v1510 = vpop.f32.mrf.mxu0
  %v1511 = vadd.f32 0.0, %v1510
  %v1512 = vpop.f32.mrf.mxu0
  %v1513 = vadd.f32 0.0, %v1512
  %1514 = vmatmul.bf16.gmra.mxu0 %v1042
  %v1515 = vpop.f32.mrf.mxu0
  %v1516 = vadd.f32 0.0, %v1515
  %v1517 = vpop.f32.mrf.mxu0
  %v1518 = vadd.f32 0.0, %v1517
  %1519 = vmatmul.bf16.gmra.mxu0 %v1045
  %v1520 = vpop.f32.mrf.mxu0
  %v1521 = vadd.f32 0.0, %v1520
  %v1522 = vpop.f32.mrf.mxu0
  %v1523 = vadd.f32 0.0, %v1522
  %1524 = vmatmul.bf16.gmra.mxu0 %v1048
  %v1525 = vpop.f32.mrf.mxu0
  %v1526 = vadd.f32 0.0, %v1525
  %v1527 = vpop.f32.mrf.mxu0
  %v1528 = vadd.f32 0.0, %v1527
  %1529 = vmatmul.bf16.gmra.mxu0 %v1051
  %v1530 = vpop.f32.mrf.mxu0
  %v1531 = vadd.f32 0.0, %v1530
  %v1532 = vpop.f32.mrf.mxu0
  %v1533 = vadd.f32 0.0, %v1532
  %1534 = vmatmul.bf16.gmra.mxu0 %v1054
  %v1535 = vpop.f32.mrf.mxu0
  %v1536 = vadd.f32 0.0, %v1535
  %v1537 = vpop.f32.mrf.mxu0
  %v1538 = vadd.f32 0.0, %v1537
  %1539 = vmatmul.bf16.gmra.mxu0 %v1057
  %v1540 = vpop.f32.mrf.mxu0
  %v1541 = vadd.f32 0.0, %v1540
  %v1542 = vpop.f32.mrf.mxu0
  %v1543 = vadd.f32 0.0, %v1542
  %1544 = vmatmul.bf16.gmra.mxu0 %v1060
  %v1545 = vpop.f32.mrf.mxu0
  %v1546 = vadd.f32 0.0, %v1545
  %v1547 = vpop.f32.mrf.mxu0
  %v1548 = vadd.f32 0.0, %v1547
  %1549 = vmatmul.bf16.gmra.mxu0 %v1063
  %v1550 = vpop.f32.mrf.mxu0
  %v1551 = vadd.f32 0.0, %v1550
  %v1552 = vpop.f32.mrf.mxu0
  %v1553 = vadd.f32 0.0, %v1552
  %1554 = vmatmul.bf16.gmra.mxu0 %v1066
  %v1555 = vpop.f32.mrf.mxu0
  %v1556 = vadd.f32 0.0, %v1555
  %v1557 = vpop.f32.mrf.mxu0
  %v1558 = vadd.f32 0.0, %v1557
  %1559 = vmatmul.bf16.gmra.mxu0 %v1069
  %v1560 = vpop.f32.mrf.mxu0
  %v1561 = vadd.f32 0.0, %v1560
  %v1562 = vpop.f32.mrf.mxu0
  %v1563 = vadd.f32 0.0, %v1562
  %1564 = vmatmul.bf16.gmra.mxu0 %v1072
  %v1565 = vpop.f32.mrf.mxu0
  %v1566 = vadd.f32 0.0, %v1565
  %v1567 = vpop.f32.mrf.mxu0
  %v1568 = vadd.f32 0.0, %v1567
  %1569 = vmatmul.bf16.gmra.mxu0 %v1075
  %v1570 = vpop.f32.mrf.mxu0
  %v1571 = vadd.f32 0.0, %v1570
  %v1572 = vpop.f32.mrf.mxu0
  %v1573 = vadd.f32 0.0, %v1572
  %1574 = vmatmul.bf16.gmra.mxu0 %v1078
  %v1575 = vpop.f32.mrf.mxu0
  %v1576 = vadd.f32 0.0, %v1575
  %v1577 = vpop.f32.mrf.mxu0
  %v1578 = vadd.f32 0.0, %v1577
  %1579 = vmatmul.bf16.gmra.mxu0 %v1081
  %v1580 = vpop.f32.mrf.mxu0
  %v1581 = vadd.f32 0.0, %v1580
  %v1582 = vpop.f32.mrf.mxu0
  %v1583 = vadd.f32 0.0, %v1582
  %1584 = vmatmul.bf16.gmra.mxu0 %v1084
  %v1585 = vpop.f32.mrf.mxu0
  %v1586 = vadd.f32 0.0, %v1585
  %v1587 = vpop.f32.mrf.mxu0
  %v1588 = vadd.f32 0.0, %v1587
  %1589 = vmatmul.bf16.gmra.mxu0 %v1087
  %v1590 = vpop.f32.mrf.mxu0
  %v1591 = vadd.f32 0.0, %v1590
  %v1592 = vpop.f32.mrf.mxu0
  %v1593 = vadd.f32 0.0, %v1592
  %1594 = vmatmul.bf16.gmra.mxu0 %v1090
  %v1595 = vpop.f32.mrf.mxu0
  %v1596 = vadd.f32 0.0, %v1595
  %v1597 = vpop.f32.mrf.mxu0
  %v1598 = vadd.f32 0.0, %v1597
  %1599 = vmatmul.bf16.gmra.mxu0 %v1093
  %v1600 = vpop.f32.mrf.mxu0
  %v1601 = vadd.f32 0.0, %v1600
  %v1602 = vpop.f32.mrf.mxu0
  %v1603 = vadd.f32 0.0, %v1602
  %1604 = vmatmul.bf16.gmra.mxu0 %v1096
  %v1605 = vpop.f32.mrf.mxu0
  %v1606 = vadd.f32 0.0, %v1605
  %v1607 = vpop.f32.mrf.mxu0
  %v1608 = vadd.f32 0.0, %v1607
  %1609 = vmatmul.bf16.gmra.mxu0 %v1099
  %v1610 = vpop.f32.mrf.mxu0
  %v1611 = vadd.f32 0.0, %v1610
  %v1612 = vpop.f32.mrf.mxu0
  %v1613 = vadd.f32 0.0, %v1612
  %1614 = vmatmul.bf16.gmra.mxu0 %v1102
  %v1615 = vpop.f32.mrf.mxu0
  %v1616 = vadd.f32 0.0, %v1615
  %v1617 = vpop.f32.mrf.mxu0
  %v1618 = vadd.f32 0.0, %v1617
  %1619 = vmatmul.bf16.gmra.mxu0 %v1105
  %v1620 = vpop.f32.mrf.mxu0
  %v1621 = vadd.f32 0.0, %v1620
  %v1622 = vpop.f32.mrf.mxu0
  %v1623 = vadd.f32 0.0, %v1622
  %1624 = vmatmul.bf16.gmra.mxu0 %v1108
  %v1625 = vpop.f32.mrf.mxu0
  %v1626 = vadd.f32 0.0, %v1625
  %v1627 = vpop.f32.mrf.mxu0
  %v1628 = vadd.f32 0.0, %v1627
  %1629 = vmatmul.bf16.gmra.mxu0 %v1111
  %v1630 = vpop.f32.mrf.mxu0
  %v1631 = vadd.f32 0.0, %v1630
  %v1632 = vpop.f32.mrf.mxu0
  %v1633 = vadd.f32 0.0, %v1632
  %1634 = vmatmul.bf16.gmra.mxu0 %v1114
  %v1635 = vpop.f32.mrf.mxu0
  %v1636 = vadd.f32 0.0, %v1635
  %v1637 = vpop.f32.mrf.mxu0
  %v1638 = vadd.f32 0.0, %v1637
  %1639 = vmatmul.bf16.gmra.mxu0 %v1117
  %v1640 = vpop.f32.mrf.mxu0
  %v1641 = vadd.f32 0.0, %v1640
  %v1642 = vpop.f32.mrf.mxu0
  %v1643 = vadd.f32 0.0, %v1642
  %1644 = vmatmul.bf16.gmra.mxu0 %v1120
  %v1645 = vpop.f32.mrf.mxu0
  %v1646 = vadd.f32 0.0, %v1645
  %v1647 = vpop.f32.mrf.mxu0
  %v1648 = vadd.f32 0.0, %v1647
  %1649 = vmatmul.bf16.gmra.mxu0 %v1123
  %v1650 = vpop.f32.mrf.mxu0
  %v1651 = vadd.f32 0.0, %v1650
  %v1652 = vpop.f32.mrf.mxu0
  %v1653 = vadd.f32 0.0, %v1652
  %1654 = vmatmul.bf16.gmra.mxu0 %v1126
  %v1655 = vpop.f32.mrf.mxu0
  %v1656 = vadd.f32 0.0, %v1655
  %v1657 = vpop.f32.mrf.mxu0
  %v1658 = vadd.f32 0.0, %v1657
  %1659 = vmatmul.bf16.gmra.mxu0 %v1129
  %v1660 = vpop.f32.mrf.mxu0
  %v1661 = vadd.f32 0.0, %v1660
  %v1662 = vpop.f32.mrf.mxu0
  %v1663 = vadd.f32 0.0, %v1662
  %1664 = vmatmul.bf16.gmra.mxu0 %v1132
  %v1665 = vpop.f32.mrf.mxu0
  %v1666 = vadd.f32 0.0, %v1665
  %v1667 = vpop.f32.mrf.mxu0
  %v1668 = vadd.f32 0.0, %v1667
  %1669 = vmatmul.bf16.gmra.mxu0 %v1135
  %v1670 = vpop.f32.mrf.mxu0
  %v1671 = vadd.f32 0.0, %v1670
  %v1672 = vpop.f32.mrf.mxu0
  %v1673 = vadd.f32 0.0, %v1672
  %1674 = vmatmul.bf16.gmra.mxu0 %v1138
  %v1675 = vpop.f32.mrf.mxu0
  %v1676 = vadd.f32 0.0, %v1675
  %v1677 = vpop.f32.mrf.mxu0
  %v1678 = vadd.f32 0.0, %v1677
  %1679 = vmatmul.bf16.gmra.mxu0 %v1141
  %v1680 = vpop.f32.mrf.mxu0
  %v1681 = vadd.f32 0.0, %v1680
  %v1682 = vpop.f32.mrf.mxu0
  %v1683 = vadd.f32 0.0, %v1682
  %1684 = vmatmul.bf16.gmra.mxu0 %v1144
  %v1685 = vpop.f32.mrf.mxu0
  %v1686 = vadd.f32 0.0, %v1685
  %v1687 = vpop.f32.mrf.mxu0
  %v1688 = vadd.f32 0.0, %v1687
  %1689 = vmatmul.bf16.gmra.mxu0 %v1147
  %v1690 = vpop.f32.mrf.mxu0
  %v1691 = vadd.f32 0.0, %v1690
  %v1692 = vpop.f32.mrf.mxu0
  %v1693 = vadd.f32 0.0, %v1692
  %1694 = vmatmul.bf16.gmra.mxu0 %v1150
  %v1695 = vpop.f32.mrf.mxu0
  %v1696 = vadd.f32 0.0, %v1695
  %v1697 = vpop.f32.mrf.mxu0
  %v1698 = vadd.f32 0.0, %v1697
  %1699 = vmatmul.bf16.gmra.mxu0 %v1153
  %v1700 = vpop.f32.mrf.mxu0
  %v1701 = vadd.f32 0.0, %v1700
  %v1702 = vpop.f32.mrf.mxu0
  %v1703 = vadd.f32 0.0, %v1702
  %1704 = vmatmul.bf16.gmra.mxu0 %v1156
  %v1705 = vpop.f32.mrf.mxu0
  %v1706 = vadd.f32 0.0, %v1705
  %v1707 = vpop.f32.mrf.mxu0
  %v1708 = vadd.f32 0.0, %v1707
  %1709 = vmatmul.bf16.gmra.mxu0 %v1159
  %v1710 = vpop.f32.mrf.mxu0
  %v1711 = vadd.f32 0.0, %v1710
  %v1712 = vpop.f32.mrf.mxu0
  %v1713 = vadd.f32 0.0, %v1712
  %1714 = vmatmul.bf16.gmra.mxu0 %v1162
  %v1715 = vpop.f32.mrf.mxu0
  %v1716 = vadd.f32 0.0, %v1715
  %v1717 = vpop.f32.mrf.mxu0
  %v1718 = vadd.f32 0.0, %v1717
  %1719 = vmatmul.bf16.gmra.mxu0 %v1165
  %v1720 = vpop.f32.mrf.mxu0
  %v1721 = vadd.f32 0.0, %v1720
  %v1722 = vpop.f32.mrf.mxu0
  %v1723 = vadd.f32 0.0, %v1722
  %1724 = vmatmul.bf16.gmra.mxu0 %v1168
  %v1725 = vpop.f32.mrf.mxu0
  %v1726 = vadd.f32 0.0, %v1725
  %v1727 = vpop.f32.mrf.mxu0
  %v1728 = vadd.f32 0.0, %v1727
  %1729 = vmatmul.bf16.gmra.mxu0 %v1171
  %v1730 = vpop.f32.mrf.mxu0
  %v1731 = vadd.f32 0.0, %v1730
  %v1732 = vpop.f32.mrf.mxu0
  %v1733 = vadd.f32 0.0, %v1732
  %1734 = vmatmul.bf16.gmra.mxu0 %v1174
  %v1735 = vpop.f32.mrf.mxu0
  %v1736 = vadd.f32 0.0, %v1735
  %v1737 = vpop.f32.mrf.mxu0
  %v1738 = vadd.f32 0.0, %v1737
  %1739 = vmatmul.bf16.gmra.mxu0 %v1177
  %v1740 = vpop.f32.mrf.mxu0
  %v1741 = vadd.f32 0.0, %v1740
  %v1742 = vpop.f32.mrf.mxu0
  %v1743 = vadd.f32 0.0, %v1742
  %1744 = vmatmul.bf16.gmra.mxu0 %v1180
  %v1745 = vpop.f32.mrf.mxu0
  %v1746 = vadd.f32 0.0, %v1745
  %v1747 = vpop.f32.mrf.mxu0
  %v1748 = vadd.f32 0.0, %v1747
  %1749 = vmatmul.bf16.gmra.mxu0 %v1183
  %v1750 = vpop.f32.mrf.mxu0
  %v1751 = vadd.f32 0.0, %v1750
  %v1752 = vpop.f32.mrf.mxu0
  %v1753 = vadd.f32 0.0, %v1752
  %1754 = vmatmul.bf16.gmra.mxu0 %v1186
  %v1755 = vpop.f32.mrf.mxu0
  %v1756 = vadd.f32 0.0, %v1755
  %v1757 = vpop.f32.mrf.mxu0
  %v1758 = vadd.f32 0.0, %v1757
  %1759 = vmatmul.bf16.gmra.mxu0 %v1189
  %v1760 = vpop.f32.mrf.mxu0
  %v1761 = vadd.f32 0.0, %v1760
  %v1762 = vpop.f32.mrf.mxu0
  %v1763 = vadd.f32 0.0, %v1762
  %1764 = vmatmul.bf16.gmra.mxu0 %v1192
  %v1765 = vpop.f32.mrf.mxu0
  %v1766 = vadd.f32 0.0, %v1765
  %v1767 = vpop.f32.mrf.mxu0
  %v1768 = vadd.f32 0.0, %v1767
  %1769 = vmatmul.bf16.gmra.mxu0 %v1195
  %v1770 = vpop.f32.mrf.mxu0
  %v1771 = vadd.f32 0.0, %v1770
  %v1772 = vpop.f32.mrf.mxu0
  %v1773 = vadd.f32 0.0, %v1772
  %1774 = vmatmul.bf16.gmra.mxu0 %v1198
  %v1775 = vpop.f32.mrf.mxu0
  %v1776 = vadd.f32 0.0, %v1775
  %v1777 = vpop.f32.mrf.mxu0
  %v1778 = vadd.f32 0.0, %v1777
  %1779 = vmatmul.bf16.gmra.mxu0 %v1201
  %v1780 = vpop.f32.mrf.mxu0
  %v1781 = vadd.f32 0.0, %v1780
  %v1782 = vpop.f32.mrf.mxu0
  %v1783 = vadd.f32 0.0, %v1782
  %1784 = vmatmul.bf16.gmra.mxu0 %v1204
  %v1785 = vpop.f32.mrf.mxu0
  %v1786 = vadd.f32 0.0, %v1785
  %v1787 = vpop.f32.mrf.mxu0
  %v1788 = vadd.f32 0.0, %v1787
  %1789 = vmatmul.bf16.gmra.mxu0 %v1207
  %v1790 = vpop.f32.mrf.mxu0
  %v1791 = vadd.f32 0.0, %v1790
  %v1792 = vpop.f32.mrf.mxu0
  %v1793 = vadd.f32 0.0, %v1792
  %1794 = vmatmul.bf16.gmra.mxu0 %v1210
  %v1795 = vpop.f32.mrf.mxu0
  %v1796 = vadd.f32 0.0, %v1795
  %v1797 = vpop.f32.mrf.mxu0
  %v1798 = vadd.f32 0.0, %v1797
  %1799 = vmatmul.bf16.gmra.mxu0 %v1213
  %v1800 = vpop.f32.mrf.mxu0
  %v1801 = vadd.f32 0.0, %v1800
  %v1802 = vpop.f32.mrf.mxu0
  %v1803 = vadd.f32 0.0, %v1802
  %1804 = vmatmul.bf16.gmra.mxu0 %v1216
  %v1805 = vpop.f32.mrf.mxu0
  %v1806 = vadd.f32 0.0, %v1805
  %v1807 = vpop.f32.mrf.mxu0
  %v1808 = vadd.f32 0.0, %v1807
  %1809 = vmatmul.bf16.gmra.mxu0 %v1219
  %v1810 = vpop.f32.mrf.mxu0
  %v1811 = vadd.f32 0.0, %v1810
  %v1812 = vpop.f32.mrf.mxu0
  %v1813 = vadd.f32 0.0, %v1812
  %1814 = vmatmul.bf16.gmra.mxu0 %v1222
  %v1815 = vpop.f32.mrf.mxu0
  %v1816 = vadd.f32 0.0, %v1815
  %v1817 = vpop.f32.mrf.mxu0
  %v1818 = vadd.f32 0.0, %v1817
  %1819 = vmatmul.bf16.gmra.mxu0 %v1225
  %v1820 = vpop.f32.mrf.mxu0
  %v1821 = vadd.f32 0.0, %v1820
  %v1822 = vpop.f32.mrf.mxu0
  %v1823 = vadd.f32 0.0, %v1822
  %1824 = vmatmul.bf16.gmra.mxu0 %v1228
  %v1825 = vpop.f32.mrf.mxu0
  %v1826 = vadd.f32 0.0, %v1825
  %v1827 = vpop.f32.mrf.mxu0
  %v1828 = vadd.f32 0.0, %v1827
  %1829 = vmatmul.bf16.gmra.mxu0 %v1231
  %v1830 = vpop.f32.mrf.mxu0
  %v1831 = vadd.f32 0.0, %v1830
  %v1832 = vpop.f32.mrf.mxu0
  %v1833 = vadd.f32 0.0, %v1832
  %1834 = vmatmul.bf16.gmra.mxu0 %v1234
  %v1835 = vpop.f32.mrf.mxu0
  %v1836 = vadd.f32 0.0, %v1835
  %v1837 = vpop.f32.mrf.mxu0
  %v1838 = vadd.f32 0.0, %v1837
  %1839 = vmatmul.bf16.gmra.mxu0 %v1237
  %v1840 = vpop.f32.mrf.mxu0
  %v1841 = vadd.f32 0.0, %v1840
  %v1842 = vpop.f32.mrf.mxu0
  %v1843 = vadd.f32 0.0, %v1842
  %1844 = vmatmul.bf16.gmra.mxu0 %v1240
  %v1845 = vpop.f32.mrf.mxu0
  %v1846 = vadd.f32 0.0, %v1845
  %v1847 = vpop.f32.mrf.mxu0
  %v1848 = vadd.f32 0.0, %v1847
  %1849 = vmatmul.bf16.gmra.mxu0 %v1243
  %v1850 = vpop.f32.mrf.mxu0
  %v1851 = vadd.f32 0.0, %v1850
  %v1852 = vpop.f32.mrf.mxu0
  %v1853 = vadd.f32 0.0, %v1852
  %1854 = vmatmul.bf16.gmra.mxu0 %v1246
  %v1855 = vpop.f32.mrf.mxu0
  %v1856 = vadd.f32 0.0, %v1855
  %v1857 = vpop.f32.mrf.mxu0
  %v1858 = vadd.f32 0.0, %v1857
  %1859 = vmatmul.bf16.gmra.mxu0 %v1249
  %v1860 = vpop.f32.mrf.mxu0
  %v1861 = vadd.f32 0.0, %v1860
  %v1862 = vpop.f32.mrf.mxu0
  %v1863 = vadd.f32 0.0, %v1862
  %1864 = vmatmul.bf16.gmra.mxu0 %v1252
  %v1865 = vpop.f32.mrf.mxu0
  %v1866 = vadd.f32 0.0, %v1865
  %v1867 = vpop.f32.mrf.mxu0
  %v1868 = vadd.f32 0.0, %v1867
  %1869 = vmatmul.bf16.gmra.mxu0 %v1255
  %v1870 = vpop.f32.mrf.mxu0
  %v1871 = vadd.f32 0.0, %v1870
  %v1872 = vpop.f32.mrf.mxu0
  %v1873 = vadd.f32 0.0, %v1872
  %1874 = vmatmul.bf16.gmra.mxu0 %v1258
  %v1875 = vpop.f32.mrf.mxu0
  %v1876 = vadd.f32 0.0, %v1875
  %v1877 = vpop.f32.mrf.mxu0
  %v1878 = vadd.f32 0.0, %v1877
  %1879 = vmatmul.bf16.gmra.mxu0 %v1261
  %v1880 = vpop.f32.mrf.mxu0
  %v1881 = vadd.f32 0.0, %v1880
  %v1882 = vpop.f32.mrf.mxu0
  %v1883 = vadd.f32 0.0, %v1882
  %1884 = vmatmul.bf16.gmra.mxu0 %v1264
  %v1885 = vpop.f32.mrf.mxu0
  %v1886 = vadd.f32 0.0, %v1885
  %v1887 = vpop.f32.mrf.mxu0
  %v1888 = vadd.f32 0.0, %v1887
  %1889 = vmatmul.bf16.gmra.mxu0 %v1267
  %v1890 = vpop.f32.mrf.mxu0
  %v1891 = vadd.f32 0.0, %v1890
  %v1892 = vpop.f32.mrf.mxu0
  %v1893 = vadd.f32 0.0, %v1892
  %1894 = vmatmul.bf16.gmra.mxu0 %v1270
  %v1895 = vpop.f32.mrf.mxu0
  %v1896 = vadd.f32 0.0, %v1895
  %v1897 = vpop.f32.mrf.mxu0
  %v1898 = vadd.f32 0.0, %v1897
  %1899 = vmatmul.bf16.gmra.mxu0 %v1273
  %v1900 = vpop.f32.mrf.mxu0
  %v1901 = vadd.f32 0.0, %v1900
  %v1902 = vpop.f32.mrf.mxu0
  %v1903 = vadd.f32 0.0, %v1902
  %1904 = vmatmul.bf16.gmra.mxu0 %v1276
  %v1905 = vpop.f32.mrf.mxu0
  %v1906 = vadd.f32 0.0, %v1905
  %v1907 = vpop.f32.mrf.mxu0
  %v1908 = vadd.f32 0.0, %v1907
  %1909 = vmatmul.bf16.gmra.mxu0 %v1279
  %v1910 = vpop.f32.mrf.mxu0
  %v1911 = vadd.f32 0.0, %v1910
  %v1912 = vpop.f32.mrf.mxu0
  %v1913 = vadd.f32 0.0, %v1912
  %1914 = vmatmul.bf16.gmra.mxu0 %v1282
  %v1915 = vpop.f32.mrf.mxu0
  %v1916 = vadd.f32 0.0, %v1915
  %v1917 = vpop.f32.mrf.mxu0
  %v1918 = vadd.f32 0.0, %v1917
  %1919 = vmatmul.bf16.gmra.mxu0 %v1285
  %v1920 = vpop.f32.mrf.mxu0
  %v1921 = vadd.f32 0.0, %v1920
  %v1922 = vpop.f32.mrf.mxu0
  %v1923 = vadd.f32 0.0, %v1922
  %1924 = vmatmul.bf16.gmra.mxu0 %v1288
  %v1925 = vpop.f32.mrf.mxu0
  %v1926 = vadd.f32 0.0, %v1925
  %v1927 = vpop.f32.mrf.mxu0
  %v1928 = vadd.f32 0.0, %v1927
  %1929 = vmatmul.bf16.gmra.mxu0 %v1291
  %v1930 = vpop.f32.mrf.mxu0
  %v1931 = vadd.f32 0.0, %v1930
  %v1932 = vpop.f32.mrf.mxu0
  %v1933 = vadd.f32 0.0, %v1932
  %1934 = vmatmul.bf16.gmra.mxu0 %v1294
  %v1935 = vpop.f32.mrf.mxu0
  %v1936 = vadd.f32 0.0, %v1935
  %v1937 = vpop.f32.mrf.mxu0
  %v1938 = vadd.f32 0.0, %v1937
  %1939 = vmatmul.bf16.gmra.mxu0 %v1297
  %v1940 = vpop.f32.mrf.mxu0
  %v1941 = vadd.f32 0.0, %v1940
  %v1942 = vpop.f32.mrf.mxu0
  %v1943 = vadd.f32 0.0, %v1942
  %1944 = vmatmul.bf16.gmra.mxu0 %v1300
  %v1945 = vpop.f32.mrf.mxu0
  %v1946 = vadd.f32 0.0, %v1945
  %v1947 = vpop.f32.mrf.mxu0
  %v1948 = vadd.f32 0.0, %v1947
  %1949 = vmatmul.bf16.gmra.mxu0 %v1303
  %v1950 = vpop.f32.mrf.mxu0
  %v1951 = vadd.f32 0.0, %v1950
  %v1952 = vpop.f32.mrf.mxu0
  %v1953 = vadd.f32 0.0, %v1952
  %1954 = vmatmul.bf16.gmra.mxu0 %v1306
  %v1955 = vpop.f32.mrf.mxu0
  %v1956 = vadd.f32 0.0, %v1955
  %v1957 = vpop.f32.mrf.mxu0
  %v1958 = vadd.f32 0.0, %v1957
  %1959 = vmatmul.bf16.gmra.mxu0 %v1309
  %v1960 = vpop.f32.mrf.mxu0
  %v1961 = vadd.f32 0.0, %v1960
  %v1962 = vpop.f32.mrf.mxu0
  %v1963 = vadd.f32 0.0, %v1962
  %1964 = vmatmul.bf16.gmra.mxu0 %v1312
  %v1965 = vpop.f32.mrf.mxu0
  %v1966 = vadd.f32 0.0, %v1965
  %v1967 = vpop.f32.mrf.mxu0
  %v1968 = vadd.f32 0.0, %v1967
  %1969 = vdwg.mxu0
  %v1970 = vld [vmem:[%s2] sm:$0x1]
  %v1971 = vld [vmem:[%s3] sm:$0x1]
  %vm1972 = vcmask 64512
  %v1973 = vsel %vm1972, %v1331, 0.0
  %v1974 = vsel %vm1972, %v1333, 0.0
  %v1975 = vadd.f32 %v1973, %v1974
  %v1976 = vsel %vm1972, %v1336, 0.0
  %v1977 = vadd.f32 %v1975, %v1976
  %v1978 = vsel %vm1972, %v1338, 0.0
  %v1979 = vadd.f32 %v1977, %v1978
  %v1980 = vsel %vm1972, %v1341, 0.0
  %v1981 = vadd.f32 %v1979, %v1980
  %v1982 = vsel %vm1972, %v1343, 0.0
  %v1983 = vadd.f32 %v1981, %v1982
  %v1984 = vsel %vm1972, %v1346, 0.0
  %v1985 = vadd.f32 %v1983, %v1984
  %v1986 = vsel %vm1972, %v1348, 0.0
  %v1987 = vadd.f32 %v1985, %v1986
  %v1988 = vsel %vm1972, %v1351, 0.0
  %v1989 = vadd.f32 %v1987, %v1988
  %v1990 = vsel %vm1972, %v1353, 0.0
  %v1991 = vadd.f32 %v1989, %v1990
  %v1992 = vsel %vm1972, %v1356, 0.0
  %v1993 = vadd.f32 %v1991, %v1992
  %v1994 = vsel %vm1972, %v1358, 0.0
  %v1995 = vadd.f32 %v1993, %v1994
  %v1996 = vsel %vm1972, %v1361, 0.0
  %v1997 = vadd.f32 %v1995, %v1996
  %v1998 = vsel %vm1972, %v1363, 0.0
  %v1999 = vadd.f32 %v1997, %v1998
  %v2000 = vsel %vm1972, %v1366, 0.0
  %v2001 = vadd.f32 %v1999, %v2000
  %v2002 = vsel %vm1972, %v1368, 0.0
  %v2003 = vadd.f32 %v2001, %v2002
  %v2004 = vsel %vm1972, %v1371, 0.0
  %v2005 = vadd.f32 %v2003, %v2004
  %v2006 = vsel %vm1972, %v1373, 0.0
  %v2007 = vadd.f32 %v2005, %v2006
  %v2008 = vsel %vm1972, %v1376, 0.0
  %v2009 = vadd.f32 %v2007, %v2008
  %v2010 = vsel %vm1972, %v1378, 0.0
  %v2011 = vadd.f32 %v2009, %v2010
  %v2012 = vsel %vm1972, %v1381, 0.0
  %v2013 = vadd.f32 %v2011, %v2012
  %v2014 = vsel %vm1972, %v1383, 0.0
  %v2015 = vadd.f32 %v2013, %v2014
  %v2016 = vsel %vm1972, %v1386, 0.0
  %v2017 = vadd.f32 %v2015, %v2016
  %v2018 = vsel %vm1972, %v1388, 0.0
  %v2019 = vadd.f32 %v2017, %v2018
  %v2020 = vsel %vm1972, %v1391, 0.0
  %v2021 = vadd.f32 %v2019, %v2020
  %v2022 = vsel %vm1972, %v1393, 0.0
  %v2023 = vadd.f32 %v2021, %v2022
  %v2024 = vsel %vm1972, %v1396, 0.0
  %v2025 = vadd.f32 %v2023, %v2024
  %v2026 = vsel %vm1972, %v1398, 0.0
  %v2027 = vadd.f32 %v2025, %v2026
  %v2028 = vsel %vm1972, %v1401, 0.0
  %v2029 = vadd.f32 %v2027, %v2028
  %v2030 = vsel %vm1972, %v1403, 0.0
  %v2031 = vadd.f32 %v2029, %v2030
  %v2032 = vsel %vm1972, %v1406, 0.0
  %v2033 = vadd.f32 %v2031, %v2032
  %v2034 = vsel %vm1972, %v1408, 0.0
  %v2035 = vadd.f32 %v2033, %v2034
  %v2036 = vsel %vm1972, %v1411, 0.0
  %v2037 = vadd.f32 %v2035, %v2036
  %v2038 = vsel %vm1972, %v1413, 0.0
  %v2039 = vadd.f32 %v2037, %v2038
  %v2040 = vsel %vm1972, %v1416, 0.0
  %v2041 = vadd.f32 %v2039, %v2040
  %v2042 = vsel %vm1972, %v1418, 0.0
  %v2043 = vadd.f32 %v2041, %v2042
  %v2044 = vsel %vm1972, %v1421, 0.0
  %v2045 = vadd.f32 %v2043, %v2044
  %v2046 = vsel %vm1972, %v1423, 0.0
  %v2047 = vadd.f32 %v2045, %v2046
  %v2048 = vsel %vm1972, %v1426, 0.0
  %v2049 = vadd.f32 %v2047, %v2048
  %v2050 = vsel %vm1972, %v1428, 0.0
  %v2051 = vadd.f32 %v2049, %v2050
  %v2052 = vsel %vm1972, %v1431, 0.0
  %v2053 = vadd.f32 %v2051, %v2052
  %v2054 = vsel %vm1972, %v1433, 0.0
  %v2055 = vadd.f32 %v2053, %v2054
  %v2056 = vsel %vm1972, %v1436, 0.0
  %v2057 = vadd.f32 %v2055, %v2056
  %v2058 = vsel %vm1972, %v1438, 0.0
  %v2059 = vadd.f32 %v2057, %v2058
  %v2060 = vsel %vm1972, %v1441, 0.0
  %v2061 = vadd.f32 %v2059, %v2060
  %v2062 = vsel %vm1972, %v1443, 0.0
  %v2063 = vadd.f32 %v2061, %v2062
  %v2064 = vsel %vm1972, %v1446, 0.0
  %v2065 = vadd.f32 %v2063, %v2064
  %v2066 = vsel %vm1972, %v1448, 0.0
  %v2067 = vadd.f32 %v2065, %v2066
  %v2068 = vsel %vm1972, %v1451, 0.0
  %v2069 = vadd.f32 %v2067, %v2068
  %v2070 = vsel %vm1972, %v1453, 0.0
  %v2071 = vadd.f32 %v2069, %v2070
  %v2072 = vsel %vm1972, %v1456, 0.0
  %v2073 = vadd.f32 %v2071, %v2072
  %v2074 = vsel %vm1972, %v1458, 0.0
  %v2075 = vadd.f32 %v2073, %v2074
  %v2076 = vsel %vm1972, %v1461, 0.0
  %v2077 = vadd.f32 %v2075, %v2076
  %v2078 = vsel %vm1972, %v1463, 0.0
  %v2079 = vadd.f32 %v2077, %v2078
  %v2080 = vsel %vm1972, %v1466, 0.0
  %v2081 = vadd.f32 %v2079, %v2080
  %v2082 = vsel %vm1972, %v1468, 0.0
  %v2083 = vadd.f32 %v2081, %v2082
  %v2084 = vsel %vm1972, %v1471, 0.0
  %v2085 = vadd.f32 %v2083, %v2084
  %v2086 = vsel %vm1972, %v1473, 0.0
  %v2087 = vadd.f32 %v2085, %v2086
  %v2088 = vsel %vm1972, %v1476, 0.0
  %v2089 = vadd.f32 %v2087, %v2088
  %v2090 = vsel %vm1972, %v1478, 0.0
  %v2091 = vadd.f32 %v2089, %v2090
  %v2092 = vsel %vm1972, %v1481, 0.0
  %v2093 = vadd.f32 %v2091, %v2092
  %v2094 = vsel %vm1972, %v1483, 0.0
  %v2095 = vadd.f32 %v2093, %v2094
  %v2096 = vsel %vm1972, %v1486, 0.0
  %v2097 = vadd.f32 %v2095, %v2096
  %v2098 = vsel %vm1972, %v1488, 0.0
  %v2099 = vadd.f32 %v2097, %v2098
  %v2100 = vsel %vm1972, %v1491, 0.0
  %v2101 = vadd.f32 %v2099, %v2100
  %v2102 = vsel %vm1972, %v1493, 0.0
  %v2103 = vadd.f32 %v2101, %v2102
  %v2104 = vsel %vm1972, %v1496, 0.0
  %v2105 = vadd.f32 %v2103, %v2104
  %v2106 = vsel %vm1972, %v1498, 0.0
  %v2107 = vadd.f32 %v2105, %v2106
  %v2108 = vsel %vm1972, %v1501, 0.0
  %v2109 = vadd.f32 %v2107, %v2108
  %v2110 = vsel %vm1972, %v1503, 0.0
  %v2111 = vadd.f32 %v2109, %v2110
  %v2112 = vsel %vm1972, %v1506, 0.0
  %v2113 = vadd.f32 %v2111, %v2112
  %v2114 = vsel %vm1972, %v1508, 0.0
  %v2115 = vadd.f32 %v2113, %v2114
  %v2116 = vsel %vm1972, %v1511, 0.0
  %v2117 = vadd.f32 %v2115, %v2116
  %v2118 = vsel %vm1972, %v1513, 0.0
  %v2119 = vadd.f32 %v2117, %v2118
  %v2120 = vsel %vm1972, %v1516, 0.0
  %v2121 = vadd.f32 %v2119, %v2120
  %v2122 = vsel %vm1972, %v1518, 0.0
  %v2123 = vadd.f32 %v2121, %v2122
  %v2124 = vsel %vm1972, %v1521, 0.0
  %v2125 = vadd.f32 %v2123, %v2124
  %v2126 = vsel %vm1972, %v1523, 0.0
  %v2127 = vadd.f32 %v2125, %v2126
  %v2128 = vsel %vm1972, %v1526, 0.0
  %v2129 = vadd.f32 %v2127, %v2128
  %v2130 = vsel %vm1972, %v1528, 0.0
  %v2131 = vadd.f32 %v2129, %v2130
  %v2132 = vsel %vm1972, %v1531, 0.0
  %v2133 = vadd.f32 %v2131, %v2132
  %v2134 = vsel %vm1972, %v1533, 0.0
  %v2135 = vadd.f32 %v2133, %v2134
  %v2136 = vsel %vm1972, %v1536, 0.0
  %v2137 = vadd.f32 %v2135, %v2136
  %v2138 = vsel %vm1972, %v1538, 0.0
  %v2139 = vadd.f32 %v2137, %v2138
  %v2140 = vsel %vm1972, %v1541, 0.0
  %v2141 = vadd.f32 %v2139, %v2140
  %v2142 = vsel %vm1972, %v1543, 0.0
  %v2143 = vadd.f32 %v2141, %v2142
  %v2144 = vsel %vm1972, %v1546, 0.0
  %v2145 = vadd.f32 %v2143, %v2144
  %v2146 = vsel %vm1972, %v1548, 0.0
  %v2147 = vadd.f32 %v2145, %v2146
  %v2148 = vsel %vm1972, %v1551, 0.0
  %v2149 = vadd.f32 %v2147, %v2148
  %v2150 = vsel %vm1972, %v1553, 0.0
  %v2151 = vadd.f32 %v2149, %v2150
  %v2152 = vsel %vm1972, %v1556, 0.0
  %v2153 = vadd.f32 %v2151, %v2152
  %v2154 = vsel %vm1972, %v1558, 0.0
  %v2155 = vadd.f32 %v2153, %v2154
  %v2156 = vsel %vm1972, %v1561, 0.0
  %v2157 = vadd.f32 %v2155, %v2156
  %v2158 = vsel %vm1972, %v1563, 0.0
  %v2159 = vadd.f32 %v2157, %v2158
  %v2160 = vsel %vm1972, %v1566, 0.0
  %v2161 = vadd.f32 %v2159, %v2160
  %v2162 = vsel %vm1972, %v1568, 0.0
  %v2163 = vadd.f32 %v2161, %v2162
  %v2164 = vsel %vm1972, %v1571, 0.0
  %v2165 = vadd.f32 %v2163, %v2164
  %v2166 = vsel %vm1972, %v1573, 0.0
  %v2167 = vadd.f32 %v2165, %v2166
  %v2168 = vsel %vm1972, %v1576, 0.0
  %v2169 = vadd.f32 %v2167, %v2168
  %v2170 = vsel %vm1972, %v1578, 0.0
  %v2171 = vadd.f32 %v2169, %v2170
  %v2172 = vsel %vm1972, %v1581, 0.0
  %v2173 = vadd.f32 %v2171, %v2172
  %v2174 = vsel %vm1972, %v1583, 0.0
  %v2175 = vadd.f32 %v2173, %v2174
  %v2176 = vsel %vm1972, %v1586, 0.0
  %v2177 = vadd.f32 %v2175, %v2176
  %v2178 = vsel %vm1972, %v1588, 0.0
  %v2179 = vadd.f32 %v2177, %v2178
  %v2180 = vsel %vm1972, %v1591, 0.0
  %v2181 = vadd.f32 %v2179, %v2180
  %v2182 = vsel %vm1972, %v1593, 0.0
  %v2183 = vadd.f32 %v2181, %v2182
  %v2184 = vsel %vm1972, %v1596, 0.0
  %v2185 = vadd.f32 %v2183, %v2184
  %v2186 = vsel %vm1972, %v1598, 0.0
  %v2187 = vadd.f32 %v2185, %v2186
  %v2188 = vsel %vm1972, %v1601, 0.0
  %v2189 = vadd.f32 %v2187, %v2188
  %v2190 = vsel %vm1972, %v1603, 0.0
  %v2191 = vadd.f32 %v2189, %v2190
  %v2192 = vsel %vm1972, %v1606, 0.0
  %v2193 = vadd.f32 %v2191, %v2192
  %v2194 = vsel %vm1972, %v1608, 0.0
  %v2195 = vadd.f32 %v2193, %v2194
  %v2196 = vsel %vm1972, %v1611, 0.0
  %v2197 = vadd.f32 %v2195, %v2196
  %v2198 = vsel %vm1972, %v1613, 0.0
  %v2199 = vadd.f32 %v2197, %v2198
  %v2200 = vsel %vm1972, %v1616, 0.0
  %v2201 = vadd.f32 %v2199, %v2200
  %v2202 = vsel %vm1972, %v1618, 0.0
  %v2203 = vadd.f32 %v2201, %v2202
  %v2204 = vsel %vm1972, %v1621, 0.0
  %v2205 = vadd.f32 %v2203, %v2204
  %v2206 = vsel %vm1972, %v1623, 0.0
  %v2207 = vadd.f32 %v2205, %v2206
  %v2208 = vsel %vm1972, %v1626, 0.0
  %v2209 = vadd.f32 %v2207, %v2208
  %v2210 = vsel %vm1972, %v1628, 0.0
  %v2211 = vadd.f32 %v2209, %v2210
  %v2212 = vsel %vm1972, %v1631, 0.0
  %v2213 = vadd.f32 %v2211, %v2212
  %v2214 = vsel %vm1972, %v1633, 0.0
  %v2215 = vadd.f32 %v2213, %v2214
  %v2216 = vsel %vm1972, %v1636, 0.0
  %v2217 = vadd.f32 %v2215, %v2216
  %v2218 = vsel %vm1972, %v1638, 0.0
  %v2219 = vadd.f32 %v2217, %v2218
  %v2220 = vsel %vm1972, %v1641, 0.0
  %v2221 = vadd.f32 %v2219, %v2220
  %v2222 = vsel %vm1972, %v1643, 0.0
  %v2223 = vadd.f32 %v2221, %v2222
  %v2224 = vsel %vm1972, %v1646, 0.0
  %v2225 = vadd.f32 %v2223, %v2224
  %v2226 = vsel %vm1972, %v1648, 0.0
  %v2227 = vadd.f32 %v2225, %v2226
  %v2228 = vsel %vm1972, %v1651, 0.0
  %v2229 = vadd.f32 %v2227, %v2228
  %v2230 = vsel %vm1972, %v1653, 0.0
  %v2231 = vadd.f32 %v2229, %v2230
  %v2232 = vsel %vm1972, %v1656, 0.0
  %v2233 = vadd.f32 %v2231, %v2232
  %v2234 = vsel %vm1972, %v1658, 0.0
  %v2235 = vadd.f32 %v2233, %v2234
  %v2236 = vsel %vm1972, %v1661, 0.0
  %v2237 = vadd.f32 %v2235, %v2236
  %v2238 = vsel %vm1972, %v1663, 0.0
  %v2239 = vadd.f32 %v2237, %v2238
  %v2240 = vsel %vm1972, %v1666, 0.0
  %v2241 = vadd.f32 %v2239, %v2240
  %v2242 = vsel %vm1972, %v1668, 0.0
  %v2243 = vadd.f32 %v2241, %v2242
  %v2244 = vsel %vm1972, %v1671, 0.0
  %v2245 = vadd.f32 %v2243, %v2244
  %v2246 = vsel %vm1972, %v1673, 0.0
  %v2247 = vadd.f32 %v2245, %v2246
  %v2248 = vsel %vm1972, %v1676, 0.0
  %v2249 = vadd.f32 %v2247, %v2248
  %v2250 = vsel %vm1972, %v1678, 0.0
  %v2251 = vadd.f32 %v2249, %v2250
  %v2252 = vsel %vm1972, %v1681, 0.0
  %v2253 = vadd.f32 %v2251, %v2252
  %v2254 = vsel %vm1972, %v1683, 0.0
  %v2255 = vadd.f32 %v2253, %v2254
  %v2256 = vsel %vm1972, %v1686, 0.0
  %v2257 = vadd.f32 %v2255, %v2256
  %v2258 = vsel %vm1972, %v1688, 0.0
  %v2259 = vadd.f32 %v2257, %v2258
  %v2260 = vsel %vm1972, %v1691, 0.0
  %v2261 = vadd.f32 %v2259, %v2260
  %v2262 = vsel %vm1972, %v1693, 0.0
  %v2263 = vadd.f32 %v2261, %v2262
  %v2264 = vsel %vm1972, %v1696, 0.0
  %v2265 = vadd.f32 %v2263, %v2264
  %v2266 = vsel %vm1972, %v1698, 0.0
  %v2267 = vadd.f32 %v2265, %v2266
  %v2268 = vsel %vm1972, %v1701, 0.0
  %v2269 = vadd.f32 %v2267, %v2268
  %v2270 = vsel %vm1972, %v1703, 0.0
  %v2271 = vadd.f32 %v2269, %v2270
  %v2272 = vsel %vm1972, %v1706, 0.0
  %v2273 = vadd.f32 %v2271, %v2272
  %v2274 = vsel %vm1972, %v1708, 0.0
  %v2275 = vadd.f32 %v2273, %v2274
  %v2276 = vsel %vm1972, %v1711, 0.0
  %v2277 = vadd.f32 %v2275, %v2276
  %v2278 = vsel %vm1972, %v1713, 0.0
  %v2279 = vadd.f32 %v2277, %v2278
  %v2280 = vsel %vm1972, %v1716, 0.0
  %v2281 = vadd.f32 %v2279, %v2280
  %v2282 = vsel %vm1972, %v1718, 0.0
  %v2283 = vadd.f32 %v2281, %v2282
  %v2284 = vsel %vm1972, %v1721, 0.0
  %v2285 = vadd.f32 %v2283, %v2284
  %v2286 = vsel %vm1972, %v1723, 0.0
  %v2287 = vadd.f32 %v2285, %v2286
  %v2288 = vsel %vm1972, %v1726, 0.0
  %v2289 = vadd.f32 %v2287, %v2288
  %v2290 = vsel %vm1972, %v1728, 0.0
  %v2291 = vadd.f32 %v2289, %v2290
  %v2292 = vsel %vm1972, %v1731, 0.0
  %v2293 = vadd.f32 %v2291, %v2292
  %v2294 = vsel %vm1972, %v1733, 0.0
  %v2295 = vadd.f32 %v2293, %v2294
  %v2296 = vsel %vm1972, %v1736, 0.0
  %v2297 = vadd.f32 %v2295, %v2296
  %v2298 = vsel %vm1972, %v1738, 0.0
  %v2299 = vadd.f32 %v2297, %v2298
  %v2300 = vsel %vm1972, %v1741, 0.0
  %v2301 = vadd.f32 %v2299, %v2300
  %v2302 = vsel %vm1972, %v1743, 0.0
  %v2303 = vadd.f32 %v2301, %v2302
  %v2304 = vsel %vm1972, %v1746, 0.0
  %v2305 = vadd.f32 %v2303, %v2304
  %v2306 = vsel %vm1972, %v1748, 0.0
  %v2307 = vadd.f32 %v2305, %v2306
  %v2308 = vsel %vm1972, %v1751, 0.0
  %v2309 = vadd.f32 %v2307, %v2308
  %v2310 = vsel %vm1972, %v1753, 0.0
  %v2311 = vadd.f32 %v2309, %v2310
  %v2312 = vsel %vm1972, %v1756, 0.0
  %v2313 = vadd.f32 %v2311, %v2312
  %v2314 = vsel %vm1972, %v1758, 0.0
  %v2315 = vadd.f32 %v2313, %v2314
  %v2316 = vsel %vm1972, %v1761, 0.0
  %v2317 = vadd.f32 %v2315, %v2316
  %v2318 = vsel %vm1972, %v1763, 0.0
  %v2319 = vadd.f32 %v2317, %v2318
  %v2320 = vsel %vm1972, %v1766, 0.0
  %v2321 = vadd.f32 %v2319, %v2320
  %v2322 = vsel %vm1972, %v1768, 0.0
  %v2323 = vadd.f32 %v2321, %v2322
  %v2324 = vsel %vm1972, %v1771, 0.0
  %v2325 = vadd.f32 %v2323, %v2324
  %v2326 = vsel %vm1972, %v1773, 0.0
  %v2327 = vadd.f32 %v2325, %v2326
  %v2328 = vsel %vm1972, %v1776, 0.0
  %v2329 = vadd.f32 %v2327, %v2328
  %v2330 = vsel %vm1972, %v1778, 0.0
  %v2331 = vadd.f32 %v2329, %v2330
  %v2332 = vsel %vm1972, %v1781, 0.0
  %v2333 = vadd.f32 %v2331, %v2332
  %v2334 = vsel %vm1972, %v1783, 0.0
  %v2335 = vadd.f32 %v2333, %v2334
  %v2336 = vsel %vm1972, %v1786, 0.0
  %v2337 = vadd.f32 %v2335, %v2336
  %v2338 = vsel %vm1972, %v1788, 0.0
  %v2339 = vadd.f32 %v2337, %v2338
  %v2340 = vsel %vm1972, %v1791, 0.0
  %v2341 = vadd.f32 %v2339, %v2340
  %v2342 = vsel %vm1972, %v1793, 0.0
  %v2343 = vadd.f32 %v2341, %v2342
  %v2344 = vsel %vm1972, %v1796, 0.0
  %v2345 = vadd.f32 %v2343, %v2344
  %v2346 = vsel %vm1972, %v1798, 0.0
  %v2347 = vadd.f32 %v2345, %v2346
  %v2348 = vsel %vm1972, %v1801, 0.0
  %v2349 = vadd.f32 %v2347, %v2348
  %v2350 = vsel %vm1972, %v1803, 0.0
  %v2351 = vadd.f32 %v2349, %v2350
  %v2352 = vsel %vm1972, %v1806, 0.0
  %v2353 = vadd.f32 %v2351, %v2352
  %v2354 = vsel %vm1972, %v1808, 0.0
  %v2355 = vadd.f32 %v2353, %v2354
  %v2356 = vsel %vm1972, %v1811, 0.0
  %v2357 = vadd.f32 %v2355, %v2356
  %v2358 = vsel %vm1972, %v1813, 0.0
  %v2359 = vadd.f32 %v2357, %v2358
  %v2360 = vsel %vm1972, %v1816, 0.0
  %v2361 = vadd.f32 %v2359, %v2360
  %v2362 = vsel %vm1972, %v1818, 0.0
  %v2363 = vadd.f32 %v2361, %v2362
  %v2364 = vsel %vm1972, %v1821, 0.0
  %v2365 = vadd.f32 %v2363, %v2364
  %v2366 = vsel %vm1972, %v1823, 0.0
  %v2367 = vadd.f32 %v2365, %v2366
  %v2368 = vsel %vm1972, %v1826, 0.0
  %v2369 = vadd.f32 %v2367, %v2368
  %v2370 = vsel %vm1972, %v1828, 0.0
  %v2371 = vadd.f32 %v2369, %v2370
  %v2372 = vsel %vm1972, %v1831, 0.0
  %v2373 = vadd.f32 %v2371, %v2372
  %v2374 = vsel %vm1972, %v1833, 0.0
  %v2375 = vadd.f32 %v2373, %v2374
  %v2376 = vsel %vm1972, %v1836, 0.0
  %v2377 = vadd.f32 %v2375, %v2376
  %v2378 = vsel %vm1972, %v1838, 0.0
  %v2379 = vadd.f32 %v2377, %v2378
  %v2380 = vsel %vm1972, %v1841, 0.0
  %v2381 = vadd.f32 %v2379, %v2380
  %v2382 = vsel %vm1972, %v1843, 0.0
  %v2383 = vadd.f32 %v2381, %v2382
  %v2384 = vsel %vm1972, %v1846, 0.0
  %v2385 = vadd.f32 %v2383, %v2384
  %v2386 = vsel %vm1972, %v1848, 0.0
  %v2387 = vadd.f32 %v2385, %v2386
  %v2388 = vsel %vm1972, %v1851, 0.0
  %v2389 = vadd.f32 %v2387, %v2388
  %v2390 = vsel %vm1972, %v1853, 0.0
  %v2391 = vadd.f32 %v2389, %v2390
  %v2392 = vsel %vm1972, %v1856, 0.0
  %v2393 = vadd.f32 %v2391, %v2392
  %v2394 = vsel %vm1972, %v1858, 0.0
  %v2395 = vadd.f32 %v2393, %v2394
  %v2396 = vsel %vm1972, %v1861, 0.0
  %v2397 = vadd.f32 %v2395, %v2396
  %v2398 = vsel %vm1972, %v1863, 0.0
  %v2399 = vadd.f32 %v2397, %v2398
  %v2400 = vsel %vm1972, %v1866, 0.0
  %v2401 = vadd.f32 %v2399, %v2400
  %v2402 = vsel %vm1972, %v1868, 0.0
  %v2403 = vadd.f32 %v2401, %v2402
  %v2404 = vsel %vm1972, %v1871, 0.0
  %v2405 = vadd.f32 %v2403, %v2404
  %v2406 = vsel %vm1972, %v1873, 0.0
  %v2407 = vadd.f32 %v2405, %v2406
  %v2408 = vsel %vm1972, %v1876, 0.0
  %v2409 = vadd.f32 %v2407, %v2408
  %v2410 = vsel %vm1972, %v1878, 0.0
  %v2411 = vadd.f32 %v2409, %v2410
  %v2412 = vsel %vm1972, %v1881, 0.0
  %v2413 = vadd.f32 %v2411, %v2412
  %v2414 = vsel %vm1972, %v1883, 0.0
  %v2415 = vadd.f32 %v2413, %v2414
  %v2416 = vsel %vm1972, %v1886, 0.0
  %v2417 = vadd.f32 %v2415, %v2416
  %v2418 = vsel %vm1972, %v1888, 0.0
  %v2419 = vadd.f32 %v2417, %v2418
  %v2420 = vsel %vm1972, %v1891, 0.0
  %v2421 = vadd.f32 %v2419, %v2420
  %v2422 = vsel %vm1972, %v1893, 0.0
  %v2423 = vadd.f32 %v2421, %v2422
  %v2424 = vsel %vm1972, %v1896, 0.0
  %v2425 = vadd.f32 %v2423, %v2424
  %v2426 = vsel %vm1972, %v1898, 0.0
  %v2427 = vadd.f32 %v2425, %v2426
  %v2428 = vsel %vm1972, %v1901, 0.0
  %v2429 = vadd.f32 %v2427, %v2428
  %v2430 = vsel %vm1972, %v1903, 0.0
  %v2431 = vadd.f32 %v2429, %v2430
  %v2432 = vsel %vm1972, %v1906, 0.0
  %v2433 = vadd.f32 %v2431, %v2432
  %v2434 = vsel %vm1972, %v1908, 0.0
  %v2435 = vadd.f32 %v2433, %v2434
  %v2436 = vsel %vm1972, %v1911, 0.0
  %v2437 = vadd.f32 %v2435, %v2436
  %v2438 = vsel %vm1972, %v1913, 0.0
  %v2439 = vadd.f32 %v2437, %v2438
  %v2440 = vsel %vm1972, %v1916, 0.0
  %v2441 = vadd.f32 %v2439, %v2440
  %v2442 = vsel %vm1972, %v1918, 0.0
  %v2443 = vadd.f32 %v2441, %v2442
  %v2444 = vsel %vm1972, %v1921, 0.0
  %v2445 = vadd.f32 %v2443, %v2444
  %v2446 = vsel %vm1972, %v1923, 0.0
  %v2447 = vadd.f32 %v2445, %v2446
  %v2448 = vsel %vm1972, %v1926, 0.0
  %v2449 = vadd.f32 %v2447, %v2448
  %v2450 = vsel %vm1972, %v1928, 0.0
  %v2451 = vadd.f32 %v2449, %v2450
  %v2452 = vsel %vm1972, %v1931, 0.0
  %v2453 = vadd.f32 %v2451, %v2452
  %v2454 = vsel %vm1972, %v1933, 0.0
  %v2455 = vadd.f32 %v2453, %v2454
  %v2456 = vsel %vm1972, %v1936, 0.0
  %v2457 = vadd.f32 %v2455, %v2456
  %v2458 = vsel %vm1972, %v1938, 0.0
  %v2459 = vadd.f32 %v2457, %v2458
  %v2460 = vsel %vm1972, %v1941, 0.0
  %v2461 = vadd.f32 %v2459, %v2460
  %v2462 = vsel %vm1972, %v1943, 0.0
  %v2463 = vadd.f32 %v2461, %v2462
  %v2464 = vsel %vm1972, %v1946, 0.0
  %v2465 = vadd.f32 %v2463, %v2464
  %v2466 = vsel %vm1972, %v1948, 0.0
  %v2467 = vadd.f32 %v2465, %v2466
  %v2468 = vsel %vm1972, %v1951, 0.0
  %v2469 = vadd.f32 %v2467, %v2468
  %v2470 = vsel %vm1972, %v1953, 0.0
  %v2471 = vadd.f32 %v2469, %v2470
  %v2472 = vsel %vm1972, %v1956, 0.0
  %v2473 = vadd.f32 %v2471, %v2472
  %v2474 = vsel %vm1972, %v1958, 0.0
  %v2475 = vadd.f32 %v2473, %v2474
  %v2476 = vsel %vm1972, %v1961, 0.0
  %v2477 = vadd.f32 %v2475, %v2476
  %v2478 = vsel %vm1972, %v1963, 0.0
  %v2479 = vadd.f32 %v2477, %v2478
  %v2480 = vsel %vm1972, %v1966, 0.0
  %v2481 = vadd.f32 %v2479, %v2480
  %v2482 = vsel %vm1972, %v1968, 0.0
  %v2483 = vadd.f32 %v2481, %v2482
  %v2484 = vrot.slane %v2483, 4
  %v2485 = vadd.f32 %v2483, %v2484
  %v2486 = vrot.slane %v2485, 2
  %v2487 = vadd.f32 %v2485, %v2486
  %v2488 = vrot.slane %v2487, 1
  %v2489 = vadd.f32 %v2487, %v2488
  %v2490 = vrcp.pop 2048.0
  %v2491 = vmul.f32 2048.0, %v2490
  %v2492 = vsub.f32 1.0, %v2491
  %v2493 = vmul.f32 %v2490, %v2492
  %v2494 = vadd.f32 %v2490, %v2493
  %vm2495 = vweird.f32 %v2490
  %v2496 = vsel %vm2495, %v2490, %v2494
  %v2497 = vmul.f32 %v2489, %v2496
  %v2498 = vsub.f32 %v1331, %v2497
  %v2499 = vsub.f32 %v1333, %v2497
  %v2500 = vsub.f32 %v1336, %v2497
  %v2501 = vsub.f32 %v1338, %v2497
  %v2502 = vsub.f32 %v1341, %v2497
  %v2503 = vsub.f32 %v1343, %v2497
  %v2504 = vsub.f32 %v1346, %v2497
  %v2505 = vsub.f32 %v1348, %v2497
  %v2506 = vsub.f32 %v1351, %v2497
  %v2507 = vsub.f32 %v1353, %v2497
  %v2508 = vsub.f32 %v1356, %v2497
  %v2509 = vsub.f32 %v1358, %v2497
  %v2510 = vsub.f32 %v1361, %v2497
  %v2511 = vsub.f32 %v1363, %v2497
  %v2512 = vsub.f32 %v1366, %v2497
  %v2513 = vsub.f32 %v1368, %v2497
  %v2514 = vsub.f32 %v1371, %v2497
  %v2515 = vsub.f32 %v1373, %v2497
  %v2516 = vsub.f32 %v1376, %v2497
  %v2517 = vsub.f32 %v1378, %v2497
  %v2518 = vsub.f32 %v1381, %v2497
  %v2519 = vsub.f32 %v1383, %v2497
  %v2520 = vsub.f32 %v1386, %v2497
  %v2521 = vsub.f32 %v1388, %v2497
  %v2522 = vsub.f32 %v1391, %v2497
  %v2523 = vsub.f32 %v1393, %v2497
  %v2524 = vsub.f32 %v1396, %v2497
  %v2525 = vsub.f32 %v1398, %v2497
  %v2526 = vsub.f32 %v1401, %v2497
  %v2527 = vsub.f32 %v1403, %v2497
  %v2528 = vsub.f32 %v1406, %v2497
  %v2529 = vsub.f32 %v1408, %v2497
  %v2530 = vsub.f32 %v1411, %v2497
  %v2531 = vsub.f32 %v1413, %v2497
  %v2532 = vsub.f32 %v1416, %v2497
  %v2533 = vsub.f32 %v1418, %v2497
  %v2534 = vsub.f32 %v1421, %v2497
  %v2535 = vsub.f32 %v1423, %v2497
  %v2536 = vsub.f32 %v1426, %v2497
  %v2537 = vsub.f32 %v1428, %v2497
  %v2538 = vsub.f32 %v1431, %v2497
  %v2539 = vsub.f32 %v1433, %v2497
  %v2540 = vsub.f32 %v1436, %v2497
  %v2541 = vsub.f32 %v1438, %v2497
  %v2542 = vsub.f32 %v1441, %v2497
  %v2543 = vsub.f32 %v1443, %v2497
  %v2544 = vsub.f32 %v1446, %v2497
  %v2545 = vsub.f32 %v1448, %v2497
  %v2546 = vsub.f32 %v1451, %v2497
  %v2547 = vsub.f32 %v1453, %v2497
  %v2548 = vsub.f32 %v1456, %v2497
  %v2549 = vsub.f32 %v1458, %v2497
  %v2550 = vsub.f32 %v1461, %v2497
  %v2551 = vsub.f32 %v1463, %v2497
  %v2552 = vsub.f32 %v1466, %v2497
  %v2553 = vsub.f32 %v1468, %v2497
  %v2554 = vsub.f32 %v1471, %v2497
  %v2555 = vsub.f32 %v1473, %v2497
  %v2556 = vsub.f32 %v1476, %v2497
  %v2557 = vsub.f32 %v1478, %v2497
  %v2558 = vsub.f32 %v1481, %v2497
  %v2559 = vsub.f32 %v1483, %v2497
  %v2560 = vsub.f32 %v1486, %v2497
  %v2561 = vsub.f32 %v1488, %v2497
  %v2562 = vsub.f32 %v1491, %v2497
  %v2563 = vsub.f32 %v1493, %v2497
  %v2564 = vsub.f32 %v1496, %v2497
  %v2565 = vsub.f32 %v1498, %v2497
  %v2566 = vsub.f32 %v1501, %v2497
  %v2567 = vsub.f32 %v1503, %v2497
  %v2568 = vsub.f32 %v1506, %v2497
  %v2569 = vsub.f32 %v1508, %v2497
  %v2570 = vsub.f32 %v1511, %v2497
  %v2571 = vsub.f32 %v1513, %v2497
  %v2572 = vsub.f32 %v1516, %v2497
  %v2573 = vsub.f32 %v1518, %v2497
  %v2574 = vsub.f32 %v1521, %v2497
  %v2575 = vsub.f32 %v1523, %v2497
  %v2576 = vsub.f32 %v1526, %v2497
  %v2577 = vsub.f32 %v1528, %v2497
  %v2578 = vsub.f32 %v1531, %v2497
  %v2579 = vsub.f32 %v1533, %v2497
  %v2580 = vsub.f32 %v1536, %v2497
  %v2581 = vsub.f32 %v1538, %v2497
  %v2582 = vsub.f32 %v1541, %v2497
  %v2583 = vsub.f32 %v1543, %v2497
  %v2584 = vsub.f32 %v1546, %v2497
  %v2585 = vsub.f32 %v1548, %v2497
  %v2586 = vsub.f32 %v1551, %v2497
  %v2587 = vsub.f32 %v1553, %v2497
  %v2588 = vsub.f32 %v1556, %v2497
  %v2589 = vsub.f32 %v1558, %v2497
  %v2590 = vsub.f32 %v1561, %v2497
  %v2591 = vsub.f32 %v1563, %v2497
  %v2592 = vsub.f32 %v1566, %v2497
  %v2593 = vsub.f32 %v1568, %v2497
  %v2594 = vsub.f32 %v1571, %v2497
  %v2595 = vsub.f32 %v1573, %v2497
  %v2596 = vsub.f32 %v1576, %v2497
  %v2597 = vsub.f32 %v1578, %v2497
  %v2598 = vsub.f32 %v1581, %v2497
  %v2599 = vsub.f32 %v1583, %v2497
  %v2600 = vsub.f32 %v1586, %v2497
  %v2601 = vsub.f32 %v1588, %v2497
  %v2602 = vsub.f32 %v1591, %v2497
  %v2603 = vsub.f32 %v1593, %v2497
  %v2604 = vsub.f32 %v1596, %v2497
  %v2605 = vsub.f32 %v1598, %v2497
  %v2606 = vsub.f32 %v1601, %v2497
  %v2607 = vsub.f32 %v1603, %v2497
  %v2608 = vsub.f32 %v1606, %v2497
  %v2609 = vsub.f32 %v1608, %v2497
  %v2610 = vsub.f32 %v1611, %v2497
  %v2611 = vsub.f32 %v1613, %v2497
  %v2612 = vsub.f32 %v1616, %v2497
  %v2613 = vsub.f32 %v1618, %v2497
  %v2614 = vsub.f32 %v1621, %v2497
  %v2615 = vsub.f32 %v1623, %v2497
  %v2616 = vsub.f32 %v1626, %v2497
  %v2617 = vsub.f32 %v1628, %v2497
  %v2618 = vsub.f32 %v1631, %v2497
  %v2619 = vsub.f32 %v1633, %v2497
  %v2620 = vsub.f32 %v1636, %v2497
  %v2621 = vsub.f32 %v1638, %v2497
  %v2622 = vsub.f32 %v1641, %v2497
  %v2623 = vsub.f32 %v1643, %v2497
  %v2624 = vsub.f32 %v1646, %v2497
  %v2625 = vsub.f32 %v1648, %v2497
  %v2626 = vsub.f32 %v1651, %v2497
  %v2627 = vsub.f32 %v1653, %v2497
  %v2628 = vsub.f32 %v1656, %v2497
  %v2629 = vsub.f32 %v1658, %v2497
  %v2630 = vsub.f32 %v1661, %v2497
  %v2631 = vsub.f32 %v1663, %v2497
  %v2632 = vsub.f32 %v1666, %v2497
  %v2633 = vsub.f32 %v1668, %v2497
  %v2634 = vsub.f32 %v1671, %v2497
  %v2635 = vsub.f32 %v1673, %v2497
  %v2636 = vsub.f32 %v1676, %v2497
  %v2637 = vsub.f32 %v1678, %v2497
  %v2638 = vsub.f32 %v1681, %v2497
  %v2639 = vsub.f32 %v1683, %v2497
  %v2640 = vsub.f32 %v1686, %v2497
  %v2641 = vsub.f32 %v1688, %v2497
  %v2642 = vsub.f32 %v1691, %v2497
  %v2643 = vsub.f32 %v1693, %v2497
  %v2644 = vsub.f32 %v1696, %v2497
  %v2645 = vsub.f32 %v1698, %v2497
  %v2646 = vsub.f32 %v1701, %v2497
  %v2647 = vsub.f32 %v1703, %v2497
  %v2648 = vsub.f32 %v1706, %v2497
  %v2649 = vsub.f32 %v1708, %v2497
  %v2650 = vsub.f32 %v1711, %v2497
  %v2651 = vsub.f32 %v1713, %v2497
  %v2652 = vsub.f32 %v1716, %v2497
  %v2653 = vsub.f32 %v1718, %v2497
  %v2654 = vsub.f32 %v1721, %v2497
  %v2655 = vsub.f32 %v1723, %v2497
  %v2656 = vsub.f32 %v1726, %v2497
  %v2657 = vsub.f32 %v1728, %v2497
  %v2658 = vsub.f32 %v1731, %v2497
  %v2659 = vsub.f32 %v1733, %v2497
  %v2660 = vsub.f32 %v1736, %v2497
  %v2661 = vsub.f32 %v1738, %v2497
  %v2662 = vsub.f32 %v1741, %v2497
  %v2663 = vsub.f32 %v1743, %v2497
  %v2664 = vsub.f32 %v1746, %v2497
  %v2665 = vsub.f32 %v1748, %v2497
  %v2666 = vsub.f32 %v1751, %v2497
  %v2667 = vsub.f32 %v1753, %v2497
  %v2668 = vsub.f32 %v1756, %v2497
  %v2669 = vsub.f32 %v1758, %v2497
  %v2670 = vsub.f32 %v1761, %v2497
  %v2671 = vsub.f32 %v1763, %v2497
  %v2672 = vsub.f32 %v1766, %v2497
  %v2673 = vsub.f32 %v1768, %v2497
  %v2674 = vsub.f32 %v1771, %v2497
  %v2675 = vsub.f32 %v1773, %v2497
  %v2676 = vsub.f32 %v1776, %v2497
  %v2677 = vsub.f32 %v1778, %v2497
  %v2678 = vsub.f32 %v1781, %v2497
  %v2679 = vsub.f32 %v1783, %v2497
  %v2680 = vsub.f32 %v1786, %v2497
  %v2681 = vsub.f32 %v1788, %v2497
  %v2682 = vsub.f32 %v1791, %v2497
  %v2683 = vsub.f32 %v1793, %v2497
  %v2684 = vsub.f32 %v1796, %v2497
  %v2685 = vsub.f32 %v1798, %v2497
  %v2686 = vsub.f32 %v1801, %v2497
  %v2687 = vsub.f32 %v1803, %v2497
  %v2688 = vsub.f32 %v1806, %v2497
  %v2689 = vsub.f32 %v1808, %v2497
  %v2690 = vsub.f32 %v1811, %v2497
  %v2691 = vsub.f32 %v1813, %v2497
  %v2692 = vsub.f32 %v1816, %v2497
  %v2693 = vsub.f32 %v1818, %v2497
  %v2694 = vsub.f32 %v1821, %v2497
  %v2695 = vsub.f32 %v1823, %v2497
  %v2696 = vsub.f32 %v1826, %v2497
  %v2697 = vsub.f32 %v1828, %v2497
  %v2698 = vsub.f32 %v1831, %v2497
  %v2699 = vsub.f32 %v1833, %v2497
  %v2700 = vsub.f32 %v1836, %v2497
  %v2701 = vsub.f32 %v1838, %v2497
  %v2702 = vsub.f32 %v1841, %v2497
  %v2703 = vsub.f32 %v1843, %v2497
  %v2704 = vsub.f32 %v1846, %v2497
  %v2705 = vsub.f32 %v1848, %v2497
  %v2706 = vsub.f32 %v1851, %v2497
  %v2707 = vsub.f32 %v1853, %v2497
  %v2708 = vsub.f32 %v1856, %v2497
  %v2709 = vsub.f32 %v1858, %v2497
  %v2710 = vsub.f32 %v1861, %v2497
  %v2711 = vsub.f32 %v1863, %v2497
  %v2712 = vsub.f32 %v1866, %v2497
  %v2713 = vsub.f32 %v1868, %v2497
  %v2714 = vsub.f32 %v1871, %v2497
  %v2715 = vsub.f32 %v1873, %v2497
  %v2716 = vsub.f32 %v1876, %v2497
  %v2717 = vsub.f32 %v1878, %v2497
  %v2718 = vsub.f32 %v1881, %v2497
  %v2719 = vsub.f32 %v1883, %v2497
  %v2720 = vsub.f32 %v1886, %v2497
  %v2721 = vsub.f32 %v1888, %v2497
  %v2722 = vsub.f32 %v1891, %v2497
  %v2723 = vsub.f32 %v1893, %v2497
  %v2724 = vsub.f32 %v1896, %v2497
  %v2725 = vsub.f32 %v1898, %v2497
  %v2726 = vsub.f32 %v1901, %v2497
  %v2727 = vsub.f32 %v1903, %v2497
  %v2728 = vsub.f32 %v1906, %v2497
  %v2729 = vsub.f32 %v1908, %v2497
  %v2730 = vsub.f32 %v1911, %v2497
  %v2731 = vsub.f32 %v1913, %v2497
  %v2732 = vsub.f32 %v1916, %v2497
  %v2733 = vsub.f32 %v1918, %v2497
  %v2734 = vsub.f32 %v1921, %v2497
  %v2735 = vsub.f32 %v1923, %v2497
  %v2736 = vsub.f32 %v1926, %v2497
  %v2737 = vsub.f32 %v1928, %v2497
  %v2738 = vsub.f32 %v1931, %v2497
  %v2739 = vsub.f32 %v1933, %v2497
  %v2740 = vsub.f32 %v1936, %v2497
  %v2741 = vsub.f32 %v1938, %v2497
  %v2742 = vsub.f32 %v1941, %v2497
  %v2743 = vsub.f32 %v1943, %v2497
  %v2744 = vsub.f32 %v1946, %v2497
  %v2745 = vsub.f32 %v1948, %v2497
  %v2746 = vsub.f32 %v1951, %v2497
  %v2747 = vsub.f32 %v1953, %v2497
  %v2748 = vsub.f32 %v1956, %v2497
  %v2749 = vsub.f32 %v1958, %v2497
  %v2750 = vsub.f32 %v1961, %v2497
  %v2751 = vsub.f32 %v1963, %v2497
  %v2752 = vsub.f32 %v1966, %v2497
  %v2753 = vsub.f32 %v1968, %v2497
  %v2754 = vmul.f32 %v2498, %v2498
  %v2755 = vmul.f32 %v2499, %v2499
  %v2756 = vmul.f32 %v2500, %v2500
  %v2757 = vmul.f32 %v2501, %v2501
  %v2758 = vmul.f32 %v2502, %v2502
  %v2759 = vmul.f32 %v2503, %v2503
  %v2760 = vmul.f32 %v2504, %v2504
  %v2761 = vmul.f32 %v2505, %v2505
  %v2762 = vmul.f32 %v2506, %v2506
  %v2763 = vmul.f32 %v2507, %v2507
  %v2764 = vmul.f32 %v2508, %v2508
  %v2765 = vmul.f32 %v2509, %v2509
  %v2766 = vmul.f32 %v2510, %v2510
  %v2767 = vmul.f32 %v2511, %v2511
  %v2768 = vmul.f32 %v2512, %v2512
  %v2769 = vmul.f32 %v2513, %v2513
  %v2770 = vmul.f32 %v2514, %v2514
  %v2771 = vmul.f32 %v2515, %v2515
  %v2772 = vmul.f32 %v2516, %v2516
  %v2773 = vmul.f32 %v2517, %v2517
  %v2774 = vmul.f32 %v2518, %v2518
  %v2775 = vmul.f32 %v2519, %v2519
  %v2776 = vmul.f32 %v2520, %v2520
  %v2777 = vmul.f32 %v2521, %v2521
  %v2778 = vmul.f32 %v2522, %v2522
  %v2779 = vmul.f32 %v2523, %v2523
  %v2780 = vmul.f32 %v2524, %v2524
  %v2781 = vmul.f32 %v2525, %v2525
  %v2782 = vmul.f32 %v2526, %v2526
  %v2783 = vmul.f32 %v2527, %v2527
  %v2784 = vmul.f32 %v2528, %v2528
  %v2785 = vmul.f32 %v2529, %v2529
  %v2786 = vmul.f32 %v2530, %v2530
  %v2787 = vmul.f32 %v2531, %v2531
  %v2788 = vmul.f32 %v2532, %v2532
  %v2789 = vmul.f32 %v2533, %v2533
  %v2790 = vmul.f32 %v2534, %v2534
  %v2791 = vmul.f32 %v2535, %v2535
  %v2792 = vmul.f32 %v2536, %v2536
  %v2793 = vmul.f32 %v2537, %v2537
  %v2794 = vmul.f32 %v2538, %v2538
  %v2795 = vmul.f32 %v2539, %v2539
  %v2796 = vmul.f32 %v2540, %v2540
  %v2797 = vmul.f32 %v2541, %v2541
  %v2798 = vmul.f32 %v2542, %v2542
  %v2799 = vmul.f32 %v2543, %v2543
  %v2800 = vmul.f32 %v2544, %v2544
  %v2801 = vmul.f32 %v2545, %v2545
  %v2802 = vmul.f32 %v2546, %v2546
  %v2803 = vmul.f32 %v2547, %v2547
  %v2804 = vmul.f32 %v2548, %v2548
  %v2805 = vmul.f32 %v2549, %v2549
  %v2806 = vmul.f32 %v2550, %v2550
  %v2807 = vmul.f32 %v2551, %v2551
  %v2808 = vmul.f32 %v2552, %v2552
  %v2809 = vmul.f32 %v2553, %v2553
  %v2810 = vmul.f32 %v2554, %v2554
  %v2811 = vmul.f32 %v2555, %v2555
  %v2812 = vmul.f32 %v2556, %v2556
  %v2813 = vmul.f32 %v2557, %v2557
  %v2814 = vmul.f32 %v2558, %v2558
  %v2815 = vmul.f32 %v2559, %v2559
  %v2816 = vmul.f32 %v2560, %v2560
  %v2817 = vmul.f32 %v2561, %v2561
  %v2818 = vmul.f32 %v2562, %v2562
  %v2819 = vmul.f32 %v2563, %v2563
  %v2820 = vmul.f32 %v2564, %v2564
  %v2821 = vmul.f32 %v2565, %v2565
  %v2822 = vmul.f32 %v2566, %v2566
  %v2823 = vmul.f32 %v2567, %v2567
  %v2824 = vmul.f32 %v2568, %v2568
  %v2825 = vmul.f32 %v2569, %v2569
  %v2826 = vmul.f32 %v2570, %v2570
  %v2827 = vmul.f32 %v2571, %v2571
  %v2828 = vmul.f32 %v2572, %v2572
  %v2829 = vmul.f32 %v2573, %v2573
  %v2830 = vmul.f32 %v2574, %v2574
  %v2831 = vmul.f32 %v2575, %v2575
  %v2832 = vmul.f32 %v2576, %v2576
  %v2833 = vmul.f32 %v2577, %v2577
  %v2834 = vmul.f32 %v2578, %v2578
  %v2835 = vmul.f32 %v2579, %v2579
  %v2836 = vmul.f32 %v2580, %v2580
  %v2837 = vmul.f32 %v2581, %v2581
  %v2838 = vmul.f32 %v2582, %v2582
  %v2839 = vmul.f32 %v2583, %v2583
  %v2840 = vmul.f32 %v2584, %v2584
  %v2841 = vmul.f32 %v2585, %v2585
  %v2842 = vmul.f32 %v2586, %v2586
  %v2843 = vmul.f32 %v2587, %v2587
  %v2844 = vmul.f32 %v2588, %v2588
  %v2845 = vmul.f32 %v2589, %v2589
  %v2846 = vmul.f32 %v2590, %v2590
  %v2847 = vmul.f32 %v2591, %v2591
  %v2848 = vmul.f32 %v2592, %v2592
  %v2849 = vmul.f32 %v2593, %v2593
  %v2850 = vmul.f32 %v2594, %v2594
  %v2851 = vmul.f32 %v2595, %v2595
  %v2852 = vmul.f32 %v2596, %v2596
  %v2853 = vmul.f32 %v2597, %v2597
  %v2854 = vmul.f32 %v2598, %v2598
  %v2855 = vmul.f32 %v2599, %v2599
  %v2856 = vmul.f32 %v2600, %v2600
  %v2857 = vmul.f32 %v2601, %v2601
  %v2858 = vmul.f32 %v2602, %v2602
  %v2859 = vmul.f32 %v2603, %v2603
  %v2860 = vmul.f32 %v2604, %v2604
  %v2861 = vmul.f32 %v2605, %v2605
  %v2862 = vmul.f32 %v2606, %v2606
  %v2863 = vmul.f32 %v2607, %v2607
  %v2864 = vmul.f32 %v2608, %v2608
  %v2865 = vmul.f32 %v2609, %v2609
  %v2866 = vmul.f32 %v2610, %v2610
  %v2867 = vmul.f32 %v2611, %v2611
  %v2868 = vmul.f32 %v2612, %v2612
  %v2869 = vmul.f32 %v2613, %v2613
  %v2870 = vmul.f32 %v2614, %v2614
  %v2871 = vmul.f32 %v2615, %v2615
  %v2872 = vmul.f32 %v2616, %v2616
  %v2873 = vmul.f32 %v2617, %v2617
  %v2874 = vmul.f32 %v2618, %v2618
  %v2875 = vmul.f32 %v2619, %v2619
  %v2876 = vmul.f32 %v2620, %v2620
  %v2877 = vmul.f32 %v2621, %v2621
  %v2878 = vmul.f32 %v2622, %v2622
  %v2879 = vmul.f32 %v2623, %v2623
  %v2880 = vmul.f32 %v2624, %v2624
  %v2881 = vmul.f32 %v2625, %v2625
  %v2882 = vmul.f32 %v2626, %v2626
  %v2883 = vmul.f32 %v2627, %v2627
  %v2884 = vmul.f32 %v2628, %v2628
  %v2885 = vmul.f32 %v2629, %v2629
  %v2886 = vmul.f32 %v2630, %v2630
  %v2887 = vmul.f32 %v2631, %v2631
  %v2888 = vmul.f32 %v2632, %v2632
  %v2889 = vmul.f32 %v2633, %v2633
  %v2890 = vmul.f32 %v2634, %v2634
  %v2891 = vmul.f32 %v2635, %v2635
  %v2892 = vmul.f32 %v2636, %v2636
  %v2893 = vmul.f32 %v2637, %v2637
  %v2894 = vmul.f32 %v2638, %v2638
  %v2895 = vmul.f32 %v2639, %v2639
  %v2896 = vmul.f32 %v2640, %v2640
  %v2897 = vmul.f32 %v2641, %v2641
  %v2898 = vmul.f32 %v2642, %v2642
  %v2899 = vmul.f32 %v2643, %v2643
  %v2900 = vmul.f32 %v2644, %v2644
  %v2901 = vmul.f32 %v2645, %v2645
  %v2902 = vmul.f32 %v2646, %v2646
  %v2903 = vmul.f32 %v2647, %v2647
  %v2904 = vmul.f32 %v2648, %v2648
  %v2905 = vmul.f32 %v2649, %v2649
  %v2906 = vmul.f32 %v2650, %v2650
  %v2907 = vmul.f32 %v2651, %v2651
  %v2908 = vmul.f32 %v2652, %v2652
  %v2909 = vmul.f32 %v2653, %v2653
  %v2910 = vmul.f32 %v2654, %v2654
  %v2911 = vmul.f32 %v2655, %v2655
  %v2912 = vmul.f32 %v2656, %v2656
  %v2913 = vmul.f32 %v2657, %v2657
  %v2914 = vmul.f32 %v2658, %v2658
  %v2915 = vmul.f32 %v2659, %v2659
  %v2916 = vmul.f32 %v2660, %v2660
  %v2917 = vmul.f32 %v2661, %v2661
  %v2918 = vmul.f32 %v2662, %v2662
  %v2919 = vmul.f32 %v2663, %v2663
  %v2920 = vmul.f32 %v2664, %v2664
  %v2921 = vmul.f32 %v2665, %v2665
  %v2922 = vmul.f32 %v2666, %v2666
  %v2923 = vmul.f32 %v2667, %v2667
  %v2924 = vmul.f32 %v2668, %v2668
  %v2925 = vmul.f32 %v2669, %v2669
  %v2926 = vmul.f32 %v2670, %v2670
  %v2927 = vmul.f32 %v2671, %v2671
  %v2928 = vmul.f32 %v2672, %v2672
  %v2929 = vmul.f32 %v2673, %v2673
  %v2930 = vmul.f32 %v2674, %v2674
  %v2931 = vmul.f32 %v2675, %v2675
  %v2932 = vmul.f32 %v2676, %v2676
  %v2933 = vmul.f32 %v2677, %v2677
  %v2934 = vmul.f32 %v2678, %v2678
  %v2935 = vmul.f32 %v2679, %v2679
  %v2936 = vmul.f32 %v2680, %v2680
  %v2937 = vmul.f32 %v2681, %v2681
  %v2938 = vmul.f32 %v2682, %v2682
  %v2939 = vmul.f32 %v2683, %v2683
  %v2940 = vmul.f32 %v2684, %v2684
  %v2941 = vmul.f32 %v2685, %v2685
  %v2942 = vmul.f32 %v2686, %v2686
  %v2943 = vmul.f32 %v2687, %v2687
  %v2944 = vmul.f32 %v2688, %v2688
  %v2945 = vmul.f32 %v2689, %v2689
  %v2946 = vmul.f32 %v2690, %v2690
  %v2947 = vmul.f32 %v2691, %v2691
  %v2948 = vmul.f32 %v2692, %v2692
  %v2949 = vmul.f32 %v2693, %v2693
  %v2950 = vmul.f32 %v2694, %v2694
  %v2951 = vmul.f32 %v2695, %v2695
  %v2952 = vmul.f32 %v2696, %v2696
  %v2953 = vmul.f32 %v2697, %v2697
  %v2954 = vmul.f32 %v2698, %v2698
  %v2955 = vmul.f32 %v2699, %v2699
  %v2956 = vmul.f32 %v2700, %v2700
  %v2957 = vmul.f32 %v2701, %v2701
  %v2958 = vmul.f32 %v2702, %v2702
  %v2959 = vmul.f32 %v2703, %v2703
  %v2960 = vmul.f32 %v2704, %v2704
  %v2961 = vmul.f32 %v2705, %v2705
  %v2962 = vmul.f32 %v2706, %v2706
  %v2963 = vmul.f32 %v2707, %v2707
  %v2964 = vmul.f32 %v2708, %v2708
  %v2965 = vmul.f32 %v2709, %v2709
  %v2966 = vmul.f32 %v2710, %v2710
  %v2967 = vmul.f32 %v2711, %v2711
  %v2968 = vmul.f32 %v2712, %v2712
  %v2969 = vmul.f32 %v2713, %v2713
  %v2970 = vmul.f32 %v2714, %v2714
  %v2971 = vmul.f32 %v2715, %v2715
  %v2972 = vmul.f32 %v2716, %v2716
  %v2973 = vmul.f32 %v2717, %v2717
  %v2974 = vmul.f32 %v2718, %v2718
  %v2975 = vmul.f32 %v2719, %v2719
  %v2976 = vmul.f32 %v2720, %v2720
  %v2977 = vmul.f32 %v2721, %v2721
  %v2978 = vmul.f32 %v2722, %v2722
  %v2979 = vmul.f32 %v2723, %v2723
  %v2980 = vmul.f32 %v2724, %v2724
  %v2981 = vmul.f32 %v2725, %v2725
  %v2982 = vmul.f32 %v2726, %v2726
  %v2983 = vmul.f32 %v2727, %v2727
  %v2984 = vmul.f32 %v2728, %v2728
  %v2985 = vmul.f32 %v2729, %v2729
  %v2986 = vmul.f32 %v2730, %v2730
  %v2987 = vmul.f32 %v2731, %v2731
  %v2988 = vmul.f32 %v2732, %v2732
  %v2989 = vmul.f32 %v2733, %v2733
  %v2990 = vmul.f32 %v2734, %v2734
  %v2991 = vmul.f32 %v2735, %v2735
  %v2992 = vmul.f32 %v2736, %v2736
  %v2993 = vmul.f32 %v2737, %v2737
  %v2994 = vmul.f32 %v2738, %v2738
  %v2995 = vmul.f32 %v2739, %v2739
  %v2996 = vmul.f32 %v2740, %v2740
  %v2997 = vmul.f32 %v2741, %v2741
  %v2998 = vmul.f32 %v2742, %v2742
  %v2999 = vmul.f32 %v2743, %v2743
  %v3000 = vmul.f32 %v2744, %v2744
  %v3001 = vmul.f32 %v2745, %v2745
  %v3002 = vmul.f32 %v2746, %v2746
  %v3003 = vmul.f32 %v2747, %v2747
  %v3004 = vmul.f32 %v2748, %v2748
  %v3005 = vmul.f32 %v2749, %v2749
  %v3006 = vmul.f32 %v2750, %v2750
  %v3007 = vmul.f32 %v2751, %v2751
  %v3008 = vmul.f32 %v2752, %v2752
  %v3009 = vmul.f32 %v2753, %v2753
  %v3010 = vsel %vm1972, %v2754, 0.0
  %v3011 = vsel %vm1972, %v2755, 0.0
  %v3012 = vadd.f32 %v3010, %v3011
  %v3013 = vsel %vm1972, %v2756, 0.0
  %v3014 = vadd.f32 %v3012, %v3013
  %v3015 = vsel %vm1972, %v2757, 0.0
  %v3016 = vadd.f32 %v3014, %v3015
  %v3017 = vsel %vm1972, %v2758, 0.0
  %v3018 = vadd.f32 %v3016, %v3017
  %v3019 = vsel %vm1972, %v2759, 0.0
  %v3020 = vadd.f32 %v3018, %v3019
  %v3021 = vsel %vm1972, %v2760, 0.0
  %v3022 = vadd.f32 %v3020, %v3021
  %v3023 = vsel %vm1972, %v2761, 0.0
  %v3024 = vadd.f32 %v3022, %v3023
  %v3025 = vsel %vm1972, %v2762, 0.0
  %v3026 = vadd.f32 %v3024, %v3025
  %v3027 = vsel %vm1972, %v2763, 0.0
  %v3028 = vadd.f32 %v3026, %v3027
  %v3029 = vsel %vm1972, %v2764, 0.0
  %v3030 = vadd.f32 %v3028, %v3029
  %v3031 = vsel %vm1972, %v2765, 0.0
  %v3032 = vadd.f32 %v3030, %v3031
  %v3033 = vsel %vm1972, %v2766, 0.0
  %v3034 = vadd.f32 %v3032, %v3033
  %v3035 = vsel %vm1972, %v2767, 0.0
  %v3036 = vadd.f32 %v3034, %v3035
  %v3037 = vsel %vm1972, %v2768, 0.0
  %v3038 = vadd.f32 %v3036, %v3037
  %v3039 = vsel %vm1972, %v2769, 0.0
  %v3040 = vadd.f32 %v3038, %v3039
  %v3041 = vsel %vm1972, %v2770, 0.0
  %v3042 = vadd.f32 %v3040, %v3041
  %v3043 = vsel %vm1972, %v2771, 0.0
  %v3044 = vadd.f32 %v3042, %v3043
  %v3045 = vsel %vm1972, %v2772, 0.0
  %v3046 = vadd.f32 %v3044, %v3045
  %v3047 = vsel %vm1972, %v2773, 0.0
  %v3048 = vadd.f32 %v3046, %v3047
  %v3049 = vsel %vm1972, %v2774, 0.0
  %v3050 = vadd.f32 %v3048, %v3049
  %v3051 = vsel %vm1972, %v2775, 0.0
  %v3052 = vadd.f32 %v3050, %v3051
  %v3053 = vsel %vm1972, %v2776, 0.0
  %v3054 = vadd.f32 %v3052, %v3053
  %v3055 = vsel %vm1972, %v2777, 0.0
  %v3056 = vadd.f32 %v3054, %v3055
  %v3057 = vsel %vm1972, %v2778, 0.0
  %v3058 = vadd.f32 %v3056, %v3057
  %v3059 = vsel %vm1972, %v2779, 0.0
  %v3060 = vadd.f32 %v3058, %v3059
  %v3061 = vsel %vm1972, %v2780, 0.0
  %v3062 = vadd.f32 %v3060, %v3061
  %v3063 = vsel %vm1972, %v2781, 0.0
  %v3064 = vadd.f32 %v3062, %v3063
  %v3065 = vsel %vm1972, %v2782, 0.0
  %v3066 = vadd.f32 %v3064, %v3065
  %v3067 = vsel %vm1972, %v2783, 0.0
  %v3068 = vadd.f32 %v3066, %v3067
  %v3069 = vsel %vm1972, %v2784, 0.0
  %v3070 = vadd.f32 %v3068, %v3069
  %v3071 = vsel %vm1972, %v2785, 0.0
  %v3072 = vadd.f32 %v3070, %v3071
  %v3073 = vsel %vm1972, %v2786, 0.0
  %v3074 = vadd.f32 %v3072, %v3073
  %v3075 = vsel %vm1972, %v2787, 0.0
  %v3076 = vadd.f32 %v3074, %v3075
  %v3077 = vsel %vm1972, %v2788, 0.0
  %v3078 = vadd.f32 %v3076, %v3077
  %v3079 = vsel %vm1972, %v2789, 0.0
  %v3080 = vadd.f32 %v3078, %v3079
  %v3081 = vsel %vm1972, %v2790, 0.0
  %v3082 = vadd.f32 %v3080, %v3081
  %v3083 = vsel %vm1972, %v2791, 0.0
  %v3084 = vadd.f32 %v3082, %v3083
  %v3085 = vsel %vm1972, %v2792, 0.0
  %v3086 = vadd.f32 %v3084, %v3085
  %v3087 = vsel %vm1972, %v2793, 0.0
  %v3088 = vadd.f32 %v3086, %v3087
  %v3089 = vsel %vm1972, %v2794, 0.0
  %v3090 = vadd.f32 %v3088, %v3089
  %v3091 = vsel %vm1972, %v2795, 0.0
  %v3092 = vadd.f32 %v3090, %v3091
  %v3093 = vsel %vm1972, %v2796, 0.0
  %v3094 = vadd.f32 %v3092, %v3093
  %v3095 = vsel %vm1972, %v2797, 0.0
  %v3096 = vadd.f32 %v3094, %v3095
  %v3097 = vsel %vm1972, %v2798, 0.0
  %v3098 = vadd.f32 %v3096, %v3097
  %v3099 = vsel %vm1972, %v2799, 0.0
  %v3100 = vadd.f32 %v3098, %v3099
  %v3101 = vsel %vm1972, %v2800, 0.0
  %v3102 = vadd.f32 %v3100, %v3101
  %v3103 = vsel %vm1972, %v2801, 0.0
  %v3104 = vadd.f32 %v3102, %v3103
  %v3105 = vsel %vm1972, %v2802, 0.0
  %v3106 = vadd.f32 %v3104, %v3105
  %v3107 = vsel %vm1972, %v2803, 0.0
  %v3108 = vadd.f32 %v3106, %v3107
  %v3109 = vsel %vm1972, %v2804, 0.0
  %v3110 = vadd.f32 %v3108, %v3109
  %v3111 = vsel %vm1972, %v2805, 0.0
  %v3112 = vadd.f32 %v3110, %v3111
  %v3113 = vsel %vm1972, %v2806, 0.0
  %v3114 = vadd.f32 %v3112, %v3113
  %v3115 = vsel %vm1972, %v2807, 0.0
  %v3116 = vadd.f32 %v3114, %v3115
  %v3117 = vsel %vm1972, %v2808, 0.0
  %v3118 = vadd.f32 %v3116, %v3117
  %v3119 = vsel %vm1972, %v2809, 0.0
  %v3120 = vadd.f32 %v3118, %v3119
  %v3121 = vsel %vm1972, %v2810, 0.0
  %v3122 = vadd.f32 %v3120, %v3121
  %v3123 = vsel %vm1972, %v2811, 0.0
  %v3124 = vadd.f32 %v3122, %v3123
  %v3125 = vsel %vm1972, %v2812, 0.0
  %v3126 = vadd.f32 %v3124, %v3125
  %v3127 = vsel %vm1972, %v2813, 0.0
  %v3128 = vadd.f32 %v3126, %v3127
  %v3129 = vsel %vm1972, %v2814, 0.0
  %v3130 = vadd.f32 %v3128, %v3129
  %v3131 = vsel %vm1972, %v2815, 0.0
  %v3132 = vadd.f32 %v3130, %v3131
  %v3133 = vsel %vm1972, %v2816, 0.0
  %v3134 = vadd.f32 %v3132, %v3133
  %v3135 = vsel %vm1972, %v2817, 0.0
  %v3136 = vadd.f32 %v3134, %v3135
  %v3137 = vsel %vm1972, %v2818, 0.0
  %v3138 = vadd.f32 %v3136, %v3137
  %v3139 = vsel %vm1972, %v2819, 0.0
  %v3140 = vadd.f32 %v3138, %v3139
  %v3141 = vsel %vm1972, %v2820, 0.0
  %v3142 = vadd.f32 %v3140, %v3141
  %v3143 = vsel %vm1972, %v2821, 0.0
  %v3144 = vadd.f32 %v3142, %v3143
  %v3145 = vsel %vm1972, %v2822, 0.0
  %v3146 = vadd.f32 %v3144, %v3145
  %v3147 = vsel %vm1972, %v2823, 0.0
  %v3148 = vadd.f32 %v3146, %v3147
  %v3149 = vsel %vm1972, %v2824, 0.0
  %v3150 = vadd.f32 %v3148, %v3149
  %v3151 = vsel %vm1972, %v2825, 0.0
  %v3152 = vadd.f32 %v3150, %v3151
  %v3153 = vsel %vm1972, %v2826, 0.0
  %v3154 = vadd.f32 %v3152, %v3153
  %v3155 = vsel %vm1972, %v2827, 0.0
  %v3156 = vadd.f32 %v3154, %v3155
  %v3157 = vsel %vm1972, %v2828, 0.0
  %v3158 = vadd.f32 %v3156, %v3157
  %v3159 = vsel %vm1972, %v2829, 0.0
  %v3160 = vadd.f32 %v3158, %v3159
  %v3161 = vsel %vm1972, %v2830, 0.0
  %v3162 = vadd.f32 %v3160, %v3161
  %v3163 = vsel %vm1972, %v2831, 0.0
  %v3164 = vadd.f32 %v3162, %v3163
  %v3165 = vsel %vm1972, %v2832, 0.0
  %v3166 = vadd.f32 %v3164, %v3165
  %v3167 = vsel %vm1972, %v2833, 0.0
  %v3168 = vadd.f32 %v3166, %v3167
  %v3169 = vsel %vm1972, %v2834, 0.0
  %v3170 = vadd.f32 %v3168, %v3169
  %v3171 = vsel %vm1972, %v2835, 0.0
  %v3172 = vadd.f32 %v3170, %v3171
  %v3173 = vsel %vm1972, %v2836, 0.0
  %v3174 = vadd.f32 %v3172, %v3173
  %v3175 = vsel %vm1972, %v2837, 0.0
  %v3176 = vadd.f32 %v3174, %v3175
  %v3177 = vsel %vm1972, %v2838, 0.0
  %v3178 = vadd.f32 %v3176, %v3177
  %v3179 = vsel %vm1972, %v2839, 0.0
  %v3180 = vadd.f32 %v3178, %v3179
  %v3181 = vsel %vm1972, %v2840, 0.0
  %v3182 = vadd.f32 %v3180, %v3181
  %v3183 = vsel %vm1972, %v2841, 0.0
  %v3184 = vadd.f32 %v3182, %v3183
  %v3185 = vsel %vm1972, %v2842, 0.0
  %v3186 = vadd.f32 %v3184, %v3185
  %v3187 = vsel %vm1972, %v2843, 0.0
  %v3188 = vadd.f32 %v3186, %v3187
  %v3189 = vsel %vm1972, %v2844, 0.0
  %v3190 = vadd.f32 %v3188, %v3189
  %v3191 = vsel %vm1972, %v2845, 0.0
  %v3192 = vadd.f32 %v3190, %v3191
  %v3193 = vsel %vm1972, %v2846, 0.0
  %v3194 = vadd.f32 %v3192, %v3193
  %v3195 = vsel %vm1972, %v2847, 0.0
  %v3196 = vadd.f32 %v3194, %v3195
  %v3197 = vsel %vm1972, %v2848, 0.0
  %v3198 = vadd.f32 %v3196, %v3197
  %v3199 = vsel %vm1972, %v2849, 0.0
  %v3200 = vadd.f32 %v3198, %v3199
  %v3201 = vsel %vm1972, %v2850, 0.0
  %v3202 = vadd.f32 %v3200, %v3201
  %v3203 = vsel %vm1972, %v2851, 0.0
  %v3204 = vadd.f32 %v3202, %v3203
  %v3205 = vsel %vm1972, %v2852, 0.0
  %v3206 = vadd.f32 %v3204, %v3205
  %v3207 = vsel %vm1972, %v2853, 0.0
  %v3208 = vadd.f32 %v3206, %v3207
  %v3209 = vsel %vm1972, %v2854, 0.0
  %v3210 = vadd.f32 %v3208, %v3209
  %v3211 = vsel %vm1972, %v2855, 0.0
  %v3212 = vadd.f32 %v3210, %v3211
  %v3213 = vsel %vm1972, %v2856, 0.0
  %v3214 = vadd.f32 %v3212, %v3213
  %v3215 = vsel %vm1972, %v2857, 0.0
  %v3216 = vadd.f32 %v3214, %v3215
  %v3217 = vsel %vm1972, %v2858, 0.0
  %v3218 = vadd.f32 %v3216, %v3217
  %v3219 = vsel %vm1972, %v2859, 0.0
  %v3220 = vadd.f32 %v3218, %v3219
  %v3221 = vsel %vm1972, %v2860, 0.0
  %v3222 = vadd.f32 %v3220, %v3221
  %v3223 = vsel %vm1972, %v2861, 0.0
  %v3224 = vadd.f32 %v3222, %v3223
  %v3225 = vsel %vm1972, %v2862, 0.0
  %v3226 = vadd.f32 %v3224, %v3225
  %v3227 = vsel %vm1972, %v2863, 0.0
  %v3228 = vadd.f32 %v3226, %v3227
  %v3229 = vsel %vm1972, %v2864, 0.0
  %v3230 = vadd.f32 %v3228, %v3229
  %v3231 = vsel %vm1972, %v2865, 0.0
  %v3232 = vadd.f32 %v3230, %v3231
  %v3233 = vsel %vm1972, %v2866, 0.0
  %v3234 = vadd.f32 %v3232, %v3233
  %v3235 = vsel %vm1972, %v2867, 0.0
  %v3236 = vadd.f32 %v3234, %v3235
  %v3237 = vsel %vm1972, %v2868, 0.0
  %v3238 = vadd.f32 %v3236, %v3237
  %v3239 = vsel %vm1972, %v2869, 0.0
  %v3240 = vadd.f32 %v3238, %v3239
  %v3241 = vsel %vm1972, %v2870, 0.0
  %v3242 = vadd.f32 %v3240, %v3241
  %v3243 = vsel %vm1972, %v2871, 0.0
  %v3244 = vadd.f32 %v3242, %v3243
  %v3245 = vsel %vm1972, %v2872, 0.0
  %v3246 = vadd.f32 %v3244, %v3245
  %v3247 = vsel %vm1972, %v2873, 0.0
  %v3248 = vadd.f32 %v3246, %v3247
  %v3249 = vsel %vm1972, %v2874, 0.0
  %v3250 = vadd.f32 %v3248, %v3249
  %v3251 = vsel %vm1972, %v2875, 0.0
  %v3252 = vadd.f32 %v3250, %v3251
  %v3253 = vsel %vm1972, %v2876, 0.0
  %v3254 = vadd.f32 %v3252, %v3253
  %v3255 = vsel %vm1972, %v2877, 0.0
  %v3256 = vadd.f32 %v3254, %v3255
  %v3257 = vsel %vm1972, %v2878, 0.0
  %v3258 = vadd.f32 %v3256, %v3257
  %v3259 = vsel %vm1972, %v2879, 0.0
  %v3260 = vadd.f32 %v3258, %v3259
  %v3261 = vsel %vm1972, %v2880, 0.0
  %v3262 = vadd.f32 %v3260, %v3261
  %v3263 = vsel %vm1972, %v2881, 0.0
  %v3264 = vadd.f32 %v3262, %v3263
  %v3265 = vsel %vm1972, %v2882, 0.0
  %v3266 = vadd.f32 %v3264, %v3265
  %v3267 = vsel %vm1972, %v2883, 0.0
  %v3268 = vadd.f32 %v3266, %v3267
  %v3269 = vsel %vm1972, %v2884, 0.0
  %v3270 = vadd.f32 %v3268, %v3269
  %v3271 = vsel %vm1972, %v2885, 0.0
  %v3272 = vadd.f32 %v3270, %v3271
  %v3273 = vsel %vm1972, %v2886, 0.0
  %v3274 = vadd.f32 %v3272, %v3273
  %v3275 = vsel %vm1972, %v2887, 0.0
  %v3276 = vadd.f32 %v3274, %v3275
  %v3277 = vsel %vm1972, %v2888, 0.0
  %v3278 = vadd.f32 %v3276, %v3277
  %v3279 = vsel %vm1972, %v2889, 0.0
  %v3280 = vadd.f32 %v3278, %v3279
  %v3281 = vsel %vm1972, %v2890, 0.0
  %v3282 = vadd.f32 %v3280, %v3281
  %v3283 = vsel %vm1972, %v2891, 0.0
  %v3284 = vadd.f32 %v3282, %v3283
  %v3285 = vsel %vm1972, %v2892, 0.0
  %v3286 = vadd.f32 %v3284, %v3285
  %v3287 = vsel %vm1972, %v2893, 0.0
  %v3288 = vadd.f32 %v3286, %v3287
  %v3289 = vsel %vm1972, %v2894, 0.0
  %v3290 = vadd.f32 %v3288, %v3289
  %v3291 = vsel %vm1972, %v2895, 0.0
  %v3292 = vadd.f32 %v3290, %v3291
  %v3293 = vsel %vm1972, %v2896, 0.0
  %v3294 = vadd.f32 %v3292, %v3293
  %v3295 = vsel %vm1972, %v2897, 0.0
  %v3296 = vadd.f32 %v3294, %v3295
  %v3297 = vsel %vm1972, %v2898, 0.0
  %v3298 = vadd.f32 %v3296, %v3297
  %v3299 = vsel %vm1972, %v2899, 0.0
  %v3300 = vadd.f32 %v3298, %v3299
  %v3301 = vsel %vm1972, %v2900, 0.0
  %v3302 = vadd.f32 %v3300, %v3301
  %v3303 = vsel %vm1972, %v2901, 0.0
  %v3304 = vadd.f32 %v3302, %v3303
  %v3305 = vsel %vm1972, %v2902, 0.0
  %v3306 = vadd.f32 %v3304, %v3305
  %v3307 = vsel %vm1972, %v2903, 0.0
  %v3308 = vadd.f32 %v3306, %v3307
  %v3309 = vsel %vm1972, %v2904, 0.0
  %v3310 = vadd.f32 %v3308, %v3309
  %v3311 = vsel %vm1972, %v2905, 0.0
  %v3312 = vadd.f32 %v3310, %v3311
  %v3313 = vsel %vm1972, %v2906, 0.0
  %v3314 = vadd.f32 %v3312, %v3313
  %v3315 = vsel %vm1972, %v2907, 0.0
  %v3316 = vadd.f32 %v3314, %v3315
  %v3317 = vsel %vm1972, %v2908, 0.0
  %v3318 = vadd.f32 %v3316, %v3317
  %v3319 = vsel %vm1972, %v2909, 0.0
  %v3320 = vadd.f32 %v3318, %v3319
  %v3321 = vsel %vm1972, %v2910, 0.0
  %v3322 = vadd.f32 %v3320, %v3321
  %v3323 = vsel %vm1972, %v2911, 0.0
  %v3324 = vadd.f32 %v3322, %v3323
  %v3325 = vsel %vm1972, %v2912, 0.0
  %v3326 = vadd.f32 %v3324, %v3325
  %v3327 = vsel %vm1972, %v2913, 0.0
  %v3328 = vadd.f32 %v3326, %v3327
  %v3329 = vsel %vm1972, %v2914, 0.0
  %v3330 = vadd.f32 %v3328, %v3329
  %v3331 = vsel %vm1972, %v2915, 0.0
  %v3332 = vadd.f32 %v3330, %v3331
  %v3333 = vsel %vm1972, %v2916, 0.0
  %v3334 = vadd.f32 %v3332, %v3333
  %v3335 = vsel %vm1972, %v2917, 0.0
  %v3336 = vadd.f32 %v3334, %v3335
  %v3337 = vsel %vm1972, %v2918, 0.0
  %v3338 = vadd.f32 %v3336, %v3337
  %v3339 = vsel %vm1972, %v2919, 0.0
  %v3340 = vadd.f32 %v3338, %v3339
  %v3341 = vsel %vm1972, %v2920, 0.0
  %v3342 = vadd.f32 %v3340, %v3341
  %v3343 = vsel %vm1972, %v2921, 0.0
  %v3344 = vadd.f32 %v3342, %v3343
  %v3345 = vsel %vm1972, %v2922, 0.0
  %v3346 = vadd.f32 %v3344, %v3345
  %v3347 = vsel %vm1972, %v2923, 0.0
  %v3348 = vadd.f32 %v3346, %v3347
  %v3349 = vsel %vm1972, %v2924, 0.0
  %v3350 = vadd.f32 %v3348, %v3349
  %v3351 = vsel %vm1972, %v2925, 0.0
  %v3352 = vadd.f32 %v3350, %v3351
  %v3353 = vsel %vm1972, %v2926, 0.0
  %v3354 = vadd.f32 %v3352, %v3353
  %v3355 = vsel %vm1972, %v2927, 0.0
  %v3356 = vadd.f32 %v3354, %v3355
  %v3357 = vsel %vm1972, %v2928, 0.0
  %v3358 = vadd.f32 %v3356, %v3357
  %v3359 = vsel %vm1972, %v2929, 0.0
  %v3360 = vadd.f32 %v3358, %v3359
  %v3361 = vsel %vm1972, %v2930, 0.0
  %v3362 = vadd.f32 %v3360, %v3361
  %v3363 = vsel %vm1972, %v2931, 0.0
  %v3364 = vadd.f32 %v3362, %v3363
  %v3365 = vsel %vm1972, %v2932, 0.0
  %v3366 = vadd.f32 %v3364, %v3365
  %v3367 = vsel %vm1972, %v2933, 0.0
  %v3368 = vadd.f32 %v3366, %v3367
  %v3369 = vsel %vm1972, %v2934, 0.0
  %v3370 = vadd.f32 %v3368, %v3369
  %v3371 = vsel %vm1972, %v2935, 0.0
  %v3372 = vadd.f32 %v3370, %v3371
  %v3373 = vsel %vm1972, %v2936, 0.0
  %v3374 = vadd.f32 %v3372, %v3373
  %v3375 = vsel %vm1972, %v2937, 0.0
  %v3376 = vadd.f32 %v3374, %v3375
  %v3377 = vsel %vm1972, %v2938, 0.0
  %v3378 = vadd.f32 %v3376, %v3377
  %v3379 = vsel %vm1972, %v2939, 0.0
  %v3380 = vadd.f32 %v3378, %v3379
  %v3381 = vsel %vm1972, %v2940, 0.0
  %v3382 = vadd.f32 %v3380, %v3381
  %v3383 = vsel %vm1972, %v2941, 0.0
  %v3384 = vadd.f32 %v3382, %v3383
  %v3385 = vsel %vm1972, %v2942, 0.0
  %v3386 = vadd.f32 %v3384, %v3385
  %v3387 = vsel %vm1972, %v2943, 0.0
  %v3388 = vadd.f32 %v3386, %v3387
  %v3389 = vsel %vm1972, %v2944, 0.0
  %v3390 = vadd.f32 %v3388, %v3389
  %v3391 = vsel %vm1972, %v2945, 0.0
  %v3392 = vadd.f32 %v3390, %v3391
  %v3393 = vsel %vm1972, %v2946, 0.0
  %v3394 = vadd.f32 %v3392, %v3393
  %v3395 = vsel %vm1972, %v2947, 0.0
  %v3396 = vadd.f32 %v3394, %v3395
  %v3397 = vsel %vm1972, %v2948, 0.0
  %v3398 = vadd.f32 %v3396, %v3397
  %v3399 = vsel %vm1972, %v2949, 0.0
  %v3400 = vadd.f32 %v3398, %v3399
  %v3401 = vsel %vm1972, %v2950, 0.0
  %v3402 = vadd.f32 %v3400, %v3401
  %v3403 = vsel %vm1972, %v2951, 0.0
  %v3404 = vadd.f32 %v3402, %v3403
  %v3405 = vsel %vm1972, %v2952, 0.0
  %v3406 = vadd.f32 %v3404, %v3405
  %v3407 = vsel %vm1972, %v2953, 0.0
  %v3408 = vadd.f32 %v3406, %v3407
  %v3409 = vsel %vm1972, %v2954, 0.0
  %v3410 = vadd.f32 %v3408, %v3409
  %v3411 = vsel %vm1972, %v2955, 0.0
  %v3412 = vadd.f32 %v3410, %v3411
  %v3413 = vsel %vm1972, %v2956, 0.0
  %v3414 = vadd.f32 %v3412, %v3413
  %v3415 = vsel %vm1972, %v2957, 0.0
  %v3416 = vadd.f32 %v3414, %v3415
  %v3417 = vsel %vm1972, %v2958, 0.0
  %v3418 = vadd.f32 %v3416, %v3417
  %v3419 = vsel %vm1972, %v2959, 0.0
  %v3420 = vadd.f32 %v3418, %v3419
  %v3421 = vsel %vm1972, %v2960, 0.0
  %v3422 = vadd.f32 %v3420, %v3421
  %v3423 = vsel %vm1972, %v2961, 0.0
  %v3424 = vadd.f32 %v3422, %v3423
  %v3425 = vsel %vm1972, %v2962, 0.0
  %v3426 = vadd.f32 %v3424, %v3425
  %v3427 = vsel %vm1972, %v2963, 0.0
  %v3428 = vadd.f32 %v3426, %v3427
  %v3429 = vsel %vm1972, %v2964, 0.0
  %v3430 = vadd.f32 %v3428, %v3429
  %v3431 = vsel %vm1972, %v2965, 0.0
  %v3432 = vadd.f32 %v3430, %v3431
  %v3433 = vsel %vm1972, %v2966, 0.0
  %v3434 = vadd.f32 %v3432, %v3433
  %v3435 = vsel %vm1972, %v2967, 0.0
  %v3436 = vadd.f32 %v3434, %v3435
  %v3437 = vsel %vm1972, %v2968, 0.0
  %v3438 = vadd.f32 %v3436, %v3437
  %v3439 = vsel %vm1972, %v2969, 0.0
  %v3440 = vadd.f32 %v3438, %v3439
  %v3441 = vsel %vm1972, %v2970, 0.0
  %v3442 = vadd.f32 %v3440, %v3441
  %v3443 = vsel %vm1972, %v2971, 0.0
  %v3444 = vadd.f32 %v3442, %v3443
  %v3445 = vsel %vm1972, %v2972, 0.0
  %v3446 = vadd.f32 %v3444, %v3445
  %v3447 = vsel %vm1972, %v2973, 0.0
  %v3448 = vadd.f32 %v3446, %v3447
  %v3449 = vsel %vm1972, %v2974, 0.0
  %v3450 = vadd.f32 %v3448, %v3449
  %v3451 = vsel %vm1972, %v2975, 0.0
  %v3452 = vadd.f32 %v3450, %v3451
  %v3453 = vsel %vm1972, %v2976, 0.0
  %v3454 = vadd.f32 %v3452, %v3453
  %v3455 = vsel %vm1972, %v2977, 0.0
  %v3456 = vadd.f32 %v3454, %v3455
  %v3457 = vsel %vm1972, %v2978, 0.0
  %v3458 = vadd.f32 %v3456, %v3457
  %v3459 = vsel %vm1972, %v2979, 0.0
  %v3460 = vadd.f32 %v3458, %v3459
  %v3461 = vsel %vm1972, %v2980, 0.0
  %v3462 = vadd.f32 %v3460, %v3461
  %v3463 = vsel %vm1972, %v2981, 0.0
  %v3464 = vadd.f32 %v3462, %v3463
  %v3465 = vsel %vm1972, %v2982, 0.0
  %v3466 = vadd.f32 %v3464, %v3465
  %v3467 = vsel %vm1972, %v2983, 0.0
  %v3468 = vadd.f32 %v3466, %v3467
  %v3469 = vsel %vm1972, %v2984, 0.0
  %v3470 = vadd.f32 %v3468, %v3469
  %v3471 = vsel %vm1972, %v2985, 0.0
  %v3472 = vadd.f32 %v3470, %v3471
  %v3473 = vsel %vm1972, %v2986, 0.0
  %v3474 = vadd.f32 %v3472, %v3473
  %v3475 = vsel %vm1972, %v2987, 0.0
  %v3476 = vadd.f32 %v3474, %v3475
  %v3477 = vsel %vm1972, %v2988, 0.0
  %v3478 = vadd.f32 %v3476, %v3477
  %v3479 = vsel %vm1972, %v2989, 0.0
  %v3480 = vadd.f32 %v3478, %v3479
  %v3481 = vsel %vm1972, %v2990, 0.0
  %v3482 = vadd.f32 %v3480, %v3481
  %v3483 = vsel %vm1972, %v2991, 0.0
  %v3484 = vadd.f32 %v3482, %v3483
  %v3485 = vsel %vm1972, %v2992, 0.0
  %v3486 = vadd.f32 %v3484, %v3485
  %v3487 = vsel %vm1972, %v2993, 0.0
  %v3488 = vadd.f32 %v3486, %v3487
  %v3489 = vsel %vm1972, %v2994, 0.0
  %v3490 = vadd.f32 %v3488, %v3489
  %v3491 = vsel %vm1972, %v2995, 0.0
  %v3492 = vadd.f32 %v3490, %v3491
  %v3493 = vsel %vm1972, %v2996, 0.0
  %v3494 = vadd.f32 %v3492, %v3493
  %v3495 = vsel %vm1972, %v2997, 0.0
  %v3496 = vadd.f32 %v3494, %v3495
  %v3497 = vsel %vm1972, %v2998, 0.0
  %v3498 = vadd.f32 %v3496, %v3497
  %v3499 = vsel %vm1972, %v2999, 0.0
  %v3500 = vadd.f32 %v3498, %v3499
  %v3501 = vsel %vm1972, %v3000, 0.0
  %v3502 = vadd.f32 %v3500, %v3501
  %v3503 = vsel %vm1972, %v3001, 0.0
  %v3504 = vadd.f32 %v3502, %v3503
  %v3505 = vsel %vm1972, %v3002, 0.0
  %v3506 = vadd.f32 %v3504, %v3505
  %v3507 = vsel %vm1972, %v3003, 0.0
  %v3508 = vadd.f32 %v3506, %v3507
  %v3509 = vsel %vm1972, %v3004, 0.0
  %v3510 = vadd.f32 %v3508, %v3509
  %v3511 = vsel %vm1972, %v3005, 0.0
  %v3512 = vadd.f32 %v3510, %v3511
  %v3513 = vsel %vm1972, %v3006, 0.0
  %v3514 = vadd.f32 %v3512, %v3513
  %v3515 = vsel %vm1972, %v3007, 0.0
  %v3516 = vadd.f32 %v3514, %v3515
  %v3517 = vsel %vm1972, %v3008, 0.0
  %v3518 = vadd.f32 %v3516, %v3517
  %v3519 = vsel %vm1972, %v3009, 0.0
  %v3520 = vadd.f32 %v3518, %v3519
  %v3521 = vrot.slane %v3520, 4
  %v3522 = vadd.f32 %v3520, %v3521
  %v3523 = vrot.slane %v3522, 2
  %v3524 = vadd.f32 %v3522, %v3523
  %v3525 = vrot.slane %v3524, 1
  %v3526 = vadd.f32 %v3524, %v3525
  %v3527 = vmul.f32 %v3526, %v2496
  %v3528 = vadd.f32 %v3527, 1e-05
  %v3529 = vrsqrt.pop %v3528
  %v3530 = vmul.f32 %v3529, %v3528
  %v3531 = vmul.f32 %v3530, %v3529
  %v3532 = vmul.f32 0.5, %v3531
  %v3533 = vsub.f32 1.5, %v3532
  %v3534 = vmul.f32 %v3529, %v3533
  %vm3535 = vweird.f32 %v3528
  %vm3536 = vweird.f32 %v3529
  %vm3537 = vmor %vm3535, %vm3536
  %v3538 = vsel %vm3537, %v3529, %v3534
  %v3539 = vmul.f32 %v2498, %v3538
  %v3540 = vmul.f32 %v2499, %v3538
  %v3541 = vmul.f32 %v2500, %v3538
  %v3542 = vmul.f32 %v2501, %v3538
  %v3543 = vmul.f32 %v2502, %v3538
  %v3544 = vmul.f32 %v2503, %v3538
  %v3545 = vmul.f32 %v2504, %v3538
  %v3546 = vmul.f32 %v2505, %v3538
  %v3547 = vmul.f32 %v2506, %v3538
  %v3548 = vmul.f32 %v2507, %v3538
  %v3549 = vmul.f32 %v2508, %v3538
  %v3550 = vmul.f32 %v2509, %v3538
  %v3551 = vmul.f32 %v2510, %v3538
  %v3552 = vmul.f32 %v2511, %v3538
  %v3553 = vmul.f32 %v2512, %v3538
  %v3554 = vmul.f32 %v2513, %v3538
  %v3555 = vmul.f32 %v2514, %v3538
  %v3556 = vmul.f32 %v2515, %v3538
  %v3557 = vmul.f32 %v2516, %v3538
  %v3558 = vmul.f32 %v2517, %v3538
  %v3559 = vmul.f32 %v2518, %v3538
  %v3560 = vmul.f32 %v2519, %v3538
  %v3561 = vmul.f32 %v2520, %v3538
  %v3562 = vmul.f32 %v2521, %v3538
  %v3563 = vmul.f32 %v2522, %v3538
  %v3564 = vmul.f32 %v2523, %v3538
  %v3565 = vmul.f32 %v2524, %v3538
  %v3566 = vmul.f32 %v2525, %v3538
  %v3567 = vmul.f32 %v2526, %v3538
  %v3568 = vmul.f32 %v2527, %v3538
  %v3569 = vmul.f32 %v2528, %v3538
  %v3570 = vmul.f32 %v2529, %v3538
  %v3571 = vmul.f32 %v2530, %v3538
  %v3572 = vmul.f32 %v2531, %v3538
  %v3573 = vmul.f32 %v2532, %v3538
  %v3574 = vmul.f32 %v2533, %v3538
  %v3575 = vmul.f32 %v2534, %v3538
  %v3576 = vmul.f32 %v2535, %v3538
  %v3577 = vmul.f32 %v2536, %v3538
  %v3578 = vmul.f32 %v2537, %v3538
  %v3579 = vmul.f32 %v2538, %v3538
  %v3580 = vmul.f32 %v2539, %v3538
  %v3581 = vmul.f32 %v2540, %v3538
  %v3582 = vmul.f32 %v2541, %v3538
  %v3583 = vmul.f32 %v2542, %v3538
  %v3584 = vmul.f32 %v2543, %v3538
  %v3585 = vmul.f32 %v2544, %v3538
  %v3586 = vmul.f32 %v2545, %v3538
  %v3587 = vmul.f32 %v2546, %v3538
  %v3588 = vmul.f32 %v2547, %v3538
  %v3589 = vmul.f32 %v2548, %v3538
  %v3590 = vmul.f32 %v2549, %v3538
  %v3591 = vmul.f32 %v2550, %v3538
  %v3592 = vmul.f32 %v2551, %v3538
  %v3593 = vmul.f32 %v2552, %v3538
  %v3594 = vmul.f32 %v2553, %v3538
  %v3595 = vmul.f32 %v2554, %v3538
  %v3596 = vmul.f32 %v2555, %v3538
  %v3597 = vmul.f32 %v2556, %v3538
  %v3598 = vmul.f32 %v2557, %v3538
  %v3599 = vmul.f32 %v2558, %v3538
  %v3600 = vmul.f32 %v2559, %v3538
  %v3601 = vmul.f32 %v2560, %v3538
  %v3602 = vmul.f32 %v2561, %v3538
  %v3603 = vmul.f32 %v2562, %v3538
  %v3604 = vmul.f32 %v2563, %v3538
  %v3605 = vmul.f32 %v2564, %v3538
  %v3606 = vmul.f32 %v2565, %v3538
  %v3607 = vmul.f32 %v2566, %v3538
  %v3608 = vmul.f32 %v2567, %v3538
  %v3609 = vmul.f32 %v2568, %v3538
  %v3610 = vmul.f32 %v2569, %v3538
  %v3611 = vmul.f32 %v2570, %v3538
  %v3612 = vmul.f32 %v2571, %v3538
  %v3613 = vmul.f32 %v2572, %v3538
  %v3614 = vmul.f32 %v2573, %v3538
  %v3615 = vmul.f32 %v2574, %v3538
  %v3616 = vmul.f32 %v2575, %v3538
  %v3617 = vmul.f32 %v2576, %v3538
  %v3618 = vmul.f32 %v2577, %v3538
  %v3619 = vmul.f32 %v2578, %v3538
  %v3620 = vmul.f32 %v2579, %v3538
  %v3621 = vmul.f32 %v2580, %v3538
  %v3622 = vmul.f32 %v2581, %v3538
  %v3623 = vmul.f32 %v2582, %v3538
  %v3624 = vmul.f32 %v2583, %v3538
  %v3625 = vmul.f32 %v2584, %v3538
  %v3626 = vmul.f32 %v2585, %v3538
  %v3627 = vmul.f32 %v2586, %v3538
  %v3628 = vmul.f32 %v2587, %v3538
  %v3629 = vmul.f32 %v2588, %v3538
  %v3630 = vmul.f32 %v2589, %v3538
  %v3631 = vmul.f32 %v2590, %v3538
  %v3632 = vmul.f32 %v2591, %v3538
  %v3633 = vmul.f32 %v2592, %v3538
  %v3634 = vmul.f32 %v2593, %v3538
  %v3635 = vmul.f32 %v2594, %v3538
  %v3636 = vmul.f32 %v2595, %v3538
  %v3637 = vmul.f32 %v2596, %v3538
  %v3638 = vmul.f32 %v2597, %v3538
  %v3639 = vmul.f32 %v2598, %v3538
  %v3640 = vmul.f32 %v2599, %v3538
  %v3641 = vmul.f32 %v2600, %v3538
  %v3642 = vmul.f32 %v2601, %v3538
  %v3643 = vmul.f32 %v2602, %v3538
  %v3644 = vmul.f32 %v2603, %v3538
  %v3645 = vmul.f32 %v2604, %v3538
  %v3646 = vmul.f32 %v2605, %v3538
  %v3647 = vmul.f32 %v2606, %v3538
  %v3648 = vmul.f32 %v2607, %v3538
  %v3649 = vmul.f32 %v2608, %v3538
  %v3650 = vmul.f32 %v2609, %v3538
  %v3651 = vmul.f32 %v2610, %v3538
  %v3652 = vmul.f32 %v2611, %v3538
  %v3653 = vmul.f32 %v2612, %v3538
  %v3654 = vmul.f32 %v2613, %v3538
  %v3655 = vmul.f32 %v2614, %v3538
  %v3656 = vmul.f32 %v2615, %v3538
  %v3657 = vmul.f32 %v2616, %v3538
  %v3658 = vmul.f32 %v2617, %v3538
  %v3659 = vmul.f32 %v2618, %v3538
  %v3660 = vmul.f32 %v2619, %v3538
  %v3661 = vmul.f32 %v2620, %v3538
  %v3662 = vmul.f32 %v2621, %v3538
  %v3663 = vmul.f32 %v2622, %v3538
  %v3664 = vmul.f32 %v2623, %v3538
  %v3665 = vmul.f32 %v2624, %v3538
  %v3666 = vmul.f32 %v2625, %v3538
  %v3667 = vmul.f32 %v2626, %v3538
  %v3668 = vmul.f32 %v2627, %v3538
  %v3669 = vmul.f32 %v2628, %v3538
  %v3670 = vmul.f32 %v2629, %v3538
  %v3671 = vmul.f32 %v2630, %v3538
  %v3672 = vmul.f32 %v2631, %v3538
  %v3673 = vmul.f32 %v2632, %v3538
  %v3674 = vmul.f32 %v2633, %v3538
  %v3675 = vmul.f32 %v2634, %v3538
  %v3676 = vmul.f32 %v2635, %v3538
  %v3677 = vmul.f32 %v2636, %v3538
  %v3678 = vmul.f32 %v2637, %v3538
  %v3679 = vmul.f32 %v2638, %v3538
  %v3680 = vmul.f32 %v2639, %v3538
  %v3681 = vmul.f32 %v2640, %v3538
  %v3682 = vmul.f32 %v2641, %v3538
  %v3683 = vmul.f32 %v2642, %v3538
  %v3684 = vmul.f32 %v2643, %v3538
  %v3685 = vmul.f32 %v2644, %v3538
  %v3686 = vmul.f32 %v2645, %v3538
  %v3687 = vmul.f32 %v2646, %v3538
  %v3688 = vmul.f32 %v2647, %v3538
  %v3689 = vmul.f32 %v2648, %v3538
  %v3690 = vmul.f32 %v2649, %v3538
  %v3691 = vmul.f32 %v2650, %v3538
  %v3692 = vmul.f32 %v2651, %v3538
  %v3693 = vmul.f32 %v2652, %v3538
  %v3694 = vmul.f32 %v2653, %v3538
  %v3695 = vmul.f32 %v2654, %v3538
  %v3696 = vmul.f32 %v2655, %v3538
  %v3697 = vmul.f32 %v2656, %v3538
  %v3698 = vmul.f32 %v2657, %v3538
  %v3699 = vmul.f32 %v2658, %v3538
  %v3700 = vmul.f32 %v2659, %v3538
  %v3701 = vmul.f32 %v2660, %v3538
  %v3702 = vmul.f32 %v2661, %v3538
  %v3703 = vmul.f32 %v2662, %v3538
  %v3704 = vmul.f32 %v2663, %v3538
  %v3705 = vmul.f32 %v2664, %v3538
  %v3706 = vmul.f32 %v2665, %v3538
  %v3707 = vmul.f32 %v2666, %v3538
  %v3708 = vmul.f32 %v2667, %v3538
  %v3709 = vmul.f32 %v2668, %v3538
  %v3710 = vmul.f32 %v2669, %v3538
  %v3711 = vmul.f32 %v2670, %v3538
  %v3712 = vmul.f32 %v2671, %v3538
  %v3713 = vmul.f32 %v2672, %v3538
  %v3714 = vmul.f32 %v2673, %v3538
  %v3715 = vmul.f32 %v2674, %v3538
  %v3716 = vmul.f32 %v2675, %v3538
  %v3717 = vmul.f32 %v2676, %v3538
  %v3718 = vmul.f32 %v2677, %v3538
  %v3719 = vmul.f32 %v2678, %v3538
  %v3720 = vmul.f32 %v2679, %v3538
  %v3721 = vmul.f32 %v2680, %v3538
  %v3722 = vmul.f32 %v2681, %v3538
  %v3723 = vmul.f32 %v2682, %v3538
  %v3724 = vmul.f32 %v2683, %v3538
  %v3725 = vmul.f32 %v2684, %v3538
  %v3726 = vmul.f32 %v2685, %v3538
  %v3727 = vmul.f32 %v2686, %v3538
  %v3728 = vmul.f32 %v2687, %v3538
  %v3729 = vmul.f32 %v2688, %v3538
  %v3730 = vmul.f32 %v2689, %v3538
  %v3731 = vmul.f32 %v2690, %v3538
  %v3732 = vmul.f32 %v2691, %v3538
  %v3733 = vmul.f32 %v2692, %v3538
  %v3734 = vmul.f32 %v2693, %v3538
  %v3735 = vmul.f32 %v2694, %v3538
  %v3736 = vmul.f32 %v2695, %v3538
  %v3737 = vmul.f32 %v2696, %v3538
  %v3738 = vmul.f32 %v2697, %v3538
  %v3739 = vmul.f32 %v2698, %v3538
  %v3740 = vmul.f32 %v2699, %v3538
  %v3741 = vmul.f32 %v2700, %v3538
  %v3742 = vmul.f32 %v2701, %v3538
  %v3743 = vmul.f32 %v2702, %v3538
  %v3744 = vmul.f32 %v2703, %v3538
  %v3745 = vmul.f32 %v2704, %v3538
  %v3746 = vmul.f32 %v2705, %v3538
  %v3747 = vmul.f32 %v2706, %v3538
  %v3748 = vmul.f32 %v2707, %v3538
  %v3749 = vmul.f32 %v2708, %v3538
  %v3750 = vmul.f32 %v2709, %v3538
  %v3751 = vmul.f32 %v2710, %v3538
  %v3752 = vmul.f32 %v2711, %v3538
  %v3753 = vmul.f32 %v2712, %v3538
  %v3754 = vmul.f32 %v2713, %v3538
  %v3755 = vmul.f32 %v2714, %v3538
  %v3756 = vmul.f32 %v2715, %v3538
  %v3757 = vmul.f32 %v2716, %v3538
  %v3758 = vmul.f32 %v2717, %v3538
  %v3759 = vmul.f32 %v2718, %v3538
  %v3760 = vmul.f32 %v2719, %v3538
  %v3761 = vmul.f32 %v2720, %v3538
  %v3762 = vmul.f32 %v2721, %v3538
  %v3763 = vmul.f32 %v2722, %v3538
  %v3764 = vmul.f32 %v2723, %v3538
  %v3765 = vmul.f32 %v2724, %v3538
  %v3766 = vmul.f32 %v2725, %v3538
  %v3767 = vmul.f32 %v2726, %v3538
  %v3768 = vmul.f32 %v2727, %v3538
  %v3769 = vmul.f32 %v2728, %v3538
  %v3770 = vmul.f32 %v2729, %v3538
  %v3771 = vmul.f32 %v2730, %v3538
  %v3772 = vmul.f32 %v2731, %v3538
  %v3773 = vmul.f32 %v2732, %v3538
  %v3774 = vmul.f32 %v2733, %v3538
  %v3775 = vmul.f32 %v2734, %v3538
  %v3776 = vmul.f32 %v2735, %v3538
  %v3777 = vmul.f32 %v2736, %v3538
  %v3778 = vmul.f32 %v2737, %v3538
  %v3779 = vmul.f32 %v2738, %v3538
  %v3780 = vmul.f32 %v2739, %v3538
  %v3781 = vmul.f32 %v2740, %v3538
  %v3782 = vmul.f32 %v2741, %v3538
  %v3783 = vmul.f32 %v2742, %v3538
  %v3784 = vmul.f32 %v2743, %v3538
  %v3785 = vmul.f32 %v2744, %v3538
  %v3786 = vmul.f32 %v2745, %v3538
  %v3787 = vmul.f32 %v2746, %v3538
  %v3788 = vmul.f32 %v2747, %v3538
  %v3789 = vmul.f32 %v2748, %v3538
  %v3790 = vmul.f32 %v2749, %v3538
  %v3791 = vmul.f32 %v2750, %v3538
  %v3792 = vmul.f32 %v2751, %v3538
  %v3793 = vmul.f32 %v2752, %v3538
  %v3794 = vmul.f32 %v2753, %v3538
  %v3796 = vperm.slane %v1970, 0
  %v3798 = vmul.f32 %v3539, %v3796
  %v3799 = vmul.f32 %v3540, %v3796
  %v3800 = vmul.f32 %v3541, %v3796
  %v3801 = vmul.f32 %v3542, %v3796
  %v3802 = vmul.f32 %v3543, %v3796
  %v3803 = vmul.f32 %v3544, %v3796
  %v3804 = vmul.f32 %v3545, %v3796
  %v3805 = vmul.f32 %v3546, %v3796
  %v3806 = vmul.f32 %v3547, %v3796
  %v3807 = vmul.f32 %v3548, %v3796
  %v3808 = vmul.f32 %v3549, %v3796
  %v3809 = vmul.f32 %v3550, %v3796
  %v3810 = vmul.f32 %v3551, %v3796
  %v3811 = vmul.f32 %v3552, %v3796
  %v3812 = vmul.f32 %v3553, %v3796
  %v3813 = vmul.f32 %v3554, %v3796
  %v3814 = vmul.f32 %v3555, %v3796
  %v3815 = vmul.f32 %v3556, %v3796
  %v3816 = vmul.f32 %v3557, %v3796
  %v3817 = vmul.f32 %v3558, %v3796
  %v3818 = vmul.f32 %v3559, %v3796
  %v3819 = vmul.f32 %v3560, %v3796
  %v3820 = vmul.f32 %v3561, %v3796
  %v3821 = vmul.f32 %v3562, %v3796
  %v3822 = vmul.f32 %v3563, %v3796
  %v3823 = vmul.f32 %v3564, %v3796
  %v3824 = vmul.f32 %v3565, %v3796
  %v3825 = vmul.f32 %v3566, %v3796
  %v3826 = vmul.f32 %v3567, %v3796
  %v3827 = vmul.f32 %v3568, %v3796
  %v3828 = vmul.f32 %v3569, %v3796
  %v3829 = vmul.f32 %v3570, %v3796
  %v3830 = vmul.f32 %v3571, %v3796
  %v3831 = vmul.f32 %v3572, %v3796
  %v3832 = vmul.f32 %v3573, %v3796
  %v3833 = vmul.f32 %v3574, %v3796
  %v3834 = vmul.f32 %v3575, %v3796
  %v3835 = vmul.f32 %v3576, %v3796
  %v3836 = vmul.f32 %v3577, %v3796
  %v3837 = vmul.f32 %v3578, %v3796
  %v3838 = vmul.f32 %v3579, %v3796
  %v3839 = vmul.f32 %v3580, %v3796
  %v3840 = vmul.f32 %v3581, %v3796
  %v3841 = vmul.f32 %v3582, %v3796
  %v3842 = vmul.f32 %v3583, %v3796
  %v3843 = vmul.f32 %v3584, %v3796
  %v3844 = vmul.f32 %v3585, %v3796
  %v3845 = vmul.f32 %v3586, %v3796
  %v3846 = vmul.f32 %v3587, %v3796
  %v3847 = vmul.f32 %v3588, %v3796
  %v3848 = vmul.f32 %v3589, %v3796
  %v3849 = vmul.f32 %v3590, %v3796
  %v3850 = vmul.f32 %v3591, %v3796
  %v3851 = vmul.f32 %v3592, %v3796
  %v3852 = vmul.f32 %v3593, %v3796
  %v3853 = vmul.f32 %v3594, %v3796
  %v3854 = vmul.f32 %v3595, %v3796
  %v3855 = vmul.f32 %v3596, %v3796
  %v3856 = vmul.f32 %v3597, %v3796
  %v3857 = vmul.f32 %v3598, %v3796
  %v3858 = vmul.f32 %v3599, %v3796
  %v3859 = vmul.f32 %v3600, %v3796
  %v3860 = vmul.f32 %v3601, %v3796
  %v3861 = vmul.f32 %v3602, %v3796
  %v3862 = vmul.f32 %v3603, %v3796
  %v3863 = vmul.f32 %v3604, %v3796
  %v3864 = vmul.f32 %v3605, %v3796
  %v3865 = vmul.f32 %v3606, %v3796
  %v3866 = vmul.f32 %v3607, %v3796
  %v3867 = vmul.f32 %v3608, %v3796
  %v3868 = vmul.f32 %v3609, %v3796
  %v3869 = vmul.f32 %v3610, %v3796
  %v3870 = vmul.f32 %v3611, %v3796
  %v3871 = vmul.f32 %v3612, %v3796
  %v3872 = vmul.f32 %v3613, %v3796
  %v3873 = vmul.f32 %v3614, %v3796
  %v3874 = vmul.f32 %v3615, %v3796
  %v3875 = vmul.f32 %v3616, %v3796
  %v3876 = vmul.f32 %v3617, %v3796
  %v3877 = vmul.f32 %v3618, %v3796
  %v3878 = vmul.f32 %v3619, %v3796
  %v3879 = vmul.f32 %v3620, %v3796
  %v3880 = vmul.f32 %v3621, %v3796
  %v3881 = vmul.f32 %v3622, %v3796
  %v3882 = vmul.f32 %v3623, %v3796
  %v3883 = vmul.f32 %v3624, %v3796
  %v3884 = vmul.f32 %v3625, %v3796
  %v3885 = vmul.f32 %v3626, %v3796
  %v3886 = vmul.f32 %v3627, %v3796
  %v3887 = vmul.f32 %v3628, %v3796
  %v3888 = vmul.f32 %v3629, %v3796
  %v3889 = vmul.f32 %v3630, %v3796
  %v3890 = vmul.f32 %v3631, %v3796
  %v3891 = vmul.f32 %v3632, %v3796
  %v3892 = vmul.f32 %v3633, %v3796
  %v3893 = vmul.f32 %v3634, %v3796
  %v3894 = vmul.f32 %v3635, %v3796
  %v3895 = vmul.f32 %v3636, %v3796
  %v3896 = vmul.f32 %v3637, %v3796
  %v3897 = vmul.f32 %v3638, %v3796
  %v3898 = vmul.f32 %v3639, %v3796
  %v3899 = vmul.f32 %v3640, %v3796
  %v3900 = vmul.f32 %v3641, %v3796
  %v3901 = vmul.f32 %v3642, %v3796
  %v3902 = vmul.f32 %v3643, %v3796
  %v3903 = vmul.f32 %v3644, %v3796
  %v3904 = vmul.f32 %v3645, %v3796
  %v3905 = vmul.f32 %v3646, %v3796
  %v3906 = vmul.f32 %v3647, %v3796
  %v3907 = vmul.f32 %v3648, %v3796
  %v3908 = vmul.f32 %v3649, %v3796
  %v3909 = vmul.f32 %v3650, %v3796
  %v3910 = vmul.f32 %v3651, %v3796
  %v3911 = vmul.f32 %v3652, %v3796
  %v3912 = vmul.f32 %v3653, %v3796
  %v3913 = vmul.f32 %v3654, %v3796
  %v3914 = vmul.f32 %v3655, %v3796
  %v3915 = vmul.f32 %v3656, %v3796
  %v3916 = vmul.f32 %v3657, %v3796
  %v3917 = vmul.f32 %v3658, %v3796
  %v3918 = vmul.f32 %v3659, %v3796
  %v3919 = vmul.f32 %v3660, %v3796
  %v3920 = vmul.f32 %v3661, %v3796
  %v3921 = vmul.f32 %v3662, %v3796
  %v3922 = vmul.f32 %v3663, %v3796
  %v3923 = vmul.f32 %v3664, %v3796
  %v3924 = vmul.f32 %v3665, %v3796
  %v3925 = vmul.f32 %v3666, %v3796
  %v3926 = vmul.f32 %v3667, %v3796
  %v3927 = vmul.f32 %v3668, %v3796
  %v3928 = vmul.f32 %v3669, %v3796
  %v3929 = vmul.f32 %v3670, %v3796
  %v3930 = vmul.f32 %v3671, %v3796
  %v3931 = vmul.f32 %v3672, %v3796
  %v3932 = vmul.f32 %v3673, %v3796
  %v3933 = vmul.f32 %v3674, %v3796
  %v3934 = vmul.f32 %v3675, %v3796
  %v3935 = vmul.f32 %v3676, %v3796
  %v3936 = vmul.f32 %v3677, %v3796
  %v3937 = vmul.f32 %v3678, %v3796
  %v3938 = vmul.f32 %v3679, %v3796
  %v3939 = vmul.f32 %v3680, %v3796
  %v3940 = vmul.f32 %v3681, %v3796
  %v3941 = vmul.f32 %v3682, %v3796
  %v3942 = vmul.f32 %v3683, %v3796
  %v3943 = vmul.f32 %v3684, %v3796
  %v3944 = vmul.f32 %v3685, %v3796
  %v3945 = vmul.f32 %v3686, %v3796
  %v3946 = vmul.f32 %v3687, %v3796
  %v3947 = vmul.f32 %v3688, %v3796
  %v3948 = vmul.f32 %v3689, %v3796
  %v3949 = vmul.f32 %v3690, %v3796
  %v3950 = vmul.f32 %v3691, %v3796
  %v3951 = vmul.f32 %v3692, %v3796
  %v3952 = vmul.f32 %v3693, %v3796
  %v3953 = vmul.f32 %v3694, %v3796
  %v3954 = vmul.f32 %v3695, %v3796
  %v3955 = vmul.f32 %v3696, %v3796
  %v3956 = vmul.f32 %v3697, %v3796
  %v3957 = vmul.f32 %v3698, %v3796
  %v3958 = vmul.f32 %v3699, %v3796
  %v3959 = vmul.f32 %v3700, %v3796
  %v3960 = vmul.f32 %v3701, %v3796
  %v3961 = vmul.f32 %v3702, %v3796
  %v3962 = vmul.f32 %v3703, %v3796
  %v3963 = vmul.f32 %v3704, %v3796
  %v3964 = vmul.f32 %v3705, %v3796
  %v3965 = vmul.f32 %v3706, %v3796
  %v3966 = vmul.f32 %v3707, %v3796
  %v3967 = vmul.f32 %v3708, %v3796
  %v3968 = vmul.f32 %v3709, %v3796
  %v3969 = vmul.f32 %v3710, %v3796
  %v3970 = vmul.f32 %v3711, %v3796
  %v3971 = vmul.f32 %v3712, %v3796
  %v3972 = vmul.f32 %v3713, %v3796
  %v3973 = vmul.f32 %v3714, %v3796
  %v3974 = vmul.f32 %v3715, %v3796
  %v3975 = vmul.f32 %v3716, %v3796
  %v3976 = vmul.f32 %v3717, %v3796
  %v3977 = vmul.f32 %v3718, %v3796
  %v3978 = vmul.f32 %v3719, %v3796
  %v3979 = vmul.f32 %v3720, %v3796
  %v3980 = vmul.f32 %v3721, %v3796
  %v3981 = vmul.f32 %v3722, %v3796
  %v3982 = vmul.f32 %v3723, %v3796
  %v3983 = vmul.f32 %v3724, %v3796
  %v3984 = vmul.f32 %v3725, %v3796
  %v3985 = vmul.f32 %v3726, %v3796
  %v3986 = vmul.f32 %v3727, %v3796
  %v3987 = vmul.f32 %v3728, %v3796
  %v3988 = vmul.f32 %v3729, %v3796
  %v3989 = vmul.f32 %v3730, %v3796
  %v3990 = vmul.f32 %v3731, %v3796
  %v3991 = vmul.f32 %v3732, %v3796
  %v3992 = vmul.f32 %v3733, %v3796
  %v3993 = vmul.f32 %v3734, %v3796
  %v3994 = vmul.f32 %v3735, %v3796
  %v3995 = vmul.f32 %v3736, %v3796
  %v3996 = vmul.f32 %v3737, %v3796
  %v3997 = vmul.f32 %v3738, %v3796
  %v3998 = vmul.f32 %v3739, %v3796
  %v3999 = vmul.f32 %v3740, %v3796
  %v4000 = vmul.f32 %v3741, %v3796
  %v4001 = vmul.f32 %v3742, %v3796
  %v4002 = vmul.f32 %v3743, %v3796
  %v4003 = vmul.f32 %v3744, %v3796
  %v4004 = vmul.f32 %v3745, %v3796
  %v4005 = vmul.f32 %v3746, %v3796
  %v4006 = vmul.f32 %v3747, %v3796
  %v4007 = vmul.f32 %v3748, %v3796
  %v4008 = vmul.f32 %v3749, %v3796
  %v4009 = vmul.f32 %v3750, %v3796
  %v4010 = vmul.f32 %v3751, %v3796
  %v4011 = vmul.f32 %v3752, %v3796
  %v4012 = vmul.f32 %v3753, %v3796
  %v4013 = vmul.f32 %v3754, %v3796
  %v4014 = vmul.f32 %v3755, %v3796
  %v4015 = vmul.f32 %v3756, %v3796
  %v4016 = vmul.f32 %v3757, %v3796
  %v4017 = vmul.f32 %v3758, %v3796
  %v4018 = vmul.f32 %v3759, %v3796
  %v4019 = vmul.f32 %v3760, %v3796
  %v4020 = vmul.f32 %v3761, %v3796
  %v4021 = vmul.f32 %v3762, %v3796
  %v4022 = vmul.f32 %v3763, %v3796
  %v4023 = vmul.f32 %v3764, %v3796
  %v4024 = vmul.f32 %v3765, %v3796
  %v4025 = vmul.f32 %v3766, %v3796
  %v4026 = vmul.f32 %v3767, %v3796
  %v4027 = vmul.f32 %v3768, %v3796
  %v4028 = vmul.f32 %v3769, %v3796
  %v4029 = vmul.f32 %v3770, %v3796
  %v4030 = vmul.f32 %v3771, %v3796
  %v4031 = vmul.f32 %v3772, %v3796
  %v4032 = vmul.f32 %v3773, %v3796
  %v4033 = vmul.f32 %v3774, %v3796
  %v4034 = vmul.f32 %v3775, %v3796
  %v4035 = vmul.f32 %v3776, %v3796
  %v4036 = vmul.f32 %v3777, %v3796
  %v4037 = vmul.f32 %v3778, %v3796
  %v4038 = vmul.f32 %v3779, %v3796
  %v4039 = vmul.f32 %v3780, %v3796
  %v4040 = vmul.f32 %v3781, %v3796
  %v4041 = vmul.f32 %v3782, %v3796
  %v4042 = vmul.f32 %v3783, %v3796
  %v4043 = vmul.f32 %v3784, %v3796
  %v4044 = vmul.f32 %v3785, %v3796
  %v4045 = vmul.f32 %v3786, %v3796
  %v4046 = vmul.f32 %v3787, %v3796
  %v4047 = vmul.f32 %v3788, %v3796
  %v4048 = vmul.f32 %v3789, %v3796
  %v4049 = vmul.f32 %v3790, %v3796
  %v4050 = vmul.f32 %v3791, %v3796
  %v4051 = vmul.f32 %v3792, %v3796
  %v4052 = vmul.f32 %v3793, %v3796
  %v4053 = vmul.f32 %v3794, %v3796
  %v4055 = vperm.slane %v1971, 0
  %v4057 = vadd.f32 %v3798, %v4055
  %v4058 = vadd.f32 %v3799, %v4055
  %v4059 = vadd.f32 %v3800, %v4055
  %v4060 = vadd.f32 %v3801, %v4055
  %v4061 = vadd.f32 %v3802, %v4055
  %v4062 = vadd.f32 %v3803, %v4055
  %v4063 = vadd.f32 %v3804, %v4055
  %v4064 = vadd.f32 %v3805, %v4055
  %v4065 = vadd.f32 %v3806, %v4055
  %v4066 = vadd.f32 %v3807, %v4055
  %v4067 = vadd.f32 %v3808, %v4055
  %v4068 = vadd.f32 %v3809, %v4055
  %v4069 = vadd.f32 %v3810, %v4055
  %v4070 = vadd.f32 %v3811, %v4055
  %v4071 = vadd.f32 %v3812, %v4055
  %v4072 = vadd.f32 %v3813, %v4055
  %v4073 = vadd.f32 %v3814, %v4055
  %v4074 = vadd.f32 %v3815, %v4055
  %v4075 = vadd.f32 %v3816, %v4055
  %v4076 = vadd.f32 %v3817, %v4055
  %v4077 = vadd.f32 %v3818, %v4055
  %v4078 = vadd.f32 %v3819, %v4055
  %v4079 = vadd.f32 %v3820, %v4055
  %v4080 = vadd.f32 %v3821, %v4055
  %v4081 = vadd.f32 %v3822, %v4055
  %v4082 = vadd.f32 %v3823, %v4055
  %v4083 = vadd.f32 %v3824, %v4055
  %v4084 = vadd.f32 %v3825, %v4055
  %v4085 = vadd.f32 %v3826, %v4055
  %v4086 = vadd.f32 %v3827, %v4055
  %v4087 = vadd.f32 %v3828, %v4055
  %v4088 = vadd.f32 %v3829, %v4055
  %v4089 = vadd.f32 %v3830, %v4055
  %v4090 = vadd.f32 %v3831, %v4055
  %v4091 = vadd.f32 %v3832, %v4055
  %v4092 = vadd.f32 %v3833, %v4055
  %v4093 = vadd.f32 %v3834, %v4055
  %v4094 = vadd.f32 %v3835, %v4055
  %v4095 = vadd.f32 %v3836, %v4055
  %v4096 = vadd.f32 %v3837, %v4055
  %v4097 = vadd.f32 %v3838, %v4055
  %v4098 = vadd.f32 %v3839, %v4055
  %v4099 = vadd.f32 %v3840, %v4055
  %v4100 = vadd.f32 %v3841, %v4055
  %v4101 = vadd.f32 %v3842, %v4055
  %v4102 = vadd.f32 %v3843, %v4055
  %v4103 = vadd.f32 %v3844, %v4055
  %v4104 = vadd.f32 %v3845, %v4055
  %v4105 = vadd.f32 %v3846, %v4055
  %v4106 = vadd.f32 %v3847, %v4055
  %v4107 = vadd.f32 %v3848, %v4055
  %v4108 = vadd.f32 %v3849, %v4055
  %v4109 = vadd.f32 %v3850, %v4055
  %v4110 = vadd.f32 %v3851, %v4055
  %v4111 = vadd.f32 %v3852, %v4055
  %v4112 = vadd.f32 %v3853, %v4055
  %v4113 = vadd.f32 %v3854, %v4055
  %v4114 = vadd.f32 %v3855, %v4055
  %v4115 = vadd.f32 %v3856, %v4055
  %v4116 = vadd.f32 %v3857, %v4055
  %v4117 = vadd.f32 %v3858, %v4055
  %v4118 = vadd.f32 %v3859, %v4055
  %v4119 = vadd.f32 %v3860, %v4055
  %v4120 = vadd.f32 %v3861, %v4055
  %v4121 = vadd.f32 %v3862, %v4055
  %v4122 = vadd.f32 %v3863, %v4055
  %v4123 = vadd.f32 %v3864, %v4055
  %v4124 = vadd.f32 %v3865, %v4055
  %v4125 = vadd.f32 %v3866, %v4055
  %v4126 = vadd.f32 %v3867, %v4055
  %v4127 = vadd.f32 %v3868, %v4055
  %v4128 = vadd.f32 %v3869, %v4055
  %v4129 = vadd.f32 %v3870, %v4055
  %v4130 = vadd.f32 %v3871, %v4055
  %v4131 = vadd.f32 %v3872, %v4055
  %v4132 = vadd.f32 %v3873, %v4055
  %v4133 = vadd.f32 %v3874, %v4055
  %v4134 = vadd.f32 %v3875, %v4055
  %v4135 = vadd.f32 %v3876, %v4055
  %v4136 = vadd.f32 %v3877, %v4055
  %v4137 = vadd.f32 %v3878, %v4055
  %v4138 = vadd.f32 %v3879, %v4055
  %v4139 = vadd.f32 %v3880, %v4055
  %v4140 = vadd.f32 %v3881, %v4055
  %v4141 = vadd.f32 %v3882, %v4055
  %v4142 = vadd.f32 %v3883, %v4055
  %v4143 = vadd.f32 %v3884, %v4055
  %v4144 = vadd.f32 %v3885, %v4055
  %v4145 = vadd.f32 %v3886, %v4055
  %v4146 = vadd.f32 %v3887, %v4055
  %v4147 = vadd.f32 %v3888, %v4055
  %v4148 = vadd.f32 %v3889, %v4055
  %v4149 = vadd.f32 %v3890, %v4055
  %v4150 = vadd.f32 %v3891, %v4055
  %v4151 = vadd.f32 %v3892, %v4055
  %v4152 = vadd.f32 %v3893, %v4055
  %v4153 = vadd.f32 %v3894, %v4055
  %v4154 = vadd.f32 %v3895, %v4055
  %v4155 = vadd.f32 %v3896, %v4055
  %v4156 = vadd.f32 %v3897, %v4055
  %v4157 = vadd.f32 %v3898, %v4055
  %v4158 = vadd.f32 %v3899, %v4055
  %v4159 = vadd.f32 %v3900, %v4055
  %v4160 = vadd.f32 %v3901, %v4055
  %v4161 = vadd.f32 %v3902, %v4055
  %v4162 = vadd.f32 %v3903, %v4055
  %v4163 = vadd.f32 %v3904, %v4055
  %v4164 = vadd.f32 %v3905, %v4055
  %v4165 = vadd.f32 %v3906, %v4055
  %v4166 = vadd.f32 %v3907, %v4055
  %v4167 = vadd.f32 %v3908, %v4055
  %v4168 = vadd.f32 %v3909, %v4055
  %v4169 = vadd.f32 %v3910, %v4055
  %v4170 = vadd.f32 %v3911, %v4055
  %v4171 = vadd.f32 %v3912, %v4055
  %v4172 = vadd.f32 %v3913, %v4055
  %v4173 = vadd.f32 %v3914, %v4055
  %v4174 = vadd.f32 %v3915, %v4055
  %v4175 = vadd.f32 %v3916, %v4055
  %v4176 = vadd.f32 %v3917, %v4055
  %v4177 = vadd.f32 %v3918, %v4055
  %v4178 = vadd.f32 %v3919, %v4055
  %v4179 = vadd.f32 %v3920, %v4055
  %v4180 = vadd.f32 %v3921, %v4055
  %v4181 = vadd.f32 %v3922, %v4055
  %v4182 = vadd.f32 %v3923, %v4055
  %v4183 = vadd.f32 %v3924, %v4055
  %v4184 = vadd.f32 %v3925, %v4055
  %v4185 = vadd.f32 %v3926, %v4055
  %v4186 = vadd.f32 %v3927, %v4055
  %v4187 = vadd.f32 %v3928, %v4055
  %v4188 = vadd.f32 %v3929, %v4055
  %v4189 = vadd.f32 %v3930, %v4055
  %v4190 = vadd.f32 %v3931, %v4055
  %v4191 = vadd.f32 %v3932, %v4055
  %v4192 = vadd.f32 %v3933, %v4055
  %v4193 = vadd.f32 %v3934, %v4055
  %v4194 = vadd.f32 %v3935, %v4055
  %v4195 = vadd.f32 %v3936, %v4055
  %v4196 = vadd.f32 %v3937, %v4055
  %v4197 = vadd.f32 %v3938, %v4055
  %v4198 = vadd.f32 %v3939, %v4055
  %v4199 = vadd.f32 %v3940, %v4055
  %v4200 = vadd.f32 %v3941, %v4055
  %v4201 = vadd.f32 %v3942, %v4055
  %v4202 = vadd.f32 %v3943, %v4055
  %v4203 = vadd.f32 %v3944, %v4055
  %v4204 = vadd.f32 %v3945, %v4055
  %v4205 = vadd.f32 %v3946, %v4055
  %v4206 = vadd.f32 %v3947, %v4055
  %v4207 = vadd.f32 %v3948, %v4055
  %v4208 = vadd.f32 %v3949, %v4055
  %v4209 = vadd.f32 %v3950, %v4055
  %v4210 = vadd.f32 %v3951, %v4055
  %v4211 = vadd.f32 %v3952, %v4055
  %v4212 = vadd.f32 %v3953, %v4055
  %v4213 = vadd.f32 %v3954, %v4055
  %v4214 = vadd.f32 %v3955, %v4055
  %v4215 = vadd.f32 %v3956, %v4055
  %v4216 = vadd.f32 %v3957, %v4055
  %v4217 = vadd.f32 %v3958, %v4055
  %v4218 = vadd.f32 %v3959, %v4055
  %v4219 = vadd.f32 %v3960, %v4055
  %v4220 = vadd.f32 %v3961, %v4055
  %v4221 = vadd.f32 %v3962, %v4055
  %v4222 = vadd.f32 %v3963, %v4055
  %v4223 = vadd.f32 %v3964, %v4055
  %v4224 = vadd.f32 %v3965, %v4055
  %v4225 = vadd.f32 %v3966, %v4055
  %v4226 = vadd.f32 %v3967, %v4055
  %v4227 = vadd.f32 %v3968, %v4055
  %v4228 = vadd.f32 %v3969, %v4055
  %v4229 = vadd.f32 %v3970, %v4055
  %v4230 = vadd.f32 %v3971, %v4055
  %v4231 = vadd.f32 %v3972, %v4055
  %v4232 = vadd.f32 %v3973, %v4055
  %v4233 = vadd.f32 %v3974, %v4055
  %v4234 = vadd.f32 %v3975, %v4055
  %v4235 = vadd.f32 %v3976, %v4055
  %v4236 = vadd.f32 %v3977, %v4055
  %v4237 = vadd.f32 %v3978, %v4055
  %v4238 = vadd.f32 %v3979, %v4055
  %v4239 = vadd.f32 %v3980, %v4055
  %v4240 = vadd.f32 %v3981, %v4055
  %v4241 = vadd.f32 %v3982, %v4055
  %v4242 = vadd.f32 %v3983, %v4055
  %v4243 = vadd.f32 %v3984, %v4055
  %v4244 = vadd.f32 %v3985, %v4055
  %v4245 = vadd.f32 %v3986, %v4055
  %v4246 = vadd.f32 %v3987, %v4055
  %v4247 = vadd.f32 %v3988, %v4055
  %v4248 = vadd.f32 %v3989, %v4055
  %v4249 = vadd.f32 %v3990, %v4055
  %v4250 = vadd.f32 %v3991, %v4055
  %v4251 = vadd.f32 %v3992, %v4055
  %v4252 = vadd.f32 %v3993, %v4055
  %v4253 = vadd.f32 %v3994, %v4055
  %v4254 = vadd.f32 %v3995, %v4055
  %v4255 = vadd.f32 %v3996, %v4055
  %v4256 = vadd.f32 %v3997, %v4055
  %v4257 = vadd.f32 %v3998, %v4055
  %v4258 = vadd.f32 %v3999, %v4055
  %v4259 = vadd.f32 %v4000, %v4055
  %v4260 = vadd.f32 %v4001, %v4055
  %v4261 = vadd.f32 %v4002, %v4055
  %v4262 = vadd.f32 %v4003, %v4055
  %v4263 = vadd.f32 %v4004, %v4055
  %v4264 = vadd.f32 %v4005, %v4055
  %v4265 = vadd.f32 %v4006, %v4055
  %v4266 = vadd.f32 %v4007, %v4055
  %v4267 = vadd.f32 %v4008, %v4055
  %v4268 = vadd.f32 %v4009, %v4055
  %v4269 = vadd.f32 %v4010, %v4055
  %v4270 = vadd.f32 %v4011, %v4055
  %v4271 = vadd.f32 %v4012, %v4055
  %v4272 = vadd.f32 %v4013, %v4055
  %v4273 = vadd.f32 %v4014, %v4055
  %v4274 = vadd.f32 %v4015, %v4055
  %v4275 = vadd.f32 %v4016, %v4055
  %v4276 = vadd.f32 %v4017, %v4055
  %v4277 = vadd.f32 %v4018, %v4055
  %v4278 = vadd.f32 %v4019, %v4055
  %v4279 = vadd.f32 %v4020, %v4055
  %v4280 = vadd.f32 %v4021, %v4055
  %v4281 = vadd.f32 %v4022, %v4055
  %v4282 = vadd.f32 %v4023, %v4055
  %v4283 = vadd.f32 %v4024, %v4055
  %v4284 = vadd.f32 %v4025, %v4055
  %v4285 = vadd.f32 %v4026, %v4055
  %v4286 = vadd.f32 %v4027, %v4055
  %v4287 = vadd.f32 %v4028, %v4055
  %v4288 = vadd.f32 %v4029, %v4055
  %v4289 = vadd.f32 %v4030, %v4055
  %v4290 = vadd.f32 %v4031, %v4055
  %v4291 = vadd.f32 %v4032, %v4055
  %v4292 = vadd.f32 %v4033, %v4055
  %v4293 = vadd.f32 %v4034, %v4055
  %v4294 = vadd.f32 %v4035, %v4055
  %v4295 = vadd.f32 %v4036, %v4055
  %v4296 = vadd.f32 %v4037, %v4055
  %v4297 = vadd.f32 %v4038, %v4055
  %v4298 = vadd.f32 %v4039, %v4055
  %v4299 = vadd.f32 %v4040, %v4055
  %v4300 = vadd.f32 %v4041, %v4055
  %v4301 = vadd.f32 %v4042, %v4055
  %v4302 = vadd.f32 %v4043, %v4055
  %v4303 = vadd.f32 %v4044, %v4055
  %v4304 = vadd.f32 %v4045, %v4055
  %v4305 = vadd.f32 %v4046, %v4055
  %v4306 = vadd.f32 %v4047, %v4055
  %v4307 = vadd.f32 %v4048, %v4055
  %v4308 = vadd.f32 %v4049, %v4055
  %v4309 = vadd.f32 %v4050, %v4055
  %v4310 = vadd.f32 %v4051, %v4055
  %v4311 = vadd.f32 %v4052, %v4055
  %v4312 = vadd.f32 %v4053, %v4055
  %vm4313 = vcmp.ge.f32.partialorder %v4057, 0.0
  %vm4314 = vcmp.ge.f32.partialorder %v4058, 0.0
  %vm4315 = vcmp.ge.f32.partialorder %v4059, 0.0
  %vm4316 = vcmp.ge.f32.partialorder %v4060, 0.0
  %vm4317 = vcmp.ge.f32.partialorder %v4061, 0.0
  %vm4318 = vcmp.ge.f32.partialorder %v4062, 0.0
  %vm4319 = vcmp.ge.f32.partialorder %v4063, 0.0
  %vm4320 = vcmp.ge.f32.partialorder %v4064, 0.0
  %vm4321 = vcmp.ge.f32.partialorder %v4065, 0.0
  %vm4322 = vcmp.ge.f32.partialorder %v4066, 0.0
  %vm4323 = vcmp.ge.f32.partialorder %v4067, 0.0
  %vm4324 = vcmp.ge.f32.partialorder %v4068, 0.0
  %vm4325 = vcmp.ge.f32.partialorder %v4069, 0.0
  %vm4326 = vcmp.ge.f32.partialorder %v4070, 0.0
  %vm4327 = vcmp.ge.f32.partialorder %v4071, 0.0
  %vm4328 = vcmp.ge.f32.partialorder %v4072, 0.0
  %vm4329 = vcmp.ge.f32.partialorder %v4073, 0.0
  %vm4330 = vcmp.ge.f32.partialorder %v4074, 0.0
  %vm4331 = vcmp.ge.f32.partialorder %v4075, 0.0
  %vm4332 = vcmp.ge.f32.partialorder %v4076, 0.0
  %vm4333 = vcmp.ge.f32.partialorder %v4077, 0.0
  %vm4334 = vcmp.ge.f32.partialorder %v4078, 0.0
  %vm4335 = vcmp.ge.f32.partialorder %v4079, 0.0
  %vm4336 = vcmp.ge.f32.partialorder %v4080, 0.0
  %vm4337 = vcmp.ge.f32.partialorder %v4081, 0.0
  %vm4338 = vcmp.ge.f32.partialorder %v4082, 0.0
  %vm4339 = vcmp.ge.f32.partialorder %v4083, 0.0
  %vm4340 = vcmp.ge.f32.partialorder %v4084, 0.0
  %vm4341 = vcmp.ge.f32.partialorder %v4085, 0.0
  %vm4342 = vcmp.ge.f32.partialorder %v4086, 0.0
  %vm4343 = vcmp.ge.f32.partialorder %v4087, 0.0
  %vm4344 = vcmp.ge.f32.partialorder %v4088, 0.0
  %vm4345 = vcmp.ge.f32.partialorder %v4089, 0.0
  %vm4346 = vcmp.ge.f32.partialorder %v4090, 0.0
  %vm4347 = vcmp.ge.f32.partialorder %v4091, 0.0
  %vm4348 = vcmp.ge.f32.partialorder %v4092, 0.0
  %vm4349 = vcmp.ge.f32.partialorder %v4093, 0.0
  %vm4350 = vcmp.ge.f32.partialorder %v4094, 0.0
  %vm4351 = vcmp.ge.f32.partialorder %v4095, 0.0
  %vm4352 = vcmp.ge.f32.partialorder %v4096, 0.0
  %vm4353 = vcmp.ge.f32.partialorder %v4097, 0.0
  %vm4354 = vcmp.ge.f32.partialorder %v4098, 0.0
  %vm4355 = vcmp.ge.f32.partialorder %v4099, 0.0
  %vm4356 = vcmp.ge.f32.partialorder %v4100, 0.0
  %vm4357 = vcmp.ge.f32.partialorder %v4101, 0.0
  %vm4358 = vcmp.ge.f32.partialorder %v4102, 0.0
  %vm4359 = vcmp.ge.f32.partialorder %v4103, 0.0
  %vm4360 = vcmp.ge.f32.partialorder %v4104, 0.0
  %vm4361 = vcmp.ge.f32.partialorder %v4105, 0.0
  %vm4362 = vcmp.ge.f32.partialorder %v4106, 0.0
  %vm4363 = vcmp.ge.f32.partialorder %v4107, 0.0
  %vm4364 = vcmp.ge.f32.partialorder %v4108, 0.0
  %vm4365 = vcmp.ge.f32.partialorder %v4109, 0.0
  %vm4366 = vcmp.ge.f32.partialorder %v4110, 0.0
  %vm4367 = vcmp.ge.f32.partialorder %v4111, 0.0
  %vm4368 = vcmp.ge.f32.partialorder %v4112, 0.0
  %vm4369 = vcmp.ge.f32.partialorder %v4113, 0.0
  %vm4370 = vcmp.ge.f32.partialorder %v4114, 0.0
  %vm4371 = vcmp.ge.f32.partialorder %v4115, 0.0
  %vm4372 = vcmp.ge.f32.partialorder %v4116, 0.0
  %vm4373 = vcmp.ge.f32.partialorder %v4117, 0.0
  %vm4374 = vcmp.ge.f32.partialorder %v4118, 0.0
  %vm4375 = vcmp.ge.f32.partialorder %v4119, 0.0
  %vm4376 = vcmp.ge.f32.partialorder %v4120, 0.0
  %vm4377 = vcmp.ge.f32.partialorder %v4121, 0.0
  %vm4378 = vcmp.ge.f32.partialorder %v4122, 0.0
  %vm4379 = vcmp.ge.f32.partialorder %v4123, 0.0
  %vm4380 = vcmp.ge.f32.partialorder %v4124, 0.0
  %vm4381 = vcmp.ge.f32.partialorder %v4125, 0.0
  %vm4382 = vcmp.ge.f32.partialorder %v4126, 0.0
  %vm4383 = vcmp.ge.f32.partialorder %v4127, 0.0
  %vm4384 = vcmp.ge.f32.partialorder %v4128, 0.0
  %vm4385 = vcmp.ge.f32.partialorder %v4129, 0.0
  %vm4386 = vcmp.ge.f32.partialorder %v4130, 0.0
  %vm4387 = vcmp.ge.f32.partialorder %v4131, 0.0
  %vm4388 = vcmp.ge.f32.partialorder %v4132, 0.0
  %vm4389 = vcmp.ge.f32.partialorder %v4133, 0.0
  %vm4390 = vcmp.ge.f32.partialorder %v4134, 0.0
  %vm4391 = vcmp.ge.f32.partialorder %v4135, 0.0
  %vm4392 = vcmp.ge.f32.partialorder %v4136, 0.0
  %vm4393 = vcmp.ge.f32.partialorder %v4137, 0.0
  %vm4394 = vcmp.ge.f32.partialorder %v4138, 0.0
  %vm4395 = vcmp.ge.f32.partialorder %v4139, 0.0
  %vm4396 = vcmp.ge.f32.partialorder %v4140, 0.0
  %vm4397 = vcmp.ge.f32.partialorder %v4141, 0.0
  %vm4398 = vcmp.ge.f32.partialorder %v4142, 0.0
  %vm4399 = vcmp.ge.f32.partialorder %v4143, 0.0
  %vm4400 = vcmp.ge.f32.partialorder %v4144, 0.0
  %vm4401 = vcmp.ge.f32.partialorder %v4145, 0.0
  %vm4402 = vcmp.ge.f32.partialorder %v4146, 0.0
  %vm4403 = vcmp.ge.f32.partialorder %v4147, 0.0
  %vm4404 = vcmp.ge.f32.partialorder %v4148, 0.0
  %vm4405 = vcmp.ge.f32.partialorder %v4149, 0.0
  %vm4406 = vcmp.ge.f32.partialorder %v4150, 0.0
  %vm4407 = vcmp.ge.f32.partialorder %v4151, 0.0
  %vm4408 = vcmp.ge.f32.partialorder %v4152, 0.0
  %vm4409 = vcmp.ge.f32.partialorder %v4153, 0.0
  %vm4410 = vcmp.ge.f32.partialorder %v4154, 0.0
  %vm4411 = vcmp.ge.f32.partialorder %v4155, 0.0
  %vm4412 = vcmp.ge.f32.partialorder %v4156, 0.0
  %vm4413 = vcmp.ge.f32.partialorder %v4157, 0.0
  %vm4414 = vcmp.ge.f32.partialorder %v4158, 0.0
  %vm4415 = vcmp.ge.f32.partialorder %v4159, 0.0
  %vm4416 = vcmp.ge.f32.partialorder %v4160, 0.0
  %vm4417 = vcmp.ge.f32.partialorder %v4161, 0.0
  %vm4418 = vcmp.ge.f32.partialorder %v4162, 0.0
  %vm4419 = vcmp.ge.f32.partialorder %v4163, 0.0
  %vm4420 = vcmp.ge.f32.partialorder %v4164, 0.0
  %vm4421 = vcmp.ge.f32.partialorder %v4165, 0.0
  %vm4422 = vcmp.ge.f32.partialorder %v4166, 0.0
  %vm4423 = vcmp.ge.f32.partialorder %v4167, 0.0
  %vm4424 = vcmp.ge.f32.partialorder %v4168, 0.0
  %vm4425 = vcmp.ge.f32.partialorder %v4169, 0.0
  %vm4426 = vcmp.ge.f32.partialorder %v4170, 0.0
  %vm4427 = vcmp.ge.f32.partialorder %v4171, 0.0
  %vm4428 = vcmp.ge.f32.partialorder %v4172, 0.0
  %vm4429 = vcmp.ge.f32.partialorder %v4173, 0.0
  %vm4430 = vcmp.ge.f32.partialorder %v4174, 0.0
  %vm4431 = vcmp.ge.f32.partialorder %v4175, 0.0
  %vm4432 = vcmp.ge.f32.partialorder %v4176, 0.0
  %vm4433 = vcmp.ge.f32.partialorder %v4177, 0.0
  %vm4434 = vcmp.ge.f32.partialorder %v4178, 0.0
  %vm4435 = vcmp.ge.f32.partialorder %v4179, 0.0
  %vm4436 = vcmp.ge.f32.partialorder %v4180, 0.0
  %vm4437 = vcmp.ge.f32.partialorder %v4181, 0.0
  %vm4438 = vcmp.ge.f32.partialorder %v4182, 0.0
  %vm4439 = vcmp.ge.f32.partialorder %v4183, 0.0
  %vm4440 = vcmp.ge.f32.partialorder %v4184, 0.0
  %vm4441 = vcmp.ge.f32.partialorder %v4185, 0.0
  %vm4442 = vcmp.ge.f32.partialorder %v4186, 0.0
  %vm4443 = vcmp.ge.f32.partialorder %v4187, 0.0
  %vm4444 = vcmp.ge.f32.partialorder %v4188, 0.0
  %vm4445 = vcmp.ge.f32.partialorder %v4189, 0.0
  %vm4446 = vcmp.ge.f32.partialorder %v4190, 0.0
  %vm4447 = vcmp.ge.f32.partialorder %v4191, 0.0
  %vm4448 = vcmp.ge.f32.partialorder %v4192, 0.0
  %vm4449 = vcmp.ge.f32.partialorder %v4193, 0.0
  %vm4450 = vcmp.ge.f32.partialorder %v4194, 0.0
  %vm4451 = vcmp.ge.f32.partialorder %v4195, 0.0
  %vm4452 = vcmp.ge.f32.partialorder %v4196, 0.0
  %vm4453 = vcmp.ge.f32.partialorder %v4197, 0.0
  %vm4454 = vcmp.ge.f32.partialorder %v4198, 0.0
  %vm4455 = vcmp.ge.f32.partialorder %v4199, 0.0
  %vm4456 = vcmp.ge.f32.partialorder %v4200, 0.0
  %vm4457 = vcmp.ge.f32.partialorder %v4201, 0.0
  %vm4458 = vcmp.ge.f32.partialorder %v4202, 0.0
  %vm4459 = vcmp.ge.f32.partialorder %v4203, 0.0
  %vm4460 = vcmp.ge.f32.partialorder %v4204, 0.0
  %vm4461 = vcmp.ge.f32.partialorder %v4205, 0.0
  %vm4462 = vcmp.ge.f32.partialorder %v4206, 0.0
  %vm4463 = vcmp.ge.f32.partialorder %v4207, 0.0
  %vm4464 = vcmp.ge.f32.partialorder %v4208, 0.0
  %vm4465 = vcmp.ge.f32.partialorder %v4209, 0.0
  %vm4466 = vcmp.ge.f32.partialorder %v4210, 0.0
  %vm4467 = vcmp.ge.f32.partialorder %v4211, 0.0
  %vm4468 = vcmp.ge.f32.partialorder %v4212, 0.0
  %vm4469 = vcmp.ge.f32.partialorder %v4213, 0.0
  %vm4470 = vcmp.ge.f32.partialorder %v4214, 0.0
  %vm4471 = vcmp.ge.f32.partialorder %v4215, 0.0
  %vm4472 = vcmp.ge.f32.partialorder %v4216, 0.0
  %vm4473 = vcmp.ge.f32.partialorder %v4217, 0.0
  %vm4474 = vcmp.ge.f32.partialorder %v4218, 0.0
  %vm4475 = vcmp.ge.f32.partialorder %v4219, 0.0
  %vm4476 = vcmp.ge.f32.partialorder %v4220, 0.0
  %vm4477 = vcmp.ge.f32.partialorder %v4221, 0.0
  %vm4478 = vcmp.ge.f32.partialorder %v4222, 0.0
  %vm4479 = vcmp.ge.f32.partialorder %v4223, 0.0
  %vm4480 = vcmp.ge.f32.partialorder %v4224, 0.0
  %vm4481 = vcmp.ge.f32.partialorder %v4225, 0.0
  %vm4482 = vcmp.ge.f32.partialorder %v4226, 0.0
  %vm4483 = vcmp.ge.f32.partialorder %v4227, 0.0
  %vm4484 = vcmp.ge.f32.partialorder %v4228, 0.0
  %vm4485 = vcmp.ge.f32.partialorder %v4229, 0.0
  %vm4486 = vcmp.ge.f32.partialorder %v4230, 0.0
  %vm4487 = vcmp.ge.f32.partialorder %v4231, 0.0
  %vm4488 = vcmp.ge.f32.partialorder %v4232, 0.0
  %vm4489 = vcmp.ge.f32.partialorder %v4233, 0.0
  %vm4490 = vcmp.ge.f32.partialorder %v4234, 0.0
  %vm4491 = vcmp.ge.f32.partialorder %v4235, 0.0
  %vm4492 = vcmp.ge.f32.partialorder %v4236, 0.0
  %vm4493 = vcmp.ge.f32.partialorder %v4237, 0.0
  %vm4494 = vcmp.ge.f32.partialorder %v4238, 0.0
  %vm4495 = vcmp.ge.f32.partialorder %v4239, 0.0
  %vm4496 = vcmp.ge.f32.partialorder %v4240, 0.0
  %vm4497 = vcmp.ge.f32.partialorder %v4241, 0.0
  %vm4498 = vcmp.ge.f32.partialorder %v4242, 0.0
  %vm4499 = vcmp.ge.f32.partialorder %v4243, 0.0
  %vm4500 = vcmp.ge.f32.partialorder %v4244, 0.0
  %vm4501 = vcmp.ge.f32.partialorder %v4245, 0.0
  %vm4502 = vcmp.ge.f32.partialorder %v4246, 0.0
  %vm4503 = vcmp.ge.f32.partialorder %v4247, 0.0
  %vm4504 = vcmp.ge.f32.partialorder %v4248, 0.0
  %vm4505 = vcmp.ge.f32.partialorder %v4249, 0.0
  %vm4506 = vcmp.ge.f32.partialorder %v4250, 0.0
  %vm4507 = vcmp.ge.f32.partialorder %v4251, 0.0
  %vm4508 = vcmp.ge.f32.partialorder %v4252, 0.0
  %vm4509 = vcmp.ge.f32.partialorder %v4253, 0.0
  %vm4510 = vcmp.ge.f32.partialorder %v4254, 0.0
  %vm4511 = vcmp.ge.f32.partialorder %v4255, 0.0
  %vm4512 = vcmp.ge.f32.partialorder %v4256, 0.0
  %vm4513 = vcmp.ge.f32.partialorder %v4257, 0.0
  %vm4514 = vcmp.ge.f32.partialorder %v4258, 0.0
  %vm4515 = vcmp.ge.f32.partialorder %v4259, 0.0
  %vm4516 = vcmp.ge.f32.partialorder %v4260, 0.0
  %vm4517 = vcmp.ge.f32.partialorder %v4261, 0.0
  %vm4518 = vcmp.ge.f32.partialorder %v4262, 0.0
  %vm4519 = vcmp.ge.f32.partialorder %v4263, 0.0
  %vm4520 = vcmp.ge.f32.partialorder %v4264, 0.0
  %vm4521 = vcmp.ge.f32.partialorder %v4265, 0.0
  %vm4522 = vcmp.ge.f32.partialorder %v4266, 0.0
  %vm4523 = vcmp.ge.f32.partialorder %v4267, 0.0
  %vm4524 = vcmp.ge.f32.partialorder %v4268, 0.0
  %vm4525 = vcmp.ge.f32.partialorder %v4269, 0.0
  %vm4526 = vcmp.ge.f32.partialorder %v4270, 0.0
  %vm4527 = vcmp.ge.f32.partialorder %v4271, 0.0
  %vm4528 = vcmp.ge.f32.partialorder %v4272, 0.0
  %vm4529 = vcmp.ge.f32.partialorder %v4273, 0.0
  %vm4530 = vcmp.ge.f32.partialorder %v4274, 0.0
  %vm4531 = vcmp.ge.f32.partialorder %v4275, 0.0
  %vm4532 = vcmp.ge.f32.partialorder %v4276, 0.0
  %vm4533 = vcmp.ge.f32.partialorder %v4277, 0.0
  %vm4534 = vcmp.ge.f32.partialorder %v4278, 0.0
  %vm4535 = vcmp.ge.f32.partialorder %v4279, 0.0
  %vm4536 = vcmp.ge.f32.partialorder %v4280, 0.0
  %vm4537 = vcmp.ge.f32.partialorder %v4281, 0.0
  %vm4538 = vcmp.ge.f32.partialorder %v4282, 0.0
  %vm4539 = vcmp.ge.f32.partialorder %v4283, 0.0
  %vm4540 = vcmp.ge.f32.partialorder %v4284, 0.0
  %vm4541 = vcmp.ge.f32.partialorder %v4285, 0.0
  %vm4542 = vcmp.ge.f32.partialorder %v4286, 0.0
  %vm4543 = vcmp.ge.f32.partialorder %v4287, 0.0
  %vm4544 = vcmp.ge.f32.partialorder %v4288, 0.0
  %vm4545 = vcmp.ge.f32.partialorder %v4289, 0.0
  %vm4546 = vcmp.ge.f32.partialorder %v4290, 0.0
  %vm4547 = vcmp.ge.f32.partialorder %v4291, 0.0
  %vm4548 = vcmp.ge.f32.partialorder %v4292, 0.0
  %vm4549 = vcmp.ge.f32.partialorder %v4293, 0.0
  %vm4550 = vcmp.ge.f32.partialorder %v4294, 0.0
  %vm4551 = vcmp.ge.f32.partialorder %v4295, 0.0
  %vm4552 = vcmp.ge.f32.partialorder %v4296, 0.0
  %vm4553 = vcmp.ge.f32.partialorder %v4297, 0.0
  %vm4554 = vcmp.ge.f32.partialorder %v4298, 0.0
  %vm4555 = vcmp.ge.f32.partialorder %v4299, 0.0
  %vm4556 = vcmp.ge.f32.partialorder %v4300, 0.0
  %vm4557 = vcmp.ge.f32.partialorder %v4301, 0.0
  %vm4558 = vcmp.ge.f32.partialorder %v4302, 0.0
  %vm4559 = vcmp.ge.f32.partialorder %v4303, 0.0
  %vm4560 = vcmp.ge.f32.partialorder %v4304, 0.0
  %vm4561 = vcmp.ge.f32.partialorder %v4305, 0.0
  %vm4562 = vcmp.ge.f32.partialorder %v4306, 0.0
  %vm4563 = vcmp.ge.f32.partialorder %v4307, 0.0
  %vm4564 = vcmp.ge.f32.partialorder %v4308, 0.0
  %vm4565 = vcmp.ge.f32.partialorder %v4309, 0.0
  %vm4566 = vcmp.ge.f32.partialorder %v4310, 0.0
  %vm4567 = vcmp.ge.f32.partialorder %v4311, 0.0
  %vm4568 = vcmp.ge.f32.partialorder %v4312, 0.0
  %v4569 = vmul.f32 %v4057, 0.01
  %v4570 = vmul.f32 %v4058, 0.01
  %v4571 = vmul.f32 %v4059, 0.01
  %v4572 = vmul.f32 %v4060, 0.01
  %v4573 = vmul.f32 %v4061, 0.01
  %v4574 = vmul.f32 %v4062, 0.01
  %v4575 = vmul.f32 %v4063, 0.01
  %v4576 = vmul.f32 %v4064, 0.01
  %v4577 = vmul.f32 %v4065, 0.01
  %v4578 = vmul.f32 %v4066, 0.01
  %v4579 = vmul.f32 %v4067, 0.01
  %v4580 = vmul.f32 %v4068, 0.01
  %v4581 = vmul.f32 %v4069, 0.01
  %v4582 = vmul.f32 %v4070, 0.01
  %v4583 = vmul.f32 %v4071, 0.01
  %v4584 = vmul.f32 %v4072, 0.01
  %v4585 = vmul.f32 %v4073, 0.01
  %v4586 = vmul.f32 %v4074, 0.01
  %v4587 = vmul.f32 %v4075, 0.01
  %v4588 = vmul.f32 %v4076, 0.01
  %v4589 = vmul.f32 %v4077, 0.01
  %v4590 = vmul.f32 %v4078, 0.01
  %v4591 = vmul.f32 %v4079, 0.01
  %v4592 = vmul.f32 %v4080, 0.01
  %v4593 = vmul.f32 %v4081, 0.01
  %v4594 = vmul.f32 %v4082, 0.01
  %v4595 = vmul.f32 %v4083, 0.01
  %v4596 = vmul.f32 %v4084, 0.01
  %v4597 = vmul.f32 %v4085, 0.01
  %v4598 = vmul.f32 %v4086, 0.01
  %v4599 = vmul.f32 %v4087, 0.01
  %v4600 = vmul.f32 %v4088, 0.01
  %v4601 = vmul.f32 %v4089, 0.01
  %v4602 = vmul.f32 %v4090, 0.01
  %v4603 = vmul.f32 %v4091, 0.01
  %v4604 = vmul.f32 %v4092, 0.01
  %v4605 = vmul.f32 %v4093, 0.01
  %v4606 = vmul.f32 %v4094, 0.01
  %v4607 = vmul.f32 %v4095, 0.01
  %v4608 = vmul.f32 %v4096, 0.01
  %v4609 = vmul.f32 %v4097, 0.01
  %v4610 = vmul.f32 %v4098, 0.01
  %v4611 = vmul.f32 %v4099, 0.01
  %v4612 = vmul.f32 %v4100, 0.01
  %v4613 = vmul.f32 %v4101, 0.01
  %v4614 = vmul.f32 %v4102, 0.01
  %v4615 = vmul.f32 %v4103, 0.01
  %v4616 = vmul.f32 %v4104, 0.01
  %v4617 = vmul.f32 %v4105, 0.01
  %v4618 = vmul.f32 %v4106, 0.01
  %v4619 = vmul.f32 %v4107, 0.01
  %v4620 = vmul.f32 %v4108, 0.01
  %v4621 = vmul.f32 %v4109, 0.01
  %v4622 = vmul.f32 %v4110, 0.01
  %v4623 = vmul.f32 %v4111, 0.01
  %v4624 = vmul.f32 %v4112, 0.01
  %v4625 = vmul.f32 %v4113, 0.01
  %v4626 = vmul.f32 %v4114, 0.01
  %v4627 = vmul.f32 %v4115, 0.01
  %v4628 = vmul.f32 %v4116, 0.01
  %v4629 = vmul.f32 %v4117, 0.01
  %v4630 = vmul.f32 %v4118, 0.01
  %v4631 = vmul.f32 %v4119, 0.01
  %v4632 = vmul.f32 %v4120, 0.01
  %v4633 = vmul.f32 %v4121, 0.01
  %v4634 = vmul.f32 %v4122, 0.01
  %v4635 = vmul.f32 %v4123, 0.01
  %v4636 = vmul.f32 %v4124, 0.01
  %v4637 = vmul.f32 %v4125, 0.01
  %v4638 = vmul.f32 %v4126, 0.01
  %v4639 = vmul.f32 %v4127, 0.01
  %v4640 = vmul.f32 %v4128, 0.01
  %v4641 = vmul.f32 %v4129, 0.01
  %v4642 = vmul.f32 %v4130, 0.01
  %v4643 = vmul.f32 %v4131, 0.01
  %v4644 = vmul.f32 %v4132, 0.01
  %v4645 = vmul.f32 %v4133, 0.01
  %v4646 = vmul.f32 %v4134, 0.01
  %v4647 = vmul.f32 %v4135, 0.01
  %v4648 = vmul.f32 %v4136, 0.01
  %v4649 = vmul.f32 %v4137, 0.01
  %v4650 = vmul.f32 %v4138, 0.01
  %v4651 = vmul.f32 %v4139, 0.01
  %v4652 = vmul.f32 %v4140, 0.01
  %v4653 = vmul.f32 %v4141, 0.01
  %v4654 = vmul.f32 %v4142, 0.01
  %v4655 = vmul.f32 %v4143, 0.01
  %v4656 = vmul.f32 %v4144, 0.01
  %v4657 = vmul.f32 %v4145, 0.01
  %v4658 = vmul.f32 %v4146, 0.01
  %v4659 = vmul.f32 %v4147, 0.01
  %v4660 = vmul.f32 %v4148, 0.01
  %v4661 = vmul.f32 %v4149, 0.01
  %v4662 = vmul.f32 %v4150, 0.01
  %v4663 = vmul.f32 %v4151, 0.01
  %v4664 = vmul.f32 %v4152, 0.01
  %v4665 = vmul.f32 %v4153, 0.01
  %v4666 = vmul.f32 %v4154, 0.01
  %v4667 = vmul.f32 %v4155, 0.01
  %v4668 = vmul.f32 %v4156, 0.01
  %v4669 = vmul.f32 %v4157, 0.01
  %v4670 = vmul.f32 %v4158, 0.01
  %v4671 = vmul.f32 %v4159, 0.01
  %v4672 = vmul.f32 %v4160, 0.01
  %v4673 = vmul.f32 %v4161, 0.01
  %v4674 = vmul.f32 %v4162, 0.01
  %v4675 = vmul.f32 %v4163, 0.01
  %v4676 = vmul.f32 %v4164, 0.01
  %v4677 = vmul.f32 %v4165, 0.01
  %v4678 = vmul.f32 %v4166, 0.01
  %v4679 = vmul.f32 %v4167, 0.01
  %v4680 = vmul.f32 %v4168, 0.01
  %v4681 = vmul.f32 %v4169, 0.01
  %v4682 = vmul.f32 %v4170, 0.01
  %v4683 = vmul.f32 %v4171, 0.01
  %v4684 = vmul.f32 %v4172, 0.01
  %v4685 = vmul.f32 %v4173, 0.01
  %v4686 = vmul.f32 %v4174, 0.01
  %v4687 = vmul.f32 %v4175, 0.01
  %v4688 = vmul.f32 %v4176, 0.01
  %v4689 = vmul.f32 %v4177, 0.01
  %v4690 = vmul.f32 %v4178, 0.01
  %v4691 = vmul.f32 %v4179, 0.01
  %v4692 = vmul.f32 %v4180, 0.01
  %v4693 = vmul.f32 %v4181, 0.01
  %v4694 = vmul.f32 %v4182, 0.01
  %v4695 = vmul.f32 %v4183, 0.01
  %v4696 = vmul.f32 %v4184, 0.01
  %v4697 = vmul.f32 %v4185, 0.01
  %v4698 = vmul.f32 %v4186, 0.01
  %v4699 = vmul.f32 %v4187, 0.01
  %v4700 = vmul.f32 %v4188, 0.01
  %v4701 = vmul.f32 %v4189, 0.01
  %v4702 = vmul.f32 %v4190, 0.01
  %v4703 = vmul.f32 %v4191, 0.01
  %v4704 = vmul.f32 %v4192, 0.01
  %v4705 = vmul.f32 %v4193, 0.01
  %v4706 = vmul.f32 %v4194, 0.01
  %v4707 = vmul.f32 %v4195, 0.01
  %v4708 = vmul.f32 %v4196, 0.01
  %v4709 = vmul.f32 %v4197, 0.01
  %v4710 = vmul.f32 %v4198, 0.01
  %v4711 = vmul.f32 %v4199, 0.01
  %v4712 = vmul.f32 %v4200, 0.01
  %v4713 = vmul.f32 %v4201, 0.01
  %v4714 = vmul.f32 %v4202, 0.01
  %v4715 = vmul.f32 %v4203, 0.01
  %v4716 = vmul.f32 %v4204, 0.01
  %v4717 = vmul.f32 %v4205, 0.01
  %v4718 = vmul.f32 %v4206, 0.01
  %v4719 = vmul.f32 %v4207, 0.01
  %v4720 = vmul.f32 %v4208, 0.01
  %v4721 = vmul.f32 %v4209, 0.01
  %v4722 = vmul.f32 %v4210, 0.01
  %v4723 = vmul.f32 %v4211, 0.01
  %v4724 = vmul.f32 %v4212, 0.01
  %v4725 = vmul.f32 %v4213, 0.01
  %v4726 = vmul.f32 %v4214, 0.01
  %v4727 = vmul.f32 %v4215, 0.01
  %v4728 = vmul.f32 %v4216, 0.01
  %v4729 = vmul.f32 %v4217, 0.01
  %v4730 = vmul.f32 %v4218, 0.01
  %v4731 = vmul.f32 %v4219, 0.01
  %v4732 = vmul.f32 %v4220, 0.01
  %v4733 = vmul.f32 %v4221, 0.01
  %v4734 = vmul.f32 %v4222, 0.01
  %v4735 = vmul.f32 %v4223, 0.01
  %v4736 = vmul.f32 %v4224, 0.01
  %v4737 = vmul.f32 %v4225, 0.01
  %v4738 = vmul.f32 %v4226, 0.01
  %v4739 = vmul.f32 %v4227, 0.01
  %v4740 = vmul.f32 %v4228, 0.01
  %v4741 = vmul.f32 %v4229, 0.01
  %v4742 = vmul.f32 %v4230, 0.01
  %v4743 = vmul.f32 %v4231, 0.01
  %v4744 = vmul.f32 %v4232, 0.01
  %v4745 = vmul.f32 %v4233, 0.01
  %v4746 = vmul.f32 %v4234, 0.01
  %v4747 = vmul.f32 %v4235, 0.01
  %v4748 = vmul.f32 %v4236, 0.01
  %v4749 = vmul.f32 %v4237, 0.01
  %v4750 = vmul.f32 %v4238, 0.01
  %v4751 = vmul.f32 %v4239, 0.01
  %v4752 = vmul.f32 %v4240, 0.01
  %v4753 = vmul.f32 %v4241, 0.01
  %v4754 = vmul.f32 %v4242, 0.01
  %v4755 = vmul.f32 %v4243, 0.01
  %v4756 = vmul.f32 %v4244, 0.01
  %v4757 = vmul.f32 %v4245, 0.01
  %v4758 = vmul.f32 %v4246, 0.01
  %v4759 = vmul.f32 %v4247, 0.01
  %v4760 = vmul.f32 %v4248, 0.01
  %v4761 = vmul.f32 %v4249, 0.01
  %v4762 = vmul.f32 %v4250, 0.01
  %v4763 = vmul.f32 %v4251, 0.01
  %v4764 = vmul.f32 %v4252, 0.01
  %v4765 = vmul.f32 %v4253, 0.01
  %v4766 = vmul.f32 %v4254, 0.01
  %v4767 = vmul.f32 %v4255, 0.01
  %v4768 = vmul.f32 %v4256, 0.01
  %v4769 = vmul.f32 %v4257, 0.01
  %v4770 = vmul.f32 %v4258, 0.01
  %v4771 = vmul.f32 %v4259, 0.01
  %v4772 = vmul.f32 %v4260, 0.01
  %v4773 = vmul.f32 %v4261, 0.01
  %v4774 = vmul.f32 %v4262, 0.01
  %v4775 = vmul.f32 %v4263, 0.01
  %v4776 = vmul.f32 %v4264, 0.01
  %v4777 = vmul.f32 %v4265, 0.01
  %v4778 = vmul.f32 %v4266, 0.01
  %v4779 = vmul.f32 %v4267, 0.01
  %v4780 = vmul.f32 %v4268, 0.01
  %v4781 = vmul.f32 %v4269, 0.01
  %v4782 = vmul.f32 %v4270, 0.01
  %v4783 = vmul.f32 %v4271, 0.01
  %v4784 = vmul.f32 %v4272, 0.01
  %v4785 = vmul.f32 %v4273, 0.01
  %v4786 = vmul.f32 %v4274, 0.01
  %v4787 = vmul.f32 %v4275, 0.01
  %v4788 = vmul.f32 %v4276, 0.01
  %v4789 = vmul.f32 %v4277, 0.01
  %v4790 = vmul.f32 %v4278, 0.01
  %v4791 = vmul.f32 %v4279, 0.01
  %v4792 = vmul.f32 %v4280, 0.01
  %v4793 = vmul.f32 %v4281, 0.01
  %v4794 = vmul.f32 %v4282, 0.01
  %v4795 = vmul.f32 %v4283, 0.01
  %v4796 = vmul.f32 %v4284, 0.01
  %v4797 = vmul.f32 %v4285, 0.01
  %v4798 = vmul.f32 %v4286, 0.01
  %v4799 = vmul.f32 %v4287, 0.01
  %v4800 = vmul.f32 %v4288, 0.01
  %v4801 = vmul.f32 %v4289, 0.01
  %v4802 = vmul.f32 %v4290, 0.01
  %v4803 = vmul.f32 %v4291, 0.01
  %v4804 = vmul.f32 %v4292, 0.01
  %v4805 = vmul.f32 %v4293, 0.01
  %v4806 = vmul.f32 %v4294, 0.01
  %v4807 = vmul.f32 %v4295, 0.01
  %v4808 = vmul.f32 %v4296, 0.01
  %v4809 = vmul.f32 %v4297, 0.01
  %v4810 = vmul.f32 %v4298, 0.01
  %v4811 = vmul.f32 %v4299, 0.01
  %v4812 = vmul.f32 %v4300, 0.01
  %v4813 = vmul.f32 %v4301, 0.01
  %v4814 = vmul.f32 %v4302, 0.01
  %v4815 = vmul.f32 %v4303, 0.01
  %v4816 = vmul.f32 %v4304, 0.01
  %v4817 = vmul.f32 %v4305, 0.01
  %v4818 = vmul.f32 %v4306, 0.01
  %v4819 = vmul.f32 %v4307, 0.01
  %v4820 = vmul.f32 %v4308, 0.01
  %v4821 = vmul.f32 %v4309, 0.01
  %v4822 = vmul.f32 %v4310, 0.01
  %v4823 = vmul.f32 %v4311, 0.01
  %v4824 = vmul.f32 %v4312, 0.01
  %v4825 = vsel %vm4313, %v4057, %v4569
  %v4826 = vsel %vm4314, %v4058, %v4570
  %v4827 = vsel %vm4315, %v4059, %v4571
  %v4828 = vsel %vm4316, %v4060, %v4572
  %v4829 = vsel %vm4317, %v4061, %v4573
  %v4830 = vsel %vm4318, %v4062, %v4574
  %v4831 = vsel %vm4319, %v4063, %v4575
  %v4832 = vsel %vm4320, %v4064, %v4576
  %v4833 = vsel %vm4321, %v4065, %v4577
  %v4834 = vsel %vm4322, %v4066, %v4578
  %v4835 = vsel %vm4323, %v4067, %v4579
  %v4836 = vsel %vm4324, %v4068, %v4580
  %v4837 = vsel %vm4325, %v4069, %v4581
  %v4838 = vsel %vm4326, %v4070, %v4582
  %v4839 = vsel %vm4327, %v4071, %v4583
  %v4840 = vsel %vm4328, %v4072, %v4584
  %v4841 = vsel %vm4329, %v4073, %v4585
  %v4842 = vsel %vm4330, %v4074, %v4586
  %v4843 = vsel %vm4331, %v4075, %v4587
  %v4844 = vsel %vm4332, %v4076, %v4588
  %v4845 = vsel %vm4333, %v4077, %v4589
  %v4846 = vsel %vm4334, %v4078, %v4590
  %v4847 = vsel %vm4335, %v4079, %v4591
  %v4848 = vsel %vm4336, %v4080, %v4592
  %v4849 = vsel %vm4337, %v4081, %v4593
  %v4850 = vsel %vm4338, %v4082, %v4594
  %v4851 = vsel %vm4339, %v4083, %v4595
  %v4852 = vsel %vm4340, %v4084, %v4596
  %v4853 = vsel %vm4341, %v4085, %v4597
  %v4854 = vsel %vm4342, %v4086, %v4598
  %v4855 = vsel %vm4343, %v4087, %v4599
  %v4856 = vsel %vm4344, %v4088, %v4600
  %v4857 = vsel %vm4345, %v4089, %v4601
  %v4858 = vsel %vm4346, %v4090, %v4602
  %v4859 = vsel %vm4347, %v4091, %v4603
  %v4860 = vsel %vm4348, %v4092, %v4604
  %v4861 = vsel %vm4349, %v4093, %v4605
  %v4862 = vsel %vm4350, %v4094, %v4606
  %v4863 = vsel %vm4351, %v4095, %v4607
  %v4864 = vsel %vm4352, %v4096, %v4608
  %v4865 = vsel %vm4353, %v4097, %v4609
  %v4866 = vsel %vm4354, %v4098, %v4610
  %v4867 = vsel %vm4355, %v4099, %v4611
  %v4868 = vsel %vm4356, %v4100, %v4612
  %v4869 = vsel %vm4357, %v4101, %v4613
  %v4870 = vsel %vm4358, %v4102, %v4614
  %v4871 = vsel %vm4359, %v4103, %v4615
  %v4872 = vsel %vm4360, %v4104, %v4616
  %v4873 = vsel %vm4361, %v4105, %v4617
  %v4874 = vsel %vm4362, %v4106, %v4618
  %v4875 = vsel %vm4363, %v4107, %v4619
  %v4876 = vsel %vm4364, %v4108, %v4620
  %v4877 = vsel %vm4365, %v4109, %v4621
  %v4878 = vsel %vm4366, %v4110, %v4622
  %v4879 = vsel %vm4367, %v4111, %v4623
  %v4880 = vsel %vm4368, %v4112, %v4624
  %v4881 = vsel %vm4369, %v4113, %v4625
  %v4882 = vsel %vm4370, %v4114, %v4626
  %v4883 = vsel %vm4371, %v4115, %v4627
  %v4884 = vsel %vm4372, %v4116, %v4628
  %v4885 = vsel %vm4373, %v4117, %v4629
  %v4886 = vsel %vm4374, %v4118, %v4630
  %v4887 = vsel %vm4375, %v4119, %v4631
  %v4888 = vsel %vm4376, %v4120, %v4632
  %v4889 = vsel %vm4377, %v4121, %v4633
  %v4890 = vsel %vm4378, %v4122, %v4634
  %v4891 = vsel %vm4379, %v4123, %v4635
  %v4892 = vsel %vm4380, %v4124, %v4636
  %v4893 = vsel %vm4381, %v4125, %v4637
  %v4894 = vsel %vm4382, %v4126, %v4638
  %v4895 = vsel %vm4383, %v4127, %v4639
  %v4896 = vsel %vm4384, %v4128, %v4640
  %v4897 = vsel %vm4385, %v4129, %v4641
  %v4898 = vsel %vm4386, %v4130, %v4642
  %v4899 = vsel %vm4387, %v4131, %v4643
  %v4900 = vsel %vm4388, %v4132, %v4644
  %v4901 = vsel %vm4389, %v4133, %v4645
  %v4902 = vsel %vm4390, %v4134, %v4646
  %v4903 = vsel %vm4391, %v4135, %v4647
  %v4904 = vsel %vm4392, %v4136, %v4648
  %v4905 = vsel %vm4393, %v4137, %v4649
  %v4906 = vsel %vm4394, %v4138, %v4650
  %v4907 = vsel %vm4395, %v4139, %v4651
  %v4908 = vsel %vm4396, %v4140, %v4652
  %v4909 = vsel %vm4397, %v4141, %v4653
  %v4910 = vsel %vm4398, %v4142, %v4654
  %v4911 = vsel %vm4399, %v4143, %v4655
  %v4912 = vsel %vm4400, %v4144, %v4656
  %v4913 = vsel %vm4401, %v4145, %v4657
  %v4914 = vsel %vm4402, %v4146, %v4658
  %v4915 = vsel %vm4403, %v4147, %v4659
  %v4916 = vsel %vm4404, %v4148, %v4660
  %v4917 = vsel %vm4405, %v4149, %v4661
  %v4918 = vsel %vm4406, %v4150, %v4662
  %v4919 = vsel %vm4407, %v4151, %v4663
  %v4920 = vsel %vm4408, %v4152, %v4664
  %v4921 = vsel %vm4409, %v4153, %v4665
  %v4922 = vsel %vm4410, %v4154, %v4666
  %v4923 = vsel %vm4411, %v4155, %v4667
  %v4924 = vsel %vm4412, %v4156, %v4668
  %v4925 = vsel %vm4413, %v4157, %v4669
  %v4926 = vsel %vm4414, %v4158, %v4670
  %v4927 = vsel %vm4415, %v4159, %v4671
  %v4928 = vsel %vm4416, %v4160, %v4672
  %v4929 = vsel %vm4417, %v4161, %v4673
  %v4930 = vsel %vm4418, %v4162, %v4674
  %v4931 = vsel %vm4419, %v4163, %v4675
  %v4932 = vsel %vm4420, %v4164, %v4676
  %v4933 = vsel %vm4421, %v4165, %v4677
  %v4934 = vsel %vm4422, %v4166, %v4678
  %v4935 = vsel %vm4423, %v4167, %v4679
  %v4936 = vsel %vm4424, %v4168, %v4680
  %v4937 = vsel %vm4425, %v4169, %v4681
  %v4938 = vsel %vm4426, %v4170, %v4682
  %v4939 = vsel %vm4427, %v4171, %v4683
  %v4940 = vsel %vm4428, %v4172, %v4684
  %v4941 = vsel %vm4429, %v4173, %v4685
  %v4942 = vsel %vm4430, %v4174, %v4686
  %v4943 = vsel %vm4431, %v4175, %v4687
  %v4944 = vsel %vm4432, %v4176, %v4688
  %v4945 = vsel %vm4433, %v4177, %v4689
  %v4946 = vsel %vm4434, %v4178, %v4690
  %v4947 = vsel %vm4435, %v4179, %v4691
  %v4948 = vsel %vm4436, %v4180, %v4692
  %v4949 = vsel %vm4437, %v4181, %v4693
  %v4950 = vsel %vm4438, %v4182, %v4694
  %v4951 = vsel %vm4439, %v4183, %v4695
  %v4952 = vsel %vm4440, %v4184, %v4696
  %v4953 = vsel %vm4441, %v4185, %v4697
  %v4954 = vsel %vm4442, %v4186, %v4698
  %v4955 = vsel %vm4443, %v4187, %v4699
  %v4956 = vsel %vm4444, %v4188, %v4700
  %v4957 = vsel %vm4445, %v4189, %v4701
  %v4958 = vsel %vm4446, %v4190, %v4702
  %v4959 = vsel %vm4447, %v4191, %v4703
  %v4960 = vsel %vm4448, %v4192, %v4704
  %v4961 = vsel %vm4449, %v4193, %v4705
  %v4962 = vsel %vm4450, %v4194, %v4706
  %v4963 = vsel %vm4451, %v4195, %v4707
  %v4964 = vsel %vm4452, %v4196, %v4708
  %v4965 = vsel %vm4453, %v4197, %v4709
  %v4966 = vsel %vm4454, %v4198, %v4710
  %v4967 = vsel %vm4455, %v4199, %v4711
  %v4968 = vsel %vm4456, %v4200, %v4712
  %v4969 = vsel %vm4457, %v4201, %v4713
  %v4970 = vsel %vm4458, %v4202, %v4714
  %v4971 = vsel %vm4459, %v4203, %v4715
  %v4972 = vsel %vm4460, %v4204, %v4716
  %v4973 = vsel %vm4461, %v4205, %v4717
  %v4974 = vsel %vm4462, %v4206, %v4718
  %v4975 = vsel %vm4463, %v4207, %v4719
  %v4976 = vsel %vm4464, %v4208, %v4720
  %v4977 = vsel %vm4465, %v4209, %v4721
  %v4978 = vsel %vm4466, %v4210, %v4722
  %v4979 = vsel %vm4467, %v4211, %v4723
  %v4980 = vsel %vm4468, %v4212, %v4724
  %v4981 = vsel %vm4469, %v4213, %v4725
  %v4982 = vsel %vm4470, %v4214, %v4726
  %v4983 = vsel %vm4471, %v4215, %v4727
  %v4984 = vsel %vm4472, %v4216, %v4728
  %v4985 = vsel %vm4473, %v4217, %v4729
  %v4986 = vsel %vm4474, %v4218, %v4730
  %v4987 = vsel %vm4475, %v4219, %v4731
  %v4988 = vsel %vm4476, %v4220, %v4732
  %v4989 = vsel %vm4477, %v4221, %v4733
  %v4990 = vsel %vm4478, %v4222, %v4734
  %v4991 = vsel %vm4479, %v4223, %v4735
  %v4992 = vsel %vm4480, %v4224, %v4736
  %v4993 = vsel %vm4481, %v4225, %v4737
  %v4994 = vsel %vm4482, %v4226, %v4738
  %v4995 = vsel %vm4483, %v4227, %v4739
  %v4996 = vsel %vm4484, %v4228, %v4740
  %v4997 = vsel %vm4485, %v4229, %v4741
  %v4998 = vsel %vm4486, %v4230, %v4742
  %v4999 = vsel %vm4487, %v4231, %v4743
  %v5000 = vsel %vm4488, %v4232, %v4744
  %v5001 = vsel %vm4489, %v4233, %v4745
  %v5002 = vsel %vm4490, %v4234, %v4746
  %v5003 = vsel %vm4491, %v4235, %v4747
  %v5004 = vsel %vm4492, %v4236, %v4748
  %v5005 = vsel %vm4493, %v4237, %v4749
  %v5006 = vsel %vm4494, %v4238, %v4750
  %v5007 = vsel %vm4495, %v4239, %v4751
  %v5008 = vsel %vm4496, %v4240, %v4752
  %v5009 = vsel %vm4497, %v4241, %v4753
  %v5010 = vsel %vm4498, %v4242, %v4754
  %v5011 = vsel %vm4499, %v4243, %v4755
  %v5012 = vsel %vm4500, %v4244, %v4756
  %v5013 = vsel %vm4501, %v4245, %v4757
  %v5014 = vsel %vm4502, %v4246, %v4758
  %v5015 = vsel %vm4503, %v4247, %v4759
  %v5016 = vsel %vm4504, %v4248, %v4760
  %v5017 = vsel %vm4505, %v4249, %v4761
  %v5018 = vsel %vm4506, %v4250, %v4762
  %v5019 = vsel %vm4507, %v4251, %v4763
  %v5020 = vsel %vm4508, %v4252, %v4764
  %v5021 = vsel %vm4509, %v4253, %v4765
  %v5022 = vsel %vm4510, %v4254, %v4766
  %v5023 = vsel %vm4511, %v4255, %v4767
  %v5024 = vsel %vm4512, %v4256, %v4768
  %v5025 = vsel %vm4513, %v4257, %v4769
  %v5026 = vsel %vm4514, %v4258, %v4770
  %v5027 = vsel %vm4515, %v4259, %v4771
  %v5028 = vsel %vm4516, %v4260, %v4772
  %v5029 = vsel %vm4517, %v4261, %v4773
  %v5030 = vsel %vm4518, %v4262, %v4774
  %v5031 = vsel %vm4519, %v4263, %v4775
  %v5032 = vsel %vm4520, %v4264, %v4776
  %v5033 = vsel %vm4521, %v4265, %v4777
  %v5034 = vsel %vm4522, %v4266, %v4778
  %v5035 = vsel %vm4523, %v4267, %v4779
  %v5036 = vsel %vm4524, %v4268, %v4780
  %v5037 = vsel %vm4525, %v4269, %v4781
  %v5038 = vsel %vm4526, %v4270, %v4782
  %v5039 = vsel %vm4527, %v4271, %v4783
  %v5040 = vsel %vm4528, %v4272, %v4784
  %v5041 = vsel %vm4529, %v4273, %v4785
  %v5042 = vsel %vm4530, %v4274, %v4786
  %v5043 = vsel %vm4531, %v4275, %v4787
  %v5044 = vsel %vm4532, %v4276, %v4788
  %v5045 = vsel %vm4533, %v4277, %v4789
  %v5046 = vsel %vm4534, %v4278, %v4790
  %v5047 = vsel %vm4535, %v4279, %v4791
  %v5048 = vsel %vm4536, %v4280, %v4792
  %v5049 = vsel %vm4537, %v4281, %v4793
  %v5050 = vsel %vm4538, %v4282, %v4794
  %v5051 = vsel %vm4539, %v4283, %v4795
  %v5052 = vsel %vm4540, %v4284, %v4796
  %v5053 = vsel %vm4541, %v4285, %v4797
  %v5054 = vsel %vm4542, %v4286, %v4798
  %v5055 = vsel %vm4543, %v4287, %v4799
  %v5056 = vsel %vm4544, %v4288, %v4800
  %v5057 = vsel %vm4545, %v4289, %v4801
  %v5058 = vsel %vm4546, %v4290, %v4802
  %v5059 = vsel %vm4547, %v4291, %v4803
  %v5060 = vsel %vm4548, %v4292, %v4804
  %v5061 = vsel %vm4549, %v4293, %v4805
  %v5062 = vsel %vm4550, %v4294, %v4806
  %v5063 = vsel %vm4551, %v4295, %v4807
  %v5064 = vsel %vm4552, %v4296, %v4808
  %v5065 = vsel %vm4553, %v4297, %v4809
  %v5066 = vsel %vm4554, %v4298, %v4810
  %v5067 = vsel %vm4555, %v4299, %v4811
  %v5068 = vsel %vm4556, %v4300, %v4812
  %v5069 = vsel %vm4557, %v4301, %v4813
  %v5070 = vsel %vm4558, %v4302, %v4814
  %v5071 = vsel %vm4559, %v4303, %v4815
  %v5072 = vsel %vm4560, %v4304, %v4816
  %v5073 = vsel %vm4561, %v4305, %v4817
  %v5074 = vsel %vm4562, %v4306, %v4818
  %v5075 = vsel %vm4563, %v4307, %v4819
  %v5076 = vsel %vm4564, %v4308, %v4820
  %v5077 = vsel %vm4565, %v4309, %v4821
  %v5078 = vsel %vm4566, %v4310, %v4822
  %v5079 = vsel %vm4567, %v4311, %v4823
  %v5080 = vsel %vm4568, %v4312, %v4824
  %5081 = vst.msk [vmem:[%s4] sm:$0xff] %vm1972, %v4825
  %5082 = vst.msk [vmem:[%s4 + $0x8] sm:$0xff] %vm1972, %v4826
  %5083 = vst.msk [vmem:[%s4 + $0x10] sm:$0xff] %vm1972, %v4827
  %5084 = vst.msk [vmem:[%s4 + $0x18] sm:$0xff] %vm1972, %v4828
  %5085 = vst.msk [vmem:[%s4 + $0x20] sm:$0xff] %vm1972, %v4829
  %5086 = vst.msk [vmem:[%s4 + $0x28] sm:$0xff] %vm1972, %v4830
  %5087 = vst.msk [vmem:[%s4 + $0x30] sm:$0xff] %vm1972, %v4831
  %5088 = vst.msk [vmem:[%s4 + $0x38] sm:$0xff] %vm1972, %v4832
  %5089 = vst.msk [vmem:[%s4 + $0x40] sm:$0xff] %vm1972, %v4833
  %5090 = vst.msk [vmem:[%s4 + $0x48] sm:$0xff] %vm1972, %v4834
  %5091 = vst.msk [vmem:[%s4 + $0x50] sm:$0xff] %vm1972, %v4835
  %5092 = vst.msk [vmem:[%s4 + $0x58] sm:$0xff] %vm1972, %v4836
  %5093 = vst.msk [vmem:[%s4 + $0x60] sm:$0xff] %vm1972, %v4837
  %5094 = vst.msk [vmem:[%s4 + $0x68] sm:$0xff] %vm1972, %v4838
  %5095 = vst.msk [vmem:[%s4 + $0x70] sm:$0xff] %vm1972, %v4839
  %5096 = vst.msk [vmem:[%s4 + $0x78] sm:$0xff] %vm1972, %v4840
  %5097 = vst.msk [vmem:[%s4 + $0x80] sm:$0xff] %vm1972, %v4841
  %5098 = vst.msk [vmem:[%s4 + $0x88] sm:$0xff] %vm1972, %v4842
  %5099 = vst.msk [vmem:[%s4 + $0x90] sm:$0xff] %vm1972, %v4843
  %5100 = vst.msk [vmem:[%s4 + $0x98] sm:$0xff] %vm1972, %v4844
  %5101 = vst.msk [vmem:[%s4 + $0xa0] sm:$0xff] %vm1972, %v4845
  %5102 = vst.msk [vmem:[%s4 + $0xa8] sm:$0xff] %vm1972, %v4846
  %5103 = vst.msk [vmem:[%s4 + $0xb0] sm:$0xff] %vm1972, %v4847
  %5104 = vst.msk [vmem:[%s4 + $0xb8] sm:$0xff] %vm1972, %v4848
  %5105 = vst.msk [vmem:[%s4 + $0xc0] sm:$0xff] %vm1972, %v4849
  %5106 = vst.msk [vmem:[%s4 + $0xc8] sm:$0xff] %vm1972, %v4850
  %5107 = vst.msk [vmem:[%s4 + $0xd0] sm:$0xff] %vm1972, %v4851
  %5108 = vst.msk [vmem:[%s4 + $0xd8] sm:$0xff] %vm1972, %v4852
  %5109 = vst.msk [vmem:[%s4 + $0xe0] sm:$0xff] %vm1972, %v4853
  %5110 = vst.msk [vmem:[%s4 + $0xe8] sm:$0xff] %vm1972, %v4854
  %5111 = vst.msk [vmem:[%s4 + $0xf0] sm:$0xff] %vm1972, %v4855
  %5112 = vst.msk [vmem:[%s4 + $0xf8] sm:$0xff] %vm1972, %v4856
  %5113 = vst.msk [vmem:[%s4 + $0x100] sm:$0xff] %vm1972, %v4857
  %5114 = vst.msk [vmem:[%s4 + $0x108] sm:$0xff] %vm1972, %v4858
  %5115 = vst.msk [vmem:[%s4 + $0x110] sm:$0xff] %vm1972, %v4859
  %5116 = vst.msk [vmem:[%s4 + $0x118] sm:$0xff] %vm1972, %v4860
  %5117 = vst.msk [vmem:[%s4 + $0x120] sm:$0xff] %vm1972, %v4861
  %5118 = vst.msk [vmem:[%s4 + $0x128] sm:$0xff] %vm1972, %v4862
  %5119 = vst.msk [vmem:[%s4 + $0x130] sm:$0xff] %vm1972, %v4863
  %5120 = vst.msk [vmem:[%s4 + $0x138] sm:$0xff] %vm1972, %v4864
  %5121 = vst.msk [vmem:[%s4 + $0x140] sm:$0xff] %vm1972, %v4865
  %5122 = vst.msk [vmem:[%s4 + $0x148] sm:$0xff] %vm1972, %v4866
  %5123 = vst.msk [vmem:[%s4 + $0x150] sm:$0xff] %vm1972, %v4867
  %5124 = vst.msk [vmem:[%s4 + $0x158] sm:$0xff] %vm1972, %v4868
  %5125 = vst.msk [vmem:[%s4 + $0x160] sm:$0xff] %vm1972, %v4869
  %5126 = vst.msk [vmem:[%s4 + $0x168] sm:$0xff] %vm1972, %v4870
  %5127 = vst.msk [vmem:[%s4 + $0x170] sm:$0xff] %vm1972, %v4871
  %5128 = vst.msk [vmem:[%s4 + $0x178] sm:$0xff] %vm1972, %v4872
  %5129 = vst.msk [vmem:[%s4 + $0x180] sm:$0xff] %vm1972, %v4873
  %5130 = vst.msk [vmem:[%s4 + $0x188] sm:$0xff] %vm1972, %v4874
  %5131 = vst.msk [vmem:[%s4 + $0x190] sm:$0xff] %vm1972, %v4875
  %5132 = vst.msk [vmem:[%s4 + $0x198] sm:$0xff] %vm1972, %v4876
  %5133 = vst.msk [vmem:[%s4 + $0x1a0] sm:$0xff] %vm1972, %v4877
  %5134 = vst.msk [vmem:[%s4 + $0x1a8] sm:$0xff] %vm1972, %v4878
  %5135 = vst.msk [vmem:[%s4 + $0x1b0] sm:$0xff] %vm1972, %v4879
  %5136 = vst.msk [vmem:[%s4 + $0x1b8] sm:$0xff] %vm1972, %v4880
  %5137 = vst.msk [vmem:[%s4 + $0x1c0] sm:$0xff] %vm1972, %v4881
  %5138 = vst.msk [vmem:[%s4 + $0x1c8] sm:$0xff] %vm1972, %v4882
  %5139 = vst.msk [vmem:[%s4 + $0x1d0] sm:$0xff] %vm1972, %v4883
  %5140 = vst.msk [vmem:[%s4 + $0x1d8] sm:$0xff] %vm1972, %v4884
  %5141 = vst.msk [vmem:[%s4 + $0x1e0] sm:$0xff] %vm1972, %v4885
  %5142 = vst.msk [vmem:[%s4 + $0x1e8] sm:$0xff] %vm1972, %v4886
  %5143 = vst.msk [vmem:[%s4 + $0x1f0] sm:$0xff] %vm1972, %v4887
  %5144 = vst.msk [vmem:[%s4 + $0x1f8] sm:$0xff] %vm1972, %v4888
  %5145 = vst.msk [vmem:[%s4 + $0x200] sm:$0xff] %vm1972, %v4889
  %5146 = vst.msk [vmem:[%s4 + $0x208] sm:$0xff] %vm1972, %v4890
  %5147 = vst.msk [vmem:[%s4 + $0x210] sm:$0xff] %vm1972, %v4891
  %5148 = vst.msk [vmem:[%s4 + $0x218] sm:$0xff] %vm1972, %v4892
  %5149 = vst.msk [vmem:[%s4 + $0x220] sm:$0xff] %vm1972, %v4893
  %5150 = vst.msk [vmem:[%s4 + $0x228] sm:$0xff] %vm1972, %v4894
  %5151 = vst.msk [vmem:[%s4 + $0x230] sm:$0xff] %vm1972, %v4895
  %5152 = vst.msk [vmem:[%s4 + $0x238] sm:$0xff] %vm1972, %v4896
  %5153 = vst.msk [vmem:[%s4 + $0x240] sm:$0xff] %vm1972, %v4897
  %5154 = vst.msk [vmem:[%s4 + $0x248] sm:$0xff] %vm1972, %v4898
  %5155 = vst.msk [vmem:[%s4 + $0x250] sm:$0xff] %vm1972, %v4899
  %5156 = vst.msk [vmem:[%s4 + $0x258] sm:$0xff] %vm1972, %v4900
  %5157 = vst.msk [vmem:[%s4 + $0x260] sm:$0xff] %vm1972, %v4901
  %5158 = vst.msk [vmem:[%s4 + $0x268] sm:$0xff] %vm1972, %v4902
  %5159 = vst.msk [vmem:[%s4 + $0x270] sm:$0xff] %vm1972, %v4903
  %5160 = vst.msk [vmem:[%s4 + $0x278] sm:$0xff] %vm1972, %v4904
  %5161 = vst.msk [vmem:[%s4 + $0x280] sm:$0xff] %vm1972, %v4905
  %5162 = vst.msk [vmem:[%s4 + $0x288] sm:$0xff] %vm1972, %v4906
  %5163 = vst.msk [vmem:[%s4 + $0x290] sm:$0xff] %vm1972, %v4907
  %5164 = vst.msk [vmem:[%s4 + $0x298] sm:$0xff] %vm1972, %v4908
  %5165 = vst.msk [vmem:[%s4 + $0x2a0] sm:$0xff] %vm1972, %v4909
  %5166 = vst.msk [vmem:[%s4 + $0x2a8] sm:$0xff] %vm1972, %v4910
  %5167 = vst.msk [vmem:[%s4 + $0x2b0] sm:$0xff] %vm1972, %v4911
  %5168 = vst.msk [vmem:[%s4 + $0x2b8] sm:$0xff] %vm1972, %v4912
  %5169 = vst.msk [vmem:[%s4 + $0x2c0] sm:$0xff] %vm1972, %v4913
  %5170 = vst.msk [vmem:[%s4 + $0x2c8] sm:$0xff] %vm1972, %v4914
  %5171 = vst.msk [vmem:[%s4 + $0x2d0] sm:$0xff] %vm1972, %v4915
  %5172 = vst.msk [vmem:[%s4 + $0x2d8] sm:$0xff] %vm1972, %v4916
  %5173 = vst.msk [vmem:[%s4 + $0x2e0] sm:$0xff] %vm1972, %v4917
  %5174 = vst.msk [vmem:[%s4 + $0x2e8] sm:$0xff] %vm1972, %v4918
  %5175 = vst.msk [vmem:[%s4 + $0x2f0] sm:$0xff] %vm1972, %v4919
  %5176 = vst.msk [vmem:[%s4 + $0x2f8] sm:$0xff] %vm1972, %v4920
  %5177 = vst.msk [vmem:[%s4 + $0x300] sm:$0xff] %vm1972, %v4921
  %5178 = vst.msk [vmem:[%s4 + $0x308] sm:$0xff] %vm1972, %v4922
  %5179 = vst.msk [vmem:[%s4 + $0x310] sm:$0xff] %vm1972, %v4923
  %5180 = vst.msk [vmem:[%s4 + $0x318] sm:$0xff] %vm1972, %v4924
  %5181 = vst.msk [vmem:[%s4 + $0x320] sm:$0xff] %vm1972, %v4925
  %5182 = vst.msk [vmem:[%s4 + $0x328] sm:$0xff] %vm1972, %v4926
  %5183 = vst.msk [vmem:[%s4 + $0x330] sm:$0xff] %vm1972, %v4927
  %5184 = vst.msk [vmem:[%s4 + $0x338] sm:$0xff] %vm1972, %v4928
  %5185 = vst.msk [vmem:[%s4 + $0x340] sm:$0xff] %vm1972, %v4929
  %5186 = vst.msk [vmem:[%s4 + $0x348] sm:$0xff] %vm1972, %v4930
  %5187 = vst.msk [vmem:[%s4 + $0x350] sm:$0xff] %vm1972, %v4931
  %5188 = vst.msk [vmem:[%s4 + $0x358] sm:$0xff] %vm1972, %v4932
  %5189 = vst.msk [vmem:[%s4 + $0x360] sm:$0xff] %vm1972, %v4933
  %5190 = vst.msk [vmem:[%s4 + $0x368] sm:$0xff] %vm1972, %v4934
  %5191 = vst.msk [vmem:[%s4 + $0x370] sm:$0xff] %vm1972, %v4935
  %5192 = vst.msk [vmem:[%s4 + $0x378] sm:$0xff] %vm1972, %v4936
  %5193 = vst.msk [vmem:[%s4 + $0x380] sm:$0xff] %vm1972, %v4937
  %5194 = vst.msk [vmem:[%s4 + $0x388] sm:$0xff] %vm1972, %v4938
  %5195 = vst.msk [vmem:[%s4 + $0x390] sm:$0xff] %vm1972, %v4939
  %5196 = vst.msk [vmem:[%s4 + $0x398] sm:$0xff] %vm1972, %v4940
  %5197 = vst.msk [vmem:[%s4 + $0x3a0] sm:$0xff] %vm1972, %v4941
  %5198 = vst.msk [vmem:[%s4 + $0x3a8] sm:$0xff] %vm1972, %v4942
  %5199 = vst.msk [vmem:[%s4 + $0x3b0] sm:$0xff] %vm1972, %v4943
  %5200 = vst.msk [vmem:[%s4 + $0x3b8] sm:$0xff] %vm1972, %v4944
  %5201 = vst.msk [vmem:[%s4 + $0x3c0] sm:$0xff] %vm1972, %v4945
  %5202 = vst.msk [vmem:[%s4 + $0x3c8] sm:$0xff] %vm1972, %v4946
  %5203 = vst.msk [vmem:[%s4 + $0x3d0] sm:$0xff] %vm1972, %v4947
  %5204 = vst.msk [vmem:[%s4 + $0x3d8] sm:$0xff] %vm1972, %v4948
  %5205 = vst.msk [vmem:[%s4 + $0x3e0] sm:$0xff] %vm1972, %v4949
  %5206 = vst.msk [vmem:[%s4 + $0x3e8] sm:$0xff] %vm1972, %v4950
  %5207 = vst.msk [vmem:[%s4 + $0x3f0] sm:$0xff] %vm1972, %v4951
  %5208 = vst.msk [vmem:[%s4 + $0x3f8] sm:$0xff] %vm1972, %v4952
  %5209 = vst.msk [vmem:[%s4 + $0x400] sm:$0xff] %vm1972, %v4953
  %5210 = vst.msk [vmem:[%s4 + $0x408] sm:$0xff] %vm1972, %v4954
  %5211 = vst.msk [vmem:[%s4 + $0x410] sm:$0xff] %vm1972, %v4955
  %5212 = vst.msk [vmem:[%s4 + $0x418] sm:$0xff] %vm1972, %v4956
  %5213 = vst.msk [vmem:[%s4 + $0x420] sm:$0xff] %vm1972, %v4957
  %5214 = vst.msk [vmem:[%s4 + $0x428] sm:$0xff] %vm1972, %v4958
  %5215 = vst.msk [vmem:[%s4 + $0x430] sm:$0xff] %vm1972, %v4959
  %5216 = vst.msk [vmem:[%s4 + $0x438] sm:$0xff] %vm1972, %v4960
  %5217 = vst.msk [vmem:[%s4 + $0x440] sm:$0xff] %vm1972, %v4961
  %5218 = vst.msk [vmem:[%s4 + $0x448] sm:$0xff] %vm1972, %v4962
  %5219 = vst.msk [vmem:[%s4 + $0x450] sm:$0xff] %vm1972, %v4963
  %5220 = vst.msk [vmem:[%s4 + $0x458] sm:$0xff] %vm1972, %v4964
  %5221 = vst.msk [vmem:[%s4 + $0x460] sm:$0xff] %vm1972, %v4965
  %5222 = vst.msk [vmem:[%s4 + $0x468] sm:$0xff] %vm1972, %v4966
  %5223 = vst.msk [vmem:[%s4 + $0x470] sm:$0xff] %vm1972, %v4967
  %5224 = vst.msk [vmem:[%s4 + $0x478] sm:$0xff] %vm1972, %v4968
  %5225 = vst.msk [vmem:[%s4 + $0x480] sm:$0xff] %vm1972, %v4969
  %5226 = vst.msk [vmem:[%s4 + $0x488] sm:$0xff] %vm1972, %v4970
  %5227 = vst.msk [vmem:[%s4 + $0x490] sm:$0xff] %vm1972, %v4971
  %5228 = vst.msk [vmem:[%s4 + $0x498] sm:$0xff] %vm1972, %v4972
  %5229 = vst.msk [vmem:[%s4 + $0x4a0] sm:$0xff] %vm1972, %v4973
  %5230 = vst.msk [vmem:[%s4 + $0x4a8] sm:$0xff] %vm1972, %v4974
  %5231 = vst.msk [vmem:[%s4 + $0x4b0] sm:$0xff] %vm1972, %v4975
  %5232 = vst.msk [vmem:[%s4 + $0x4b8] sm:$0xff] %vm1972, %v4976
  %5233 = vst.msk [vmem:[%s4 + $0x4c0] sm:$0xff] %vm1972, %v4977
  %5234 = vst.msk [vmem:[%s4 + $0x4c8] sm:$0xff] %vm1972, %v4978
  %5235 = vst.msk [vmem:[%s4 + $0x4d0] sm:$0xff] %vm1972, %v4979
  %5236 = vst.msk [vmem:[%s4 + $0x4d8] sm:$0xff] %vm1972, %v4980
  %5237 = vst.msk [vmem:[%s4 + $0x4e0] sm:$0xff] %vm1972, %v4981
  %5238 = vst.msk [vmem:[%s4 + $0x4e8] sm:$0xff] %vm1972, %v4982
  %5239 = vst.msk [vmem:[%s4 + $0x4f0] sm:$0xff] %vm1972, %v4983
  %5240 = vst.msk [vmem:[%s4 + $0x4f8] sm:$0xff] %vm1972, %v4984
  %5241 = vst.msk [vmem:[%s4 + $0x500] sm:$0xff] %vm1972, %v4985
  %5242 = vst.msk [vmem:[%s4 + $0x508] sm:$0xff] %vm1972, %v4986
  %5243 = vst.msk [vmem:[%s4 + $0x510] sm:$0xff] %vm1972, %v4987
  %5244 = vst.msk [vmem:[%s4 + $0x518] sm:$0xff] %vm1972, %v4988
  %5245 = vst.msk [vmem:[%s4 + $0x520] sm:$0xff] %vm1972, %v4989
  %5246 = vst.msk [vmem:[%s4 + $0x528] sm:$0xff] %vm1972, %v4990
  %5247 = vst.msk [vmem:[%s4 + $0x530] sm:$0xff] %vm1972, %v4991
  %5248 = vst.msk [vmem:[%s4 + $0x538] sm:$0xff] %vm1972, %v4992
  %5249 = vst.msk [vmem:[%s4 + $0x540] sm:$0xff] %vm1972, %v4993
  %5250 = vst.msk [vmem:[%s4 + $0x548] sm:$0xff] %vm1972, %v4994
  %5251 = vst.msk [vmem:[%s4 + $0x550] sm:$0xff] %vm1972, %v4995
  %5252 = vst.msk [vmem:[%s4 + $0x558] sm:$0xff] %vm1972, %v4996
  %5253 = vst.msk [vmem:[%s4 + $0x560] sm:$0xff] %vm1972, %v4997
  %5254 = vst.msk [vmem:[%s4 + $0x568] sm:$0xff] %vm1972, %v4998
  %5255 = vst.msk [vmem:[%s4 + $0x570] sm:$0xff] %vm1972, %v4999
  %5256 = vst.msk [vmem:[%s4 + $0x578] sm:$0xff] %vm1972, %v5000
  %5257 = vst.msk [vmem:[%s4 + $0x580] sm:$0xff] %vm1972, %v5001
  %5258 = vst.msk [vmem:[%s4 + $0x588] sm:$0xff] %vm1972, %v5002
  %5259 = vst.msk [vmem:[%s4 + $0x590] sm:$0xff] %vm1972, %v5003
  %5260 = vst.msk [vmem:[%s4 + $0x598] sm:$0xff] %vm1972, %v5004
  %5261 = vst.msk [vmem:[%s4 + $0x5a0] sm:$0xff] %vm1972, %v5005
  %5262 = vst.msk [vmem:[%s4 + $0x5a8] sm:$0xff] %vm1972, %v5006
  %5263 = vst.msk [vmem:[%s4 + $0x5b0] sm:$0xff] %vm1972, %v5007
  %5264 = vst.msk [vmem:[%s4 + $0x5b8] sm:$0xff] %vm1972, %v5008
  %5265 = vst.msk [vmem:[%s4 + $0x5c0] sm:$0xff] %vm1972, %v5009
  %5266 = vst.msk [vmem:[%s4 + $0x5c8] sm:$0xff] %vm1972, %v5010
  %5267 = vst.msk [vmem:[%s4 + $0x5d0] sm:$0xff] %vm1972, %v5011
  %5268 = vst.msk [vmem:[%s4 + $0x5d8] sm:$0xff] %vm1972, %v5012
  %5269 = vst.msk [vmem:[%s4 + $0x5e0] sm:$0xff] %vm1972, %v5013
  %5270 = vst.msk [vmem:[%s4 + $0x5e8] sm:$0xff] %vm1972, %v5014
  %5271 = vst.msk [vmem:[%s4 + $0x5f0] sm:$0xff] %vm1972, %v5015
  %5272 = vst.msk [vmem:[%s4 + $0x5f8] sm:$0xff] %vm1972, %v5016
  %5273 = vst.msk [vmem:[%s4 + $0x600] sm:$0xff] %vm1972, %v5017
  %5274 = vst.msk [vmem:[%s4 + $0x608] sm:$0xff] %vm1972, %v5018
  %5275 = vst.msk [vmem:[%s4 + $0x610] sm:$0xff] %vm1972, %v5019
  %5276 = vst.msk [vmem:[%s4 + $0x618] sm:$0xff] %vm1972, %v5020
  %5277 = vst.msk [vmem:[%s4 + $0x620] sm:$0xff] %vm1972, %v5021
  %5278 = vst.msk [vmem:[%s4 + $0x628] sm:$0xff] %vm1972, %v5022
  %5279 = vst.msk [vmem:[%s4 + $0x630] sm:$0xff] %vm1972, %v5023
  %5280 = vst.msk [vmem:[%s4 + $0x638] sm:$0xff] %vm1972, %v5024
  %5281 = vst.msk [vmem:[%s4 + $0x640] sm:$0xff] %vm1972, %v5025
  %5282 = vst.msk [vmem:[%s4 + $0x648] sm:$0xff] %vm1972, %v5026
  %5283 = vst.msk [vmem:[%s4 + $0x650] sm:$0xff] %vm1972, %v5027
  %5284 = vst.msk [vmem:[%s4 + $0x658] sm:$0xff] %vm1972, %v5028
  %5285 = vst.msk [vmem:[%s4 + $0x660] sm:$0xff] %vm1972, %v5029
  %5286 = vst.msk [vmem:[%s4 + $0x668] sm:$0xff] %vm1972, %v5030
  %5287 = vst.msk [vmem:[%s4 + $0x670] sm:$0xff] %vm1972, %v5031
  %5288 = vst.msk [vmem:[%s4 + $0x678] sm:$0xff] %vm1972, %v5032
  %5289 = vst.msk [vmem:[%s4 + $0x680] sm:$0xff] %vm1972, %v5033
  %5290 = vst.msk [vmem:[%s4 + $0x688] sm:$0xff] %vm1972, %v5034
  %5291 = vst.msk [vmem:[%s4 + $0x690] sm:$0xff] %vm1972, %v5035
  %5292 = vst.msk [vmem:[%s4 + $0x698] sm:$0xff] %vm1972, %v5036
  %5293 = vst.msk [vmem:[%s4 + $0x6a0] sm:$0xff] %vm1972, %v5037
  %5294 = vst.msk [vmem:[%s4 + $0x6a8] sm:$0xff] %vm1972, %v5038
  %5295 = vst.msk [vmem:[%s4 + $0x6b0] sm:$0xff] %vm1972, %v5039
  %5296 = vst.msk [vmem:[%s4 + $0x6b8] sm:$0xff] %vm1972, %v5040
  %5297 = vst.msk [vmem:[%s4 + $0x6c0] sm:$0xff] %vm1972, %v5041
  %5298 = vst.msk [vmem:[%s4 + $0x6c8] sm:$0xff] %vm1972, %v5042
  %5299 = vst.msk [vmem:[%s4 + $0x6d0] sm:$0xff] %vm1972, %v5043
  %5300 = vst.msk [vmem:[%s4 + $0x6d8] sm:$0xff] %vm1972, %v5044
  %5301 = vst.msk [vmem:[%s4 + $0x6e0] sm:$0xff] %vm1972, %v5045
  %5302 = vst.msk [vmem:[%s4 + $0x6e8] sm:$0xff] %vm1972, %v5046
  %5303 = vst.msk [vmem:[%s4 + $0x6f0] sm:$0xff] %vm1972, %v5047
  %5304 = vst.msk [vmem:[%s4 + $0x6f8] sm:$0xff] %vm1972, %v5048
  %5305 = vst.msk [vmem:[%s4 + $0x700] sm:$0xff] %vm1972, %v5049
  %5306 = vst.msk [vmem:[%s4 + $0x708] sm:$0xff] %vm1972, %v5050
  %5307 = vst.msk [vmem:[%s4 + $0x710] sm:$0xff] %vm1972, %v5051
  %5308 = vst.msk [vmem:[%s4 + $0x718] sm:$0xff] %vm1972, %v5052
  %5309 = vst.msk [vmem:[%s4 + $0x720] sm:$0xff] %vm1972, %v5053
  %5310 = vst.msk [vmem:[%s4 + $0x728] sm:$0xff] %vm1972, %v5054
  %5311 = vst.msk [vmem:[%s4 + $0x730] sm:$0xff] %vm1972, %v5055
  %5312 = vst.msk [vmem:[%s4 + $0x738] sm:$0xff] %vm1972, %v5056
  %5313 = vst.msk [vmem:[%s4 + $0x740] sm:$0xff] %vm1972, %v5057
  %5314 = vst.msk [vmem:[%s4 + $0x748] sm:$0xff] %vm1972, %v5058
  %5315 = vst.msk [vmem:[%s4 + $0x750] sm:$0xff] %vm1972, %v5059
  %5316 = vst.msk [vmem:[%s4 + $0x758] sm:$0xff] %vm1972, %v5060
  %5317 = vst.msk [vmem:[%s4 + $0x760] sm:$0xff] %vm1972, %v5061
  %5318 = vst.msk [vmem:[%s4 + $0x768] sm:$0xff] %vm1972, %v5062
  %5319 = vst.msk [vmem:[%s4 + $0x770] sm:$0xff] %vm1972, %v5063
  %5320 = vst.msk [vmem:[%s4 + $0x778] sm:$0xff] %vm1972, %v5064
  %5321 = vst.msk [vmem:[%s4 + $0x780] sm:$0xff] %vm1972, %v5065
  %5322 = vst.msk [vmem:[%s4 + $0x788] sm:$0xff] %vm1972, %v5066
  %5323 = vst.msk [vmem:[%s4 + $0x790] sm:$0xff] %vm1972, %v5067
  %5324 = vst.msk [vmem:[%s4 + $0x798] sm:$0xff] %vm1972, %v5068
  %5325 = vst.msk [vmem:[%s4 + $0x7a0] sm:$0xff] %vm1972, %v5069
  %5326 = vst.msk [vmem:[%s4 + $0x7a8] sm:$0xff] %vm1972, %v5070
  %5327 = vst.msk [vmem:[%s4 + $0x7b0] sm:$0xff] %vm1972, %v5071
  %5328 = vst.msk [vmem:[%s4 + $0x7b8] sm:$0xff] %vm1972, %v5072
  %5329 = vst.msk [vmem:[%s4 + $0x7c0] sm:$0xff] %vm1972, %v5073
  %5330 = vst.msk [vmem:[%s4 + $0x7c8] sm:$0xff] %vm1972, %v5074
  %5331 = vst.msk [vmem:[%s4 + $0x7d0] sm:$0xff] %vm1972, %v5075
  %5332 = vst.msk [vmem:[%s4 + $0x7d8] sm:$0xff] %vm1972, %v5076
  %5333 = vst.msk [vmem:[%s4 + $0x7e0] sm:$0xff] %vm1972, %v5077
  %5334 = vst.msk [vmem:[%s4 + $0x7e8] sm:$0xff] %vm1972, %v5078
  %5335 = vst.msk [vmem:[%s4 + $0x7f0] sm:$0xff] %vm1972, %v5079
  %5336 = vst.msk [vmem:[%s4 + $0x7f8] sm:$0xff] %vm1972, %v5080
  // Predicated region
  $region18: #{_lambda_.6} parent=0 // pred_check
    _
  $region19: #{_lambda_.6} parent=0 // pred_check_branch
    %5338 = sbr.rel (0) target = $region21
  $region20: #{_lambda_.6} parent=0 // pred_region
    _
  $region21: #{_lambda_.6} parent=0 // pred_fallthru
    _
  // Predicated region
  $region22: #{_lambda_.6} parent=0 // pred_check
    _
  $region23: #{_lambda_.6} parent=0 // pred_check_branch
    %5340 = sbr.rel (0) target = $region25
  $region24: #{_lambda_.6} parent=0 // pred_region
    _
  $region25: #{_lambda_.6} parent=0 // pred_fallthru
    _

// kernel: _lambda_.7
$region0: #{_lambda_.7}
  #allocation0 [shape = 'u32[]', space=smem, size = 0x4, offset = 0x4, fixed_abs, tag = 'smem constant byte address 0x4 - core index']
  #allocation1 [shape = 'u32[72,128]{1,0:T(1,128)}', space=vmem, size = 0x9000, scoped, tag = 'internal scratch']
  %s0 = inlined_call_operand.vmem [shape: bf16[512,72], index: 0, kind: input, shape index: {}]
  %s1 = inlined_call_operand.vmem [shape: bf16[72,16], index: 1, kind: input, shape index: {}]
  %s2 = inlined_call_operand.vmem [shape: f32[1,16], index: 2, kind: input, shape index: {}]
  %s3 = inlined_call_operand.vmem [shape: f32[1,16], index: 3, kind: input, shape index: {}]
  %s4 = inlined_call_operand.vmem [shape: f32[512,16], index: 4, kind: output, shape index: {}]
  %s5 = sld [smem:[#allocation0]]
  $region26: #{_lambda_.7} parent=0
    _
  %s7 = ssub.s32 1, %s5
  %s8 = scalar_select 0, %s7, %s5
  // Predicated region
  $region2: #{_lambda_.7} parent=0 // pred_check
    _
  $region3: #{_lambda_.7} parent=0 // pred_check_branch
    %10 = sbr.rel (0) target = $region5
  $region4: #{_lambda_.7} parent=0 // pred_region
    _
  $region5: #{_lambda_.7} parent=0 // pred_fallthru
    _
  // Predicated region
  $region6: #{_lambda_.7} parent=0 // pred_check
    _
  $region7: #{_lambda_.7} parent=0 // pred_check_branch
    %12 = sbr.rel (0) target = $region9
  $region8: #{_lambda_.7} parent=0 // pred_region
    _
  $region9: #{_lambda_.7} parent=0 // pred_fallthru
    _
  // Predicated region
  $region10: #{_lambda_.7} parent=0 // pred_check
    _
  $region11: #{_lambda_.7} parent=0 // pred_check_branch
    %14 = sbr.rel (0) target = $region13
  $region12: #{_lambda_.7} parent=0 // pred_region
    _
  $region13: #{_lambda_.7} parent=0 // pred_fallthru
    _
  // Predicated region
  $region14: #{_lambda_.7} parent=0 // pred_check
    _
  $region15: #{_lambda_.7} parent=0 // pred_check_branch
    %16 = sbr.rel (0) target = $region17
  $region16: #{_lambda_.7} parent=0 // pred_region
    _
  $region17: #{_lambda_.7} parent=0 // pred_fallthru
    _
  %v18 = vld [vmem:[%s0] sm:$0xf]
  %v19 = vld [vmem:[%s0 + $0x4] sm:$0xf]
  %v20 = vld [vmem:[%s0 + $0x8] sm:$0xf]
  %v21 = vld [vmem:[%s0 + $0xc] sm:$0xf]
  %v22 = vld [vmem:[%s0 + $0x10] sm:$0xf]
  %v23 = vld [vmem:[%s0 + $0x14] sm:$0xf]
  %v24 = vld [vmem:[%s0 + $0x18] sm:$0xf]
  %v25 = vld [vmem:[%s0 + $0x1c] sm:$0xf]
  %v26 = vld [vmem:[%s0 + $0x20] sm:$0xf]
  %v27 = vld [vmem:[%s0 + $0x24] sm:$0xf]
  %v28 = vld [vmem:[%s0 + $0x28] sm:$0xf]
  %v29 = vld [vmem:[%s0 + $0x2c] sm:$0xf]
  %v30 = vld [vmem:[%s0 + $0x30] sm:$0xf]
  %v31 = vld [vmem:[%s0 + $0x34] sm:$0xf]
  %v32 = vld [vmem:[%s0 + $0x38] sm:$0xf]
  %v33 = vld [vmem:[%s0 + $0x3c] sm:$0xf]
  %v34 = vld [vmem:[%s0 + $0x40] sm:$0xf]
  %v35 = vld [vmem:[%s0 + $0x44] sm:$0xf]
  %v36 = vld [vmem:[%s0 + $0x48] sm:$0xf]
  %v37 = vld [vmem:[%s0 + $0x4c] sm:$0xf]
  %v38 = vld [vmem:[%s0 + $0x50] sm:$0xf]
  %v39 = vld [vmem:[%s0 + $0x54] sm:$0xf]
  %v40 = vld [vmem:[%s0 + $0x58] sm:$0xf]
  %v41 = vld [vmem:[%s0 + $0x5c] sm:$0xf]
  %v42 = vld [vmem:[%s0 + $0x60] sm:$0xf]
  %v43 = vld [vmem:[%s0 + $0x64] sm:$0xf]
  %v44 = vld [vmem:[%s0 + $0x68] sm:$0xf]
  %v45 = vld [vmem:[%s0 + $0x6c] sm:$0xf]
  %v46 = vld [vmem:[%s0 + $0x70] sm:$0xf]
  %v47 = vld [vmem:[%s0 + $0x74] sm:$0xf]
  %v48 = vld [vmem:[%s0 + $0x78] sm:$0xf]
  %v49 = vld [vmem:[%s0 + $0x7c] sm:$0xf]
  %v50 = vld [vmem:[%s0 + $0x80] sm:$0xf]
  %v51 = vld [vmem:[%s0 + $0x84] sm:$0xf]
  %v52 = vld [vmem:[%s0 + $0x88] sm:$0xf]
  %v53 = vld [vmem:[%s0 + $0x8c] sm:$0xf]
  %v54 = vld [vmem:[%s0 + $0x90] sm:$0xf]
  %v55 = vld [vmem:[%s0 + $0x94] sm:$0xf]
  %v56 = vld [vmem:[%s0 + $0x98] sm:$0xf]
  %v57 = vld [vmem:[%s0 + $0x9c] sm:$0xf]
  %v58 = vld [vmem:[%s0 + $0xa0] sm:$0xf]
  %v59 = vld [vmem:[%s0 + $0xa4] sm:$0xf]
  %v60 = vld [vmem:[%s0 + $0xa8] sm:$0xf]
  %v61 = vld [vmem:[%s0 + $0xac] sm:$0xf]
  %v62 = vld [vmem:[%s0 + $0xb0] sm:$0xf]
  %v63 = vld [vmem:[%s0 + $0xb4] sm:$0xf]
  %v64 = vld [vmem:[%s0 + $0xb8] sm:$0xf]
  %v65 = vld [vmem:[%s0 + $0xbc] sm:$0xf]
  %v66 = vld [vmem:[%s0 + $0xc0] sm:$0xf]
  %v67 = vld [vmem:[%s0 + $0xc4] sm:$0xf]
  %v68 = vld [vmem:[%s0 + $0xc8] sm:$0xf]
  %v69 = vld [vmem:[%s0 + $0xcc] sm:$0xf]
  %v70 = vld [vmem:[%s0 + $0xd0] sm:$0xf]
  %v71 = vld [vmem:[%s0 + $0xd4] sm:$0xf]
  %v72 = vld [vmem:[%s0 + $0xd8] sm:$0xf]
  %v73 = vld [vmem:[%s0 + $0xdc] sm:$0xf]
  %v74 = vld [vmem:[%s0 + $0xe0] sm:$0xf]
  %v75 = vld [vmem:[%s0 + $0xe4] sm:$0xf]
  %v76 = vld [vmem:[%s0 + $0xe8] sm:$0xf]
  %v77 = vld [vmem:[%s0 + $0xec] sm:$0xf]
  %v78 = vld [vmem:[%s0 + $0xf0] sm:$0xf]
  %v79 = vld [vmem:[%s0 + $0xf4] sm:$0xf]
  %v80 = vld [vmem:[%s0 + $0xf8] sm:$0xf]
  %v81 = vld [vmem:[%s0 + $0xfc] sm:$0xf]
  %v82 = vld [vmem:[%s1] sm:$0xf]
  %v83 = vld [vmem:[%s1 + $0x4] sm:$0xf]
  %v84 = vld [vmem:[%s1 + $0x8] sm:$0xf]
  %v85 = vld [vmem:[%s1 + $0xc] sm:$0xf]
  %v86 = vld [vmem:[%s1 + $0x10] sm:$0xf]
  %v87 = vld [vmem:[%s1 + $0x14] sm:$0xf]
  %v88 = vld [vmem:[%s1 + $0x18] sm:$0xf]
  %v89 = vld [vmem:[%s1 + $0x1c] sm:$0xf]
  %v90 = vld [vmem:[%s1 + $0x20] sm:$0xf]
  %v155 = vunpack.c.l.b16 %v18
  %v156 = vunpack.c.l.b16 %v19
  %v157 = vunpack.c.l.b16 %v20
  %v158 = vunpack.c.l.b16 %v21
  %v159 = vunpack.c.l.b16 %v22
  %v160 = vunpack.c.l.b16 %v23
  %v161 = vunpack.c.l.b16 %v24
  %v162 = vunpack.c.l.b16 %v25
  %v163 = vunpack.c.l.b16 %v26
  %v164 = vunpack.c.l.b16 %v27
  %v165 = vunpack.c.l.b16 %v28
  %v166 = vunpack.c.l.b16 %v29
  %v167 = vunpack.c.l.b16 %v30
  %v168 = vunpack.c.l.b16 %v31
  %v169 = vunpack.c.l.b16 %v32
  %v170 = vunpack.c.l.b16 %v33
  %v171 = vunpack.c.l.b16 %v34
  %v172 = vunpack.c.l.b16 %v35
  %v173 = vunpack.c.l.b16 %v36
  %v174 = vunpack.c.l.b16 %v37
  %v175 = vunpack.c.l.b16 %v38
  %v176 = vunpack.c.l.b16 %v39
  %v177 = vunpack.c.l.b16 %v40
  %v178 = vunpack.c.l.b16 %v41
  %v179 = vunpack.c.l.b16 %v42
  %v180 = vunpack.c.l.b16 %v43
  %v181 = vunpack.c.l.b16 %v44
  %v182 = vunpack.c.l.b16 %v45
  %v183 = vunpack.c.l.b16 %v46
  %v184 = vunpack.c.l.b16 %v47
  %v185 = vunpack.c.l.b16 %v48
  %v186 = vunpack.c.l.b16 %v49
  %v187 = vunpack.c.l.b16 %v50
  %v188 = vunpack.c.l.b16 %v51
  %v189 = vunpack.c.l.b16 %v52
  %v190 = vunpack.c.l.b16 %v53
  %v191 = vunpack.c.l.b16 %v54
  %v192 = vunpack.c.l.b16 %v55
  %v193 = vunpack.c.l.b16 %v56
  %v194 = vunpack.c.l.b16 %v57
  %v195 = vunpack.c.l.b16 %v58
  %v196 = vunpack.c.l.b16 %v59
  %v197 = vunpack.c.l.b16 %v60
  %v198 = vunpack.c.l.b16 %v61
  %v199 = vunpack.c.l.b16 %v62
  %v200 = vunpack.c.l.b16 %v63
  %v201 = vunpack.c.l.b16 %v64
  %v202 = vunpack.c.l.b16 %v65
  %v203 = vunpack.c.l.b16 %v66
  %v204 = vunpack.c.l.b16 %v67
  %v205 = vunpack.c.l.b16 %v68
  %v206 = vunpack.c.l.b16 %v69
  %v207 = vunpack.c.l.b16 %v70
  %v208 = vunpack.c.l.b16 %v71
  %v209 = vunpack.c.l.b16 %v72
  %v210 = vunpack.c.l.b16 %v73
  %v211 = vunpack.c.l.b16 %v74
  %v212 = vunpack.c.l.b16 %v75
  %v213 = vunpack.c.l.b16 %v76
  %v214 = vunpack.c.l.b16 %v77
  %v215 = vunpack.c.l.b16 %v78
  %v216 = vunpack.c.l.b16 %v79
  %v217 = vunpack.c.l.b16 %v80
  %v218 = vunpack.c.l.b16 %v81
  %v219 = vpack.c.b16 %v156, %v155
  %v220 = vpack.c.b16 %v158, %v157
  %v221 = vpack.c.b16 %v160, %v159
  %v222 = vpack.c.b16 %v162, %v161
  %v223 = vpack.c.b16 %v164, %v163
  %v224 = vpack.c.b16 %v166, %v165
  %v225 = vpack.c.b16 %v168, %v167
  %v226 = vpack.c.b16 %v170, %v169
  %v227 = vpack.c.b16 %v172, %v171
  %v228 = vpack.c.b16 %v174, %v173
  %v229 = vpack.c.b16 %v176, %v175
  %v230 = vpack.c.b16 %v178, %v177
  %v231 = vpack.c.b16 %v180, %v179
  %v232 = vpack.c.b16 %v182, %v181
  %v233 = vpack.c.b16 %v184, %v183
  %v234 = vpack.c.b16 %v186, %v185
  %v235 = vpack.c.b16 %v188, %v187
  %v236 = vpack.c.b16 %v190, %v189
  %v237 = vpack.c.b16 %v192, %v191
  %v238 = vpack.c.b16 %v194, %v193
  %v239 = vpack.c.b16 %v196, %v195
  %v240 = vpack.c.b16 %v198, %v197
  %v241 = vpack.c.b16 %v200, %v199
  %v242 = vpack.c.b16 %v202, %v201
  %v243 = vpack.c.b16 %v204, %v203
  %v244 = vpack.c.b16 %v206, %v205
  %v245 = vpack.c.b16 %v208, %v207
  %v246 = vpack.c.b16 %v210, %v209
  %v247 = vpack.c.b16 %v212, %v211
  %v248 = vpack.c.b16 %v214, %v213
  %v249 = vpack.c.b16 %v216, %v215
  %v250 = vpack.c.b16 %v218, %v217
  %v260 = vunpack.c.l.b16 %v82
  %v261 = vunpack.c.l.b16 %v83
  %v262 = vunpack.c.l.b16 %v84
  %v263 = vunpack.c.l.b16 %v85
  %v264 = vunpack.c.l.b16 %v86
  %v265 = vunpack.c.l.b16 %v87
  %v266 = vunpack.c.l.b16 %v88
  %v267 = vunpack.c.l.b16 %v89
  %v268 = vunpack.c.l.b16 %v90
  %v269 = vpack.c.b16 %v261, %v260
  %v270 = vpack.c.b16 %v263, %v262
  %v271 = vpack.c.b16 %v265, %v264
  %v272 = vpack.c.b16 %v267, %v266
  %v273 = vpack.c.b16 %v268, %v268
  %vm278 = vcmask 588800
  %v280 = vsel %vm278, %v219, 0
  %v283 = vsel %vm278, %v220, 0
  %v286 = vsel %vm278, %v221, 0
  %v289 = vsel %vm278, %v222, 0
  %v292 = vsel %vm278, %v223, 0
  %v295 = vsel %vm278, %v224, 0
  %v298 = vsel %vm278, %v225, 0
  %v301 = vsel %vm278, %v226, 0
  %v304 = vsel %vm278, %v227, 0
  %v307 = vsel %vm278, %v228, 0
  %v310 = vsel %vm278, %v229, 0
  %v313 = vsel %vm278, %v230, 0
  %v316 = vsel %vm278, %v231, 0
  %v319 = vsel %vm278, %v232, 0
  %v322 = vsel %vm278, %v233, 0
  %v325 = vsel %vm278, %v234, 0
  %v328 = vsel %vm278, %v235, 0
  %v331 = vsel %vm278, %v236, 0
  %v334 = vsel %vm278, %v237, 0
  %v337 = vsel %vm278, %v238, 0
  %v340 = vsel %vm278, %v239, 0
  %v343 = vsel %vm278, %v240, 0
  %v346 = vsel %vm278, %v241, 0
  %v349 = vsel %vm278, %v242, 0
  %v352 = vsel %vm278, %v243, 0
  %v355 = vsel %vm278, %v244, 0
  %v358 = vsel %vm278, %v245, 0
  %v361 = vsel %vm278, %v246, 0
  %v364 = vsel %vm278, %v247, 0
  %v367 = vsel %vm278, %v248, 0
  %v370 = vsel %vm278, %v249, 0
  %v373 = vsel %vm278, %v250, 0
  %vm375 = vcmask 1043456
  %v377 = vsel %vm375, %v273, 0
  %379 = vmatpush.bf16.msra.mxu0 0
  %380 = vmatpush.bf16.msra.mxu0 0
  %381 = vmatpush.bf16.msra.mxu0 0
  %382 = vmatpush.bf16.msra.mxu0 %v377
  %383 = vmatpush.bf16.msra.mxu0 %v272
  %384 = vmatpush.bf16.msra.mxu0 %v271
  %385 = vmatpush.bf16.msra.mxu0 %v270
  %386 = vmatpush.bf16.msra.mxu0 %v269
  %387 = vmatmul.bf16.gmra.mxu0 %v280
  %v388 = vpop.f32.mrf.mxu0
  %v389 = vadd.f32 0.0, %v388
  %v390 = vpop.f32.mrf.mxu0
  %v391 = vadd.f32 0.0, %v390
  %392 = vmatmul.bf16.gmra.mxu0 %v283
  %v393 = vpop.f32.mrf.mxu0
  %v394 = vadd.f32 0.0, %v393
  %v395 = vpop.f32.mrf.mxu0
  %v396 = vadd.f32 0.0, %v395
  %397 = vmatmul.bf16.gmra.mxu0 %v286
  %v398 = vpop.f32.mrf.mxu0
  %v399 = vadd.f32 0.0, %v398
  %v400 = vpop.f32.mrf.mxu0
  %v401 = vadd.f32 0.0, %v400
  %402 = vmatmul.bf16.gmra.mxu0 %v289
  %v403 = vpop.f32.mrf.mxu0
  %v404 = vadd.f32 0.0, %v403
  %v405 = vpop.f32.mrf.mxu0
  %v406 = vadd.f32 0.0, %v405
  %407 = vmatmul.bf16.gmra.mxu0 %v292
  %v408 = vpop.f32.mrf.mxu0
  %v409 = vadd.f32 0.0, %v408
  %v410 = vpop.f32.mrf.mxu0
  %v411 = vadd.f32 0.0, %v410
  %412 = vmatmul.bf16.gmra.mxu0 %v295
  %v413 = vpop.f32.mrf.mxu0
  %v414 = vadd.f32 0.0, %v413
  %v415 = vpop.f32.mrf.mxu0
  %v416 = vadd.f32 0.0, %v415
  %417 = vmatmul.bf16.gmra.mxu0 %v298
  %v418 = vpop.f32.mrf.mxu0
  %v419 = vadd.f32 0.0, %v418
  %v420 = vpop.f32.mrf.mxu0
  %v421 = vadd.f32 0.0, %v420
  %422 = vmatmul.bf16.gmra.mxu0 %v301
  %v423 = vpop.f32.mrf.mxu0
  %v424 = vadd.f32 0.0, %v423
  %v425 = vpop.f32.mrf.mxu0
  %v426 = vadd.f32 0.0, %v425
  %427 = vmatmul.bf16.gmra.mxu0 %v304
  %v428 = vpop.f32.mrf.mxu0
  %v429 = vadd.f32 0.0, %v428
  %v430 = vpop.f32.mrf.mxu0
  %v431 = vadd.f32 0.0, %v430
  %432 = vmatmul.bf16.gmra.mxu0 %v307
  %v433 = vpop.f32.mrf.mxu0
  %v434 = vadd.f32 0.0, %v433
  %v435 = vpop.f32.mrf.mxu0
  %v436 = vadd.f32 0.0, %v435
  %437 = vmatmul.bf16.gmra.mxu0 %v310
  %v438 = vpop.f32.mrf.mxu0
  %v439 = vadd.f32 0.0, %v438
  %v440 = vpop.f32.mrf.mxu0
  %v441 = vadd.f32 0.0, %v440
  %442 = vmatmul.bf16.gmra.mxu0 %v313
  %v443 = vpop.f32.mrf.mxu0
  %v444 = vadd.f32 0.0, %v443
  %v445 = vpop.f32.mrf.mxu0
  %v446 = vadd.f32 0.0, %v445
  %447 = vmatmul.bf16.gmra.mxu0 %v316
  %v448 = vpop.f32.mrf.mxu0
  %v449 = vadd.f32 0.0, %v448
  %v450 = vpop.f32.mrf.mxu0
  %v451 = vadd.f32 0.0, %v450
  %452 = vmatmul.bf16.gmra.mxu0 %v319
  %v453 = vpop.f32.mrf.mxu0
  %v454 = vadd.f32 0.0, %v453
  %v455 = vpop.f32.mrf.mxu0
  %v456 = vadd.f32 0.0, %v455
  %457 = vmatmul.bf16.gmra.mxu0 %v322
  %v458 = vpop.f32.mrf.mxu0
  %v459 = vadd.f32 0.0, %v458
  %v460 = vpop.f32.mrf.mxu0
  %v461 = vadd.f32 0.0, %v460
  %462 = vmatmul.bf16.gmra.mxu0 %v325
  %v463 = vpop.f32.mrf.mxu0
  %v464 = vadd.f32 0.0, %v463
  %v465 = vpop.f32.mrf.mxu0
  %v466 = vadd.f32 0.0, %v465
  %467 = vmatmul.bf16.gmra.mxu0 %v328
  %v468 = vpop.f32.mrf.mxu0
  %v469 = vadd.f32 0.0, %v468
  %v470 = vpop.f32.mrf.mxu0
  %v471 = vadd.f32 0.0, %v470
  %472 = vmatmul.bf16.gmra.mxu0 %v331
  %v473 = vpop.f32.mrf.mxu0
  %v474 = vadd.f32 0.0, %v473
  %v475 = vpop.f32.mrf.mxu0
  %v476 = vadd.f32 0.0, %v475
  %477 = vmatmul.bf16.gmra.mxu0 %v334
  %v478 = vpop.f32.mrf.mxu0
  %v479 = vadd.f32 0.0, %v478
  %v480 = vpop.f32.mrf.mxu0
  %v481 = vadd.f32 0.0, %v480
  %482 = vmatmul.bf16.gmra.mxu0 %v337
  %v483 = vpop.f32.mrf.mxu0
  %v484 = vadd.f32 0.0, %v483
  %v485 = vpop.f32.mrf.mxu0
  %v486 = vadd.f32 0.0, %v485
  %487 = vmatmul.bf16.gmra.mxu0 %v340
  %v488 = vpop.f32.mrf.mxu0
  %v489 = vadd.f32 0.0, %v488
  %v490 = vpop.f32.mrf.mxu0
  %v491 = vadd.f32 0.0, %v490
  %492 = vmatmul.bf16.gmra.mxu0 %v343
  %v493 = vpop.f32.mrf.mxu0
  %v494 = vadd.f32 0.0, %v493
  %v495 = vpop.f32.mrf.mxu0
  %v496 = vadd.f32 0.0, %v495
  %497 = vmatmul.bf16.gmra.mxu0 %v346
  %v498 = vpop.f32.mrf.mxu0
  %v499 = vadd.f32 0.0, %v498
  %v500 = vpop.f32.mrf.mxu0
  %v501 = vadd.f32 0.0, %v500
  %502 = vmatmul.bf16.gmra.mxu0 %v349
  %v503 = vpop.f32.mrf.mxu0
  %v504 = vadd.f32 0.0, %v503
  %v505 = vpop.f32.mrf.mxu0
  %v506 = vadd.f32 0.0, %v505
  %507 = vmatmul.bf16.gmra.mxu0 %v352
  %v508 = vpop.f32.mrf.mxu0
  %v509 = vadd.f32 0.0, %v508
  %v510 = vpop.f32.mrf.mxu0
  %v511 = vadd.f32 0.0, %v510
  %512 = vmatmul.bf16.gmra.mxu0 %v355
  %v513 = vpop.f32.mrf.mxu0
  %v514 = vadd.f32 0.0, %v513
  %v515 = vpop.f32.mrf.mxu0
  %v516 = vadd.f32 0.0, %v515
  %517 = vmatmul.bf16.gmra.mxu0 %v358
  %v518 = vpop.f32.mrf.mxu0
  %v519 = vadd.f32 0.0, %v518
  %v520 = vpop.f32.mrf.mxu0
  %v521 = vadd.f32 0.0, %v520
  %522 = vmatmul.bf16.gmra.mxu0 %v361
  %v523 = vpop.f32.mrf.mxu0
  %v524 = vadd.f32 0.0, %v523
  %v525 = vpop.f32.mrf.mxu0
  %v526 = vadd.f32 0.0, %v525
  %527 = vmatmul.bf16.gmra.mxu0 %v364
  %v528 = vpop.f32.mrf.mxu0
  %v529 = vadd.f32 0.0, %v528
  %v530 = vpop.f32.mrf.mxu0
  %v531 = vadd.f32 0.0, %v530
  %532 = vmatmul.bf16.gmra.mxu0 %v367
  %v533 = vpop.f32.mrf.mxu0
  %v534 = vadd.f32 0.0, %v533
  %v535 = vpop.f32.mrf.mxu0
  %v536 = vadd.f32 0.0, %v535
  %537 = vmatmul.bf16.gmra.mxu0 %v370
  %v538 = vpop.f32.mrf.mxu0
  %v539 = vadd.f32 0.0, %v538
  %v540 = vpop.f32.mrf.mxu0
  %v541 = vadd.f32 0.0, %v540
  %542 = vmatmul.bf16.gmra.mxu0 %v373
  %v543 = vpop.f32.mrf.mxu0
  %v544 = vadd.f32 0.0, %v543
  %v545 = vpop.f32.mrf.mxu0
  %v546 = vadd.f32 0.0, %v545
  %547 = vdwg.mxu0
  %v548 = vld [vmem:[%s2] sm:$0x1]
  %v549 = vld [vmem:[%s3] sm:$0x1]
  %vm550 = vcmask 130048
  %v551 = vsel %vm550, %v389, 0.0
  %v552 = vsel %vm550, %v391, 0.0
  %v553 = vadd.f32 %v551, %v552
  %v554 = vsel %vm550, %v394, 0.0
  %v555 = vadd.f32 %v553, %v554
  %v556 = vsel %vm550, %v396, 0.0
  %v557 = vadd.f32 %v555, %v556
  %v558 = vsel %vm550, %v399, 0.0
  %v559 = vadd.f32 %v557, %v558
  %v560 = vsel %vm550, %v401, 0.0
  %v561 = vadd.f32 %v559, %v560
  %v562 = vsel %vm550, %v404, 0.0
  %v563 = vadd.f32 %v561, %v562
  %v564 = vsel %vm550, %v406, 0.0
  %v565 = vadd.f32 %v563, %v564
  %v566 = vsel %vm550, %v409, 0.0
  %v567 = vadd.f32 %v565, %v566
  %v568 = vsel %vm550, %v411, 0.0
  %v569 = vadd.f32 %v567, %v568
  %v570 = vsel %vm550, %v414, 0.0
  %v571 = vadd.f32 %v569, %v570
  %v572 = vsel %vm550, %v416, 0.0
  %v573 = vadd.f32 %v571, %v572
  %v574 = vsel %vm550, %v419, 0.0
  %v575 = vadd.f32 %v573, %v574
  %v576 = vsel %vm550, %v421, 0.0
  %v577 = vadd.f32 %v575, %v576
  %v578 = vsel %vm550, %v424, 0.0
  %v579 = vadd.f32 %v577, %v578
  %v580 = vsel %vm550, %v426, 0.0
  %v581 = vadd.f32 %v579, %v580
  %v582 = vsel %vm550, %v429, 0.0
  %v583 = vadd.f32 %v581, %v582
  %v584 = vsel %vm550, %v431, 0.0
  %v585 = vadd.f32 %v583, %v584
  %v586 = vsel %vm550, %v434, 0.0
  %v587 = vadd.f32 %v585, %v586
  %v588 = vsel %vm550, %v436, 0.0
  %v589 = vadd.f32 %v587, %v588
  %v590 = vsel %vm550, %v439, 0.0
  %v591 = vadd.f32 %v589, %v590
  %v592 = vsel %vm550, %v441, 0.0
  %v593 = vadd.f32 %v591, %v592
  %v594 = vsel %vm550, %v444, 0.0
  %v595 = vadd.f32 %v593, %v594
  %v596 = vsel %vm550, %v446, 0.0
  %v597 = vadd.f32 %v595, %v596
  %v598 = vsel %vm550, %v449, 0.0
  %v599 = vadd.f32 %v597, %v598
  %v600 = vsel %vm550, %v451, 0.0
  %v601 = vadd.f32 %v599, %v600
  %v602 = vsel %vm550, %v454, 0.0
  %v603 = vadd.f32 %v601, %v602
  %v604 = vsel %vm550, %v456, 0.0
  %v605 = vadd.f32 %v603, %v604
  %v606 = vsel %vm550, %v459, 0.0
  %v607 = vadd.f32 %v605, %v606
  %v608 = vsel %vm550, %v461, 0.0
  %v609 = vadd.f32 %v607, %v608
  %v610 = vsel %vm550, %v464, 0.0
  %v611 = vadd.f32 %v609, %v610
  %v612 = vsel %vm550, %v466, 0.0
  %v613 = vadd.f32 %v611, %v612
  %v614 = vsel %vm550, %v469, 0.0
  %v615 = vadd.f32 %v613, %v614
  %v616 = vsel %vm550, %v471, 0.0
  %v617 = vadd.f32 %v615, %v616
  %v618 = vsel %vm550, %v474, 0.0
  %v619 = vadd.f32 %v617, %v618
  %v620 = vsel %vm550, %v476, 0.0
  %v621 = vadd.f32 %v619, %v620
  %v622 = vsel %vm550, %v479, 0.0
  %v623 = vadd.f32 %v621, %v622
  %v624 = vsel %vm550, %v481, 0.0
  %v625 = vadd.f32 %v623, %v624
  %v626 = vsel %vm550, %v484, 0.0
  %v627 = vadd.f32 %v625, %v626
  %v628 = vsel %vm550, %v486, 0.0
  %v629 = vadd.f32 %v627, %v628
  %v630 = vsel %vm550, %v489, 0.0
  %v631 = vadd.f32 %v629, %v630
  %v632 = vsel %vm550, %v491, 0.0
  %v633 = vadd.f32 %v631, %v632
  %v634 = vsel %vm550, %v494, 0.0
  %v635 = vadd.f32 %v633, %v634
  %v636 = vsel %vm550, %v496, 0.0
  %v637 = vadd.f32 %v635, %v636
  %v638 = vsel %vm550, %v499, 0.0
  %v639 = vadd.f32 %v637, %v638
  %v640 = vsel %vm550, %v501, 0.0
  %v641 = vadd.f32 %v639, %v640
  %v642 = vsel %vm550, %v504, 0.0
  %v643 = vadd.f32 %v641, %v642
  %v644 = vsel %vm550, %v506, 0.0
  %v645 = vadd.f32 %v643, %v644
  %v646 = vsel %vm550, %v509, 0.0
  %v647 = vadd.f32 %v645, %v646
  %v648 = vsel %vm550, %v511, 0.0
  %v649 = vadd.f32 %v647, %v648
  %v650 = vsel %vm550, %v514, 0.0
  %v651 = vadd.f32 %v649, %v650
  %v652 = vsel %vm550, %v516, 0.0
  %v653 = vadd.f32 %v651, %v652
  %v654 = vsel %vm550, %v519, 0.0
  %v655 = vadd.f32 %v653, %v654
  %v656 = vsel %vm550, %v521, 0.0
  %v657 = vadd.f32 %v655, %v656
  %v658 = vsel %vm550, %v524, 0.0
  %v659 = vadd.f32 %v657, %v658
  %v660 = vsel %vm550, %v526, 0.0
  %v661 = vadd.f32 %v659, %v660
  %v662 = vsel %vm550, %v529, 0.0
  %v663 = vadd.f32 %v661, %v662
  %v664 = vsel %vm550, %v531, 0.0
  %v665 = vadd.f32 %v663, %v664
  %v666 = vsel %vm550, %v534, 0.0
  %v667 = vadd.f32 %v665, %v666
  %v668 = vsel %vm550, %v536, 0.0
  %v669 = vadd.f32 %v667, %v668
  %v670 = vsel %vm550, %v539, 0.0
  %v671 = vadd.f32 %v669, %v670
  %v672 = vsel %vm550, %v541, 0.0
  %v673 = vadd.f32 %v671, %v672
  %v674 = vsel %vm550, %v544, 0.0
  %v675 = vadd.f32 %v673, %v674
  %v676 = vsel %vm550, %v546, 0.0
  %v677 = vadd.f32 %v675, %v676
  %v678 = vrot.slane %v677, 4
  %v679 = vadd.f32 %v677, %v678
  %v680 = vrot.slane %v679, 2
  %v681 = vadd.f32 %v679, %v680
  %v682 = vrot.slane %v681, 1
  %v683 = vadd.f32 %v681, %v682
  %v684 = vrcp.pop 512.0
  %v685 = vmul.f32 512.0, %v684
  %v686 = vsub.f32 1.0, %v685
  %v687 = vmul.f32 %v684, %v686
  %v688 = vadd.f32 %v684, %v687
  %vm689 = vweird.f32 %v684
  %v690 = vsel %vm689, %v684, %v688
  %v691 = vmul.f32 %v683, %v690
  %v692 = vsub.f32 %v389, %v691
  %v693 = vsub.f32 %v391, %v691
  %v694 = vsub.f32 %v394, %v691
  %v695 = vsub.f32 %v396, %v691
  %v696 = vsub.f32 %v399, %v691
  %v697 = vsub.f32 %v401, %v691
  %v698 = vsub.f32 %v404, %v691
  %v699 = vsub.f32 %v406, %v691
  %v700 = vsub.f32 %v409, %v691
  %v701 = vsub.f32 %v411, %v691
  %v702 = vsub.f32 %v414, %v691
  %v703 = vsub.f32 %v416, %v691
  %v704 = vsub.f32 %v419, %v691
  %v705 = vsub.f32 %v421, %v691
  %v706 = vsub.f32 %v424, %v691
  %v707 = vsub.f32 %v426, %v691
  %v708 = vsub.f32 %v429, %v691
  %v709 = vsub.f32 %v431, %v691
  %v710 = vsub.f32 %v434, %v691
  %v711 = vsub.f32 %v436, %v691
  %v712 = vsub.f32 %v439, %v691
  %v713 = vsub.f32 %v441, %v691
  %v714 = vsub.f32 %v444, %v691
  %v715 = vsub.f32 %v446, %v691
  %v716 = vsub.f32 %v449, %v691
  %v717 = vsub.f32 %v451, %v691
  %v718 = vsub.f32 %v454, %v691
  %v719 = vsub.f32 %v456, %v691
  %v720 = vsub.f32 %v459, %v691
  %v721 = vsub.f32 %v461, %v691
  %v722 = vsub.f32 %v464, %v691
  %v723 = vsub.f32 %v466, %v691
  %v724 = vsub.f32 %v469, %v691
  %v725 = vsub.f32 %v471, %v691
  %v726 = vsub.f32 %v474, %v691
  %v727 = vsub.f32 %v476, %v691
  %v728 = vsub.f32 %v479, %v691
  %v729 = vsub.f32 %v481, %v691
  %v730 = vsub.f32 %v484, %v691
  %v731 = vsub.f32 %v486, %v691
  %v732 = vsub.f32 %v489, %v691
  %v733 = vsub.f32 %v491, %v691
  %v734 = vsub.f32 %v494, %v691
  %v735 = vsub.f32 %v496, %v691
  %v736 = vsub.f32 %v499, %v691
  %v737 = vsub.f32 %v501, %v691
  %v738 = vsub.f32 %v504, %v691
  %v739 = vsub.f32 %v506, %v691
  %v740 = vsub.f32 %v509, %v691
  %v741 = vsub.f32 %v511, %v691
  %v742 = vsub.f32 %v514, %v691
  %v743 = vsub.f32 %v516, %v691
  %v744 = vsub.f32 %v519, %v691
  %v745 = vsub.f32 %v521, %v691
  %v746 = vsub.f32 %v524, %v691
  %v747 = vsub.f32 %v526, %v691
  %v748 = vsub.f32 %v529, %v691
  %v749 = vsub.f32 %v531, %v691
  %v750 = vsub.f32 %v534, %v691
  %v751 = vsub.f32 %v536, %v691
  %v752 = vsub.f32 %v539, %v691
  %v753 = vsub.f32 %v541, %v691
  %v754 = vsub.f32 %v544, %v691
  %v755 = vsub.f32 %v546, %v691
  %v756 = vmul.f32 %v692, %v692
  %v757 = vmul.f32 %v693, %v693
  %v758 = vmul.f32 %v694, %v694
  %v759 = vmul.f32 %v695, %v695
  %v760 = vmul.f32 %v696, %v696
  %v761 = vmul.f32 %v697, %v697
  %v762 = vmul.f32 %v698, %v698
  %v763 = vmul.f32 %v699, %v699
  %v764 = vmul.f32 %v700, %v700
  %v765 = vmul.f32 %v701, %v701
  %v766 = vmul.f32 %v702, %v702
  %v767 = vmul.f32 %v703, %v703
  %v768 = vmul.f32 %v704, %v704
  %v769 = vmul.f32 %v705, %v705
  %v770 = vmul.f32 %v706, %v706
  %v771 = vmul.f32 %v707, %v707
  %v772 = vmul.f32 %v708, %v708
  %v773 = vmul.f32 %v709, %v709
  %v774 = vmul.f32 %v710, %v710
  %v775 = vmul.f32 %v711, %v711
  %v776 = vmul.f32 %v712, %v712
  %v777 = vmul.f32 %v713, %v713
  %v778 = vmul.f32 %v714, %v714
  %v779 = vmul.f32 %v715, %v715
  %v780 = vmul.f32 %v716, %v716
  %v781 = vmul.f32 %v717, %v717
  %v782 = vmul.f32 %v718, %v718
  %v783 = vmul.f32 %v719, %v719
  %v784 = vmul.f32 %v720, %v720
  %v785 = vmul.f32 %v721, %v721
  %v786 = vmul.f32 %v722, %v722
  %v787 = vmul.f32 %v723, %v723
  %v788 = vmul.f32 %v724, %v724
  %v789 = vmul.f32 %v725, %v725
  %v790 = vmul.f32 %v726, %v726
  %v791 = vmul.f32 %v727, %v727
  %v792 = vmul.f32 %v728, %v728
  %v793 = vmul.f32 %v729, %v729
  %v794 = vmul.f32 %v730, %v730
  %v795 = vmul.f32 %v731, %v731
  %v796 = vmul.f32 %v732, %v732
  %v797 = vmul.f32 %v733, %v733
  %v798 = vmul.f32 %v734, %v734
  %v799 = vmul.f32 %v735, %v735
  %v800 = vmul.f32 %v736, %v736
  %v801 = vmul.f32 %v737, %v737
  %v802 = vmul.f32 %v738, %v738
  %v803 = vmul.f32 %v739, %v739
  %v804 = vmul.f32 %v740, %v740
  %v805 = vmul.f32 %v741, %v741
  %v806 = vmul.f32 %v742, %v742
  %v807 = vmul.f32 %v743, %v743
  %v808 = vmul.f32 %v744, %v744
  %v809 = vmul.f32 %v745, %v745
  %v810 = vmul.f32 %v746, %v746
  %v811 = vmul.f32 %v747, %v747
  %v812 = vmul.f32 %v748, %v748
  %v813 = vmul.f32 %v749, %v749
  %v814 = vmul.f32 %v750, %v750
  %v815 = vmul.f32 %v751, %v751
  %v816 = vmul.f32 %v752, %v752
  %v817 = vmul.f32 %v753, %v753
  %v818 = vmul.f32 %v754, %v754
  %v819 = vmul.f32 %v755, %v755
  %v820 = vsel %vm550, %v756, 0.0
  %v821 = vsel %vm550, %v757, 0.0
  %v822 = vadd.f32 %v820, %v821
  %v823 = vsel %vm550, %v758, 0.0
  %v824 = vadd.f32 %v822, %v823
  %v825 = vsel %vm550, %v759, 0.0
  %v826 = vadd.f32 %v824, %v825
  %v827 = vsel %vm550, %v760, 0.0
  %v828 = vadd.f32 %v826, %v827
  %v829 = vsel %vm550, %v761, 0.0
  %v830 = vadd.f32 %v828, %v829
  %v831 = vsel %vm550, %v762, 0.0
  %v832 = vadd.f32 %v830, %v831
  %v833 = vsel %vm550, %v763, 0.0
  %v834 = vadd.f32 %v832, %v833
  %v835 = vsel %vm550, %v764, 0.0
  %v836 = vadd.f32 %v834, %v835
  %v837 = vsel %vm550, %v765, 0.0
  %v838 = vadd.f32 %v836, %v837
  %v839 = vsel %vm550, %v766, 0.0
  %v840 = vadd.f32 %v838, %v839
  %v841 = vsel %vm550, %v767, 0.0
  %v842 = vadd.f32 %v840, %v841
  %v843 = vsel %vm550, %v768, 0.0
  %v844 = vadd.f32 %v842, %v843
  %v845 = vsel %vm550, %v769, 0.0
  %v846 = vadd.f32 %v844, %v845
  %v847 = vsel %vm550, %v770, 0.0
  %v848 = vadd.f32 %v846, %v847
  %v849 = vsel %vm550, %v771, 0.0
  %v850 = vadd.f32 %v848, %v849
  %v851 = vsel %vm550, %v772, 0.0
  %v852 = vadd.f32 %v850, %v851
  %v853 = vsel %vm550, %v773, 0.0
  %v854 = vadd.f32 %v852, %v853
  %v855 = vsel %vm550, %v774, 0.0
  %v856 = vadd.f32 %v854, %v855
  %v857 = vsel %vm550, %v775, 0.0
  %v858 = vadd.f32 %v856, %v857
  %v859 = vsel %vm550, %v776, 0.0
  %v860 = vadd.f32 %v858, %v859
  %v861 = vsel %vm550, %v777, 0.0
  %v862 = vadd.f32 %v860, %v861
  %v863 = vsel %vm550, %v778, 0.0
  %v864 = vadd.f32 %v862, %v863
  %v865 = vsel %vm550, %v779, 0.0
  %v866 = vadd.f32 %v864, %v865
  %v867 = vsel %vm550, %v780, 0.0
  %v868 = vadd.f32 %v866, %v867
  %v869 = vsel %vm550, %v781, 0.0
  %v870 = vadd.f32 %v868, %v869
  %v871 = vsel %vm550, %v782, 0.0
  %v872 = vadd.f32 %v870, %v871
  %v873 = vsel %vm550, %v783, 0.0
  %v874 = vadd.f32 %v872, %v873
  %v875 = vsel %vm550, %v784, 0.0
  %v876 = vadd.f32 %v874, %v875
  %v877 = vsel %vm550, %v785, 0.0
  %v878 = vadd.f32 %v876, %v877
  %v879 = vsel %vm550, %v786, 0.0
  %v880 = vadd.f32 %v878, %v879
  %v881 = vsel %vm550, %v787, 0.0
  %v882 = vadd.f32 %v880, %v881
  %v883 = vsel %vm550, %v788, 0.0
  %v884 = vadd.f32 %v882, %v883
  %v885 = vsel %vm550, %v789, 0.0
  %v886 = vadd.f32 %v884, %v885
  %v887 = vsel %vm550, %v790, 0.0
  %v888 = vadd.f32 %v886, %v887
  %v889 = vsel %vm550, %v791, 0.0
  %v890 = vadd.f32 %v888, %v889
  %v891 = vsel %vm550, %v792, 0.0
  %v892 = vadd.f32 %v890, %v891
  %v893 = vsel %vm550, %v793, 0.0
  %v894 = vadd.f32 %v892, %v893
  %v895 = vsel %vm550, %v794, 0.0
  %v896 = vadd.f32 %v894, %v895
  %v897 = vsel %vm550, %v795, 0.0
  %v898 = vadd.f32 %v896, %v897
  %v899 = vsel %vm550, %v796, 0.0
  %v900 = vadd.f32 %v898, %v899
  %v901 = vsel %vm550, %v797, 0.0
  %v902 = vadd.f32 %v900, %v901
  %v903 = vsel %vm550, %v798, 0.0
  %v904 = vadd.f32 %v902, %v903
  %v905 = vsel %vm550, %v799, 0.0
  %v906 = vadd.f32 %v904, %v905
  %v907 = vsel %vm550, %v800, 0.0
  %v908 = vadd.f32 %v906, %v907
  %v909 = vsel %vm550, %v801, 0.0
  %v910 = vadd.f32 %v908, %v909
  %v911 = vsel %vm550, %v802, 0.0
  %v912 = vadd.f32 %v910, %v911
  %v913 = vsel %vm550, %v803, 0.0
  %v914 = vadd.f32 %v912, %v913
  %v915 = vsel %vm550, %v804, 0.0
  %v916 = vadd.f32 %v914, %v915
  %v917 = vsel %vm550, %v805, 0.0
  %v918 = vadd.f32 %v916, %v917
  %v919 = vsel %vm550, %v806, 0.0
  %v920 = vadd.f32 %v918, %v919
  %v921 = vsel %vm550, %v807, 0.0
  %v922 = vadd.f32 %v920, %v921
  %v923 = vsel %vm550, %v808, 0.0
  %v924 = vadd.f32 %v922, %v923
  %v925 = vsel %vm550, %v809, 0.0
  %v926 = vadd.f32 %v924, %v925
  %v927 = vsel %vm550, %v810, 0.0
  %v928 = vadd.f32 %v926, %v927
  %v929 = vsel %vm550, %v811, 0.0
  %v930 = vadd.f32 %v928, %v929
  %v931 = vsel %vm550, %v812, 0.0
  %v932 = vadd.f32 %v930, %v931
  %v933 = vsel %vm550, %v813, 0.0
  %v934 = vadd.f32 %v932, %v933
  %v935 = vsel %vm550, %v814, 0.0
  %v936 = vadd.f32 %v934, %v935
  %v937 = vsel %vm550, %v815, 0.0
  %v938 = vadd.f32 %v936, %v937
  %v939 = vsel %vm550, %v816, 0.0
  %v940 = vadd.f32 %v938, %v939
  %v941 = vsel %vm550, %v817, 0.0
  %v942 = vadd.f32 %v940, %v941
  %v943 = vsel %vm550, %v818, 0.0
  %v944 = vadd.f32 %v942, %v943
  %v945 = vsel %vm550, %v819, 0.0
  %v946 = vadd.f32 %v944, %v945
  %v947 = vrot.slane %v946, 4
  %v948 = vadd.f32 %v946, %v947
  %v949 = vrot.slane %v948, 2
  %v950 = vadd.f32 %v948, %v949
  %v951 = vrot.slane %v950, 1
  %v952 = vadd.f32 %v950, %v951
  %v953 = vmul.f32 %v952, %v690
  %v954 = vadd.f32 %v953, 1e-05
  %v955 = vrsqrt.pop %v954
  %v956 = vmul.f32 %v955, %v954
  %v957 = vmul.f32 %v956, %v955
  %v958 = vmul.f32 0.5, %v957
  %v959 = vsub.f32 1.5, %v958
  %v960 = vmul.f32 %v955, %v959
  %vm961 = vweird.f32 %v954
  %vm962 = vweird.f32 %v955
  %vm963 = vmor %vm961, %vm962
  %v964 = vsel %vm963, %v955, %v960
  %v965 = vmul.f32 %v692, %v964
  %v966 = vmul.f32 %v693, %v964
  %v967 = vmul.f32 %v694, %v964
  %v968 = vmul.f32 %v695, %v964
  %v969 = vmul.f32 %v696, %v964
  %v970 = vmul.f32 %v697, %v964
  %v971 = vmul.f32 %v698, %v964
  %v972 = vmul.f32 %v699, %v964
  %v973 = vmul.f32 %v700, %v964
  %v974 = vmul.f32 %v701, %v964
  %v975 = vmul.f32 %v702, %v964
  %v976 = vmul.f32 %v703, %v964
  %v977 = vmul.f32 %v704, %v964
  %v978 = vmul.f32 %v705, %v964
  %v979 = vmul.f32 %v706, %v964
  %v980 = vmul.f32 %v707, %v964
  %v981 = vmul.f32 %v708, %v964
  %v982 = vmul.f32 %v709, %v964
  %v983 = vmul.f32 %v710, %v964
  %v984 = vmul.f32 %v711, %v964
  %v985 = vmul.f32 %v712, %v964
  %v986 = vmul.f32 %v713, %v964
  %v987 = vmul.f32 %v714, %v964
  %v988 = vmul.f32 %v715, %v964
  %v989 = vmul.f32 %v716, %v964
  %v990 = vmul.f32 %v717, %v964
  %v991 = vmul.f32 %v718, %v964
  %v992 = vmul.f32 %v719, %v964
  %v993 = vmul.f32 %v720, %v964
  %v994 = vmul.f32 %v721, %v964
  %v995 = vmul.f32 %v722, %v964
  %v996 = vmul.f32 %v723, %v964
  %v997 = vmul.f32 %v724, %v964
  %v998 = vmul.f32 %v725, %v964
  %v999 = vmul.f32 %v726, %v964
  %v1000 = vmul.f32 %v727, %v964
  %v1001 = vmul.f32 %v728, %v964
  %v1002 = vmul.f32 %v729, %v964
  %v1003 = vmul.f32 %v730, %v964
  %v1004 = vmul.f32 %v731, %v964
  %v1005 = vmul.f32 %v732, %v964
  %v1006 = vmul.f32 %v733, %v964
  %v1007 = vmul.f32 %v734, %v964
  %v1008 = vmul.f32 %v735, %v964
  %v1009 = vmul.f32 %v736, %v964
  %v1010 = vmul.f32 %v737, %v964
  %v1011 = vmul.f32 %v738, %v964
  %v1012 = vmul.f32 %v739, %v964
  %v1013 = vmul.f32 %v740, %v964
  %v1014 = vmul.f32 %v741, %v964
  %v1015 = vmul.f32 %v742, %v964
  %v1016 = vmul.f32 %v743, %v964
  %v1017 = vmul.f32 %v744, %v964
  %v1018 = vmul.f32 %v745, %v964
  %v1019 = vmul.f32 %v746, %v964
  %v1020 = vmul.f32 %v747, %v964
  %v1021 = vmul.f32 %v748, %v964
  %v1022 = vmul.f32 %v749, %v964
  %v1023 = vmul.f32 %v750, %v964
  %v1024 = vmul.f32 %v751, %v964
  %v1025 = vmul.f32 %v752, %v964
  %v1026 = vmul.f32 %v753, %v964
  %v1027 = vmul.f32 %v754, %v964
  %v1028 = vmul.f32 %v755, %v964
  %v1030 = vperm.slane %v548, 0
  %v1032 = vmul.f32 %v965, %v1030
  %v1033 = vmul.f32 %v966, %v1030
  %v1034 = vmul.f32 %v967, %v1030
  %v1035 = vmul.f32 %v968, %v1030
  %v1036 = vmul.f32 %v969, %v1030
  %v1037 = vmul.f32 %v970, %v1030
  %v1038 = vmul.f32 %v971, %v1030
  %v1039 = vmul.f32 %v972, %v1030
  %v1040 = vmul.f32 %v973, %v1030
  %v1041 = vmul.f32 %v974, %v1030
  %v1042 = vmul.f32 %v975, %v1030
  %v1043 = vmul.f32 %v976, %v1030
  %v1044 = vmul.f32 %v977, %v1030
  %v1045 = vmul.f32 %v978, %v1030
  %v1046 = vmul.f32 %v979, %v1030
  %v1047 = vmul.f32 %v980, %v1030
  %v1048 = vmul.f32 %v981, %v1030
  %v1049 = vmul.f32 %v982, %v1030
  %v1050 = vmul.f32 %v983, %v1030
  %v1051 = vmul.f32 %v984, %v1030
  %v1052 = vmul.f32 %v985, %v1030
  %v1053 = vmul.f32 %v986, %v1030
  %v1054 = vmul.f32 %v987, %v1030
  %v1055 = vmul.f32 %v988, %v1030
  %v1056 = vmul.f32 %v989, %v1030
  %v1057 = vmul.f32 %v990, %v1030
  %v1058 = vmul.f32 %v991, %v1030
  %v1059 = vmul.f32 %v992, %v1030
  %v1060 = vmul.f32 %v993, %v1030
  %v1061 = vmul.f32 %v994, %v1030
  %v1062 = vmul.f32 %v995, %v1030
  %v1063 = vmul.f32 %v996, %v1030
  %v1064 = vmul.f32 %v997, %v1030
  %v1065 = vmul.f32 %v998, %v1030
  %v1066 = vmul.f32 %v999, %v1030
  %v1067 = vmul.f32 %v1000, %v1030
  %v1068 = vmul.f32 %v1001, %v1030
  %v1069 = vmul.f32 %v1002, %v1030
  %v1070 = vmul.f32 %v1003, %v1030
  %v1071 = vmul.f32 %v1004, %v1030
  %v1072 = vmul.f32 %v1005, %v1030
  %v1073 = vmul.f32 %v1006, %v1030
  %v1074 = vmul.f32 %v1007, %v1030
  %v1075 = vmul.f32 %v1008, %v1030
  %v1076 = vmul.f32 %v1009, %v1030
  %v1077 = vmul.f32 %v1010, %v1030
  %v1078 = vmul.f32 %v1011, %v1030
  %v1079 = vmul.f32 %v1012, %v1030
  %v1080 = vmul.f32 %v1013, %v1030
  %v1081 = vmul.f32 %v1014, %v1030
  %v1082 = vmul.f32 %v1015, %v1030
  %v1083 = vmul.f32 %v1016, %v1030
  %v1084 = vmul.f32 %v1017, %v1030
  %v1085 = vmul.f32 %v1018, %v1030
  %v1086 = vmul.f32 %v1019, %v1030
  %v1087 = vmul.f32 %v1020, %v1030
  %v1088 = vmul.f32 %v1021, %v1030
  %v1089 = vmul.f32 %v1022, %v1030
  %v1090 = vmul.f32 %v1023, %v1030
  %v1091 = vmul.f32 %v1024, %v1030
  %v1092 = vmul.f32 %v1025, %v1030
  %v1093 = vmul.f32 %v1026, %v1030
  %v1094 = vmul.f32 %v1027, %v1030
  %v1095 = vmul.f32 %v1028, %v1030
  %v1097 = vperm.slane %v549, 0
  %v1099 = vadd.f32 %v1032, %v1097
  %v1100 = vadd.f32 %v1033, %v1097
  %v1101 = vadd.f32 %v1034, %v1097
  %v1102 = vadd.f32 %v1035, %v1097
  %v1103 = vadd.f32 %v1036, %v1097
  %v1104 = vadd.f32 %v1037, %v1097
  %v1105 = vadd.f32 %v1038, %v1097
  %v1106 = vadd.f32 %v1039, %v1097
  %v1107 = vadd.f32 %v1040, %v1097
  %v1108 = vadd.f32 %v1041, %v1097
  %v1109 = vadd.f32 %v1042, %v1097
  %v1110 = vadd.f32 %v1043, %v1097
  %v1111 = vadd.f32 %v1044, %v1097
  %v1112 = vadd.f32 %v1045, %v1097
  %v1113 = vadd.f32 %v1046, %v1097
  %v1114 = vadd.f32 %v1047, %v1097
  %v1115 = vadd.f32 %v1048, %v1097
  %v1116 = vadd.f32 %v1049, %v1097
  %v1117 = vadd.f32 %v1050, %v1097
  %v1118 = vadd.f32 %v1051, %v1097
  %v1119 = vadd.f32 %v1052, %v1097
  %v1120 = vadd.f32 %v1053, %v1097
  %v1121 = vadd.f32 %v1054, %v1097
  %v1122 = vadd.f32 %v1055, %v1097
  %v1123 = vadd.f32 %v1056, %v1097
  %v1124 = vadd.f32 %v1057, %v1097
  %v1125 = vadd.f32 %v1058, %v1097
  %v1126 = vadd.f32 %v1059, %v1097
  %v1127 = vadd.f32 %v1060, %v1097
  %v1128 = vadd.f32 %v1061, %v1097
  %v1129 = vadd.f32 %v1062, %v1097
  %v1130 = vadd.f32 %v1063, %v1097
  %v1131 = vadd.f32 %v1064, %v1097
  %v1132 = vadd.f32 %v1065, %v1097
  %v1133 = vadd.f32 %v1066, %v1097
  %v1134 = vadd.f32 %v1067, %v1097
  %v1135 = vadd.f32 %v1068, %v1097
  %v1136 = vadd.f32 %v1069, %v1097
  %v1137 = vadd.f32 %v1070, %v1097
  %v1138 = vadd.f32 %v1071, %v1097
  %v1139 = vadd.f32 %v1072, %v1097
  %v1140 = vadd.f32 %v1073, %v1097
  %v1141 = vadd.f32 %v1074, %v1097
  %v1142 = vadd.f32 %v1075, %v1097
  %v1143 = vadd.f32 %v1076, %v1097
  %v1144 = vadd.f32 %v1077, %v1097
  %v1145 = vadd.f32 %v1078, %v1097
  %v1146 = vadd.f32 %v1079, %v1097
  %v1147 = vadd.f32 %v1080, %v1097
  %v1148 = vadd.f32 %v1081, %v1097
  %v1149 = vadd.f32 %v1082, %v1097
  %v1150 = vadd.f32 %v1083, %v1097
  %v1151 = vadd.f32 %v1084, %v1097
  %v1152 = vadd.f32 %v1085, %v1097
  %v1153 = vadd.f32 %v1086, %v1097
  %v1154 = vadd.f32 %v1087, %v1097
  %v1155 = vadd.f32 %v1088, %v1097
  %v1156 = vadd.f32 %v1089, %v1097
  %v1157 = vadd.f32 %v1090, %v1097
  %v1158 = vadd.f32 %v1091, %v1097
  %v1159 = vadd.f32 %v1092, %v1097
  %v1160 = vadd.f32 %v1093, %v1097
  %v1161 = vadd.f32 %v1094, %v1097
  %v1162 = vadd.f32 %v1095, %v1097
  %vm1163 = vcmp.ge.f32.partialorder %v1099, 0.0
  %vm1164 = vcmp.ge.f32.partialorder %v1100, 0.0
  %vm1165 = vcmp.ge.f32.partialorder %v1101, 0.0
  %vm1166 = vcmp.ge.f32.partialorder %v1102, 0.0
  %vm1167 = vcmp.ge.f32.partialorder %v1103, 0.0
  %vm1168 = vcmp.ge.f32.partialorder %v1104, 0.0
  %vm1169 = vcmp.ge.f32.partialorder %v1105, 0.0
  %vm1170 = vcmp.ge.f32.partialorder %v1106, 0.0
  %vm1171 = vcmp.ge.f32.partialorder %v1107, 0.0
  %vm1172 = vcmp.ge.f32.partialorder %v1108, 0.0
  %vm1173 = vcmp.ge.f32.partialorder %v1109, 0.0
  %vm1174 = vcmp.ge.f32.partialorder %v1110, 0.0
  %vm1175 = vcmp.ge.f32.partialorder %v1111, 0.0
  %vm1176 = vcmp.ge.f32.partialorder %v1112, 0.0
  %vm1177 = vcmp.ge.f32.partialorder %v1113, 0.0
  %vm1178 = vcmp.ge.f32.partialorder %v1114, 0.0
  %vm1179 = vcmp.ge.f32.partialorder %v1115, 0.0
  %vm1180 = vcmp.ge.f32.partialorder %v1116, 0.0
  %vm1181 = vcmp.ge.f32.partialorder %v1117, 0.0
  %vm1182 = vcmp.ge.f32.partialorder %v1118, 0.0
  %vm1183 = vcmp.ge.f32.partialorder %v1119, 0.0
  %vm1184 = vcmp.ge.f32.partialorder %v1120, 0.0
  %vm1185 = vcmp.ge.f32.partialorder %v1121, 0.0
  %vm1186 = vcmp.ge.f32.partialorder %v1122, 0.0
  %vm1187 = vcmp.ge.f32.partialorder %v1123, 0.0
  %vm1188 = vcmp.ge.f32.partialorder %v1124, 0.0
  %vm1189 = vcmp.ge.f32.partialorder %v1125, 0.0
  %vm1190 = vcmp.ge.f32.partialorder %v1126, 0.0
  %vm1191 = vcmp.ge.f32.partialorder %v1127, 0.0
  %vm1192 = vcmp.ge.f32.partialorder %v1128, 0.0
  %vm1193 = vcmp.ge.f32.partialorder %v1129, 0.0
  %vm1194 = vcmp.ge.f32.partialorder %v1130, 0.0
  %vm1195 = vcmp.ge.f32.partialorder %v1131, 0.0
  %vm1196 = vcmp.ge.f32.partialorder %v1132, 0.0
  %vm1197 = vcmp.ge.f32.partialorder %v1133, 0.0
  %vm1198 = vcmp.ge.f32.partialorder %v1134, 0.0
  %vm1199 = vcmp.ge.f32.partialorder %v1135, 0.0
  %vm1200 = vcmp.ge.f32.partialorder %v1136, 0.0
  %vm1201 = vcmp.ge.f32.partialorder %v1137, 0.0
  %vm1202 = vcmp.ge.f32.partialorder %v1138, 0.0
  %vm1203 = vcmp.ge.f32.partialorder %v1139, 0.0
  %vm1204 = vcmp.ge.f32.partialorder %v1140, 0.0
  %vm1205 = vcmp.ge.f32.partialorder %v1141, 0.0
  %vm1206 = vcmp.ge.f32.partialorder %v1142, 0.0
  %vm1207 = vcmp.ge.f32.partialorder %v1143, 0.0
  %vm1208 = vcmp.ge.f32.partialorder %v1144, 0.0
  %vm1209 = vcmp.ge.f32.partialorder %v1145, 0.0
  %vm1210 = vcmp.ge.f32.partialorder %v1146, 0.0
  %vm1211 = vcmp.ge.f32.partialorder %v1147, 0.0
  %vm1212 = vcmp.ge.f32.partialorder %v1148, 0.0
  %vm1213 = vcmp.ge.f32.partialorder %v1149, 0.0
  %vm1214 = vcmp.ge.f32.partialorder %v1150, 0.0
  %vm1215 = vcmp.ge.f32.partialorder %v1151, 0.0
  %vm1216 = vcmp.ge.f32.partialorder %v1152, 0.0
  %vm1217 = vcmp.ge.f32.partialorder %v1153, 0.0
  %vm1218 = vcmp.ge.f32.partialorder %v1154, 0.0
  %vm1219 = vcmp.ge.f32.partialorder %v1155, 0.0
  %vm1220 = vcmp.ge.f32.partialorder %v1156, 0.0
  %vm1221 = vcmp.ge.f32.partialorder %v1157, 0.0
  %vm1222 = vcmp.ge.f32.partialorder %v1158, 0.0
  %vm1223 = vcmp.ge.f32.partialorder %v1159, 0.0
  %vm1224 = vcmp.ge.f32.partialorder %v1160, 0.0
  %vm1225 = vcmp.ge.f32.partialorder %v1161, 0.0
  %vm1226 = vcmp.ge.f32.partialorder %v1162, 0.0
  %v1227 = vmul.f32 %v1099, 0.01
  %v1228 = vmul.f32 %v1100, 0.01
  %v1229 = vmul.f32 %v1101, 0.01
  %v1230 = vmul.f32 %v1102, 0.01
  %v1231 = vmul.f32 %v1103, 0.01
  %v1232 = vmul.f32 %v1104, 0.01
  %v1233 = vmul.f32 %v1105, 0.01
  %v1234 = vmul.f32 %v1106, 0.01
  %v1235 = vmul.f32 %v1107, 0.01
  %v1236 = vmul.f32 %v1108, 0.01
  %v1237 = vmul.f32 %v1109, 0.01
  %v1238 = vmul.f32 %v1110, 0.01
  %v1239 = vmul.f32 %v1111, 0.01
  %v1240 = vmul.f32 %v1112, 0.01
  %v1241 = vmul.f32 %v1113, 0.01
  %v1242 = vmul.f32 %v1114, 0.01
  %v1243 = vmul.f32 %v1115, 0.01
  %v1244 = vmul.f32 %v1116, 0.01
  %v1245 = vmul.f32 %v1117, 0.01
  %v1246 = vmul.f32 %v1118, 0.01
  %v1247 = vmul.f32 %v1119, 0.01
  %v1248 = vmul.f32 %v1120, 0.01
  %v1249 = vmul.f32 %v1121, 0.01
  %v1250 = vmul.f32 %v1122, 0.01
  %v1251 = vmul.f32 %v1123, 0.01
  %v1252 = vmul.f32 %v1124, 0.01
  %v1253 = vmul.f32 %v1125, 0.01
  %v1254 = vmul.f32 %v1126, 0.01
  %v1255 = vmul.f32 %v1127, 0.01
  %v1256 = vmul.f32 %v1128, 0.01
  %v1257 = vmul.f32 %v1129, 0.01
  %v1258 = vmul.f32 %v1130, 0.01
  %v1259 = vmul.f32 %v1131, 0.01
  %v1260 = vmul.f32 %v1132, 0.01
  %v1261 = vmul.f32 %v1133, 0.01
  %v1262 = vmul.f32 %v1134, 0.01
  %v1263 = vmul.f32 %v1135, 0.01
  %v1264 = vmul.f32 %v1136, 0.01
  %v1265 = vmul.f32 %v1137, 0.01
  %v1266 = vmul.f32 %v1138, 0.01
  %v1267 = vmul.f32 %v1139, 0.01
  %v1268 = vmul.f32 %v1140, 0.01
  %v1269 = vmul.f32 %v1141, 0.01
  %v1270 = vmul.f32 %v1142, 0.01
  %v1271 = vmul.f32 %v1143, 0.01
  %v1272 = vmul.f32 %v1144, 0.01
  %v1273 = vmul.f32 %v1145, 0.01
  %v1274 = vmul.f32 %v1146, 0.01
  %v1275 = vmul.f32 %v1147, 0.01
  %v1276 = vmul.f32 %v1148, 0.01
  %v1277 = vmul.f32 %v1149, 0.01
  %v1278 = vmul.f32 %v1150, 0.01
  %v1279 = vmul.f32 %v1151, 0.01
  %v1280 = vmul.f32 %v1152, 0.01
  %v1281 = vmul.f32 %v1153, 0.01
  %v1282 = vmul.f32 %v1154, 0.01
  %v1283 = vmul.f32 %v1155, 0.01
  %v1284 = vmul.f32 %v1156, 0.01
  %v1285 = vmul.f32 %v1157, 0.01
  %v1286 = vmul.f32 %v1158, 0.01
  %v1287 = vmul.f32 %v1159, 0.01
  %v1288 = vmul.f32 %v1160, 0.01
  %v1289 = vmul.f32 %v1161, 0.01
  %v1290 = vmul.f32 %v1162, 0.01
  %v1291 = vsel %vm1163, %v1099, %v1227
  %v1292 = vsel %vm1164, %v1100, %v1228
  %v1293 = vsel %vm1165, %v1101, %v1229
  %v1294 = vsel %vm1166, %v1102, %v1230
  %v1295 = vsel %vm1167, %v1103, %v1231
  %v1296 = vsel %vm1168, %v1104, %v1232
  %v1297 = vsel %vm1169, %v1105, %v1233
  %v1298 = vsel %vm1170, %v1106, %v1234
  %v1299 = vsel %vm1171, %v1107, %v1235
  %v1300 = vsel %vm1172, %v1108, %v1236
  %v1301 = vsel %vm1173, %v1109, %v1237
  %v1302 = vsel %vm1174, %v1110, %v1238
  %v1303 = vsel %vm1175, %v1111, %v1239
  %v1304 = vsel %vm1176, %v1112, %v1240
  %v1305 = vsel %vm1177, %v1113, %v1241
  %v1306 = vsel %vm1178, %v1114, %v1242
  %v1307 = vsel %vm1179, %v1115, %v1243
  %v1308 = vsel %vm1180, %v1116, %v1244
  %v1309 = vsel %vm1181, %v1117, %v1245
  %v1310 = vsel %vm1182, %v1118, %v1246
  %v1311 = vsel %vm1183, %v1119, %v1247
  %v1312 = vsel %vm1184, %v1120, %v1248
  %v1313 = vsel %vm1185, %v1121, %v1249
  %v1314 = vsel %vm1186, %v1122, %v1250
  %v1315 = vsel %vm1187, %v1123, %v1251
  %v1316 = vsel %vm1188, %v1124, %v1252
  %v1317 = vsel %vm1189, %v1125, %v1253
  %v1318 = vsel %vm1190, %v1126, %v1254
  %v1319 = vsel %vm1191, %v1127, %v1255
  %v1320 = vsel %vm1192, %v1128, %v1256
  %v1321 = vsel %vm1193, %v1129, %v1257
  %v1322 = vsel %vm1194, %v1130, %v1258
  %v1323 = vsel %vm1195, %v1131, %v1259
  %v1324 = vsel %vm1196, %v1132, %v1260
  %v1325 = vsel %vm1197, %v1133, %v1261
  %v1326 = vsel %vm1198, %v1134, %v1262
  %v1327 = vsel %vm1199, %v1135, %v1263
  %v1328 = vsel %vm1200, %v1136, %v1264
  %v1329 = vsel %vm1201, %v1137, %v1265
  %v1330 = vsel %vm1202, %v1138, %v1266
  %v1331 = vsel %vm1203, %v1139, %v1267
  %v1332 = vsel %vm1204, %v1140, %v1268
  %v1333 = vsel %vm1205, %v1141, %v1269
  %v1334 = vsel %vm1206, %v1142, %v1270
  %v1335 = vsel %vm1207, %v1143, %v1271
  %v1336 = vsel %vm1208, %v1144, %v1272
  %v1337 = vsel %vm1209, %v1145, %v1273
  %v1338 = vsel %vm1210, %v1146, %v1274
  %v1339 = vsel %vm1211, %v1147, %v1275
  %v1340 = vsel %vm1212, %v1148, %v1276
  %v1341 = vsel %vm1213, %v1149, %v1277
  %v1342 = vsel %vm1214, %v1150, %v1278
  %v1343 = vsel %vm1215, %v1151, %v1279
  %v1344 = vsel %vm1216, %v1152, %v1280
  %v1345 = vsel %vm1217, %v1153, %v1281
  %v1346 = vsel %vm1218, %v1154, %v1282
  %v1347 = vsel %vm1219, %v1155, %v1283
  %v1348 = vsel %vm1220, %v1156, %v1284
  %v1349 = vsel %vm1221, %v1157, %v1285
  %v1350 = vsel %vm1222, %v1158, %v1286
  %v1351 = vsel %vm1223, %v1159, %v1287
  %v1352 = vsel %vm1224, %v1160, %v1288
  %v1353 = vsel %vm1225, %v1161, %v1289
  %v1354 = vsel %vm1226, %v1162, %v1290
  %1355 = vst.msk [vmem:[%s4] sm:$0xff] %vm550, %v1291
  %1356 = vst.msk [vmem:[%s4 + $0x8] sm:$0xff] %vm550, %v1292
  %1357 = vst.msk [vmem:[%s4 + $0x10] sm:$0xff] %vm550, %v1293
  %1358 = vst.msk [vmem:[%s4 + $0x18] sm:$0xff] %vm550, %v1294
  %1359 = vst.msk [vmem:[%s4 + $0x20] sm:$0xff] %vm550, %v1295
  %1360 = vst.msk [vmem:[%s4 + $0x28] sm:$0xff] %vm550, %v1296
  %1361 = vst.msk [vmem:[%s4 + $0x30] sm:$0xff] %vm550, %v1297
  %1362 = vst.msk [vmem:[%s4 + $0x38] sm:$0xff] %vm550, %v1298
  %1363 = vst.msk [vmem:[%s4 + $0x40] sm:$0xff] %vm550, %v1299
  %1364 = vst.msk [vmem:[%s4 + $0x48] sm:$0xff] %vm550, %v1300
  %1365 = vst.msk [vmem:[%s4 + $0x50] sm:$0xff] %vm550, %v1301
  %1366 = vst.msk [vmem:[%s4 + $0x58] sm:$0xff] %vm550, %v1302
  %1367 = vst.msk [vmem:[%s4 + $0x60] sm:$0xff] %vm550, %v1303
  %1368 = vst.msk [vmem:[%s4 + $0x68] sm:$0xff] %vm550, %v1304
  %1369 = vst.msk [vmem:[%s4 + $0x70] sm:$0xff] %vm550, %v1305
  %1370 = vst.msk [vmem:[%s4 + $0x78] sm:$0xff] %vm550, %v1306
  %1371 = vst.msk [vmem:[%s4 + $0x80] sm:$0xff] %vm550, %v1307
  %1372 = vst.msk [vmem:[%s4 + $0x88] sm:$0xff] %vm550, %v1308
  %1373 = vst.msk [vmem:[%s4 + $0x90] sm:$0xff] %vm550, %v1309
  %1374 = vst.msk [vmem:[%s4 + $0x98] sm:$0xff] %vm550, %v1310
  %1375 = vst.msk [vmem:[%s4 + $0xa0] sm:$0xff] %vm550, %v1311
  %1376 = vst.msk [vmem:[%s4 + $0xa8] sm:$0xff] %vm550, %v1312
  %1377 = vst.msk [vmem:[%s4 + $0xb0] sm:$0xff] %vm550, %v1313
  %1378 = vst.msk [vmem:[%s4 + $0xb8] sm:$0xff] %vm550, %v1314
  %1379 = vst.msk [vmem:[%s4 + $0xc0] sm:$0xff] %vm550, %v1315
  %1380 = vst.msk [vmem:[%s4 + $0xc8] sm:$0xff] %vm550, %v1316
  %1381 = vst.msk [vmem:[%s4 + $0xd0] sm:$0xff] %vm550, %v1317
  %1382 = vst.msk [vmem:[%s4 + $0xd8] sm:$0xff] %vm550, %v1318
  %1383 = vst.msk [vmem:[%s4 + $0xe0] sm:$0xff] %vm550, %v1319
  %1384 = vst.msk [vmem:[%s4 + $0xe8] sm:$0xff] %vm550, %v1320
  %1385 = vst.msk [vmem:[%s4 + $0xf0] sm:$0xff] %vm550, %v1321
  %1386 = vst.msk [vmem:[%s4 + $0xf8] sm:$0xff] %vm550, %v1322
  %1387 = vst.msk [vmem:[%s4 + $0x100] sm:$0xff] %vm550, %v1323
  %1388 = vst.msk [vmem:[%s4 + $0x108] sm:$0xff] %vm550, %v1324
  %1389 = vst.msk [vmem:[%s4 + $0x110] sm:$0xff] %vm550, %v1325
  %1390 = vst.msk [vmem:[%s4 + $0x118] sm:$0xff] %vm550, %v1326
  %1391 = vst.msk [vmem:[%s4 + $0x120] sm:$0xff] %vm550, %v1327
  %1392 = vst.msk [vmem:[%s4 + $0x128] sm:$0xff] %vm550, %v1328
  %1393 = vst.msk [vmem:[%s4 + $0x130] sm:$0xff] %vm550, %v1329
  %1394 = vst.msk [vmem:[%s4 + $0x138] sm:$0xff] %vm550, %v1330
  %1395 = vst.msk [vmem:[%s4 + $0x140] sm:$0xff] %vm550, %v1331
  %1396 = vst.msk [vmem:[%s4 + $0x148] sm:$0xff] %vm550, %v1332
  %1397 = vst.msk [vmem:[%s4 + $0x150] sm:$0xff] %vm550, %v1333
  %1398 = vst.msk [vmem:[%s4 + $0x158] sm:$0xff] %vm550, %v1334
  %1399 = vst.msk [vmem:[%s4 + $0x160] sm:$0xff] %vm550, %v1335
  %1400 = vst.msk [vmem:[%s4 + $0x168] sm:$0xff] %vm550, %v1336
  %1401 = vst.msk [vmem:[%s4 + $0x170] sm:$0xff] %vm550, %v1337
  %1402 = vst.msk [vmem:[%s4 + $0x178] sm:$0xff] %vm550, %v1338
  %1403 = vst.msk [vmem:[%s4 + $0x180] sm:$0xff] %vm550, %v1339
  %1404 = vst.msk [vmem:[%s4 + $0x188] sm:$0xff] %vm550, %v1340
  %1405 = vst.msk [vmem:[%s4 + $0x190] sm:$0xff] %vm550, %v1341
  %1406 = vst.msk [vmem:[%s4 + $0x198] sm:$0xff] %vm550, %v1342
  %1407 = vst.msk [vmem:[%s4 + $0x1a0] sm:$0xff] %vm550, %v1343
  %1408 = vst.msk [vmem:[%s4 + $0x1a8] sm:$0xff] %vm550, %v1344
  %1409 = vst.msk [vmem:[%s4 + $0x1b0] sm:$0xff] %vm550, %v1345
  %1410 = vst.msk [vmem:[%s4 + $0x1b8] sm:$0xff] %vm550, %v1346
  %1411 = vst.msk [vmem:[%s4 + $0x1c0] sm:$0xff] %vm550, %v1347
  %1412 = vst.msk [vmem:[%s4 + $0x1c8] sm:$0xff] %vm550, %v1348
  %1413 = vst.msk [vmem:[%s4 + $0x1d0] sm:$0xff] %vm550, %v1349
  %1414 = vst.msk [vmem:[%s4 + $0x1d8] sm:$0xff] %vm550, %v1350
  %1415 = vst.msk [vmem:[%s4 + $0x1e0] sm:$0xff] %vm550, %v1351
  %1416 = vst.msk [vmem:[%s4 + $0x1e8] sm:$0xff] %vm550, %v1352
  %1417 = vst.msk [vmem:[%s4 + $0x1f0] sm:$0xff] %vm550, %v1353
  %1418 = vst.msk [vmem:[%s4 + $0x1f8] sm:$0xff] %vm550, %v1354
  // Predicated region
  $region18: #{_lambda_.7} parent=0 // pred_check
    _
  $region19: #{_lambda_.7} parent=0 // pred_check_branch
    %1420 = sbr.rel (0) target = $region21
  $region20: #{_lambda_.7} parent=0 // pred_region
    _
  $region21: #{_lambda_.7} parent=0 // pred_fallthru
    _
  // Predicated region
  $region22: #{_lambda_.7} parent=0 // pred_check
    _
  $region23: #{_lambda_.7} parent=0 // pred_check_branch
    %1422 = sbr.rel (0) target = $region25
  $region24: #{_lambda_.7} parent=0 // pred_region
    _
  $region25: #{_lambda_.7} parent=0 // pred_fallthru
    _

// kernel: _lambda_.8
$region0: #{_lambda_.8}
  #allocation0 [shape = 'u32[]', space=smem, size = 0x4, offset = 0x4, fixed_abs, tag = 'smem constant byte address 0x4 - core index']
  #allocation1 [shape = 'u32[72,128]{1,0:T(1,128)}', space=vmem, size = 0x9000, scoped, tag = 'internal scratch']
  %s0 = inlined_call_operand.vmem [shape: bf16[128,144], index: 0, kind: input, shape index: {}]
  %s1 = inlined_call_operand.vmem [shape: bf16[144,32], index: 1, kind: input, shape index: {}]
  %s2 = inlined_call_operand.vmem [shape: f32[1,32], index: 2, kind: input, shape index: {}]
  %s3 = inlined_call_operand.vmem [shape: f32[1,32], index: 3, kind: input, shape index: {}]
  %s4 = inlined_call_operand.vmem [shape: f32[128,32], index: 4, kind: output, shape index: {}]
  %s5 = sld [smem:[#allocation0]]
  $region26: #{_lambda_.8} parent=0
    _
  %s7 = ssub.s32 1, %s5
  %s8 = scalar_select 0, %s7, %s5
  // Predicated region
  $region2: #{_lambda_.8} parent=0 // pred_check
    _
  $region3: #{_lambda_.8} parent=0 // pred_check_branch
    %10 = sbr.rel (0) target = $region5
  $region4: #{_lambda_.8} parent=0 // pred_region
    _
  $region5: #{_lambda_.8} parent=0 // pred_fallthru
    _
  // Predicated region
  $region6: #{_lambda_.8} parent=0 // pred_check
    _
  $region7: #{_lambda_.8} parent=0 // pred_check_branch
    %12 = sbr.rel (0) target = $region9
  $region8: #{_lambda_.8} parent=0 // pred_region
    _
  $region9: #{_lambda_.8} parent=0 // pred_fallthru
    _
  // Predicated region
  $region10: #{_lambda_.8} parent=0 // pred_check
    _
  $region11: #{_lambda_.8} parent=0 // pred_check_branch
    %14 = sbr.rel (0) target = $region13
  $region12: #{_lambda_.8} parent=0 // pred_region
    _
  $region13: #{_lambda_.8} parent=0 // pred_fallthru
    _
  // Predicated region
  $region14: #{_lambda_.8} parent=0 // pred_check
    _
  $region15: #{_lambda_.8} parent=0 // pred_check_branch
    %16 = sbr.rel (0) target = $region17
  $region16: #{_lambda_.8} parent=0 // pred_region
    _
  $region17: #{_lambda_.8} parent=0 // pred_fallthru
    _
  %v18 = vld [vmem:[%s0] sm:$0xff]
  %v19 = vld [vmem:[%s0 + $0x8] sm:$0xff]
  %v20 = vld [vmem:[%s0 + $0x10] sm:$0xff]
  %v21 = vld [vmem:[%s0 + $0x18] sm:$0xff]
  %v22 = vld [vmem:[%s0 + $0x20] sm:$0xff]
  %v23 = vld [vmem:[%s0 + $0x28] sm:$0xff]
  %v24 = vld [vmem:[%s0 + $0x30] sm:$0xff]
  %v25 = vld [vmem:[%s0 + $0x38] sm:$0xff]
  %v26 = vld [vmem:[%s0 + $0x40] sm:$0xff]
  %v27 = vld [vmem:[%s0 + $0x48] sm:$0xff]
  %v28 = vld [vmem:[%s0 + $0x50] sm:$0xff]
  %v29 = vld [vmem:[%s0 + $0x58] sm:$0xff]
  %v30 = vld [vmem:[%s0 + $0x60] sm:$0xff]
  %v31 = vld [vmem:[%s0 + $0x68] sm:$0xff]
  %v32 = vld [vmem:[%s0 + $0x70] sm:$0xff]
  %v33 = vld [vmem:[%s0 + $0x78] sm:$0xff]
  %v34 = vld [vmem:[%s1] sm:$0xf]
  %v35 = vld [vmem:[%s1 + $0x4] sm:$0xf]
  %v36 = vld [vmem:[%s1 + $0x8] sm:$0xf]
  %v37 = vld [vmem:[%s1 + $0xc] sm:$0xf]
  %v38 = vld [vmem:[%s1 + $0x10] sm:$0xf]
  %v39 = vld [vmem:[%s1 + $0x14] sm:$0xf]
  %v40 = vld [vmem:[%s1 + $0x18] sm:$0xf]
  %v41 = vld [vmem:[%s1 + $0x1c] sm:$0xf]
  %v42 = vld [vmem:[%s1 + $0x20] sm:$0xf]
  %v43 = vld [vmem:[%s1 + $0x24] sm:$0xf]
  %v44 = vld [vmem:[%s1 + $0x28] sm:$0xf]
  %v45 = vld [vmem:[%s1 + $0x2c] sm:$0xf]
  %v46 = vld [vmem:[%s1 + $0x30] sm:$0xf]
  %v47 = vld [vmem:[%s1 + $0x34] sm:$0xf]
  %v48 = vld [vmem:[%s1 + $0x38] sm:$0xf]
  %v49 = vld [vmem:[%s1 + $0x3c] sm:$0xf]
  %v50 = vld [vmem:[%s1 + $0x40] sm:$0xf]
  %v51 = vld [vmem:[%s1 + $0x44] sm:$0xf]
  %v68 = vunpack.c.l.b16 %v18
  %v69 = vunpack.c.h.b16 %v18
  %v70 = vunpack.c.l.b16 %v19
  %v71 = vunpack.c.h.b16 %v19
  %v72 = vunpack.c.l.b16 %v20
  %v73 = vunpack.c.h.b16 %v20
  %v74 = vunpack.c.l.b16 %v21
  %v75 = vunpack.c.h.b16 %v21
  %v76 = vunpack.c.l.b16 %v22
  %v77 = vunpack.c.h.b16 %v22
  %v78 = vunpack.c.l.b16 %v23
  %v79 = vunpack.c.h.b16 %v23
  %v80 = vunpack.c.l.b16 %v24
  %v81 = vunpack.c.h.b16 %v24
  %v82 = vunpack.c.l.b16 %v25
  %v83 = vunpack.c.h.b16 %v25
  %v84 = vunpack.c.l.b16 %v26
  %v85 = vunpack.c.h.b16 %v26
  %v86 = vunpack.c.l.b16 %v27
  %v87 = vunpack.c.h.b16 %v27
  %v88 = vunpack.c.l.b16 %v28
  %v89 = vunpack.c.h.b16 %v28
  %v90 = vunpack.c.l.b16 %v29
  %v91 = vunpack.c.h.b16 %v29
  %v92 = vunpack.c.l.b16 %v30
  %v93 = vunpack.c.h.b16 %v30
  %v94 = vunpack.c.l.b16 %v31
  %v95 = vunpack.c.h.b16 %v31
  %v96 = vunpack.c.l.b16 %v32
  %v97 = vunpack.c.h.b16 %v32
  %v98 = vunpack.c.l.b16 %v33
  %v99 = vunpack.c.h.b16 %v33
  %v100 = vpack.c.b16 %v70, %v68
  %v101 = vpack.c.b16 %v71, %v69
  %v102 = vpack.c.b16 %v74, %v72
  %v103 = vpack.c.b16 %v75, %v73
  %v104 = vpack.c.b16 %v78, %v76
  %v105 = vpack.c.b16 %v79, %v77
  %v106 = vpack.c.b16 %v82, %v80
  %v107 = vpack.c.b16 %v83, %v81
  %v108 = vpack.c.b16 %v86, %v84
  %v109 = vpack.c.b16 %v87, %v85
  %v110 = vpack.c.b16 %v90, %v88
  %v111 = vpack.c.b16 %v91, %v89
  %v112 = vpack.c.b16 %v94, %v92
  %v113 = vpack.c.b16 %v95, %v93
  %v114 = vpack.c.b16 %v98, %v96
  %v115 = vpack.c.b16 %v99, %v97
  %v142 = vunpack.c.l.b16 %v34
  %v143 = vunpack.c.l.b16 %v35
  %v144 = vunpack.c.l.b16 %v36
  %v145 = vunpack.c.l.b16 %v37
  %v146 = vunpack.c.l.b16 %v38
  %v147 = vunpack.c.l.b16 %v39
  %v148 = vunpack.c.l.b16 %v40
  %v149 = vunpack.c.l.b16 %v41
  %v150 = vunpack.c.l.b16 %v42
  %v151 = vunpack.c.l.b16 %v43
  %v152 = vunpack.c.l.b16 %v44
  %v153 = vunpack.c.l.b16 %v45
  %v154 = vunpack.c.l.b16 %v46
  %v155 = vunpack.c.l.b16 %v47
  %v156 = vunpack.c.l.b16 %v48
  %v157 = vunpack.c.l.b16 %v49
  %v158 = vunpack.c.l.b16 %v50
  %v159 = vunpack.c.l.b16 %v51
  %v160 = vpack.c.b16 %v143, %v142
  %v161 = vpack.c.b16 %v145, %v144
  %v162 = vpack.c.b16 %v147, %v146
  %v163 = vpack.c.b16 %v149, %v148
  %v164 = vpack.c.b16 %v151, %v150
  %v165 = vpack.c.b16 %v153, %v152
  %v166 = vpack.c.b16 %v155, %v154
  %v167 = vpack.c.b16 %v157, %v156
  %v168 = vpack.c.b16 %v159, %v158
  %vm178 = vcmask 130048
  %v180 = vsel %vm178, %v101, 0
  %v183 = vsel %vm178, %v103, 0
  %v186 = vsel %vm178, %v105, 0
  %v189 = vsel %vm178, %v107, 0
  %v192 = vsel %vm178, %v109, 0
  %v195 = vsel %vm178, %v111, 0
  %v198 = vsel %vm178, %v113, 0
  %v201 = vsel %vm178, %v115, 0
  %203 = vmatpush.bf16.msra.mxu0 %v167
  %204 = vmatpush.bf16.msra.mxu0 %v166
  %205 = vmatpush.bf16.msra.mxu0 %v165
  %206 = vmatpush.bf16.msra.mxu0 %v164
  %207 = vmatpush.bf16.msra.mxu0 %v163
  %208 = vmatpush.bf16.msra.mxu0 %v162
  %209 = vmatpush.bf16.msra.mxu0 %v161
  %210 = vmatpush.bf16.msra.mxu0 %v160
  %211 = vmatmul.bf16.gmra.mxu0 %v100
  %v212 = vpop.f32.mrf.mxu0
  %v213 = vadd.f32 0.0, %v212
  %v214 = vpop.f32.mrf.mxu0
  %v215 = vadd.f32 0.0, %v214
  %216 = vmatmul.bf16.gmra.mxu0 %v102
  %v217 = vpop.f32.mrf.mxu0
  %v218 = vadd.f32 0.0, %v217
  %v219 = vpop.f32.mrf.mxu0
  %v220 = vadd.f32 0.0, %v219
  %221 = vmatmul.bf16.gmra.mxu0 %v104
  %v222 = vpop.f32.mrf.mxu0
  %v223 = vadd.f32 0.0, %v222
  %v224 = vpop.f32.mrf.mxu0
  %v225 = vadd.f32 0.0, %v224
  %226 = vmatmul.bf16.gmra.mxu0 %v106
  %v227 = vpop.f32.mrf.mxu0
  %v228 = vadd.f32 0.0, %v227
  %v229 = vpop.f32.mrf.mxu0
  %v230 = vadd.f32 0.0, %v229
  %231 = vmatmul.bf16.gmra.mxu0 %v108
  %v232 = vpop.f32.mrf.mxu0
  %v233 = vadd.f32 0.0, %v232
  %v234 = vpop.f32.mrf.mxu0
  %v235 = vadd.f32 0.0, %v234
  %236 = vmatmul.bf16.gmra.mxu0 %v110
  %v237 = vpop.f32.mrf.mxu0
  %v238 = vadd.f32 0.0, %v237
  %v239 = vpop.f32.mrf.mxu0
  %v240 = vadd.f32 0.0, %v239
  %241 = vmatmul.bf16.gmra.mxu0 %v112
  %v242 = vpop.f32.mrf.mxu0
  %v243 = vadd.f32 0.0, %v242
  %v244 = vpop.f32.mrf.mxu0
  %v245 = vadd.f32 0.0, %v244
  %246 = vmatmul.bf16.gmra.mxu0 %v114
  %v247 = vpop.f32.mrf.mxu0
  %v248 = vadd.f32 0.0, %v247
  %v249 = vpop.f32.mrf.mxu0
  %v250 = vadd.f32 0.0, %v249
  %251 = vdwg.mxu0
  %252 = vmatpush.bf16.msra.mxu0 0
  %253 = vmatpush.bf16.msra.mxu0 0
  %254 = vmatpush.bf16.msra.mxu0 0
  %255 = vmatpush.bf16.msra.mxu0 0
  %256 = vmatpush.bf16.msra.mxu0 0
  %257 = vmatpush.bf16.msra.mxu0 0
  %258 = vmatpush.bf16.msra.mxu0 0
  %259 = vmatpush.bf16.msra.mxu0 %v168
  %260 = vmatmul.bf16.gmra.mxu0 %v180
  %v261 = vpop.f32.mrf.mxu0
  %v262 = vadd.f32 %v213, %v261
  %v263 = vpop.f32.mrf.mxu0
  %v264 = vadd.f32 %v215, %v263
  %265 = vmatmul.bf16.gmra.mxu0 %v183
  %v266 = vpop.f32.mrf.mxu0
  %v267 = vadd.f32 %v218, %v266
  %v268 = vpop.f32.mrf.mxu0
  %v269 = vadd.f32 %v220, %v268
  %270 = vmatmul.bf16.gmra.mxu0 %v186
  %v271 = vpop.f32.mrf.mxu0
  %v272 = vadd.f32 %v223, %v271
  %v273 = vpop.f32.mrf.mxu0
  %v274 = vadd.f32 %v225, %v273
  %275 = vmatmul.bf16.gmra.mxu0 %v189
  %v276 = vpop.f32.mrf.mxu0
  %v277 = vadd.f32 %v228, %v276
  %v278 = vpop.f32.mrf.mxu0
  %v279 = vadd.f32 %v230, %v278
  %280 = vmatmul.bf16.gmra.mxu0 %v192
  %v281 = vpop.f32.mrf.mxu0
  %v282 = vadd.f32 %v233, %v281
  %v283 = vpop.f32.mrf.mxu0
  %v284 = vadd.f32 %v235, %v283
  %285 = vmatmul.bf16.gmra.mxu0 %v195
  %v286 = vpop.f32.mrf.mxu0
  %v287 = vadd.f32 %v238, %v286
  %v288 = vpop.f32.mrf.mxu0
  %v289 = vadd.f32 %v240, %v288
  %290 = vmatmul.bf16.gmra.mxu0 %v198
  %v291 = vpop.f32.mrf.mxu0
  %v292 = vadd.f32 %v243, %v291
  %v293 = vpop.f32.mrf.mxu0
  %v294 = vadd.f32 %v245, %v293
  %295 = vmatmul.bf16.gmra.mxu0 %v201
  %v296 = vpop.f32.mrf.mxu0
  %v297 = vadd.f32 %v248, %v296
  %v298 = vpop.f32.mrf.mxu0
  %v299 = vadd.f32 %v250, %v298
  %300 = vdwg.mxu0
  %v301 = vld [vmem:[%s2] sm:$0x1]
  %v302 = vld [vmem:[%s3] sm:$0x1]
  %vm303 = vcmask 261120
  %v304 = vsel %vm303, %v262, 0.0
  %v305 = vsel %vm303, %v264, 0.0
  %v306 = vadd.f32 %v304, %v305
  %v307 = vsel %vm303, %v267, 0.0
  %v308 = vadd.f32 %v306, %v307
  %v309 = vsel %vm303, %v269, 0.0
  %v310 = vadd.f32 %v308, %v309
  %v311 = vsel %vm303, %v272, 0.0
  %v312 = vadd.f32 %v310, %v311
  %v313 = vsel %vm303, %v274, 0.0
  %v314 = vadd.f32 %v312, %v313
  %v315 = vsel %vm303, %v277, 0.0
  %v316 = vadd.f32 %v314, %v315
  %v317 = vsel %vm303, %v279, 0.0
  %v318 = vadd.f32 %v316, %v317
  %v319 = vsel %vm303, %v282, 0.0
  %v320 = vadd.f32 %v318, %v319
  %v321 = vsel %vm303, %v284, 0.0
  %v322 = vadd.f32 %v320, %v321
  %v323 = vsel %vm303, %v287, 0.0
  %v324 = vadd.f32 %v322, %v323
  %v325 = vsel %vm303, %v289, 0.0
  %v326 = vadd.f32 %v324, %v325
  %v327 = vsel %vm303, %v292, 0.0
  %v328 = vadd.f32 %v326, %v327
  %v329 = vsel %vm303, %v294, 0.0
  %v330 = vadd.f32 %v328, %v329
  %v331 = vsel %vm303, %v297, 0.0
  %v332 = vadd.f32 %v330, %v331
  %v333 = vsel %vm303, %v299, 0.0
  %v334 = vadd.f32 %v332, %v333
  %v335 = vrot.slane %v334, 4
  %v336 = vadd.f32 %v334, %v335
  %v337 = vrot.slane %v336, 2
  %v338 = vadd.f32 %v336, %v337
  %v339 = vrot.slane %v338, 1
  %v340 = vadd.f32 %v338, %v339
  %v341 = vrcp.pop 128.0
  %v342 = vmul.f32 128.0, %v341
  %v343 = vsub.f32 1.0, %v342
  %v344 = vmul.f32 %v341, %v343
  %v345 = vadd.f32 %v341, %v344
  %vm346 = vweird.f32 %v341
  %v347 = vsel %vm346, %v341, %v345
  %v348 = vmul.f32 %v340, %v347
  %v349 = vsub.f32 %v262, %v348
  %v350 = vsub.f32 %v264, %v348
  %v351 = vsub.f32 %v267, %v348
  %v352 = vsub.f32 %v269, %v348
  %v353 = vsub.f32 %v272, %v348
  %v354 = vsub.f32 %v274, %v348
  %v355 = vsub.f32 %v277, %v348
  %v356 = vsub.f32 %v279, %v348
  %v357 = vsub.f32 %v282, %v348
  %v358 = vsub.f32 %v284, %v348
  %v359 = vsub.f32 %v287, %v348
  %v360 = vsub.f32 %v289, %v348
  %v361 = vsub.f32 %v292, %v348
  %v362 = vsub.f32 %v294, %v348
  %v363 = vsub.f32 %v297, %v348
  %v364 = vsub.f32 %v299, %v348
  %v365 = vmul.f32 %v349, %v349
  %v366 = vmul.f32 %v350, %v350
  %v367 = vmul.f32 %v351, %v351
  %v368 = vmul.f32 %v352, %v352
  %v369 = vmul.f32 %v353, %v353
  %v370 = vmul.f32 %v354, %v354
  %v371 = vmul.f32 %v355, %v355
  %v372 = vmul.f32 %v356, %v356
  %v373 = vmul.f32 %v357, %v357
  %v374 = vmul.f32 %v358, %v358
  %v375 = vmul.f32 %v359, %v359
  %v376 = vmul.f32 %v360, %v360
  %v377 = vmul.f32 %v361, %v361
  %v378 = vmul.f32 %v362, %v362
  %v379 = vmul.f32 %v363, %v363
  %v380 = vmul.f32 %v364, %v364
  %v381 = vsel %vm303, %v365, 0.0
  %v382 = vsel %vm303, %v366, 0.0
  %v383 = vadd.f32 %v381, %v382
  %v384 = vsel %vm303, %v367, 0.0
  %v385 = vadd.f32 %v383, %v384
  %v386 = vsel %vm303, %v368, 0.0
  %v387 = vadd.f32 %v385, %v386
  %v388 = vsel %vm303, %v369, 0.0
  %v389 = vadd.f32 %v387, %v388
  %v390 = vsel %vm303, %v370, 0.0
  %v391 = vadd.f32 %v389, %v390
  %v392 = vsel %vm303, %v371, 0.0
  %v393 = vadd.f32 %v391, %v392
  %v394 = vsel %vm303, %v372, 0.0
  %v395 = vadd.f32 %v393, %v394
  %v396 = vsel %vm303, %v373, 0.0
  %v397 = vadd.f32 %v395, %v396
  %v398 = vsel %vm303, %v374, 0.0
  %v399 = vadd.f32 %v397, %v398
  %v400 = vsel %vm303, %v375, 0.0
  %v401 = vadd.f32 %v399, %v400
  %v402 = vsel %vm303, %v376, 0.0
  %v403 = vadd.f32 %v401, %v402
  %v404 = vsel %vm303, %v377, 0.0
  %v405 = vadd.f32 %v403, %v404
  %v406 = vsel %vm303, %v378, 0.0
  %v407 = vadd.f32 %v405, %v406
  %v408 = vsel %vm303, %v379, 0.0
  %v409 = vadd.f32 %v407, %v408
  %v410 = vsel %vm303, %v380, 0.0
  %v411 = vadd.f32 %v409, %v410
  %v412 = vrot.slane %v411, 4
  %v413 = vadd.f32 %v411, %v412
  %v414 = vrot.slane %v413, 2
  %v415 = vadd.f32 %v413, %v414
  %v416 = vrot.slane %v415, 1
  %v417 = vadd.f32 %v415, %v416
  %v418 = vmul.f32 %v417, %v347
  %v419 = vadd.f32 %v418, 1e-05
  %v420 = vrsqrt.pop %v419
  %v421 = vmul.f32 %v420, %v419
  %v422 = vmul.f32 %v421, %v420
  %v423 = vmul.f32 0.5, %v422
  %v424 = vsub.f32 1.5, %v423
  %v425 = vmul.f32 %v420, %v424
  %vm426 = vweird.f32 %v419
  %vm427 = vweird.f32 %v420
  %vm428 = vmor %vm426, %vm427
  %v429 = vsel %vm428, %v420, %v425
  %v430 = vmul.f32 %v349, %v429
  %v431 = vmul.f32 %v350, %v429
  %v432 = vmul.f32 %v351, %v429
  %v433 = vmul.f32 %v352, %v429
  %v434 = vmul.f32 %v353, %v429
  %v435 = vmul.f32 %v354, %v429
  %v436 = vmul.f32 %v355, %v429
  %v437 = vmul.f32 %v356, %v429
  %v438 = vmul.f32 %v357, %v429
  %v439 = vmul.f32 %v358, %v429
  %v440 = vmul.f32 %v359, %v429
  %v441 = vmul.f32 %v360, %v429
  %v442 = vmul.f32 %v361, %v429
  %v443 = vmul.f32 %v362, %v429
  %v444 = vmul.f32 %v363, %v429
  %v445 = vmul.f32 %v364, %v429
  %v447 = vperm.slane %v301, 0
  %v449 = vmul.f32 %v430, %v447
  %v450 = vmul.f32 %v431, %v447
  %v451 = vmul.f32 %v432, %v447
  %v452 = vmul.f32 %v433, %v447
  %v453 = vmul.f32 %v434, %v447
  %v454 = vmul.f32 %v435, %v447
  %v455 = vmul.f32 %v436, %v447
  %v456 = vmul.f32 %v437, %v447
  %v457 = vmul.f32 %v438, %v447
  %v458 = vmul.f32 %v439, %v447
  %v459 = vmul.f32 %v440, %v447
  %v460 = vmul.f32 %v441, %v447
  %v461 = vmul.f32 %v442, %v447
  %v462 = vmul.f32 %v443, %v447
  %v463 = vmul.f32 %v444, %v447
  %v464 = vmul.f32 %v445, %v447
  %v466 = vperm.slane %v302, 0
  %v468 = vadd.f32 %v449, %v466
  %v469 = vadd.f32 %v450, %v466
  %v470 = vadd.f32 %v451, %v466
  %v471 = vadd.f32 %v452, %v466
  %v472 = vadd.f32 %v453, %v466
  %v473 = vadd.f32 %v454, %v466
  %v474 = vadd.f32 %v455, %v466
  %v475 = vadd.f32 %v456, %v466
  %v476 = vadd.f32 %v457, %v466
  %v477 = vadd.f32 %v458, %v466
  %v478 = vadd.f32 %v459, %v466
  %v479 = vadd.f32 %v460, %v466
  %v480 = vadd.f32 %v461, %v466
  %v481 = vadd.f32 %v462, %v466
  %v482 = vadd.f32 %v463, %v466
  %v483 = vadd.f32 %v464, %v466
  %vm484 = vcmp.ge.f32.partialorder %v468, 0.0
  %vm485 = vcmp.ge.f32.partialorder %v469, 0.0
  %vm486 = vcmp.ge.f32.partialorder %v470, 0.0
  %vm487 = vcmp.ge.f32.partialorder %v471, 0.0
  %vm488 = vcmp.ge.f32.partialorder %v472, 0.0
  %vm489 = vcmp.ge.f32.partialorder %v473, 0.0
  %vm490 = vcmp.ge.f32.partialorder %v474, 0.0
  %vm491 = vcmp.ge.f32.partialorder %v475, 0.0
  %vm492 = vcmp.ge.f32.partialorder %v476, 0.0
  %vm493 = vcmp.ge.f32.partialorder %v477, 0.0
  %vm494 = vcmp.ge.f32.partialorder %v478, 0.0
  %vm495 = vcmp.ge.f32.partialorder %v479, 0.0
  %vm496 = vcmp.ge.f32.partialorder %v480, 0.0
  %vm497 = vcmp.ge.f32.partialorder %v481, 0.0
  %vm498 = vcmp.ge.f32.partialorder %v482, 0.0
  %vm499 = vcmp.ge.f32.partialorder %v483, 0.0
  %v500 = vmul.f32 %v468, 0.01
  %v501 = vmul.f32 %v469, 0.01
  %v502 = vmul.f32 %v470, 0.01
  %v503 = vmul.f32 %v471, 0.01
  %v504 = vmul.f32 %v472, 0.01
  %v505 = vmul.f32 %v473, 0.01
  %v506 = vmul.f32 %v474, 0.01
  %v507 = vmul.f32 %v475, 0.01
  %v508 = vmul.f32 %v476, 0.01
  %v509 = vmul.f32 %v477, 0.01
  %v510 = vmul.f32 %v478, 0.01
  %v511 = vmul.f32 %v479, 0.01
  %v512 = vmul.f32 %v480, 0.01
  %v513 = vmul.f32 %v481, 0.01
  %v514 = vmul.f32 %v482, 0.01
  %v515 = vmul.f32 %v483, 0.01
  %v516 = vsel %vm484, %v468, %v500
  %v517 = vsel %vm485, %v469, %v501
  %v518 = vsel %vm486, %v470, %v502
  %v519 = vsel %vm487, %v471, %v503
  %v520 = vsel %vm488, %v472, %v504
  %v521 = vsel %vm489, %v473, %v505
  %v522 = vsel %vm490, %v474, %v506
  %v523 = vsel %vm491, %v475, %v507
  %v524 = vsel %vm492, %v476, %v508
  %v525 = vsel %vm493, %v477, %v509
  %v526 = vsel %vm494, %v478, %v510
  %v527 = vsel %vm495, %v479, %v511
  %v528 = vsel %vm496, %v480, %v512
  %v529 = vsel %vm497, %v481, %v513
  %v530 = vsel %vm498, %v482, %v514
  %v531 = vsel %vm499, %v483, %v515
  %532 = vst.msk [vmem:[%s4] sm:$0xff] %vm303, %v516
  %533 = vst.msk [vmem:[%s4 + $0x8] sm:$0xff] %vm303, %v517
  %534 = vst.msk [vmem:[%s4 + $0x10] sm:$0xff] %vm303, %v518
  %535 = vst.msk [vmem:[%s4 + $0x18] sm:$0xff] %vm303, %v519
  %536 = vst.msk [vmem:[%s4 + $0x20] sm:$0xff] %vm303, %v520
  %537 = vst.msk [vmem:[%s4 + $0x28] sm:$0xff] %vm303, %v521
  %538 = vst.msk [vmem:[%s4 + $0x30] sm:$0xff] %vm303, %v522
  %539 = vst.msk [vmem:[%s4 + $0x38] sm:$0xff] %vm303, %v523
  %540 = vst.msk [vmem:[%s4 + $0x40] sm:$0xff] %vm303, %v524
  %541 = vst.msk [vmem:[%s4 + $0x48] sm:$0xff] %vm303, %v525
  %542 = vst.msk [vmem:[%s4 + $0x50] sm:$0xff] %vm303, %v526
  %543 = vst.msk [vmem:[%s4 + $0x58] sm:$0xff] %vm303, %v527
  %544 = vst.msk [vmem:[%s4 + $0x60] sm:$0xff] %vm303, %v528
  %545 = vst.msk [vmem:[%s4 + $0x68] sm:$0xff] %vm303, %v529
  %546 = vst.msk [vmem:[%s4 + $0x70] sm:$0xff] %vm303, %v530
  %547 = vst.msk [vmem:[%s4 + $0x78] sm:$0xff] %vm303, %v531
  // Predicated region
  $region18: #{_lambda_.8} parent=0 // pred_check
    _
  $region19: #{_lambda_.8} parent=0 // pred_check_branch
    %549 = sbr.rel (0) target = $region21
  $region20: #{_lambda_.8} parent=0 // pred_region
    _
  $region21: #{_lambda_.8} parent=0 // pred_fallthru
    _
  // Predicated region
  $region22: #{_lambda_.8} parent=0 // pred_check
    _
  $region23: #{_lambda_.8} parent=0 // pred_check_branch
    %551 = sbr.rel (0) target = $region25
  $region24: #{_lambda_.8} parent=0 // pred_region
    _
  $region25: #{_lambda_.8} parent=0 // pred_fallthru
    _

// kernel: _lambda_.9
$region0: #{_lambda_.9}
  #allocation0 [shape = 'u32[]', space=smem, size = 0x4, offset = 0x4, fixed_abs, tag = 'smem constant byte address 0x4 - core index']
  #allocation1 [shape = 'u32[72,128]{1,0:T(1,128)}', space=vmem, size = 0x9000, scoped, tag = 'internal scratch']
  %s0 = inlined_call_operand.vmem [shape: bf16[32,288], index: 0, kind: input, shape index: {}]
  %s1 = inlined_call_operand.vmem [shape: bf16[288,64], index: 1, kind: input, shape index: {}]
  %s2 = inlined_call_operand.vmem [shape: f32[1,64], index: 2, kind: input, shape index: {}]
  %s3 = inlined_call_operand.vmem [shape: f32[1,64], index: 3, kind: input, shape index: {}]
  %s4 = inlined_call_operand.vmem [shape: f32[32,64], index: 4, kind: output, shape index: {}]
  %s5 = sld [smem:[#allocation0]]
  $region26: #{_lambda_.9} parent=0
    _
  %s7 = ssub.s32 1, %s5
  %s8 = scalar_select 0, %s7, %s5
  // Predicated region
  $region2: #{_lambda_.9} parent=0 // pred_check
    _
  $region3: #{_lambda_.9} parent=0 // pred_check_branch
    %10 = sbr.rel (0) target = $region5
  $region4: #{_lambda_.9} parent=0 // pred_region
    _
  $region5: #{_lambda_.9} parent=0 // pred_fallthru
    _
  // Predicated region
  $region6: #{_lambda_.9} parent=0 // pred_check
    _
  $region7: #{_lambda_.9} parent=0 // pred_check_branch
    %12 = sbr.rel (0) target = $region9
  $region8: #{_lambda_.9} parent=0 // pred_region
    _
  $region9: #{_lambda_.9} parent=0 // pred_fallthru
    _
  // Predicated region
  $region10: #{_lambda_.9} parent=0 // pred_check
    _
  $region11: #{_lambda_.9} parent=0 // pred_check_branch
    %14 = sbr.rel (0) target = $region13
  $region12: #{_lambda_.9} parent=0 // pred_region
    _
  $region13: #{_lambda_.9} parent=0 // pred_fallthru
    _
  // Predicated region
  $region14: #{_lambda_.9} parent=0 // pred_check
    _
  $region15: #{_lambda_.9} parent=0 // pred_check_branch
    %16 = sbr.rel (0) target = $region17
  $region16: #{_lambda_.9} parent=0 // pred_region
    _
  $region17: #{_lambda_.9} parent=0 // pred_fallthru
    _
  %v18 = vld [vmem:[%s0] sm:$0xff]
  %v19 = vld [vmem:[%s0 + $0x8] sm:$0xf]
  %v20 = vld [vmem:[%s0 + $0xc] sm:$0xff]
  %v21 = vld [vmem:[%s0 + $0x14] sm:$0xf]
  %v22 = vld [vmem:[%s0 + $0x18] sm:$0xff]
  %v23 = vld [vmem:[%s0 + $0x20] sm:$0xf]
  %v24 = vld [vmem:[%s0 + $0x24] sm:$0xff]
  %v25 = vld [vmem:[%s0 + $0x2c] sm:$0xf]
  %v26 = vld [vmem:[%s1] sm:$0xf]
  %v27 = vld [vmem:[%s1 + $0x4] sm:$0xf]
  %v28 = vld [vmem:[%s1 + $0x8] sm:$0xf]
  %v29 = vld [vmem:[%s1 + $0xc] sm:$0xf]
  %v30 = vld [vmem:[%s1 + $0x10] sm:$0xf]
  %v31 = vld [vmem:[%s1 + $0x14] sm:$0xf]
  %v32 = vld [vmem:[%s1 + $0x18] sm:$0xf]
  %v33 = vld [vmem:[%s1 + $0x1c] sm:$0xf]
  %v34 = vld [vmem:[%s1 + $0x20] sm:$0xf]
  %v35 = vld [vmem:[%s1 + $0x24] sm:$0xf]
  %v36 = vld [vmem:[%s1 + $0x28] sm:$0xf]
  %v37 = vld [vmem:[%s1 + $0x2c] sm:$0xf]
  %v38 = vld [vmem:[%s1 + $0x30] sm:$0xf]
  %v39 = vld [vmem:[%s1 + $0x34] sm:$0xf]
  %v40 = vld [vmem:[%s1 + $0x38] sm:$0xf]
  %v41 = vld [vmem:[%s1 + $0x3c] sm:$0xf]
  %v42 = vld [vmem:[%s1 + $0x40] sm:$0xf]
  %v43 = vld [vmem:[%s1 + $0x44] sm:$0xf]
  %v44 = vld [vmem:[%s1 + $0x48] sm:$0xf]
  %v45 = vld [vmem:[%s1 + $0x4c] sm:$0xf]
  %v46 = vld [vmem:[%s1 + $0x50] sm:$0xf]
  %v47 = vld [vmem:[%s1 + $0x54] sm:$0xf]
  %v48 = vld [vmem:[%s1 + $0x58] sm:$0xf]
  %v49 = vld [vmem:[%s1 + $0x5c] sm:$0xf]
  %v50 = vld [vmem:[%s1 + $0x60] sm:$0xf]
  %v51 = vld [vmem:[%s1 + $0x64] sm:$0xf]
  %v52 = vld [vmem:[%s1 + $0x68] sm:$0xf]
  %v53 = vld [vmem:[%s1 + $0x6c] sm:$0xf]
  %v54 = vld [vmem:[%s1 + $0x70] sm:$0xf]
  %v55 = vld [vmem:[%s1 + $0x74] sm:$0xf]
  %v56 = vld [vmem:[%s1 + $0x78] sm:$0xf]
  %v57 = vld [vmem:[%s1 + $0x7c] sm:$0xf]
  %v58 = vld [vmem:[%s1 + $0x80] sm:$0xf]
  %v59 = vld [vmem:[%s1 + $0x84] sm:$0xf]
  %v60 = vld [vmem:[%s1 + $0x88] sm:$0xf]
  %v61 = vld [vmem:[%s1 + $0x8c] sm:$0xf]
  %v70 = vunpack.c.l.b16 %v18
  %v71 = vunpack.c.h.b16 %v18
  %v72 = vunpack.c.l.b16 %v19
  %v73 = vunpack.c.l.b16 %v20
  %v74 = vunpack.c.h.b16 %v20
  %v75 = vunpack.c.l.b16 %v21
  %v76 = vunpack.c.l.b16 %v22
  %v77 = vunpack.c.h.b16 %v22
  %v78 = vunpack.c.l.b16 %v23
  %v79 = vunpack.c.l.b16 %v24
  %v80 = vunpack.c.h.b16 %v24
  %v81 = vunpack.c.l.b16 %v25
  %v82 = vpack.c.b16 %v73, %v70
  %v83 = vpack.c.b16 %v74, %v71
  %v84 = vpack.c.b16 %v75, %v72
  %v85 = vpack.c.b16 %v79, %v76
  %v86 = vpack.c.b16 %v80, %v77
  %v87 = vpack.c.b16 %v81, %v78
  %v128 = vunpack.c.l.b16 %v26
  %v129 = vunpack.c.l.b16 %v27
  %v130 = vunpack.c.l.b16 %v28
  %v131 = vunpack.c.l.b16 %v29
  %v132 = vunpack.c.l.b16 %v30
  %v133 = vunpack.c.l.b16 %v31
  %v134 = vunpack.c.l.b16 %v32
  %v135 = vunpack.c.l.b16 %v33
  %v136 = vunpack.c.l.b16 %v34
  %v137 = vunpack.c.l.b16 %v35
  %v138 = vunpack.c.l.b16 %v36
  %v139 = vunpack.c.l.b16 %v37
  %v140 = vunpack.c.l.b16 %v38
  %v141 = vunpack.c.l.b16 %v39
  %v142 = vunpack.c.l.b16 %v40
  %v143 = vunpack.c.l.b16 %v41
  %v144 = vunpack.c.l.b16 %v42
  %v145 = vunpack.c.l.b16 %v43
  %v146 = vunpack.c.l.b16 %v44
  %v147 = vunpack.c.l.b16 %v45
  %v148 = vunpack.c.l.b16 %v46
  %v149 = vunpack.c.l.b16 %v47
  %v150 = vunpack.c.l.b16 %v48
  %v151 = vunpack.c.l.b16 %v49
  %v152 = vunpack.c.l.b16 %v50
  %v153 = vunpack.c.l.b16 %v51
  %v154 = vunpack.c.l.b16 %v52
  %v155 = vunpack.c.l.b16 %v53
  %v156 = vunpack.c.l.b16 %v54
  %v157 = vunpack.c.l.b16 %v55
  %v158 = vunpack.c.l.b16 %v56
  %v159 = vunpack.c.l.b16 %v57
  %v160 = vunpack.c.l.b16 %v58
  %v161 = vunpack.c.l.b16 %v59
  %v162 = vunpack.c.l.b16 %v60
  %v163 = vunpack.c.l.b16 %v61
  %v164 = vpack.c.b16 %v129, %v128
  %v165 = vpack.c.b16 %v131, %v130
  %v166 = vpack.c.b16 %v133, %v132
  %v167 = vpack.c.b16 %v135, %v134
  %v168 = vpack.c.b16 %v137, %v136
  %v169 = vpack.c.b16 %v139, %v138
  %v170 = vpack.c.b16 %v141, %v140
  %v171 = vpack.c.b16 %v143, %v142
  %v172 = vpack.c.b16 %v145, %v144
  %v173 = vpack.c.b16 %v147, %v146
  %v174 = vpack.c.b16 %v149, %v148
  %v175 = vpack.c.b16 %v151, %v150
  %v176 = vpack.c.b16 %v153, %v152
  %v177 = vpack.c.b16 %v155, %v154
  %v178 = vpack.c.b16 %v157, %v156
  %v179 = vpack.c.b16 %v159, %v158
  %v180 = vpack.c.b16 %v161, %v160
  %v181 = vpack.c.b16 %v163, %v162
  %vm200 = vcmask 261120
  %v202 = vsel %vm200, %v84, 0
  %v205 = vsel %vm200, %v87, 0
  %207 = vmatpush.bf16.msra.mxu0 %v171
  %208 = vmatpush.bf16.msra.mxu0 %v170
  %209 = vmatpush.bf16.msra.mxu0 %v169
  %210 = vmatpush.bf16.msra.mxu0 %v168
  %211 = vmatpush.bf16.msra.mxu0 %v167
  %212 = vmatpush.bf16.msra.mxu0 %v166
  %213 = vmatpush.bf16.msra.mxu0 %v165
  %214 = vmatpush.bf16.msra.mxu0 %v164
  %215 = vmatmul.bf16.gmra.mxu0 %v82
  %v216 = vpop.f32.mrf.mxu0
  %v217 = vadd.f32 0.0, %v216
  %v218 = vpop.f32.mrf.mxu0
  %v219 = vadd.f32 0.0, %v218
  %220 = vmatmul.bf16.gmra.mxu0 %v85
  %v221 = vpop.f32.mrf.mxu0
  %v222 = vadd.f32 0.0, %v221
  %v223 = vpop.f32.mrf.mxu0
  %v224 = vadd.f32 0.0, %v223
  %225 = vdwg.mxu0
  %226 = vmatpush.bf16.msra.mxu0 %v179
  %227 = vmatpush.bf16.msra.mxu0 %v178
  %228 = vmatpush.bf16.msra.mxu0 %v177
  %229 = vmatpush.bf16.msra.mxu0 %v176
  %230 = vmatpush.bf16.msra.mxu0 %v175
  %231 = vmatpush.bf16.msra.mxu0 %v174
  %232 = vmatpush.bf16.msra.mxu0 %v173
  %233 = vmatpush.bf16.msra.mxu0 %v172
  %234 = vmatmul.bf16.gmra.mxu0 %v83
  %v235 = vpop.f32.mrf.mxu0
  %v236 = vadd.f32 %v217, %v235
  %v237 = vpop.f32.mrf.mxu0
  %v238 = vadd.f32 %v219, %v237
  %239 = vmatmul.bf16.gmra.mxu0 %v86
  %v240 = vpop.f32.mrf.mxu0
  %v241 = vadd.f32 %v222, %v240
  %v242 = vpop.f32.mrf.mxu0
  %v243 = vadd.f32 %v224, %v242
  %244 = vdwg.mxu0
  %245 = vmatpush.bf16.msra.mxu0 0
  %246 = vmatpush.bf16.msra.mxu0 0
  %247 = vmatpush.bf16.msra.mxu0 0
  %248 = vmatpush.bf16.msra.mxu0 0
  %249 = vmatpush.bf16.msra.mxu0 0
  %250 = vmatpush.bf16.msra.mxu0 0
  %251 = vmatpush.bf16.msra.mxu0 %v181
  %252 = vmatpush.bf16.msra.mxu0 %v180
  %253 = vmatmul.bf16.gmra.mxu0 %v202
  %v254 = vpop.f32.mrf.mxu0
  %v255 = vadd.f32 %v236, %v254
  %v256 = vpop.f32.mrf.mxu0
  %v257 = vadd.f32 %v238, %v256
  %258 = vmatmul.bf16.gmra.mxu0 %v205
  %v259 = vpop.f32.mrf.mxu0
  %v260 = vadd.f32 %v241, %v259
  %v261 = vpop.f32.mrf.mxu0
  %v262 = vadd.f32 %v243, %v261
  %263 = vdwg.mxu0
  %v264 = vld [vmem:[%s2] sm:$0x1]
  %v265 = vld [vmem:[%s3] sm:$0x1]
  %vm266 = vcmask 523264
  %v267 = vsel %vm266, %v255, 0.0
  %v268 = vsel %vm266, %v257, 0.0
  %v269 = vadd.f32 %v267, %v268
  %v270 = vsel %vm266, %v260, 0.0
  %v271 = vadd.f32 %v269, %v270
  %v272 = vsel %vm266, %v262, 0.0
  %v273 = vadd.f32 %v271, %v272
  %v274 = vrot.slane %v273, 4
  %v275 = vadd.f32 %v273, %v274
  %v276 = vrot.slane %v275, 2
  %v277 = vadd.f32 %v275, %v276
  %v278 = vrot.slane %v277, 1
  %v279 = vadd.f32 %v277, %v278
  %v280 = vrcp.pop 32.0
  %v281 = vmul.f32 32.0, %v280
  %v282 = vsub.f32 1.0, %v281
  %v283 = vmul.f32 %v280, %v282
  %v284 = vadd.f32 %v280, %v283
  %vm285 = vweird.f32 %v280
  %v286 = vsel %vm285, %v280, %v284
  %v287 = vmul.f32 %v279, %v286
  %v288 = vsub.f32 %v255, %v287
  %v289 = vsub.f32 %v257, %v287
  %v290 = vsub.f32 %v260, %v287
  %v291 = vsub.f32 %v262, %v287
  %v292 = vmul.f32 %v288, %v288
  %v293 = vmul.f32 %v289, %v289
  %v294 = vmul.f32 %v290, %v290
  %v295 = vmul.f32 %v291, %v291
  %v296 = vsel %vm266, %v292, 0.0
  %v297 = vsel %vm266, %v293, 0.0
  %v298 = vadd.f32 %v296, %v297
  %v299 = vsel %vm266, %v294, 0.0
  %v300 = vadd.f32 %v298, %v299
  %v301 = vsel %vm266, %v295, 0.0
  %v302 = vadd.f32 %v300, %v301
  %v303 = vrot.slane %v302, 4
  %v304 = vadd.f32 %v302, %v303
  %v305 = vrot.slane %v304, 2
  %v306 = vadd.f32 %v304, %v305
  %v307 = vrot.slane %v306, 1
  %v308 = vadd.f32 %v306, %v307
  %v309 = vmul.f32 %v308, %v286
  %v310 = vadd.f32 %v309, 1e-05
  %v311 = vrsqrt.pop %v310
  %v312 = vmul.f32 %v311, %v310
  %v313 = vmul.f32 %v312, %v311
  %v314 = vmul.f32 0.5, %v313
  %v315 = vsub.f32 1.5, %v314
  %v316 = vmul.f32 %v311, %v315
  %vm317 = vweird.f32 %v310
  %vm318 = vweird.f32 %v311
  %vm319 = vmor %vm317, %vm318
  %v320 = vsel %vm319, %v311, %v316
  %v321 = vmul.f32 %v288, %v320
  %v322 = vmul.f32 %v289, %v320
  %v323 = vmul.f32 %v290, %v320
  %v324 = vmul.f32 %v291, %v320
  %v326 = vperm.slane %v264, 0
  %v328 = vmul.f32 %v321, %v326
  %v329 = vmul.f32 %v322, %v326
  %v330 = vmul.f32 %v323, %v326
  %v331 = vmul.f32 %v324, %v326
  %v333 = vperm.slane %v265, 0
  %v335 = vadd.f32 %v328, %v333
  %v336 = vadd.f32 %v329, %v333
  %v337 = vadd.f32 %v330, %v333
  %v338 = vadd.f32 %v331, %v333
  %vm339 = vcmp.ge.f32.partialorder %v335, 0.0
  %vm340 = vcmp.ge.f32.partialorder %v336, 0.0
  %vm341 = vcmp.ge.f32.partialorder %v337, 0.0
  %vm342 = vcmp.ge.f32.partialorder %v338, 0.0
  %v343 = vmul.f32 %v335, 0.01
  %v344 = vmul.f32 %v336, 0.01
  %v345 = vmul.f32 %v337, 0.01
  %v346 = vmul.f32 %v338, 0.01
  %v347 = vsel %vm339, %v335, %v343
  %v348 = vsel %vm340, %v336, %v344
  %v349 = vsel %vm341, %v337, %v345
  %v350 = vsel %vm342, %v338, %v346
  %351 = vst.msk [vmem:[%s4] sm:$0xff] %vm266, %v347
  %352 = vst.msk [vmem:[%s4 + $0x8] sm:$0xff] %vm266, %v348
  %353 = vst.msk [vmem:[%s4 + $0x10] sm:$0xff] %vm266, %v349
  %354 = vst.msk [vmem:[%s4 + $0x18] sm:$0xff] %vm266, %v350
  // Predicated region
  $region18: #{_lambda_.9} parent=0 // pred_check
    _
  $region19: #{_lambda_.9} parent=0 // pred_check_branch
    %356 = sbr.rel (0) target = $region21
  $region20: #{_lambda_.9} parent=0 // pred_region
    _
  $region21: #{_lambda_.9} parent=0 // pred_fallthru
    _
  // Predicated region
  $region22: #{_lambda_.9} parent=0 // pred_check
    _
  $region23: #{_lambda_.9} parent=0 // pred_check_branch
    %358 = sbr.rel (0) target = $region25
  $region24: #{_lambda_.9} parent=0 // pred_region
    _
  $region25: #{_lambda_.9} parent=0 // pred_fallthru
    _

// kernel: _lambda_.10
$region0: #{_lambda_.10}
  #allocation0 [shape = 'u32[]', space=smem, size = 0x4, offset = 0x4, fixed_abs, tag = 'smem constant byte address 0x4 - core index']
  #allocation1 [shape = 'u32[72,128]{1,0:T(1,128)}', space=vmem, size = 0x9000, scoped, tag = 'internal scratch']
  %s0 = inlined_call_operand.vmem [shape: bf16[8,576], index: 0, kind: input, shape index: {}]
  %s1 = inlined_call_operand.vmem [shape: bf16[576,128], index: 1, kind: input, shape index: {}]
  %s2 = inlined_call_operand.vmem [shape: f32[1,128], index: 2, kind: input, shape index: {}]
  %s3 = inlined_call_operand.vmem [shape: f32[1,128], index: 3, kind: input, shape index: {}]
  %s4 = inlined_call_operand.vmem [shape: f32[8,128], index: 4, kind: output, shape index: {}]
  %s5 = sld [smem:[#allocation0]]
  $region26: #{_lambda_.10} parent=0
    _
  %s7 = ssub.s32 1, %s5
  %s8 = scalar_select 0, %s7, %s5
  // Predicated region
  $region2: #{_lambda_.10} parent=0 // pred_check
    _
  $region3: #{_lambda_.10} parent=0 // pred_check_branch
    %10 = sbr.rel (0) target = $region5
  $region4: #{_lambda_.10} parent=0 // pred_region
    _
  $region5: #{_lambda_.10} parent=0 // pred_fallthru
    _
  // Predicated region
  $region6: #{_lambda_.10} parent=0 // pred_check
    _
  $region7: #{_lambda_.10} parent=0 // pred_check_branch
    %12 = sbr.rel (0) target = $region9
  $region8: #{_lambda_.10} parent=0 // pred_region
    _
  $region9: #{_lambda_.10} parent=0 // pred_fallthru
    _
  // Predicated region
  $region10: #{_lambda_.10} parent=0 // pred_check
    _
  $region11: #{_lambda_.10} parent=0 // pred_check_branch
    %14 = sbr.rel (0) target = $region13
  $region12: #{_lambda_.10} parent=0 // pred_region
    _
  $region13: #{_lambda_.10} parent=0 // pred_fallthru
    _
  // Predicated region
  $region14: #{_lambda_.10} parent=0 // pred_check
    _
  $region15: #{_lambda_.10} parent=0 // pred_check_branch
    %16 = sbr.rel (0) target = $region17
  $region16: #{_lambda_.10} parent=0 // pred_region
    _
  $region17: #{_lambda_.10} parent=0 // pred_fallthru
    _
  %v18 = vld [vmem:[%s0] sm:$0xff]
  %v19 = vld [vmem:[%s0 + $0x8] sm:$0xff]
  %v20 = vld [vmem:[%s0 + $0x10] sm:$0xf]
  %v21 = vld [vmem:[%s1] sm:$0xf]
  %v22 = vld [vmem:[%s1 + $0x4] sm:$0xf]
  %v23 = vld [vmem:[%s1 + $0x8] sm:$0xf]
  %v24 = vld [vmem:[%s1 + $0xc] sm:$0xf]
  %v25 = vld [vmem:[%s1 + $0x10] sm:$0xf]
  %v26 = vld [vmem:[%s1 + $0x14] sm:$0xf]
  %v27 = vld [vmem:[%s1 + $0x18] sm:$0xf]
  %v28 = vld [vmem:[%s1 + $0x1c] sm:$0xf]
  %v29 = vld [vmem:[%s1 + $0x20] sm:$0xf]
  %v30 = vld [vmem:[%s1 + $0x24] sm:$0xf]
  %v31 = vld [vmem:[%s1 + $0x28] sm:$0xf]
  %v32 = vld [vmem:[%s1 + $0x2c] sm:$0xf]
  %v33 = vld [vmem:[%s1 + $0x30] sm:$0xf]
  %v34 = vld [vmem:[%s1 + $0x34] sm:$0xf]
  %v35 = vld [vmem:[%s1 + $0x38] sm:$0xf]
  %v36 = vld [vmem:[%s1 + $0x3c] sm:$0xf]
  %v37 = vld [vmem:[%s1 + $0x40] sm:$0xf]
  %v38 = vld [vmem:[%s1 + $0x44] sm:$0xf]
  %v39 = vld [vmem:[%s1 + $0x48] sm:$0xf]
  %v40 = vld [vmem:[%s1 + $0x4c] sm:$0xf]
  %v41 = vld [vmem:[%s1 + $0x50] sm:$0xf]
  %v42 = vld [vmem:[%s1 + $0x54] sm:$0xf]
  %v43 = vld [vmem:[%s1 + $0x58] sm:$0xf]
  %v44 = vld [vmem:[%s1 + $0x5c] sm:$0xf]
  %v45 = vld [vmem:[%s1 + $0x60] sm:$0xf]
  %v46 = vld [vmem:[%s1 + $0x64] sm:$0xf]
  %v47 = vld [vmem:[%s1 + $0x68] sm:$0xf]
  %v48 = vld [vmem:[%s1 + $0x6c] sm:$0xf]
  %v49 = vld [vmem:[%s1 + $0x70] sm:$0xf]
  %v50 = vld [vmem:[%s1 + $0x74] sm:$0xf]
  %v51 = vld [vmem:[%s1 + $0x78] sm:$0xf]
  %v52 = vld [vmem:[%s1 + $0x7c] sm:$0xf]
  %v53 = vld [vmem:[%s1 + $0x80] sm:$0xf]
  %v54 = vld [vmem:[%s1 + $0x84] sm:$0xf]
  %v55 = vld [vmem:[%s1 + $0x88] sm:$0xf]
  %v56 = vld [vmem:[%s1 + $0x8c] sm:$0xf]
  %v57 = vld [vmem:[%s1 + $0x90] sm:$0xf]
  %v58 = vld [vmem:[%s1 + $0x94] sm:$0xf]
  %v59 = vld [vmem:[%s1 + $0x98] sm:$0xf]
  %v60 = vld [vmem:[%s1 + $0x9c] sm:$0xf]
  %v61 = vld [vmem:[%s1 + $0xa0] sm:$0xf]
  %v62 = vld [vmem:[%s1 + $0xa4] sm:$0xf]
  %v63 = vld [vmem:[%s1 + $0xa8] sm:$0xf]
  %v64 = vld [vmem:[%s1 + $0xac] sm:$0xf]
  %v65 = vld [vmem:[%s1 + $0xb0] sm:$0xf]
  %v66 = vld [vmem:[%s1 + $0xb4] sm:$0xf]
  %v67 = vld [vmem:[%s1 + $0xb8] sm:$0xf]
  %v68 = vld [vmem:[%s1 + $0xbc] sm:$0xf]
  %v69 = vld [vmem:[%s1 + $0xc0] sm:$0xf]
  %v70 = vld [vmem:[%s1 + $0xc4] sm:$0xf]
  %v71 = vld [vmem:[%s1 + $0xc8] sm:$0xf]
  %v72 = vld [vmem:[%s1 + $0xcc] sm:$0xf]
  %v73 = vld [vmem:[%s1 + $0xd0] sm:$0xf]
  %v74 = vld [vmem:[%s1 + $0xd4] sm:$0xf]
  %v75 = vld [vmem:[%s1 + $0xd8] sm:$0xf]
  %v76 = vld [vmem:[%s1 + $0xdc] sm:$0xf]
  %v77 = vld [vmem:[%s1 + $0xe0] sm:$0xf]
  %v78 = vld [vmem:[%s1 + $0xe4] sm:$0xf]
  %v79 = vld [vmem:[%s1 + $0xe8] sm:$0xf]
  %v80 = vld [vmem:[%s1 + $0xec] sm:$0xf]
  %v81 = vld [vmem:[%s1 + $0xf0] sm:$0xf]
  %v82 = vld [vmem:[%s1 + $0xf4] sm:$0xf]
  %v83 = vld [vmem:[%s1 + $0xf8] sm:$0xf]
  %v84 = vld [vmem:[%s1 + $0xfc] sm:$0xf]
  %v85 = vld [vmem:[%s1 + $0x100] sm:$0xf]
  %v86 = vld [vmem:[%s1 + $0x104] sm:$0xf]
  %v87 = vld [vmem:[%s1 + $0x108] sm:$0xf]
  %v88 = vld [vmem:[%s1 + $0x10c] sm:$0xf]
  %v89 = vld [vmem:[%s1 + $0x110] sm:$0xf]
  %v90 = vld [vmem:[%s1 + $0x114] sm:$0xf]
  %v91 = vld [vmem:[%s1 + $0x118] sm:$0xf]
  %v92 = vld [vmem:[%s1 + $0x11c] sm:$0xf]
  %v96 = vunpack.c.l.b16 %v18
  %v97 = vunpack.c.h.b16 %v18
  %v98 = vunpack.c.l.b16 %v19
  %v99 = vunpack.c.h.b16 %v19
  %v100 = vunpack.c.l.b16 %v20
  %v101 = vpack.c.b16 %v96, %v96
  %v102 = vpack.c.b16 %v97, %v97
  %v103 = vpack.c.b16 %v98, %v98
  %v104 = vpack.c.b16 %v99, %v99
  %v105 = vpack.c.b16 %v100, %v100
  %v182 = vunpack.c.l.b16 %v21
  %v183 = vunpack.c.l.b16 %v22
  %v184 = vunpack.c.l.b16 %v23
  %v185 = vunpack.c.l.b16 %v24
  %v186 = vunpack.c.l.b16 %v25
  %v187 = vunpack.c.l.b16 %v26
  %v188 = vunpack.c.l.b16 %v27
  %v189 = vunpack.c.l.b16 %v28
  %v190 = vunpack.c.l.b16 %v29
  %v191 = vunpack.c.l.b16 %v30
  %v192 = vunpack.c.l.b16 %v31
  %v193 = vunpack.c.l.b16 %v32
  %v194 = vunpack.c.l.b16 %v33
  %v195 = vunpack.c.l.b16 %v34
  %v196 = vunpack.c.l.b16 %v35
  %v197 = vunpack.c.l.b16 %v36
  %v198 = vunpack.c.l.b16 %v37
  %v199 = vunpack.c.l.b16 %v38
  %v200 = vunpack.c.l.b16 %v39
  %v201 = vunpack.c.l.b16 %v40
  %v202 = vunpack.c.l.b16 %v41
  %v203 = vunpack.c.l.b16 %v42
  %v204 = vunpack.c.l.b16 %v43
  %v205 = vunpack.c.l.b16 %v44
  %v206 = vunpack.c.l.b16 %v45
  %v207 = vunpack.c.l.b16 %v46
  %v208 = vunpack.c.l.b16 %v47
  %v209 = vunpack.c.l.b16 %v48
  %v210 = vunpack.c.l.b16 %v49
  %v211 = vunpack.c.l.b16 %v50
  %v212 = vunpack.c.l.b16 %v51
  %v213 = vunpack.c.l.b16 %v52
  %v214 = vunpack.c.l.b16 %v53
  %v215 = vunpack.c.l.b16 %v54
  %v216 = vunpack.c.l.b16 %v55
  %v217 = vunpack.c.l.b16 %v56
  %v218 = vunpack.c.l.b16 %v57
  %v219 = vunpack.c.l.b16 %v58
  %v220 = vunpack.c.l.b16 %v59
  %v221 = vunpack.c.l.b16 %v60
  %v222 = vunpack.c.l.b16 %v61
  %v223 = vunpack.c.l.b16 %v62
  %v224 = vunpack.c.l.b16 %v63
  %v225 = vunpack.c.l.b16 %v64
  %v226 = vunpack.c.l.b16 %v65
  %v227 = vunpack.c.l.b16 %v66
  %v228 = vunpack.c.l.b16 %v67
  %v229 = vunpack.c.l.b16 %v68
  %v230 = vunpack.c.l.b16 %v69
  %v231 = vunpack.c.l.b16 %v70
  %v232 = vunpack.c.l.b16 %v71
  %v233 = vunpack.c.l.b16 %v72
  %v234 = vunpack.c.l.b16 %v73
  %v235 = vunpack.c.l.b16 %v74
  %v236 = vunpack.c.l.b16 %v75
  %v237 = vunpack.c.l.b16 %v76
  %v238 = vunpack.c.l.b16 %v77
  %v239 = vunpack.c.l.b16 %v78
  %v240 = vunpack.c.l.b16 %v79
  %v241 = vunpack.c.l.b16 %v80
  %v242 = vunpack.c.l.b16 %v81
  %v243 = vunpack.c.l.b16 %v82
  %v244 = vunpack.c.l.b16 %v83
  %v245 = vunpack.c.l.b16 %v84
  %v246 = vunpack.c.l.b16 %v85
  %v247 = vunpack.c.l.b16 %v86
  %v248 = vunpack.c.l.b16 %v87
  %v249 = vunpack.c.l.b16 %v88
  %v250 = vunpack.c.l.b16 %v89
  %v251 = vunpack.c.l.b16 %v90
  %v252 = vunpack.c.l.b16 %v91
  %v253 = vunpack.c.l.b16 %v92
  %v254 = vpack.c.b16 %v183, %v182
  %v255 = vpack.c.b16 %v185, %v184
  %v256 = vpack.c.b16 %v187, %v186
  %v257 = vpack.c.b16 %v189, %v188
  %v258 = vpack.c.b16 %v191, %v190
  %v259 = vpack.c.b16 %v193, %v192
  %v260 = vpack.c.b16 %v195, %v194
  %v261 = vpack.c.b16 %v197, %v196
  %v262 = vpack.c.b16 %v199, %v198
  %v263 = vpack.c.b16 %v201, %v200
  %v264 = vpack.c.b16 %v203, %v202
  %v265 = vpack.c.b16 %v205, %v204
  %v266 = vpack.c.b16 %v207, %v206
  %v267 = vpack.c.b16 %v209, %v208
  %v268 = vpack.c.b16 %v211, %v210
  %v269 = vpack.c.b16 %v213, %v212
  %v270 = vpack.c.b16 %v215, %v214
  %v271 = vpack.c.b16 %v217, %v216
  %v272 = vpack.c.b16 %v219, %v218
  %v273 = vpack.c.b16 %v221, %v220
  %v274 = vpack.c.b16 %v223, %v222
  %v275 = vpack.c.b16 %v225, %v224
  %v276 = vpack.c.b16 %v227, %v226
  %v277 = vpack.c.b16 %v229, %v228
  %v278 = vpack.c.b16 %v231, %v230
  %v279 = vpack.c.b16 %v233, %v232
  %v280 = vpack.c.b16 %v235, %v234
  %v281 = vpack.c.b16 %v237, %v236
  %v282 = vpack.c.b16 %v239, %v238
  %v283 = vpack.c.b16 %v241, %v240
  %v284 = vpack.c.b16 %v243, %v242
  %v285 = vpack.c.b16 %v245, %v244
  %v286 = vpack.c.b16 %v247, %v246
  %v287 = vpack.c.b16 %v249, %v248
  %v288 = vpack.c.b16 %v251, %v250
  %v289 = vpack.c.b16 %v253, %v252
  %vm326 = vcmask 523264
  %v328 = vsel %vm326, %v105, 0
  %330 = vmatpush.bf16.msra.mxu0 %v261
  %331 = vmatpush.bf16.msra.mxu0 %v260
  %332 = vmatpush.bf16.msra.mxu0 %v259
  %333 = vmatpush.bf16.msra.mxu0 %v258
  %334 = vmatpush.bf16.msra.mxu0 %v257
  %335 = vmatpush.bf16.msra.mxu0 %v256
  %336 = vmatpush.bf16.msra.mxu0 %v255
  %337 = vmatpush.bf16.msra.mxu0 %v254
  %338 = vmatmul.bf16.gmra.mxu0 %v101
  %v339 = vpop.f32.mrf.mxu0
  %v340 = vadd.f32 0.0, %v339
  %v341 = vpop.f32.mrf.mxu0
  %342 = vdwg.mxu0
  %343 = vmatpush.bf16.msra.mxu0 %v269
  %344 = vmatpush.bf16.msra.mxu0 %v268
  %345 = vmatpush.bf16.msra.mxu0 %v267
  %346 = vmatpush.bf16.msra.mxu0 %v266
  %347 = vmatpush.bf16.msra.mxu0 %v265
  %348 = vmatpush.bf16.msra.mxu0 %v264
  %349 = vmatpush.bf16.msra.mxu0 %v263
  %350 = vmatpush.bf16.msra.mxu0 %v262
  %351 = vmatmul.bf16.gmra.mxu0 %v102
  %v352 = vpop.f32.mrf.mxu0
  %v353 = vadd.f32 %v340, %v352
  %v354 = vpop.f32.mrf.mxu0
  %355 = vdwg.mxu0
  %356 = vmatpush.bf16.msra.mxu0 %v277
  %357 = vmatpush.bf16.msra.mxu0 %v276
  %358 = vmatpush.bf16.msra.mxu0 %v275
  %359 = vmatpush.bf16.msra.mxu0 %v274
  %360 = vmatpush.bf16.msra.mxu0 %v273
  %361 = vmatpush.bf16.msra.mxu0 %v272
  %362 = vmatpush.bf16.msra.mxu0 %v271
  %363 = vmatpush.bf16.msra.mxu0 %v270
  %364 = vmatmul.bf16.gmra.mxu0 %v103
  %v365 = vpop.f32.mrf.mxu0
  %v366 = vadd.f32 %v353, %v365
  %v367 = vpop.f32.mrf.mxu0
  %368 = vdwg.mxu0
  %369 = vmatpush.bf16.msra.mxu0 %v285
  %370 = vmatpush.bf16.msra.mxu0 %v284
  %371 = vmatpush.bf16.msra.mxu0 %v283
  %372 = vmatpush.bf16.msra.mxu0 %v282
  %373 = vmatpush.bf16.msra.mxu0 %v281
  %374 = vmatpush.bf16.msra.mxu0 %v280
  %375 = vmatpush.bf16.msra.mxu0 %v279
  %376 = vmatpush.bf16.msra.mxu0 %v278
  %377 = vmatmul.bf16.gmra.mxu0 %v104
  %v378 = vpop.f32.mrf.mxu0
  %v379 = vadd.f32 %v366, %v378
  %v380 = vpop.f32.mrf.mxu0
  %381 = vdwg.mxu0
  %382 = vmatpush.bf16.msra.mxu0 0
  %383 = vmatpush.bf16.msra.mxu0 0
  %384 = vmatpush.bf16.msra.mxu0 0
  %385 = vmatpush.bf16.msra.mxu0 0
  %386 = vmatpush.bf16.msra.mxu0 %v289
  %387 = vmatpush.bf16.msra.mxu0 %v288
  %388 = vmatpush.bf16.msra.mxu0 %v287
  %389 = vmatpush.bf16.msra.mxu0 %v286
  %390 = vmatmul.bf16.gmra.mxu0 %v328
  %v391 = vpop.f32.mrf.mxu0
  %v392 = vadd.f32 %v379, %v391
  %v393 = vpop.f32.mrf.mxu0
  %394 = vdwg.mxu0
  %v395 = vld [vmem:[%s2] sm:$0x1]
  %v396 = vld [vmem:[%s3] sm:$0x1]
  %v397 = vrot.slane %v392, 4
  %v398 = vadd.f32 %v392, %v397
  %v399 = vrot.slane %v398, 2
  %v400 = vadd.f32 %v398, %v399
  %v401 = vrot.slane %v400, 1
  %v402 = vadd.f32 %v400, %v401
  %v403 = vrcp.pop 8.0
  %v404 = vmul.f32 8.0, %v403
  %v405 = vsub.f32 1.0, %v404
  %v406 = vmul.f32 %v403, %v405
  %v407 = vadd.f32 %v403, %v406
  %vm408 = vweird.f32 %v403
  %v409 = vsel %vm408, %v403, %v407
  %v410 = vmul.f32 %v402, %v409
  %v411 = vsub.f32 %v392, %v410
  %v412 = vmul.f32 %v411, %v411
  %v413 = vrot.slane %v412, 4
  %v414 = vadd.f32 %v412, %v413
  %v415 = vrot.slane %v414, 2
  %v416 = vadd.f32 %v414, %v415
  %v417 = vrot.slane %v416, 1
  %v418 = vadd.f32 %v416, %v417
  %v419 = vmul.f32 %v418, %v409
  %v420 = vadd.f32 %v419, 1e-05
  %v421 = vrsqrt.pop %v420
  %v422 = vmul.f32 %v421, %v420
  %v423 = vmul.f32 %v422, %v421
  %v424 = vmul.f32 0.5, %v423
  %v425 = vsub.f32 1.5, %v424
  %v426 = vmul.f32 %v421, %v425
  %vm427 = vweird.f32 %v420
  %vm428 = vweird.f32 %v421
  %vm429 = vmor %vm427, %vm428
  %v430 = vsel %vm429, %v421, %v426
  %v431 = vmul.f32 %v411, %v430
  %v433 = vperm.slane %v395, 0
  %v435 = vmul.f32 %v431, %v433
  %v437 = vperm.slane %v396, 0
  %v439 = vadd.f32 %v435, %v437
  %vm440 = vcmp.ge.f32.partialorder %v439, 0.0
  %v441 = vmul.f32 %v439, 0.01
  %v442 = vsel %vm440, %v439, %v441
  %443 = vst [vmem:[%s4] sm:$0xff] %v442
  // Predicated region
  $region18: #{_lambda_.10} parent=0 // pred_check
    _
  $region19: #{_lambda_.10} parent=0 // pred_check_branch
    %445 = sbr.rel (0) target = $region21
  $region20: #{_lambda_.10} parent=0 // pred_region
    _
  $region21: #{_lambda_.10} parent=0 // pred_fallthru
    _
  // Predicated region
  $region22: #{_lambda_.10} parent=0 // pred_check
    _
  $region23: #{_lambda_.10} parent=0 // pred_check_branch
    %447 = sbr.rel (0) target = $region25
  $region24: #{_lambda_.10} parent=0 // pred_region
    _
  $region25: #{_lambda_.10} parent=0 // pred_fallthru
    _

// kernel: _lambda_.11
$region0: #{_lambda_.11}
  #allocation0 [shape = 'u32[]', space=smem, size = 0x4, offset = 0x4, fixed_abs, tag = 'smem constant byte address 0x4 - core index']
  #allocation1 [shape = 'u32[72,128]{1,0:T(1,128)}', space=vmem, size = 0x9000, scoped, tag = 'internal scratch']
  %s0 = inlined_call_operand.vmem [shape: bf16[2,512], index: 0, kind: input, shape index: {}]
  %s1 = inlined_call_operand.vmem [shape: bf16[512,256], index: 1, kind: input, shape index: {}]
  %s2 = inlined_call_operand.vmem [shape: f32[1,256], index: 2, kind: input, shape index: {}]
  %s3 = inlined_call_operand.vmem [shape: f32[1,256], index: 3, kind: input, shape index: {}]
  %s4 = inlined_call_operand.vmem [shape: bf16[256,512], index: 4, kind: input, shape index: {}]
  %s5 = inlined_call_operand.vmem [shape: f32[1,512], index: 5, kind: input, shape index: {}]
  %s6 = inlined_call_operand.vmem [shape: f32[1,512], index: 6, kind: input, shape index: {}]
  %s7 = inlined_call_operand.vmem [shape: bf16[512,1024], index: 7, kind: input, shape index: {}]
  %s8 = inlined_call_operand.vmem [shape: f32[1,1024], index: 8, kind: input, shape index: {}]
  %s9 = inlined_call_operand.vmem [shape: f32[1,1024], index: 9, kind: input, shape index: {}]
  %s10 = inlined_call_operand.vmem [shape: f32[2,1024], index: 10, kind: output, shape index: {}]
  %s11 = sld [smem:[#allocation0]]
  $region114: #{_lambda_.11} parent=0
    _
  %s13 = ssub.s32 1, %s11
  %s14 = scalar_select 0, %s13, %s11
  $region1: #{_lambda_.11} parent=0
    #allocation2 [shape = 'u8[262144]{0}', space=vmem, size = 0x40000, scoped, tag = 'input window, operand 7']
    loop: start=0, step=1, limit=10
    $region2: #{_lambda_.11} parent=1 // loop_pre_header
      _
    $region3: #{_lambda_.11} parent=1 // loop_header
      %s16 = sphi 0, %s20
      %p17 = scmp.ge.s32.totalorder %s16, 10
      %s24 = sphi 0, %s24
      %s26 = sphi 0, %s24
      %s27 = sphi 0, %s26
      %s41 = sphi 0, %s27
      %s45 = sphi 0, %s45
      %s47 = sphi 0, %s45
      %s48 = sphi 0, %s47
      %s62 = sphi 0, %s48
      %s66 = sphi 0, %s66
      %s68 = sphi 0, %s66
      %s69 = sphi 0, %s68
      %s83 = sphi 0, %s69
      %s87 = sphi 0, %s87
      %s89 = sphi 0, %s87
      %s90 = sphi 0, %s89
      %s104 = sphi 0, %s90
      %s108 = sphi 0, %s108
      %s110 = sphi 0, %s108
      %s111 = sphi 0, %s110
      %s125 = sphi 0, %s111
      %s129 = sphi 0, %s129
      %s131 = sphi 0, %s129
      %s132 = sphi 0, %s131
      %s146 = sphi 0, %s132
      %s150 = sphi 0, %s150
      %s152 = sphi 0, %s150
      %s153 = sphi 0, %s152
      %s167 = sphi 0, %s153
      %s173 = sphi 0, %s175
      %s176 = sphi 0, %s173
      %s177 = sphi 0, %s176
      %s193 = sphi 0, %s177
      %s199 = sphi 0, %s201
      %s202 = sphi 0, %s199
      %s203 = sphi 0, %s202
      %s219 = sphi 0, %s203
      %s225 = sphi 0, %s227
      %s228 = sphi 0, %s225
      %s229 = sphi 0, %s228
      %s245 = sphi 0, %s229
      %s251 = sphi 0, %s253
      %s254 = sphi 0, %s251
      %s255 = sphi 0, %s254
      %s271 = sphi 0, %s255
    $region4: #{_lambda_.11} parent=1 // loop_header_branch
      %19 = sbr.rel (%p17) target = $region8
    $region5: #{_lambda_.11} parent=1 // loop_body
      %s21 = ssub.s32 %s16, 1
      %s22 = ssub.s32 %s16, 2
      %s23 = sadd.s32 %s16, 1
      %s25 = sadd.s32 %s24, 1
      %p28 = scmp.eq.s32.totalorder %s16, 7
      %p29 = scmp.ne.s32.totalorder %s24, %s26
      %p30 = scmp.eq.s32.totalorder %s16, 0
      %p31 = por %p29, %p30
      %p32 = scmp.ne.s32.totalorder %s24, %s26
      %p33 = scmp.eq.s32.totalorder %s21, 7
      %p34 = por %p32, %p33
      %p35 = scmp.ne.s32.totalorder %s26, %s27
      %p36 = scmp.eq.s32.totalorder %s21, 0
      %p37 = por %p35, %p36
      %p38 = scmp.ne.s32.totalorder %s26, %s27
      %p39 = scmp.eq.s32.totalorder %s22, 7
      %p40 = por %p38, %p39
      %p42 = scmp.ne.s32.totalorder %s27, %s41
      %p43 = scmp.eq.s32.totalorder %s22, 0
      %p44 = por %p42, %p43
      %s46 = sadd.s32 %s45, 1
      %p49 = scmp.eq.s32.totalorder %s16, 7
      %p50 = scmp.ne.s32.totalorder %s45, %s47
      %p51 = scmp.eq.s32.totalorder %s16, 0
      %p52 = por %p50, %p51
      %p53 = scmp.ne.s32.totalorder %s45, %s47
      %p54 = scmp.eq.s32.totalorder %s21, 7
      %p55 = por %p53, %p54
      %p56 = scmp.ne.s32.totalorder %s47, %s48
      %p57 = scmp.eq.s32.totalorder %s21, 0
      %p58 = por %p56, %p57
      %p59 = scmp.ne.s32.totalorder %s47, %s48
      %p60 = scmp.eq.s32.totalorder %s22, 7
      %p61 = por %p59, %p60
      %p63 = scmp.ne.s32.totalorder %s48, %s62
      %p64 = scmp.eq.s32.totalorder %s22, 0
      %p65 = por %p63, %p64
      %s67 = sadd.s32 %s66, 1
      %p70 = scmp.eq.s32.totalorder %s16, 7
      %p71 = scmp.ne.s32.totalorder %s66, %s68
      %p72 = scmp.eq.s32.totalorder %s16, 0
      %p73 = por %p71, %p72
      %p74 = scmp.ne.s32.totalorder %s66, %s68
      %p75 = scmp.eq.s32.totalorder %s21, 7
      %p76 = por %p74, %p75
      %p77 = scmp.ne.s32.totalorder %s68, %s69
      %p78 = scmp.eq.s32.totalorder %s21, 0
      %p79 = por %p77, %p78
      %p80 = scmp.ne.s32.totalorder %s68, %s69
      %p81 = scmp.eq.s32.totalorder %s22, 7
      %p82 = por %p80, %p81
      %p84 = scmp.ne.s32.totalorder %s69, %s83
      %p85 = scmp.eq.s32.totalorder %s22, 0
      %p86 = por %p84, %p85
      %s88 = sadd.s32 %s87, 1
      %p91 = scmp.eq.s32.totalorder %s16, 7
      %p92 = scmp.ne.s32.totalorder %s87, %s89
      %p93 = scmp.eq.s32.totalorder %s16, 0
      %p94 = por %p92, %p93
      %p95 = scmp.ne.s32.totalorder %s87, %s89
      %p96 = scmp.eq.s32.totalorder %s21, 7
      %p97 = por %p95, %p96
      %p98 = scmp.ne.s32.totalorder %s89, %s90
      %p99 = scmp.eq.s32.totalorder %s21, 0
      %p100 = por %p98, %p99
      %p101 = scmp.ne.s32.totalorder %s89, %s90
      %p102 = scmp.eq.s32.totalorder %s22, 7
      %p103 = por %p101, %p102
      %p105 = scmp.ne.s32.totalorder %s90, %s104
      %p106 = scmp.eq.s32.totalorder %s22, 0
      %p107 = por %p105, %p106
      %s109 = sadd.s32 %s108, 1
      %p112 = scmp.eq.s32.totalorder %s16, 7
      %p113 = scmp.ne.s32.totalorder %s108, %s110
      %p114 = scmp.eq.s32.totalorder %s16, 0
      %p115 = por %p113, %p114
      %p116 = scmp.ne.s32.totalorder %s108, %s110
      %p117 = scmp.eq.s32.totalorder %s21, 7
      %p118 = por %p116, %p117
      %p119 = scmp.ne.s32.totalorder %s110, %s111
      %p120 = scmp.eq.s32.totalorder %s21, 0
      %p121 = por %p119, %p120
      %p122 = scmp.ne.s32.totalorder %s110, %s111
      %p123 = scmp.eq.s32.totalorder %s22, 7
      %p124 = por %p122, %p123
      %p126 = scmp.ne.s32.totalorder %s111, %s125
      %p127 = scmp.eq.s32.totalorder %s22, 0
      %p128 = por %p126, %p127
      %s130 = sadd.s32 %s129, 1
      %p133 = scmp.eq.s32.totalorder %s16, 7
      %p134 = scmp.ne.s32.totalorder %s129, %s131
      %p135 = scmp.eq.s32.totalorder %s16, 0
      %p136 = por %p134, %p135
      %p137 = scmp.ne.s32.totalorder %s129, %s131
      %p138 = scmp.eq.s32.totalorder %s21, 7
      %p139 = por %p137, %p138
      %p140 = scmp.ne.s32.totalorder %s131, %s132
      %p141 = scmp.eq.s32.totalorder %s21, 0
      %p142 = por %p140, %p141
      %p143 = scmp.ne.s32.totalorder %s131, %s132
      %p144 = scmp.eq.s32.totalorder %s22, 7
      %p145 = por %p143, %p144
      %p147 = scmp.ne.s32.totalorder %s132, %s146
      %p148 = scmp.eq.s32.totalorder %s22, 0
      %p149 = por %p147, %p148
      %s151 = sadd.s32 %s150, 1
      %p154 = scmp.eq.s32.totalorder %s16, 7
      %p155 = scmp.ne.s32.totalorder %s150, %s152
      %p156 = scmp.eq.s32.totalorder %s16, 0
      %p157 = por %p155, %p156
      %p158 = scmp.ne.s32.totalorder %s150, %s152
      %p159 = scmp.eq.s32.totalorder %s21, 7
      %p160 = por %p158, %p159
      %p161 = scmp.ne.s32.totalorder %s152, %s153
      %p162 = scmp.eq.s32.totalorder %s21, 0
      %p163 = por %p161, %p162
      %p164 = scmp.ne.s32.totalorder %s152, %s153
      %p165 = scmp.eq.s32.totalorder %s22, 7
      %p166 = por %p164, %p165
      %p168 = scmp.ne.s32.totalorder %s153, %s167
      %p169 = scmp.eq.s32.totalorder %s22, 0
      %p170 = por %p168, %p169
      %s171 = ssub.s32 %s16, %s23
      %p172 = scmp.eq.s32.totalorder %s171, 0
      %s174 = sadd.s32 %s173, 1
      %s175 = scalar_select %p172, %s173, %s174
      %p178 = pneg %p172
      %p179 = scmp.eq.s32.totalorder %s16, 7
      %p180 = por %p178, %p179
      %p181 = scmp.ne.s32.totalorder %s173, %s176
      %p182 = scmp.eq.s32.totalorder %s16, 0
      %p183 = por %p181, %p182
      %p184 = scmp.ne.s32.totalorder %s173, %s176
      %p185 = scmp.eq.s32.totalorder %s21, 7
      %p186 = por %p184, %p185
      %p187 = scmp.ne.s32.totalorder %s176, %s177
      %p188 = scmp.eq.s32.totalorder %s21, 0
      %p189 = por %p187, %p188
      %p190 = scmp.ne.s32.totalorder %s176, %s177
      %p191 = scmp.eq.s32.totalorder %s22, 7
      %p192 = por %p190, %p191
      %p194 = scmp.ne.s32.totalorder %s177, %s193
      %p195 = scmp.eq.s32.totalorder %s22, 0
      %p196 = por %p194, %p195
      %s197 = ssub.s32 %s16, %s23
      %p198 = scmp.eq.s32.totalorder %s197, 0
      %s200 = sadd.s32 %s199, 1
      %s201 = scalar_select %p198, %s199, %s200
      %p204 = pneg %p198
      %p205 = scmp.eq.s32.totalorder %s16, 7
      %p206 = por %p204, %p205
      %p207 = scmp.ne.s32.totalorder %s199, %s202
      %p208 = scmp.eq.s32.totalorder %s16, 0
      %p209 = por %p207, %p208
      %p210 = scmp.ne.s32.totalorder %s199, %s202
      %p211 = scmp.eq.s32.totalorder %s21, 7
      %p212 = por %p210, %p211
      %p213 = scmp.ne.s32.totalorder %s202, %s203
      %p214 = scmp.eq.s32.totalorder %s21, 0
      %p215 = por %p213, %p214
      %p216 = scmp.ne.s32.totalorder %s202, %s203
      %p217 = scmp.eq.s32.totalorder %s22, 7
      %p218 = por %p216, %p217
      %p220 = scmp.ne.s32.totalorder %s203, %s219
      %p221 = scmp.eq.s32.totalorder %s22, 0
      %p222 = por %p220, %p221
      %s223 = ssub.s32 %s16, %s23
      %p224 = scmp.eq.s32.totalorder %s223, 0
      %s226 = sadd.s32 %s225, 1
      %s227 = scalar_select %p224, %s225, %s226
      %p230 = pneg %p224
      %p231 = scmp.eq.s32.totalorder %s16, 7
      %p232 = por %p230, %p231
      %p233 = scmp.ne.s32.totalorder %s225, %s228
      %p234 = scmp.eq.s32.totalorder %s16, 0
      %p235 = por %p233, %p234
      %p236 = scmp.ne.s32.totalorder %s225, %s228
      %p237 = scmp.eq.s32.totalorder %s21, 7
      %p238 = por %p236, %p237
      %p239 = scmp.ne.s32.totalorder %s228, %s229
      %p240 = scmp.eq.s32.totalorder %s21, 0
      %p241 = por %p239, %p240
      %p242 = scmp.ne.s32.totalorder %s228, %s229
      %p243 = scmp.eq.s32.totalorder %s22, 7
      %p244 = por %p242, %p243
      %p246 = scmp.ne.s32.totalorder %s229, %s245
      %p247 = scmp.eq.s32.totalorder %s22, 0
      %p248 = por %p246, %p247
      %s249 = ssub.s32 %s16, %s23
      %p250 = scmp.eq.s32.totalorder %s249, 0
      %s252 = sadd.s32 %s251, 1
      %s253 = scalar_select %p250, %s251, %s252
      %p256 = pneg %p250
      %p257 = scmp.eq.s32.totalorder %s16, 7
      %p258 = por %p256, %p257
      %p259 = scmp.ne.s32.totalorder %s251, %s254
      %p260 = scmp.eq.s32.totalorder %s16, 0
      %p261 = por %p259, %p260
      %p262 = scmp.ne.s32.totalorder %s251, %s254
      %p263 = scmp.eq.s32.totalorder %s21, 7
      %p264 = por %p262, %p263
      %p265 = scmp.ne.s32.totalorder %s254, %s255
      %p266 = scmp.eq.s32.totalorder %s21, 0
      %p267 = por %p265, %p266
      %p268 = scmp.ne.s32.totalorder %s254, %s255
      %p269 = scmp.eq.s32.totalorder %s22, 7
      %p270 = por %p268, %p269
      %p272 = scmp.ne.s32.totalorder %s255, %s271
      %p273 = scmp.eq.s32.totalorder %s22, 0
      %p274 = por %p272, %p273
      %p275 = scmp.le.s32.totalorder 1, %s16
      %p276 = scmp.lt.s32.totalorder %s16, 9
      %p277 = pnand %p275, %p276
      %p278 = pneg %p277
      // Predicated region
      $region9: #{_lambda_.11} parent=5 // pred_check
        _
      $region10: #{_lambda_.11} parent=5 // pred_check_branch
        %280 = sbr.rel (%p277) target = $region12
      $region11: #{_lambda_.11} parent=5 // pred_region
        %s281 = ssub.s32 %s16, 1
        // Predicated region
        $region13: #{_lambda_.11} parent=11 // pred_check
          %p282 = pneg %p37
        $region14: #{_lambda_.11} parent=11 // pred_check_branch
          %284 = sbr.rel (%p282) target = $region16
        $region15: #{_lambda_.11} parent=11 // pred_region
          _
        $region16: #{_lambda_.11} parent=11 // pred_fallthru
          _
        // Predicated region
        $region17: #{_lambda_.11} parent=11 // pred_check
          %p285 = pneg %p58
        $region18: #{_lambda_.11} parent=11 // pred_check_branch
          %287 = sbr.rel (%p285) target = $region20
        $region19: #{_lambda_.11} parent=11 // pred_region
          _
        $region20: #{_lambda_.11} parent=11 // pred_fallthru
          _
        // Predicated region
        $region21: #{_lambda_.11} parent=11 // pred_check
          %p288 = pneg %p79
        $region22: #{_lambda_.11} parent=11 // pred_check_branch
          %290 = sbr.rel (%p288) target = $region24
        $region23: #{_lambda_.11} parent=11 // pred_region
          _
        $region24: #{_lambda_.11} parent=11 // pred_fallthru
          _
        // Predicated region
        $region25: #{_lambda_.11} parent=11 // pred_check
          %p291 = pneg %p100
        $region26: #{_lambda_.11} parent=11 // pred_check_branch
          %293 = sbr.rel (%p291) target = $region28
        $region27: #{_lambda_.11} parent=11 // pred_region
          _
        $region28: #{_lambda_.11} parent=11 // pred_fallthru
          _
        // Predicated region
        $region29: #{_lambda_.11} parent=11 // pred_check
          %p294 = pneg %p121
        $region30: #{_lambda_.11} parent=11 // pred_check_branch
          %296 = sbr.rel (%p294) target = $region32
        $region31: #{_lambda_.11} parent=11 // pred_region
          _
        $region32: #{_lambda_.11} parent=11 // pred_fallthru
          _
        // Predicated region
        $region33: #{_lambda_.11} parent=11 // pred_check
          %p297 = pneg %p142
        $region34: #{_lambda_.11} parent=11 // pred_check_branch
          %299 = sbr.rel (%p297) target = $region36
        $region35: #{_lambda_.11} parent=11 // pred_region
          _
        $region36: #{_lambda_.11} parent=11 // pred_fallthru
          _
        // Predicated region
        $region37: #{_lambda_.11} parent=11 // pred_check
          %p300 = pneg %p163
        $region38: #{_lambda_.11} parent=11 // pred_check_branch
          %302 = sbr.rel (%p300) target = $region40
        $region39: #{_lambda_.11} parent=11 // pred_region
          _
        $region40: #{_lambda_.11} parent=11 // pred_fallthru
          _
      $region12: #{_lambda_.11} parent=5 // pred_fallthru
        _
      %p303 = scmp.lt.s32.totalorder %s16, 8
      // Predicated region
      $region41: #{_lambda_.11} parent=5 // pred_check
        %p304 = pneg %p303
      $region42: #{_lambda_.11} parent=5 // pred_check_branch
        %306 = sbr.rel (%p304) target = $region44
      $region43: #{_lambda_.11} parent=5 // pred_region
        // Predicated region
        $region45: #{_lambda_.11} parent=43 // pred_check
          %p307 = pneg %p183
        $region46: #{_lambda_.11} parent=43 // pred_check_branch
          %309 = sbr.rel (%p307) target = $region48
        $region47: #{_lambda_.11} parent=43 // pred_region
          %s310 = sand.u32 %s173, 1
          %s311 = sand.u32 %s173, 1
          %s312 = smul.addr %s311, 256
          %s313 = scalar_lea.vmem [#allocation2], %s312
          %s314 = smul.addr %s16, 4
          %s315 = scalar_lea.vmem %s7, %s314
          // Predicated region
          $region49: #{_lambda_.11} parent=47 // pred_check
            _
          $region50: #{_lambda_.11} parent=47 // pred_check_branch
            %317 = sbr.rel (0) target = $region52
          $region51: #{_lambda_.11} parent=47 // pred_region
            // Predicated region
            $region53: #{_lambda_.11} parent=51 // pred_check
              _
            $region54: #{_lambda_.11} parent=51 // pred_check_branch
              %319 = sbr.rel target = $region56
            $region55: #{_lambda_.11} parent=51 // pred_region
              // Predicated region
              $region68: #{_lambda_.11} parent=55 // pred_check
                _
              $region69: #{_lambda_.11} parent=55 // pred_check_branch
                %461 = sbr.rel (0) target = $region71
              $region70: #{_lambda_.11} parent=55 // pred_region
                loop: start=0, step=1, limit=1
                $region72: #{_lambda_.11} parent=70 // loop_pre_header
                  _
                $region73: #{_lambda_.11} parent=70 // loop_header
                  %s463 = sphi 0, %s467
                  %p464 = scmp.ge.s32.totalorder %s463, 1
                  %s468 = sphi %s315, %s315
                  %s469 = sphi %s313, %s313
                $region74: #{_lambda_.11} parent=70 // loop_header_branch
                  %466 = sbr.rel (%p464) target = $region78
                $region75: #{_lambda_.11} parent=70 // loop_body
                  _
                $region76: #{_lambda_.11} parent=70 // loop_footer
                  %s467 = sadd.s32 1, %s463
                $region77: #{_lambda_.11} parent=70 // loop_footer_branch
                  %462 = sbr.rel target = $region73
                $region78: #{_lambda_.11} parent=70 // loop_exit
                  _
                %s471 = ssub.s32 16, 1
                loop: start=0, step=1, limit=1
                $region79: #{_lambda_.11} parent=70 // loop_pre_header
                  _
                $region80: #{_lambda_.11} parent=70 // loop_header
                  %s473 = sphi 0, %s477
                  %p474 = scmp.ge.s32.totalorder %s473, 1
                  %s478 = sphi %s315, %s315
                  %s479 = sphi %s313, %s313
                $region81: #{_lambda_.11} parent=70 // loop_header_branch
                  %476 = sbr.rel (%p474) target = $region85
                $region82: #{_lambda_.11} parent=70 // loop_body
                  %v480 = vld [vmem:[%s478] sm:%s471]
                  %481 = vst [vmem:[%s479] sm:%s471] %v480
                  %v482 = vld [vmem:[%s478 + $0x20] sm:%s471]
                  %483 = vst [vmem:[%s479 + $0x4] sm:%s471] %v482
                  %v484 = vld [vmem:[%s478 + $0x40] sm:%s471]
                  %485 = vst [vmem:[%s479 + $0x8] sm:%s471] %v484
                  %v486 = vld [vmem:[%s478 + $0x60] sm:%s471]
                  %487 = vst [vmem:[%s479 + $0xc] sm:%s471] %v486
                  %v488 = vld [vmem:[%s478 + $0x80] sm:%s471]
                  %489 = vst [vmem:[%s479 + $0x10] sm:%s471] %v488
                  %v490 = vld [vmem:[%s478 + $0xa0] sm:%s471]
                  %491 = vst [vmem:[%s479 + $0x14] sm:%s471] %v490
                  %v492 = vld [vmem:[%s478 + $0xc0] sm:%s471]
                  %493 = vst [vmem:[%s479 + $0x18] sm:%s471] %v492
                  %v494 = vld [vmem:[%s478 + $0xe0] sm:%s471]
                  %495 = vst [vmem:[%s479 + $0x1c] sm:%s471] %v494
                  %v496 = vld [vmem:[%s478 + $0x100] sm:%s471]
                  %497 = vst [vmem:[%s479 + $0x20] sm:%s471] %v496
                  %v498 = vld [vmem:[%s478 + $0x120] sm:%s471]
                  %499 = vst [vmem:[%s479 + $0x24] sm:%s471] %v498
                  %v500 = vld [vmem:[%s478 + $0x140] sm:%s471]
                  %501 = vst [vmem:[%s479 + $0x28] sm:%s471] %v500
                  %v502 = vld [vmem:[%s478 + $0x160] sm:%s471]
                  %503 = vst [vmem:[%s479 + $0x2c] sm:%s471] %v502
                  %v504 = vld [vmem:[%s478 + $0x180] sm:%s471]
                  %505 = vst [vmem:[%s479 + $0x30] sm:%s471] %v504
                  %v506 = vld [vmem:[%s478 + $0x1a0] sm:%s471]
                  %507 = vst [vmem:[%s479 + $0x34] sm:%s471] %v506
                  %v508 = vld [vmem:[%s478 + $0x1c0] sm:%s471]
                  %509 = vst [vmem:[%s479 + $0x38] sm:%s471] %v508
                  %v510 = vld [vmem:[%s478 + $0x1e0] sm:%s471]
                  %511 = vst [vmem:[%s479 + $0x3c] sm:%s471] %v510
                  %v512 = vld [vmem:[%s478 + $0x200] sm:%s471]
                  %513 = vst [vmem:[%s479 + $0x40] sm:%s471] %v512
                  %v514 = vld [vmem:[%s478 + $0x220] sm:%s471]
                  %515 = vst [vmem:[%s479 + $0x44] sm:%s471] %v514
                  %v516 = vld [vmem:[%s478 + $0x240] sm:%s471]
                  %517 = vst [vmem:[%s479 + $0x48] sm:%s471] %v516
                  %v518 = vld [vmem:[%s478 + $0x260] sm:%s471]
                  %519 = vst [vmem:[%s479 + $0x4c] sm:%s471] %v518
                  %v520 = vld [vmem:[%s478 + $0x280] sm:%s471]
                  %521 = vst [vmem:[%s479 + $0x50] sm:%s471] %v520
                  %v522 = vld [vmem:[%s478 + $0x2a0] sm:%s471]
                  %523 = vst [vmem:[%s479 + $0x54] sm:%s471] %v522
                  %v524 = vld [vmem:[%s478 + $0x2c0] sm:%s471]
                  %525 = vst [vmem:[%s479 + $0x58] sm:%s471] %v524
                  %v526 = vld [vmem:[%s478 + $0x2e0] sm:%s471]
                  %527 = vst [vmem:[%s479 + $0x5c] sm:%s471] %v526
                  %v528 = vld [vmem:[%s478 + $0x300] sm:%s471]
                  %529 = vst [vmem:[%s479 + $0x60] sm:%s471] %v528
                  %v530 = vld [vmem:[%s478 + $0x320] sm:%s471]
                  %531 = vst [vmem:[%s479 + $0x64] sm:%s471] %v530
                  %v532 = vld [vmem:[%s478 + $0x340] sm:%s471]
                  %533 = vst [vmem:[%s479 + $0x68] sm:%s471] %v532
                  %v534 = vld [vmem:[%s478 + $0x360] sm:%s471]
                  %535 = vst [vmem:[%s479 + $0x6c] sm:%s471] %v534
                  %v536 = vld [vmem:[%s478 + $0x380] sm:%s471]
                  %537 = vst [vmem:[%s479 + $0x70] sm:%s471] %v536
                  %v538 = vld [vmem:[%s478 + $0x3a0] sm:%s471]
                  %539 = vst [vmem:[%s479 + $0x74] sm:%s471] %v538
                  %v540 = vld [vmem:[%s478 + $0x3c0] sm:%s471]
                  %541 = vst [vmem:[%s479 + $0x78] sm:%s471] %v540
                  %v542 = vld [vmem:[%s478 + $0x3e0] sm:%s471]
                  %543 = vst [vmem:[%s479 + $0x7c] sm:%s471] %v542
                  %v544 = vld [vmem:[%s478 + $0x400] sm:%s471]
                  %545 = vst [vmem:[%s479 + $0x80] sm:%s471] %v544
                  %v546 = vld [vmem:[%s478 + $0x420] sm:%s471]
                  %547 = vst [vmem:[%s479 + $0x84] sm:%s471] %v546
                  %v548 = vld [vmem:[%s478 + $0x440] sm:%s471]
                  %549 = vst [vmem:[%s479 + $0x88] sm:%s471] %v548
                  %v550 = vld [vmem:[%s478 + $0x460] sm:%s471]
                  %551 = vst [vmem:[%s479 + $0x8c] sm:%s471] %v550
                  %v552 = vld [vmem:[%s478 + $0x480] sm:%s471]
                  %553 = vst [vmem:[%s479 + $0x90] sm:%s471] %v552
                  %v554 = vld [vmem:[%s478 + $0x4a0] sm:%s471]
                  %555 = vst [vmem:[%s479 + $0x94] sm:%s471] %v554
                  %v556 = vld [vmem:[%s478 + $0x4c0] sm:%s471]
                  %557 = vst [vmem:[%s479 + $0x98] sm:%s471] %v556
                  %v558 = vld [vmem:[%s478 + $0x4e0] sm:%s471]
                  %559 = vst [vmem:[%s479 + $0x9c] sm:%s471] %v558
                  %v560 = vld [vmem:[%s478 + $0x500] sm:%s471]
                  %561 = vst [vmem:[%s479 + $0xa0] sm:%s471] %v560
                  %v562 = vld [vmem:[%s478 + $0x520] sm:%s471]
                  %563 = vst [vmem:[%s479 + $0xa4] sm:%s471] %v562
                  %v564 = vld [vmem:[%s478 + $0x540] sm:%s471]
                  %565 = vst [vmem:[%s479 + $0xa8] sm:%s471] %v564
                  %v566 = vld [vmem:[%s478 + $0x560] sm:%s471]
                  %567 = vst [vmem:[%s479 + $0xac] sm:%s471] %v566
                  %v568 = vld [vmem:[%s478 + $0x580] sm:%s471]
                  %569 = vst [vmem:[%s479 + $0xb0] sm:%s471] %v568
                  %v570 = vld [vmem:[%s478 + $0x5a0] sm:%s471]
                  %571 = vst [vmem:[%s479 + $0xb4] sm:%s471] %v570
                  %v572 = vld [vmem:[%s478 + $0x5c0] sm:%s471]
                  %573 = vst [vmem:[%s479 + $0xb8] sm:%s471] %v572
                  %v574 = vld [vmem:[%s478 + $0x5e0] sm:%s471]
                  %575 = vst [vmem:[%s479 + $0xbc] sm:%s471] %v574
                  %v576 = vld [vmem:[%s478 + $0x600] sm:%s471]
                  %577 = vst [vmem:[%s479 + $0xc0] sm:%s471] %v576
                  %v578 = vld [vmem:[%s478 + $0x620] sm:%s471]
                  %579 = vst [vmem:[%s479 + $0xc4] sm:%s471] %v578
                  %v580 = vld [vmem:[%s478 + $0x640] sm:%s471]
                  %581 = vst [vmem:[%s479 + $0xc8] sm:%s471] %v580
                  %v582 = vld [vmem:[%s478 + $0x660] sm:%s471]
                  %583 = vst [vmem:[%s479 + $0xcc] sm:%s471] %v582
                  %v584 = vld [vmem:[%s478 + $0x680] sm:%s471]
                  %585 = vst [vmem:[%s479 + $0xd0] sm:%s471] %v584
                  %v586 = vld [vmem:[%s478 + $0x6a0] sm:%s471]
                  %587 = vst [vmem:[%s479 + $0xd4] sm:%s471] %v586
                  %v588 = vld [vmem:[%s478 + $0x6c0] sm:%s471]
                  %589 = vst [vmem:[%s479 + $0xd8] sm:%s471] %v588
                  %v590 = vld [vmem:[%s478 + $0x6e0] sm:%s471]
                  %591 = vst [vmem:[%s479 + $0xdc] sm:%s471] %v590
                  %v592 = vld [vmem:[%s478 + $0x700] sm:%s471]
                  %593 = vst [vmem:[%s479 + $0xe0] sm:%s471] %v592
                  %v594 = vld [vmem:[%s478 + $0x720] sm:%s471]
                  %595 = vst [vmem:[%s479 + $0xe4] sm:%s471] %v594
                  %v596 = vld [vmem:[%s478 + $0x740] sm:%s471]
                  %597 = vst [vmem:[%s479 + $0xe8] sm:%s471] %v596
                  %v598 = vld [vmem:[%s478 + $0x760] sm:%s471]
                  %599 = vst [vmem:[%s479 + $0xec] sm:%s471] %v598
                  %v600 = vld [vmem:[%s478 + $0x780] sm:%s471]
                  %601 = vst [vmem:[%s479 + $0xf0] sm:%s471] %v600
                  %v602 = vld [vmem:[%s478 + $0x7a0] sm:%s471]
                  %603 = vst [vmem:[%s479 + $0xf4] sm:%s471] %v602
                  %v604 = vld [vmem:[%s478 + $0x7c0] sm:%s471]
                  %605 = vst [vmem:[%s479 + $0xf8] sm:%s471] %v604
                  %v606 = vld [vmem:[%s478 + $0x7e0] sm:%s471]
                  %607 = vst [vmem:[%s479 + $0xfc] sm:%s471] %v606
                $region83: #{_lambda_.11} parent=70 // loop_footer
                  %s477 = sadd.s32 1, %s473
                $region84: #{_lambda_.11} parent=70 // loop_footer_branch
                  %472 = sbr.rel target = $region80
                $region85: #{_lambda_.11} parent=70 // loop_exit
                  _
              $region71: #{_lambda_.11} parent=55 // pred_fallthru
                _
            $region56: #{_lambda_.11} parent=51 // pred_fallthru
              _
            // Predicated region
            $region57: #{_lambda_.11} parent=51 // pred_check
              _
            $region58: #{_lambda_.11} parent=51 // pred_check_branch
              %321 = sbr.rel (0) target = $region60
            $region59: #{_lambda_.11} parent=51 // pred_region
              %s323 = ssub.s32 16, 1
              loop: start=0, step=1, limit=1
              $region61: #{_lambda_.11} parent=59 // loop_pre_header
                _
              $region62: #{_lambda_.11} parent=59 // loop_header
                %s325 = sphi 0, %s329
                %p326 = scmp.ge.s32.totalorder %s325, 1
                %s330 = sphi %s315, %s315
                %s331 = sphi %s313, %s313
              $region63: #{_lambda_.11} parent=59 // loop_header_branch
                %328 = sbr.rel (%p326) target = $region67
              $region64: #{_lambda_.11} parent=59 // loop_body
                %v332 = vld [vmem:[%s330] sm:%s323]
                %333 = vst [vmem:[%s331] sm:%s323] %v332
                %v334 = vld [vmem:[%s330 + $0x20] sm:%s323]
                %335 = vst [vmem:[%s331 + $0x4] sm:%s323] %v334
                %v336 = vld [vmem:[%s330 + $0x40] sm:%s323]
                %337 = vst [vmem:[%s331 + $0x8] sm:%s323] %v336
                %v338 = vld [vmem:[%s330 + $0x60] sm:%s323]
                %339 = vst [vmem:[%s331 + $0xc] sm:%s323] %v338
                %v340 = vld [vmem:[%s330 + $0x80] sm:%s323]
                %341 = vst [vmem:[%s331 + $0x10] sm:%s323] %v340
                %v342 = vld [vmem:[%s330 + $0xa0] sm:%s323]
                %343 = vst [vmem:[%s331 + $0x14] sm:%s323] %v342
                %v344 = vld [vmem:[%s330 + $0xc0] sm:%s323]
                %345 = vst [vmem:[%s331 + $0x18] sm:%s323] %v344
                %v346 = vld [vmem:[%s330 + $0xe0] sm:%s323]
                %347 = vst [vmem:[%s331 + $0x1c] sm:%s323] %v346
                %v348 = vld [vmem:[%s330 + $0x100] sm:%s323]
                %349 = vst [vmem:[%s331 + $0x20] sm:%s323] %v348
                %v350 = vld [vmem:[%s330 + $0x120] sm:%s323]
                %351 = vst [vmem:[%s331 + $0x24] sm:%s323] %v350
                %v352 = vld [vmem:[%s330 + $0x140] sm:%s323]
                %353 = vst [vmem:[%s331 + $0x28] sm:%s323] %v352
                %v354 = vld [vmem:[%s330 + $0x160] sm:%s323]
                %355 = vst [vmem:[%s331 + $0x2c] sm:%s323] %v354
                %v356 = vld [vmem:[%s330 + $0x180] sm:%s323]
                %357 = vst [vmem:[%s331 + $0x30] sm:%s323] %v356
                %v358 = vld [vmem:[%s330 + $0x1a0] sm:%s323]
                %359 = vst [vmem:[%s331 + $0x34] sm:%s323] %v358
                %v360 = vld [vmem:[%s330 + $0x1c0] sm:%s323]
                %361 = vst [vmem:[%s331 + $0x38] sm:%s323] %v360
                %v362 = vld [vmem:[%s330 + $0x1e0] sm:%s323]
                %363 = vst [vmem:[%s331 + $0x3c] sm:%s323] %v362
                %v364 = vld [vmem:[%s330 + $0x200] sm:%s323]
                %365 = vst [vmem:[%s331 + $0x40] sm:%s323] %v364
                %v366 = vld [vmem:[%s330 + $0x220] sm:%s323]
                %367 = vst [vmem:[%s331 + $0x44] sm:%s323] %v366
                %v368 = vld [vmem:[%s330 + $0x240] sm:%s323]
                %369 = vst [vmem:[%s331 + $0x48] sm:%s323] %v368
                %v370 = vld [vmem:[%s330 + $0x260] sm:%s323]
                %371 = vst [vmem:[%s331 + $0x4c] sm:%s323] %v370
                %v372 = vld [vmem:[%s330 + $0x280] sm:%s323]
                %373 = vst [vmem:[%s331 + $0x50] sm:%s323] %v372
                %v374 = vld [vmem:[%s330 + $0x2a0] sm:%s323]
                %375 = vst [vmem:[%s331 + $0x54] sm:%s323] %v374
                %v376 = vld [vmem:[%s330 + $0x2c0] sm:%s323]
                %377 = vst [vmem:[%s331 + $0x58] sm:%s323] %v376
                %v378 = vld [vmem:[%s330 + $0x2e0] sm:%s323]
                %379 = vst [vmem:[%s331 + $0x5c] sm:%s323] %v378
                %v380 = vld [vmem:[%s330 + $0x300] sm:%s323]
                %381 = vst [vmem:[%s331 + $0x60] sm:%s323] %v380
                %v382 = vld [vmem:[%s330 + $0x320] sm:%s323]
                %383 = vst [vmem:[%s331 + $0x64] sm:%s323] %v382
                %v384 = vld [vmem:[%s330 + $0x340] sm:%s323]
                %385 = vst [vmem:[%s331 + $0x68] sm:%s323] %v384
                %v386 = vld [vmem:[%s330 + $0x360] sm:%s323]
                %387 = vst [vmem:[%s331 + $0x6c] sm:%s323] %v386
                %v388 = vld [vmem:[%s330 + $0x380] sm:%s323]
                %389 = vst [vmem:[%s331 + $0x70] sm:%s323] %v388
                %v390 = vld [vmem:[%s330 + $0x3a0] sm:%s323]
                %391 = vst [vmem:[%s331 + $0x74] sm:%s323] %v390
                %v392 = vld [vmem:[%s330 + $0x3c0] sm:%s323]
                %393 = vst [vmem:[%s331 + $0x78] sm:%s323] %v392
                %v394 = vld [vmem:[%s330 + $0x3e0] sm:%s323]
                %395 = vst [vmem:[%s331 + $0x7c] sm:%s323] %v394
                %v396 = vld [vmem:[%s330 + $0x400] sm:%s323]
                %397 = vst [vmem:[%s331 + $0x80] sm:%s323] %v396
                %v398 = vld [vmem:[%s330 + $0x420] sm:%s323]
                %399 = vst [vmem:[%s331 + $0x84] sm:%s323] %v398
                %v400 = vld [vmem:[%s330 + $0x440] sm:%s323]
                %401 = vst [vmem:[%s331 + $0x88] sm:%s323] %v400
                %v402 = vld [vmem:[%s330 + $0x460] sm:%s323]
                %403 = vst [vmem:[%s331 + $0x8c] sm:%s323] %v402
                %v404 = vld [vmem:[%s330 + $0x480] sm:%s323]
                %405 = vst [vmem:[%s331 + $0x90] sm:%s323] %v404
                %v406 = vld [vmem:[%s330 + $0x4a0] sm:%s323]
                %407 = vst [vmem:[%s331 + $0x94] sm:%s323] %v406
                %v408 = vld [vmem:[%s330 + $0x4c0] sm:%s323]
                %409 = vst [vmem:[%s331 + $0x98] sm:%s323] %v408
                %v410 = vld [vmem:[%s330 + $0x4e0] sm:%s323]
                %411 = vst [vmem:[%s331 + $0x9c] sm:%s323] %v410
                %v412 = vld [vmem:[%s330 + $0x500] sm:%s323]
                %413 = vst [vmem:[%s331 + $0xa0] sm:%s323] %v412
                %v414 = vld [vmem:[%s330 + $0x520] sm:%s323]
                %415 = vst [vmem:[%s331 + $0xa4] sm:%s323] %v414
                %v416 = vld [vmem:[%s330 + $0x540] sm:%s323]
                %417 = vst [vmem:[%s331 + $0xa8] sm:%s323] %v416
                %v418 = vld [vmem:[%s330 + $0x560] sm:%s323]
                %419 = vst [vmem:[%s331 + $0xac] sm:%s323] %v418
                %v420 = vld [vmem:[%s330 + $0x580] sm:%s323]
                %421 = vst [vmem:[%s331 + $0xb0] sm:%s323] %v420
                %v422 = vld [vmem:[%s330 + $0x5a0] sm:%s323]
                %423 = vst [vmem:[%s331 + $0xb4] sm:%s323] %v422
                %v424 = vld [vmem:[%s330 + $0x5c0] sm:%s323]
                %425 = vst [vmem:[%s331 + $0xb8] sm:%s323] %v424
                %v426 = vld [vmem:[%s330 + $0x5e0] sm:%s323]
                %427 = vst [vmem:[%s331 + $0xbc] sm:%s323] %v426
                %v428 = vld [vmem:[%s330 + $0x600] sm:%s323]
                %429 = vst [vmem:[%s331 + $0xc0] sm:%s323] %v428
                %v430 = vld [vmem:[%s330 + $0x620] sm:%s323]
                %431 = vst [vmem:[%s331 + $0xc4] sm:%s323] %v430
                %v432 = vld [vmem:[%s330 + $0x640] sm:%s323]
                %433 = vst [vmem:[%s331 + $0xc8] sm:%s323] %v432
                %v434 = vld [vmem:[%s330 + $0x660] sm:%s323]
                %435 = vst [vmem:[%s331 + $0xcc] sm:%s323] %v434
                %v436 = vld [vmem:[%s330 + $0x680] sm:%s323]
                %437 = vst [vmem:[%s331 + $0xd0] sm:%s323] %v436
                %v438 = vld [vmem:[%s330 + $0x6a0] sm:%s323]
                %439 = vst [vmem:[%s331 + $0xd4] sm:%s323] %v438
                %v440 = vld [vmem:[%s330 + $0x6c0] sm:%s323]
                %441 = vst [vmem:[%s331 + $0xd8] sm:%s323] %v440
                %v442 = vld [vmem:[%s330 + $0x6e0] sm:%s323]
                %443 = vst [vmem:[%s331 + $0xdc] sm:%s323] %v442
                %v444 = vld [vmem:[%s330 + $0x700] sm:%s323]
                %445 = vst [vmem:[%s331 + $0xe0] sm:%s323] %v444
                %v446 = vld [vmem:[%s330 + $0x720] sm:%s323]
                %447 = vst [vmem:[%s331 + $0xe4] sm:%s323] %v446
                %v448 = vld [vmem:[%s330 + $0x740] sm:%s323]
                %449 = vst [vmem:[%s331 + $0xe8] sm:%s323] %v448
                %v450 = vld [vmem:[%s330 + $0x760] sm:%s323]
                %451 = vst [vmem:[%s331 + $0xec] sm:%s323] %v450
                %v452 = vld [vmem:[%s330 + $0x780] sm:%s323]
                %453 = vst [vmem:[%s331 + $0xf0] sm:%s323] %v452
                %v454 = vld [vmem:[%s330 + $0x7a0] sm:%s323]
                %455 = vst [vmem:[%s331 + $0xf4] sm:%s323] %v454
                %v456 = vld [vmem:[%s330 + $0x7c0] sm:%s323]
                %457 = vst [vmem:[%s331 + $0xf8] sm:%s323] %v456
                %v458 = vld [vmem:[%s330 + $0x7e0] sm:%s323]
                %459 = vst [vmem:[%s331 + $0xfc] sm:%s323] %v458
              $region65: #{_lambda_.11} parent=59 // loop_footer
                %s329 = sadd.s32 1, %s325
              $region66: #{_lambda_.11} parent=59 // loop_footer_branch
                %324 = sbr.rel target = $region62
              $region67: #{_lambda_.11} parent=59 // loop_exit
                _
            $region60: #{_lambda_.11} parent=51 // pred_fallthru
              _
          $region52: #{_lambda_.11} parent=47 // pred_fallthru
            _
          %608 = vnop
        $region48: #{_lambda_.11} parent=43 // pred_fallthru
          _
        // Predicated region
        $region86: #{_lambda_.11} parent=43 // pred_check
          %p609 = pneg %p209
        $region87: #{_lambda_.11} parent=43 // pred_check_branch
          %611 = sbr.rel (%p609) target = $region89
        $region88: #{_lambda_.11} parent=43 // pred_region
          %p612 = scmp.lt.s32.totalorder %s16, 7
          %s613 = scalar_select %p612, %s16, 7
          %s614 = scalar_lea.vmem %s8, %s613
        $region89: #{_lambda_.11} parent=43 // pred_fallthru
          _
        // Predicated region
        $region90: #{_lambda_.11} parent=43 // pred_check
          %p615 = pneg %p235
        $region91: #{_lambda_.11} parent=43 // pred_check_branch
          %617 = sbr.rel (%p615) target = $region93
        $region92: #{_lambda_.11} parent=43 // pred_region
          %p618 = scmp.lt.s32.totalorder %s16, 7
          %s619 = scalar_select %p618, %s16, 7
          %s620 = scalar_lea.vmem %s9, %s619
        $region93: #{_lambda_.11} parent=43 // pred_fallthru
          _
      $region44: #{_lambda_.11} parent=5 // pred_fallthru
        _
      %p621 = scmp.le.s32.totalorder 1, %s16
      %p622 = scmp.lt.s32.totalorder %s16, 9
      %p623 = pnand %p621, %p622
      %p624 = pneg %p623
      // Predicated region
      $region94: #{_lambda_.11} parent=5 // pred_check
        _
      $region95: #{_lambda_.11} parent=5 // pred_check_branch
        %626 = sbr.rel (%p623) target = $region97
      $region96: #{_lambda_.11} parent=5 // pred_region
        %s627 = ssub.s32 %s16, 1
        %s628 = sand.u32 %s176, 1
        %s629 = sand.u32 %s176, 1
        %s630 = smul.addr %s629, 256
        %s631 = scalar_lea.vmem [#allocation2], %s630
        // Predicated region
        $region98: #{_lambda_.11} parent=96 // pred_check
          %p632 = pneg %p189
        $region99: #{_lambda_.11} parent=96 // pred_check_branch
          %634 = sbr.rel (%p632) target = $region101
        $region100: #{_lambda_.11} parent=96 // pred_region
          _
        $region101: #{_lambda_.11} parent=96 // pred_fallthru
          _
        %p635 = pneg %p37
        %p636 = pneg %p34
        %p637 = pneg %p58
        %p638 = pneg %p55
        %p639 = pneg %p79
        %p640 = pneg %p76
        %p641 = pneg %p100
        %p642 = pneg %p97
        %p643 = pneg %p121
        %p644 = pneg %p118
        %p645 = pneg %p142
        %p646 = pneg %p139
        %p647 = pneg %p163
        %p648 = pneg %p160
        %s649 = sand.u32 %s176, 1
        %s650 = sand.u32 %s176, 1
        %s651 = smul.addr %s650, 256
        %s652 = scalar_lea.vmem [#allocation2], %s651
        %p653 = pneg %p189
        %p654 = pneg %p186
        %p655 = scmp.lt.s32.totalorder %s21, 7
        %s656 = scalar_select %p655, %s21, 7
        %s657 = scalar_lea.vmem %s8, %s656
        %p658 = pneg %p215
        %p659 = pneg %p212
        %p660 = scmp.lt.s32.totalorder %s21, 7
        %s661 = scalar_select %p660, %s21, 7
        %s662 = scalar_lea.vmem %s9, %s661
        %p663 = pneg %p241
        %p664 = pneg %p238
        %p665 = pneg %p267
        %p666 = pneg %p264
        %p667 = scmp.lt.s32.totalorder %s21, 7
        %s668 = scalar_select %p667, %s21, 7
        %s669 = smul.addr %s668, 2
        %s670 = scalar_lea.vmem %s10, %s669
        %p671 = scmp.lt.s32.totalorder %s21, 7
        %s672 = scalar_select %p671, %s21, 7
        %s673 = scalar_lea.vmem %s8, %s672
        %p674 = scmp.lt.s32.totalorder %s21, 7
        %s675 = scalar_select %p674, %s21, 7
        %s676 = scalar_lea.vmem %s9, %s675
        %p677 = scmp.lt.s32.totalorder %s21, 7
        %s678 = scalar_select %p677, %s21, 7
        %s679 = smul.addr %s678, 2
        %s680 = scalar_lea.vmem %s10, %s679
        %v681 = vld [vmem:[%s0] sm:$0xf]
        %v682 = vld [vmem:[%s1] sm:$0xff]
        %v683 = vld [vmem:[%s1 + $0x8] sm:$0xff]
        %v684 = vld [vmem:[%s1 + $0x10] sm:$0xff]
        %v685 = vld [vmem:[%s1 + $0x18] sm:$0xff]
        %v686 = vld [vmem:[%s1 + $0x20] sm:$0xff]
        %v687 = vld [vmem:[%s1 + $0x28] sm:$0xff]
        %v688 = vld [vmem:[%s1 + $0x30] sm:$0xff]
        %v689 = vld [vmem:[%s1 + $0x38] sm:$0xff]
        %v690 = vld [vmem:[%s1 + $0x40] sm:$0xff]
        %v691 = vld [vmem:[%s1 + $0x48] sm:$0xff]
        %v692 = vld [vmem:[%s1 + $0x50] sm:$0xff]
        %v693 = vld [vmem:[%s1 + $0x58] sm:$0xff]
        %v694 = vld [vmem:[%s1 + $0x60] sm:$0xff]
        %v695 = vld [vmem:[%s1 + $0x68] sm:$0xff]
        %v696 = vld [vmem:[%s1 + $0x70] sm:$0xff]
        %v697 = vld [vmem:[%s1 + $0x78] sm:$0xff]
        %v698 = vld [vmem:[%s1 + $0x80] sm:$0xff]
        %v699 = vld [vmem:[%s1 + $0x88] sm:$0xff]
        %v700 = vld [vmem:[%s1 + $0x90] sm:$0xff]
        %v701 = vld [vmem:[%s1 + $0x98] sm:$0xff]
        %v702 = vld [vmem:[%s1 + $0xa0] sm:$0xff]
        %v703 = vld [vmem:[%s1 + $0xa8] sm:$0xff]
        %v704 = vld [vmem:[%s1 + $0xb0] sm:$0xff]
        %v705 = vld [vmem:[%s1 + $0xb8] sm:$0xff]
        %v706 = vld [vmem:[%s1 + $0xc0] sm:$0xff]
        %v707 = vld [vmem:[%s1 + $0xc8] sm:$0xff]
        %v708 = vld [vmem:[%s1 + $0xd0] sm:$0xff]
        %v709 = vld [vmem:[%s1 + $0xd8] sm:$0xff]
        %v710 = vld [vmem:[%s1 + $0xe0] sm:$0xff]
        %v711 = vld [vmem:[%s1 + $0xe8] sm:$0xff]
        %v712 = vld [vmem:[%s1 + $0xf0] sm:$0xff]
        %v713 = vld [vmem:[%s1 + $0xf8] sm:$0xff]
        %v714 = vld [vmem:[%s1 + $0x100] sm:$0xff]
        %v715 = vld [vmem:[%s1 + $0x108] sm:$0xff]
        %v716 = vld [vmem:[%s1 + $0x110] sm:$0xff]
        %v717 = vld [vmem:[%s1 + $0x118] sm:$0xff]
        %v718 = vld [vmem:[%s1 + $0x120] sm:$0xff]
        %v719 = vld [vmem:[%s1 + $0x128] sm:$0xff]
        %v720 = vld [vmem:[%s1 + $0x130] sm:$0xff]
        %v721 = vld [vmem:[%s1 + $0x138] sm:$0xff]
        %v722 = vld [vmem:[%s1 + $0x140] sm:$0xff]
        %v723 = vld [vmem:[%s1 + $0x148] sm:$0xff]
        %v724 = vld [vmem:[%s1 + $0x150] sm:$0xff]
        %v725 = vld [vmem:[%s1 + $0x158] sm:$0xff]
        %v726 = vld [vmem:[%s1 + $0x160] sm:$0xff]
        %v727 = vld [vmem:[%s1 + $0x168] sm:$0xff]
        %v728 = vld [vmem:[%s1 + $0x170] sm:$0xff]
        %v729 = vld [vmem:[%s1 + $0x178] sm:$0xff]
        %v730 = vld [vmem:[%s1 + $0x180] sm:$0xff]
        %v731 = vld [vmem:[%s1 + $0x188] sm:$0xff]
        %v732 = vld [vmem:[%s1 + $0x190] sm:$0xff]
        %v733 = vld [vmem:[%s1 + $0x198] sm:$0xff]
        %v734 = vld [vmem:[%s1 + $0x1a0] sm:$0xff]
        %v735 = vld [vmem:[%s1 + $0x1a8] sm:$0xff]
        %v736 = vld [vmem:[%s1 + $0x1b0] sm:$0xff]
        %v737 = vld [vmem:[%s1 + $0x1b8] sm:$0xff]
        %v738 = vld [vmem:[%s1 + $0x1c0] sm:$0xff]
        %v739 = vld [vmem:[%s1 + $0x1c8] sm:$0xff]
        %v740 = vld [vmem:[%s1 + $0x1d0] sm:$0xff]
        %v741 = vld [vmem:[%s1 + $0x1d8] sm:$0xff]
        %v742 = vld [vmem:[%s1 + $0x1e0] sm:$0xff]
        %v743 = vld [vmem:[%s1 + $0x1e8] sm:$0xff]
        %v744 = vld [vmem:[%s1 + $0x1f0] sm:$0xff]
        %v745 = vld [vmem:[%s1 + $0x1f8] sm:$0xff]
        %747 = vst [vmem:[#allocation1] ss:$9 sm:$0xff] %v681
        %v748 = vld [vmem:[#allocation1] sm:$0xff]
        %v749 = vld [vmem:[#allocation1 + $0x9] sm:$0xff]
        %v750 = vld [vmem:[#allocation1 + $0x12] sm:$0xff]
        %v751 = vld [vmem:[#allocation1 + $0x1b] sm:$0xff]
        %v820 = vunpack.c.l.b16 %v682
        %v821 = vunpack.c.h.b16 %v682
        %v822 = vunpack.c.l.b16 %v683
        %v823 = vunpack.c.h.b16 %v683
        %v824 = vunpack.c.l.b16 %v684
        %v825 = vunpack.c.h.b16 %v684
        %v826 = vunpack.c.l.b16 %v685
        %v827 = vunpack.c.h.b16 %v685
        %v828 = vunpack.c.l.b16 %v686
        %v829 = vunpack.c.h.b16 %v686
        %v830 = vunpack.c.l.b16 %v687
        %v831 = vunpack.c.h.b16 %v687
        %v832 = vunpack.c.l.b16 %v688
        %v833 = vunpack.c.h.b16 %v688
        %v834 = vunpack.c.l.b16 %v689
        %v835 = vunpack.c.h.b16 %v689
        %v836 = vunpack.c.l.b16 %v690
        %v837 = vunpack.c.h.b16 %v690
        %v838 = vunpack.c.l.b16 %v691
        %v839 = vunpack.c.h.b16 %v691
        %v840 = vunpack.c.l.b16 %v692
        %v841 = vunpack.c.h.b16 %v692
        %v842 = vunpack.c.l.b16 %v693
        %v843 = vunpack.c.h.b16 %v693
        %v844 = vunpack.c.l.b16 %v694
        %v845 = vunpack.c.h.b16 %v694
        %v846 = vunpack.c.l.b16 %v695
        %v847 = vunpack.c.h.b16 %v695
        %v848 = vunpack.c.l.b16 %v696
        %v849 = vunpack.c.h.b16 %v696
        %v850 = vunpack.c.l.b16 %v697
        %v851 = vunpack.c.h.b16 %v697
        %v852 = vunpack.c.l.b16 %v698
        %v853 = vunpack.c.h.b16 %v698
        %v854 = vunpack.c.l.b16 %v699
        %v855 = vunpack.c.h.b16 %v699
        %v856 = vunpack.c.l.b16 %v700
        %v857 = vunpack.c.h.b16 %v700
        %v858 = vunpack.c.l.b16 %v701
        %v859 = vunpack.c.h.b16 %v701
        %v860 = vunpack.c.l.b16 %v702
        %v861 = vunpack.c.h.b16 %v702
        %v862 = vunpack.c.l.b16 %v703
        %v863 = vunpack.c.h.b16 %v703
        %v864 = vunpack.c.l.b16 %v704
        %v865 = vunpack.c.h.b16 %v704
        %v866 = vunpack.c.l.b16 %v705
        %v867 = vunpack.c.h.b16 %v705
        %v868 = vunpack.c.l.b16 %v706
        %v869 = vunpack.c.h.b16 %v706
        %v870 = vunpack.c.l.b16 %v707
        %v871 = vunpack.c.h.b16 %v707
        %v872 = vunpack.c.l.b16 %v708
        %v873 = vunpack.c.h.b16 %v708
        %v874 = vunpack.c.l.b16 %v709
        %v875 = vunpack.c.h.b16 %v709
        %v876 = vunpack.c.l.b16 %v710
        %v877 = vunpack.c.h.b16 %v710
        %v878 = vunpack.c.l.b16 %v711
        %v879 = vunpack.c.h.b16 %v711
        %v880 = vunpack.c.l.b16 %v712
        %v881 = vunpack.c.h.b16 %v712
        %v882 = vunpack.c.l.b16 %v713
        %v883 = vunpack.c.h.b16 %v713
        %v884 = vunpack.c.l.b16 %v714
        %v885 = vunpack.c.h.b16 %v714
        %v886 = vunpack.c.l.b16 %v715
        %v887 = vunpack.c.h.b16 %v715
        %v888 = vunpack.c.l.b16 %v716
        %v889 = vunpack.c.h.b16 %v716
        %v890 = vunpack.c.l.b16 %v717
        %v891 = vunpack.c.h.b16 %v717
        %v892 = vunpack.c.l.b16 %v718
        %v893 = vunpack.c.h.b16 %v718
        %v894 = vunpack.c.l.b16 %v719
        %v895 = vunpack.c.h.b16 %v719
        %v896 = vunpack.c.l.b16 %v720
        %v897 = vunpack.c.h.b16 %v720
        %v898 = vunpack.c.l.b16 %v721
        %v899 = vunpack.c.h.b16 %v721
        %v900 = vunpack.c.l.b16 %v722
        %v901 = vunpack.c.h.b16 %v722
        %v902 = vunpack.c.l.b16 %v723
        %v903 = vunpack.c.h.b16 %v723
        %v904 = vunpack.c.l.b16 %v724
        %v905 = vunpack.c.h.b16 %v724
        %v906 = vunpack.c.l.b16 %v725
        %v907 = vunpack.c.h.b16 %v725
        %v908 = vunpack.c.l.b16 %v726
        %v909 = vunpack.c.h.b16 %v726
        %v910 = vunpack.c.l.b16 %v727
        %v911 = vunpack.c.h.b16 %v727
        %v912 = vunpack.c.l.b16 %v728
        %v913 = vunpack.c.h.b16 %v728
        %v914 = vunpack.c.l.b16 %v729
        %v915 = vunpack.c.h.b16 %v729
        %v916 = vunpack.c.l.b16 %v730
        %v917 = vunpack.c.h.b16 %v730
        %v918 = vunpack.c.l.b16 %v731
        %v919 = vunpack.c.h.b16 %v731
        %v920 = vunpack.c.l.b16 %v732
        %v921 = vunpack.c.h.b16 %v732
        %v922 = vunpack.c.l.b16 %v733
        %v923 = vunpack.c.h.b16 %v733
        %v924 = vunpack.c.l.b16 %v734
        %v925 = vunpack.c.h.b16 %v734
        %v926 = vunpack.c.l.b16 %v735
        %v927 = vunpack.c.h.b16 %v735
        %v928 = vunpack.c.l.b16 %v736
        %v929 = vunpack.c.h.b16 %v736
        %v930 = vunpack.c.l.b16 %v737
        %v931 = vunpack.c.h.b16 %v737
        %v932 = vunpack.c.l.b16 %v738
        %v933 = vunpack.c.h.b16 %v738
        %v934 = vunpack.c.l.b16 %v739
        %v935 = vunpack.c.h.b16 %v739
        %v936 = vunpack.c.l.b16 %v740
        %v937 = vunpack.c.h.b16 %v740
        %v938 = vunpack.c.l.b16 %v741
        %v939 = vunpack.c.h.b16 %v741
        %v940 = vunpack.c.l.b16 %v742
        %v941 = vunpack.c.h.b16 %v742
        %v942 = vunpack.c.l.b16 %v743
        %v943 = vunpack.c.h.b16 %v743
        %v944 = vunpack.c.l.b16 %v744
        %v945 = vunpack.c.h.b16 %v744
        %v946 = vunpack.c.l.b16 %v745
        %v947 = vunpack.c.h.b16 %v745
        %v948 = vpack.c.b16 %v822, %v820
        %v949 = vpack.c.b16 %v823, %v821
        %v950 = vpack.c.b16 %v826, %v824
        %v951 = vpack.c.b16 %v827, %v825
        %v952 = vpack.c.b16 %v830, %v828
        %v953 = vpack.c.b16 %v831, %v829
        %v954 = vpack.c.b16 %v834, %v832
        %v955 = vpack.c.b16 %v835, %v833
        %v956 = vpack.c.b16 %v838, %v836
        %v957 = vpack.c.b16 %v839, %v837
        %v958 = vpack.c.b16 %v842, %v840
        %v959 = vpack.c.b16 %v843, %v841
        %v960 = vpack.c.b16 %v846, %v844
        %v961 = vpack.c.b16 %v847, %v845
        %v962 = vpack.c.b16 %v850, %v848
        %v963 = vpack.c.b16 %v851, %v849
        %v964 = vpack.c.b16 %v854, %v852
        %v965 = vpack.c.b16 %v855, %v853
        %v966 = vpack.c.b16 %v858, %v856
        %v967 = vpack.c.b16 %v859, %v857
        %v968 = vpack.c.b16 %v862, %v860
        %v969 = vpack.c.b16 %v863, %v861
        %v970 = vpack.c.b16 %v866, %v864
        %v971 = vpack.c.b16 %v867, %v865
        %v972 = vpack.c.b16 %v870, %v868
        %v973 = vpack.c.b16 %v871, %v869
        %v974 = vpack.c.b16 %v874, %v872
        %v975 = vpack.c.b16 %v875, %v873
        %v976 = vpack.c.b16 %v878, %v876
        %v977 = vpack.c.b16 %v879, %v877
        %v978 = vpack.c.b16 %v882, %v880
        %v979 = vpack.c.b16 %v883, %v881
        %v980 = vpack.c.b16 %v886, %v884
        %v981 = vpack.c.b16 %v887, %v885
        %v982 = vpack.c.b16 %v890, %v888
        %v983 = vpack.c.b16 %v891, %v889
        %v984 = vpack.c.b16 %v894, %v892
        %v985 = vpack.c.b16 %v895, %v893
        %v986 = vpack.c.b16 %v898, %v896
        %v987 = vpack.c.b16 %v899, %v897
        %v988 = vpack.c.b16 %v902, %v900
        %v989 = vpack.c.b16 %v903, %v901
        %v990 = vpack.c.b16 %v906, %v904
        %v991 = vpack.c.b16 %v907, %v905
        %v992 = vpack.c.b16 %v910, %v908
        %v993 = vpack.c.b16 %v911, %v909
        %v994 = vpack.c.b16 %v914, %v912
        %v995 = vpack.c.b16 %v915, %v913
        %v996 = vpack.c.b16 %v918, %v916
        %v997 = vpack.c.b16 %v919, %v917
        %v998 = vpack.c.b16 %v922, %v920
        %v999 = vpack.c.b16 %v923, %v921
        %v1000 = vpack.c.b16 %v926, %v924
        %v1001 = vpack.c.b16 %v927, %v925
        %v1002 = vpack.c.b16 %v930, %v928
        %v1003 = vpack.c.b16 %v931, %v929
        %v1004 = vpack.c.b16 %v934, %v932
        %v1005 = vpack.c.b16 %v935, %v933
        %v1006 = vpack.c.b16 %v938, %v936
        %v1007 = vpack.c.b16 %v939, %v937
        %v1008 = vpack.c.b16 %v942, %v940
        %v1009 = vpack.c.b16 %v943, %v941
        %v1010 = vpack.c.b16 %v946, %v944
        %v1011 = vpack.c.b16 %v947, %v945
        %1076 = vmatpush.bf16.msra.mxu0 %v962
        %1077 = vmatpush.bf16.msra.mxu0 %v960
        %1078 = vmatpush.bf16.msra.mxu0 %v958
        %1079 = vmatpush.bf16.msra.mxu0 %v956
        %1080 = vmatpush.bf16.msra.mxu0 %v954
        %1081 = vmatpush.bf16.msra.mxu0 %v952
        %1082 = vmatpush.bf16.msra.mxu0 %v950
        %1083 = vmatpush.bf16.msra.mxu0 %v948
        %1084 = vmatmul.bf16.gmra.mxu0 %v748
        %v1085 = vpop.f32.mrf.mxu0
        %v1086 = vadd.f32 0.0, %v1085
        %v1087 = vpop.f32.mrf.mxu0
        %1088 = vdwg.mxu0
        %1089 = vmatpush.bf16.msra.mxu0 %v978
        %1090 = vmatpush.bf16.msra.mxu0 %v976
        %1091 = vmatpush.bf16.msra.mxu0 %v974
        %1092 = vmatpush.bf16.msra.mxu0 %v972
        %1093 = vmatpush.bf16.msra.mxu0 %v970
        %1094 = vmatpush.bf16.msra.mxu0 %v968
        %1095 = vmatpush.bf16.msra.mxu0 %v966
        %1096 = vmatpush.bf16.msra.mxu0 %v964
        %1097 = vmatmul.bf16.gmra.mxu0 %v749
        %v1098 = vpop.f32.mrf.mxu0
        %v1099 = vadd.f32 %v1086, %v1098
        %v1100 = vpop.f32.mrf.mxu0
        %1101 = vdwg.mxu0
        %1102 = vmatpush.bf16.msra.mxu0 %v994
        %1103 = vmatpush.bf16.msra.mxu0 %v992
        %1104 = vmatpush.bf16.msra.mxu0 %v990
        %1105 = vmatpush.bf16.msra.mxu0 %v988
        %1106 = vmatpush.bf16.msra.mxu0 %v986
        %1107 = vmatpush.bf16.msra.mxu0 %v984
        %1108 = vmatpush.bf16.msra.mxu0 %v982
        %1109 = vmatpush.bf16.msra.mxu0 %v980
        %1110 = vmatmul.bf16.gmra.mxu0 %v750
        %v1111 = vpop.f32.mrf.mxu0
        %v1112 = vadd.f32 %v1099, %v1111
        %v1113 = vpop.f32.mrf.mxu0
        %1114 = vdwg.mxu0
        %1115 = vmatpush.bf16.msra.mxu0 %v1010
        %1116 = vmatpush.bf16.msra.mxu0 %v1008
        %1117 = vmatpush.bf16.msra.mxu0 %v1006
        %1118 = vmatpush.bf16.msra.mxu0 %v1004
        %1119 = vmatpush.bf16.msra.mxu0 %v1002
        %1120 = vmatpush.bf16.msra.mxu0 %v1000
        %1121 = vmatpush.bf16.msra.mxu0 %v998
        %1122 = vmatpush.bf16.msra.mxu0 %v996
        %1123 = vmatmul.bf16.gmra.mxu0 %v751
        %v1124 = vpop.f32.mrf.mxu0
        %v1125 = vadd.f32 %v1112, %v1124
        %v1126 = vpop.f32.mrf.mxu0
        %1127 = vdwg.mxu0
        %1128 = vmatpush.bf16.msra.mxu0 %v963
        %1129 = vmatpush.bf16.msra.mxu0 %v961
        %1130 = vmatpush.bf16.msra.mxu0 %v959
        %1131 = vmatpush.bf16.msra.mxu0 %v957
        %1132 = vmatpush.bf16.msra.mxu0 %v955
        %1133 = vmatpush.bf16.msra.mxu0 %v953
        %1134 = vmatpush.bf16.msra.mxu0 %v951
        %1135 = vmatpush.bf16.msra.mxu0 %v949
        %1136 = vmatmul.bf16.gmra.mxu0 %v748
        %v1137 = vpop.f32.mrf.mxu0
        %v1138 = vadd.f32 0.0, %v1137
        %v1139 = vpop.f32.mrf.mxu0
        %1140 = vdwg.mxu0
        %1141 = vmatpush.bf16.msra.mxu0 %v979
        %1142 = vmatpush.bf16.msra.mxu0 %v977
        %1143 = vmatpush.bf16.msra.mxu0 %v975
        %1144 = vmatpush.bf16.msra.mxu0 %v973
        %1145 = vmatpush.bf16.msra.mxu0 %v971
        %1146 = vmatpush.bf16.msra.mxu0 %v969
        %1147 = vmatpush.bf16.msra.mxu0 %v967
        %1148 = vmatpush.bf16.msra.mxu0 %v965
        %1149 = vmatmul.bf16.gmra.mxu0 %v749
        %v1150 = vpop.f32.mrf.mxu0
        %v1151 = vadd.f32 %v1138, %v1150
        %v1152 = vpop.f32.mrf.mxu0
        %1153 = vdwg.mxu0
        %1154 = vmatpush.bf16.msra.mxu0 %v995
        %1155 = vmatpush.bf16.msra.mxu0 %v993
        %1156 = vmatpush.bf16.msra.mxu0 %v991
        %1157 = vmatpush.bf16.msra.mxu0 %v989
        %1158 = vmatpush.bf16.msra.mxu0 %v987
        %1159 = vmatpush.bf16.msra.mxu0 %v985
        %1160 = vmatpush.bf16.msra.mxu0 %v983
        %1161 = vmatpush.bf16.msra.mxu0 %v981
        %1162 = vmatmul.bf16.gmra.mxu0 %v750
        %v1163 = vpop.f32.mrf.mxu0
        %v1164 = vadd.f32 %v1151, %v1163
        %v1165 = vpop.f32.mrf.mxu0
        %1166 = vdwg.mxu0
        %1167 = vmatpush.bf16.msra.mxu0 %v1011
        %1168 = vmatpush.bf16.msra.mxu0 %v1009
        %1169 = vmatpush.bf16.msra.mxu0 %v1007
        %1170 = vmatpush.bf16.msra.mxu0 %v1005
        %1171 = vmatpush.bf16.msra.mxu0 %v1003
        %1172 = vmatpush.bf16.msra.mxu0 %v1001
        %1173 = vmatpush.bf16.msra.mxu0 %v999
        %1174 = vmatpush.bf16.msra.mxu0 %v997
        %1175 = vmatmul.bf16.gmra.mxu0 %v751
        %v1176 = vpop.f32.mrf.mxu0
        %v1177 = vadd.f32 %v1164, %v1176
        %v1178 = vpop.f32.mrf.mxu0
        %1179 = vdwg.mxu0
        %v1180 = vld [vmem:[%s2] sm:$0x3]
        %v1181 = vld [vmem:[%s3] sm:$0x3]
        %vm1182 = vcmask 1041408
        %v1183 = vsel %vm1182, %v1125, 0.0
        %v1184 = vrot.slane %v1183, 4
        %v1185 = vadd.f32 %v1183, %v1184
        %v1186 = vrot.slane %v1185, 2
        %v1187 = vadd.f32 %v1185, %v1186
        %v1188 = vrot.slane %v1187, 1
        %v1189 = vadd.f32 %v1187, %v1188
        %v1190 = vsel %vm1182, %v1177, 0.0
        %v1191 = vrot.slane %v1190, 4
        %v1192 = vadd.f32 %v1190, %v1191
        %v1193 = vrot.slane %v1192, 2
        %v1194 = vadd.f32 %v1192, %v1193
        %v1195 = vrot.slane %v1194, 1
        %v1196 = vadd.f32 %v1194, %v1195
        %v1197 = vrcp.pop 2.0
        %v1198 = vmul.f32 2.0, %v1197
        %v1199 = vsub.f32 1.0, %v1198
        %v1200 = vmul.f32 %v1197, %v1199
        %v1201 = vadd.f32 %v1197, %v1200
        %vm1202 = vweird.f32 %v1197
        %v1203 = vsel %vm1202, %v1197, %v1201
        %v1204 = vmul.f32 %v1189, %v1203
        %v1205 = vmul.f32 %v1196, %v1203
        %v1206 = vsub.f32 %v1125, %v1204
        %v1207 = vsub.f32 %v1177, %v1205
        %v1208 = vmul.f32 %v1206, %v1206
        %v1209 = vmul.f32 %v1207, %v1207
        %v1210 = vsel %vm1182, %v1208, 0.0
        %v1211 = vrot.slane %v1210, 4
        %v1212 = vadd.f32 %v1210, %v1211
        %v1213 = vrot.slane %v1212, 2
        %v1214 = vadd.f32 %v1212, %v1213
        %v1215 = vrot.slane %v1214, 1
        %v1216 = vadd.f32 %v1214, %v1215
        %v1217 = vsel %vm1182, %v1209, 0.0
        %v1218 = vrot.slane %v1217, 4
        %v1219 = vadd.f32 %v1217, %v1218
        %v1220 = vrot.slane %v1219, 2
        %v1221 = vadd.f32 %v1219, %v1220
        %v1222 = vrot.slane %v1221, 1
        %v1223 = vadd.f32 %v1221, %v1222
        %v1224 = vmul.f32 %v1216, %v1203
        %v1225 = vmul.f32 %v1223, %v1203
        %v1226 = vadd.f32 %v1224, 1e-05
        %v1227 = vadd.f32 %v1225, 1e-05
        %v1228 = vrsqrt.pop %v1226
        %v1229 = vmul.f32 %v1228, %v1226
        %v1230 = vmul.f32 %v1229, %v1228
        %v1231 = vmul.f32 0.5, %v1230
        %v1232 = vsub.f32 1.5, %v1231
        %v1233 = vmul.f32 %v1228, %v1232
        %vm1234 = vweird.f32 %v1226
        %vm1235 = vweird.f32 %v1228
        %vm1236 = vmor %vm1234, %vm1235
        %v1237 = vsel %vm1236, %v1228, %v1233
        %v1238 = vrsqrt.pop %v1227
        %v1239 = vmul.f32 %v1238, %v1227
        %v1240 = vmul.f32 %v1239, %v1238
        %v1241 = vmul.f32 0.5, %v1240
        %v1242 = vsub.f32 1.5, %v1241
        %v1243 = vmul.f32 %v1238, %v1242
        %vm1244 = vweird.f32 %v1227
        %vm1245 = vweird.f32 %v1238
        %vm1246 = vmor %vm1244, %vm1245
        %v1247 = vsel %vm1246, %v1238, %v1243
        %v1248 = vmul.f32 %v1206, %v1237
        %v1249 = vmul.f32 %v1207, %v1247
        %v1251 = vperm.slane %v1180, 0
        %v1252 = vperm.slane %v1180, 1
        %v1255 = vmul.f32 %v1248, %v1251
        %v1256 = vmul.f32 %v1249, %v1252
        %v1258 = vperm.slane %v1181, 0
        %v1259 = vperm.slane %v1181, 1
        %v1262 = vadd.f32 %v1255, %v1258
        %v1263 = vadd.f32 %v1256, %v1259
        %vm1264 = vcmp.ge.f32.partialorder %v1262, 0.0
        %vm1265 = vcmp.ge.f32.partialorder %v1263, 0.0
        %v1266 = vmul.f32 %v1262, 0.01
        %v1267 = vmul.f32 %v1263, 0.01
        %v1268 = vsel %vm1264, %v1262, %v1266
        %v1269 = vsel %vm1265, %v1263, %v1267
        %v1270 = vpack.c.bf16 %v1268, %v1268
        %v1271 = vpack.c.bf16 %v1269, %v1269
        %v1272 = vld [vmem:[%s4] sm:$0xff]
        %v1273 = vld [vmem:[%s4 + $0x8] sm:$0xff]
        %v1274 = vld [vmem:[%s4 + $0x10] sm:$0xff]
        %v1275 = vld [vmem:[%s4 + $0x18] sm:$0xff]
        %v1276 = vld [vmem:[%s4 + $0x20] sm:$0xff]
        %v1277 = vld [vmem:[%s4 + $0x28] sm:$0xff]
        %v1278 = vld [vmem:[%s4 + $0x30] sm:$0xff]
        %v1279 = vld [vmem:[%s4 + $0x38] sm:$0xff]
        %v1280 = vld [vmem:[%s4 + $0x40] sm:$0xff]
        %v1281 = vld [vmem:[%s4 + $0x48] sm:$0xff]
        %v1282 = vld [vmem:[%s4 + $0x50] sm:$0xff]
        %v1283 = vld [vmem:[%s4 + $0x58] sm:$0xff]
        %v1284 = vld [vmem:[%s4 + $0x60] sm:$0xff]
        %v1285 = vld [vmem:[%s4 + $0x68] sm:$0xff]
        %v1286 = vld [vmem:[%s4 + $0x70] sm:$0xff]
        %v1287 = vld [vmem:[%s4 + $0x78] sm:$0xff]
        %v1288 = vld [vmem:[%s4 + $0x80] sm:$0xff]
        %v1289 = vld [vmem:[%s4 + $0x88] sm:$0xff]
        %v1290 = vld [vmem:[%s4 + $0x90] sm:$0xff]
        %v1291 = vld [vmem:[%s4 + $0x98] sm:$0xff]
        %v1292 = vld [vmem:[%s4 + $0xa0] sm:$0xff]
        %v1293 = vld [vmem:[%s4 + $0xa8] sm:$0xff]
        %v1294 = vld [vmem:[%s4 + $0xb0] sm:$0xff]
        %v1295 = vld [vmem:[%s4 + $0xb8] sm:$0xff]
        %v1296 = vld [vmem:[%s4 + $0xc0] sm:$0xff]
        %v1297 = vld [vmem:[%s4 + $0xc8] sm:$0xff]
        %v1298 = vld [vmem:[%s4 + $0xd0] sm:$0xff]
        %v1299 = vld [vmem:[%s4 + $0xd8] sm:$0xff]
        %v1300 = vld [vmem:[%s4 + $0xe0] sm:$0xff]
        %v1301 = vld [vmem:[%s4 + $0xe8] sm:$0xff]
        %v1302 = vld [vmem:[%s4 + $0xf0] sm:$0xff]
        %v1303 = vld [vmem:[%s4 + $0xf8] sm:$0xff]
        %v1304 = vld [vmem:[%s4 + $0x100] sm:$0xff]
        %v1305 = vld [vmem:[%s4 + $0x108] sm:$0xff]
        %v1306 = vld [vmem:[%s4 + $0x110] sm:$0xff]
        %v1307 = vld [vmem:[%s4 + $0x118] sm:$0xff]
        %v1308 = vld [vmem:[%s4 + $0x120] sm:$0xff]
        %v1309 = vld [vmem:[%s4 + $0x128] sm:$0xff]
        %v1310 = vld [vmem:[%s4 + $0x130] sm:$0xff]
        %v1311 = vld [vmem:[%s4 + $0x138] sm:$0xff]
        %v1312 = vld [vmem:[%s4 + $0x140] sm:$0xff]
        %v1313 = vld [vmem:[%s4 + $0x148] sm:$0xff]
        %v1314 = vld [vmem:[%s4 + $0x150] sm:$0xff]
        %v1315 = vld [vmem:[%s4 + $0x158] sm:$0xff]
        %v1316 = vld [vmem:[%s4 + $0x160] sm:$0xff]
        %v1317 = vld [vmem:[%s4 + $0x168] sm:$0xff]
        %v1318 = vld [vmem:[%s4 + $0x170] sm:$0xff]
        %v1319 = vld [vmem:[%s4 + $0x178] sm:$0xff]
        %v1320 = vld [vmem:[%s4 + $0x180] sm:$0xff]
        %v1321 = vld [vmem:[%s4 + $0x188] sm:$0xff]
        %v1322 = vld [vmem:[%s4 + $0x190] sm:$0xff]
        %v1323 = vld [vmem:[%s4 + $0x198] sm:$0xff]
        %v1324 = vld [vmem:[%s4 + $0x1a0] sm:$0xff]
        %v1325 = vld [vmem:[%s4 + $0x1a8] sm:$0xff]
        %v1326 = vld [vmem:[%s4 + $0x1b0] sm:$0xff]
        %v1327 = vld [vmem:[%s4 + $0x1b8] sm:$0xff]
        %v1328 = vld [vmem:[%s4 + $0x1c0] sm:$0xff]
        %v1329 = vld [vmem:[%s4 + $0x1c8] sm:$0xff]
        %v1330 = vld [vmem:[%s4 + $0x1d0] sm:$0xff]
        %v1331 = vld [vmem:[%s4 + $0x1d8] sm:$0xff]
        %v1332 = vld [vmem:[%s4 + $0x1e0] sm:$0xff]
        %v1333 = vld [vmem:[%s4 + $0x1e8] sm:$0xff]
        %v1334 = vld [vmem:[%s4 + $0x1f0] sm:$0xff]
        %v1335 = vld [vmem:[%s4 + $0x1f8] sm:$0xff]
        %v1400 = vunpack.c.l.b16 %v1272
        %v1401 = vunpack.c.h.b16 %v1272
        %v1402 = vunpack.c.l.b16 %v1273
        %v1403 = vunpack.c.h.b16 %v1273
        %v1404 = vunpack.c.l.b16 %v1274
        %v1405 = vunpack.c.h.b16 %v1274
        %v1406 = vunpack.c.l.b16 %v1275
        %v1407 = vunpack.c.h.b16 %v1275
        %v1408 = vunpack.c.l.b16 %v1276
        %v1409 = vunpack.c.h.b16 %v1276
        %v1410 = vunpack.c.l.b16 %v1277
        %v1411 = vunpack.c.h.b16 %v1277
        %v1412 = vunpack.c.l.b16 %v1278
        %v1413 = vunpack.c.h.b16 %v1278
        %v1414 = vunpack.c.l.b16 %v1279
        %v1415 = vunpack.c.h.b16 %v1279
        %v1416 = vunpack.c.l.b16 %v1280
        %v1417 = vunpack.c.h.b16 %v1280
        %v1418 = vunpack.c.l.b16 %v1281
        %v1419 = vunpack.c.h.b16 %v1281
        %v1420 = vunpack.c.l.b16 %v1282
        %v1421 = vunpack.c.h.b16 %v1282
        %v1422 = vunpack.c.l.b16 %v1283
        %v1423 = vunpack.c.h.b16 %v1283
        %v1424 = vunpack.c.l.b16 %v1284
        %v1425 = vunpack.c.h.b16 %v1284
        %v1426 = vunpack.c.l.b16 %v1285
        %v1427 = vunpack.c.h.b16 %v1285
        %v1428 = vunpack.c.l.b16 %v1286
        %v1429 = vunpack.c.h.b16 %v1286
        %v1430 = vunpack.c.l.b16 %v1287
        %v1431 = vunpack.c.h.b16 %v1287
        %v1432 = vunpack.c.l.b16 %v1288
        %v1433 = vunpack.c.h.b16 %v1288
        %v1434 = vunpack.c.l.b16 %v1289
        %v1435 = vunpack.c.h.b16 %v1289
        %v1436 = vunpack.c.l.b16 %v1290
        %v1437 = vunpack.c.h.b16 %v1290
        %v1438 = vunpack.c.l.b16 %v1291
        %v1439 = vunpack.c.h.b16 %v1291
        %v1440 = vunpack.c.l.b16 %v1292
        %v1441 = vunpack.c.h.b16 %v1292
        %v1442 = vunpack.c.l.b16 %v1293
        %v1443 = vunpack.c.h.b16 %v1293
        %v1444 = vunpack.c.l.b16 %v1294
        %v1445 = vunpack.c.h.b16 %v1294
        %v1446 = vunpack.c.l.b16 %v1295
        %v1447 = vunpack.c.h.b16 %v1295
        %v1448 = vunpack.c.l.b16 %v1296
        %v1449 = vunpack.c.h.b16 %v1296
        %v1450 = vunpack.c.l.b16 %v1297
        %v1451 = vunpack.c.h.b16 %v1297
        %v1452 = vunpack.c.l.b16 %v1298
        %v1453 = vunpack.c.h.b16 %v1298
        %v1454 = vunpack.c.l.b16 %v1299
        %v1455 = vunpack.c.h.b16 %v1299
        %v1456 = vunpack.c.l.b16 %v1300
        %v1457 = vunpack.c.h.b16 %v1300
        %v1458 = vunpack.c.l.b16 %v1301
        %v1459 = vunpack.c.h.b16 %v1301
        %v1460 = vunpack.c.l.b16 %v1302
        %v1461 = vunpack.c.h.b16 %v1302
        %v1462 = vunpack.c.l.b16 %v1303
        %v1463 = vunpack.c.h.b16 %v1303
        %v1464 = vunpack.c.l.b16 %v1304
        %v1465 = vunpack.c.h.b16 %v1304
        %v1466 = vunpack.c.l.b16 %v1305
        %v1467 = vunpack.c.h.b16 %v1305
        %v1468 = vunpack.c.l.b16 %v1306
        %v1469 = vunpack.c.h.b16 %v1306
        %v1470 = vunpack.c.l.b16 %v1307
        %v1471 = vunpack.c.h.b16 %v1307
        %v1472 = vunpack.c.l.b16 %v1308
        %v1473 = vunpack.c.h.b16 %v1308
        %v1474 = vunpack.c.l.b16 %v1309
        %v1475 = vunpack.c.h.b16 %v1309
        %v1476 = vunpack.c.l.b16 %v1310
        %v1477 = vunpack.c.h.b16 %v1310
        %v1478 = vunpack.c.l.b16 %v1311
        %v1479 = vunpack.c.h.b16 %v1311
        %v1480 = vunpack.c.l.b16 %v1312
        %v1481 = vunpack.c.h.b16 %v1312
        %v1482 = vunpack.c.l.b16 %v1313
        %v1483 = vunpack.c.h.b16 %v1313
        %v1484 = vunpack.c.l.b16 %v1314
        %v1485 = vunpack.c.h.b16 %v1314
        %v1486 = vunpack.c.l.b16 %v1315
        %v1487 = vunpack.c.h.b16 %v1315
        %v1488 = vunpack.c.l.b16 %v1316
        %v1489 = vunpack.c.h.b16 %v1316
        %v1490 = vunpack.c.l.b16 %v1317
        %v1491 = vunpack.c.h.b16 %v1317
        %v1492 = vunpack.c.l.b16 %v1318
        %v1493 = vunpack.c.h.b16 %v1318
        %v1494 = vunpack.c.l.b16 %v1319
        %v1495 = vunpack.c.h.b16 %v1319
        %v1496 = vunpack.c.l.b16 %v1320
        %v1497 = vunpack.c.h.b16 %v1320
        %v1498 = vunpack.c.l.b16 %v1321
        %v1499 = vunpack.c.h.b16 %v1321
        %v1500 = vunpack.c.l.b16 %v1322
        %v1501 = vunpack.c.h.b16 %v1322
        %v1502 = vunpack.c.l.b16 %v1323
        %v1503 = vunpack.c.h.b16 %v1323
        %v1504 = vunpack.c.l.b16 %v1324
        %v1505 = vunpack.c.h.b16 %v1324
        %v1506 = vunpack.c.l.b16 %v1325
        %v1507 = vunpack.c.h.b16 %v1325
        %v1508 = vunpack.c.l.b16 %v1326
        %v1509 = vunpack.c.h.b16 %v1326
        %v1510 = vunpack.c.l.b16 %v1327
        %v1511 = vunpack.c.h.b16 %v1327
        %v1512 = vunpack.c.l.b16 %v1328
        %v1513 = vunpack.c.h.b16 %v1328
        %v1514 = vunpack.c.l.b16 %v1329
        %v1515 = vunpack.c.h.b16 %v1329
        %v1516 = vunpack.c.l.b16 %v1330
        %v1517 = vunpack.c.h.b16 %v1330
        %v1518 = vunpack.c.l.b16 %v1331
        %v1519 = vunpack.c.h.b16 %v1331
        %v1520 = vunpack.c.l.b16 %v1332
        %v1521 = vunpack.c.h.b16 %v1332
        %v1522 = vunpack.c.l.b16 %v1333
        %v1523 = vunpack.c.h.b16 %v1333
        %v1524 = vunpack.c.l.b16 %v1334
        %v1525 = vunpack.c.h.b16 %v1334
        %v1526 = vunpack.c.l.b16 %v1335
        %v1527 = vunpack.c.h.b16 %v1335
        %v1528 = vpack.c.b16 %v1404, %v1400
        %v1529 = vpack.c.b16 %v1405, %v1401
        %v1530 = vpack.c.b16 %v1406, %v1402
        %v1531 = vpack.c.b16 %v1407, %v1403
        %v1532 = vpack.c.b16 %v1412, %v1408
        %v1533 = vpack.c.b16 %v1413, %v1409
        %v1534 = vpack.c.b16 %v1414, %v1410
        %v1535 = vpack.c.b16 %v1415, %v1411
        %v1536 = vpack.c.b16 %v1420, %v1416
        %v1537 = vpack.c.b16 %v1421, %v1417
        %v1538 = vpack.c.b16 %v1422, %v1418
        %v1539 = vpack.c.b16 %v1423, %v1419
        %v1540 = vpack.c.b16 %v1428, %v1424
        %v1541 = vpack.c.b16 %v1429, %v1425
        %v1542 = vpack.c.b16 %v1430, %v1426
        %v1543 = vpack.c.b16 %v1431, %v1427
        %v1544 = vpack.c.b16 %v1436, %v1432
        %v1545 = vpack.c.b16 %v1437, %v1433
        %v1546 = vpack.c.b16 %v1438, %v1434
        %v1547 = vpack.c.b16 %v1439, %v1435
        %v1548 = vpack.c.b16 %v1444, %v1440
        %v1549 = vpack.c.b16 %v1445, %v1441
        %v1550 = vpack.c.b16 %v1446, %v1442
        %v1551 = vpack.c.b16 %v1447, %v1443
        %v1552 = vpack.c.b16 %v1452, %v1448
        %v1553 = vpack.c.b16 %v1453, %v1449
        %v1554 = vpack.c.b16 %v1454, %v1450
        %v1555 = vpack.c.b16 %v1455, %v1451
        %v1556 = vpack.c.b16 %v1460, %v1456
        %v1557 = vpack.c.b16 %v1461, %v1457
        %v1558 = vpack.c.b16 %v1462, %v1458
        %v1559 = vpack.c.b16 %v1463, %v1459
        %v1560 = vpack.c.b16 %v1468, %v1464
        %v1561 = vpack.c.b16 %v1469, %v1465
        %v1562 = vpack.c.b16 %v1470, %v1466
        %v1563 = vpack.c.b16 %v1471, %v1467
        %v1564 = vpack.c.b16 %v1476, %v1472
        %v1565 = vpack.c.b16 %v1477, %v1473
        %v1566 = vpack.c.b16 %v1478, %v1474
        %v1567 = vpack.c.b16 %v1479, %v1475
        %v1568 = vpack.c.b16 %v1484, %v1480
        %v1569 = vpack.c.b16 %v1485, %v1481
        %v1570 = vpack.c.b16 %v1486, %v1482
        %v1571 = vpack.c.b16 %v1487, %v1483
        %v1572 = vpack.c.b16 %v1492, %v1488
        %v1573 = vpack.c.b16 %v1493, %v1489
        %v1574 = vpack.c.b16 %v1494, %v1490
        %v1575 = vpack.c.b16 %v1495, %v1491
        %v1576 = vpack.c.b16 %v1500, %v1496
        %v1577 = vpack.c.b16 %v1501, %v1497
        %v1578 = vpack.c.b16 %v1502, %v1498
        %v1579 = vpack.c.b16 %v1503, %v1499
        %v1580 = vpack.c.b16 %v1508, %v1504
        %v1581 = vpack.c.b16 %v1509, %v1505
        %v1582 = vpack.c.b16 %v1510, %v1506
        %v1583 = vpack.c.b16 %v1511, %v1507
        %v1584 = vpack.c.b16 %v1516, %v1512
        %v1585 = vpack.c.b16 %v1517, %v1513
        %v1586 = vpack.c.b16 %v1518, %v1514
        %v1587 = vpack.c.b16 %v1519, %v1515
        %v1588 = vpack.c.b16 %v1524, %v1520
        %v1589 = vpack.c.b16 %v1525, %v1521
        %v1590 = vpack.c.b16 %v1526, %v1522
        %v1591 = vpack.c.b16 %v1527, %v1523
        %1656 = vmatpush.bf16.msra.mxu0 %v1556
        %1657 = vmatpush.bf16.msra.mxu0 %v1552
        %1658 = vmatpush.bf16.msra.mxu0 %v1548
        %1659 = vmatpush.bf16.msra.mxu0 %v1544
        %1660 = vmatpush.bf16.msra.mxu0 %v1540
        %1661 = vmatpush.bf16.msra.mxu0 %v1536
        %1662 = vmatpush.bf16.msra.mxu0 %v1532
        %1663 = vmatpush.bf16.msra.mxu0 %v1528
        %1664 = vmatmul.bf16.gmra.mxu0 %v1270
        %v1665 = vpop.f32.mrf.mxu0
        %v1666 = vadd.f32 0.0, %v1665
        %v1667 = vpop.f32.mrf.mxu0
        %1668 = vdwg.mxu0
        %1669 = vmatpush.bf16.msra.mxu0 %v1588
        %1670 = vmatpush.bf16.msra.mxu0 %v1584
        %1671 = vmatpush.bf16.msra.mxu0 %v1580
        %1672 = vmatpush.bf16.msra.mxu0 %v1576
        %1673 = vmatpush.bf16.msra.mxu0 %v1572
        %1674 = vmatpush.bf16.msra.mxu0 %v1568
        %1675 = vmatpush.bf16.msra.mxu0 %v1564
        %1676 = vmatpush.bf16.msra.mxu0 %v1560
        %1677 = vmatmul.bf16.gmra.mxu0 %v1271
        %v1678 = vpop.f32.mrf.mxu0
        %v1679 = vadd.f32 %v1666, %v1678
        %v1680 = vpop.f32.mrf.mxu0
        %1681 = vdwg.mxu0
        %1682 = vmatpush.bf16.msra.mxu0 %v1557
        %1683 = vmatpush.bf16.msra.mxu0 %v1553
        %1684 = vmatpush.bf16.msra.mxu0 %v1549
        %1685 = vmatpush.bf16.msra.mxu0 %v1545
        %1686 = vmatpush.bf16.msra.mxu0 %v1541
        %1687 = vmatpush.bf16.msra.mxu0 %v1537
        %1688 = vmatpush.bf16.msra.mxu0 %v1533
        %1689 = vmatpush.bf16.msra.mxu0 %v1529
        %1690 = vmatmul.bf16.gmra.mxu0 %v1270
        %v1691 = vpop.f32.mrf.mxu0
        %v1692 = vadd.f32 0.0, %v1691
        %v1693 = vpop.f32.mrf.mxu0
        %1694 = vdwg.mxu0
        %1695 = vmatpush.bf16.msra.mxu0 %v1589
        %1696 = vmatpush.bf16.msra.mxu0 %v1585
        %1697 = vmatpush.bf16.msra.mxu0 %v1581
        %1698 = vmatpush.bf16.msra.mxu0 %v1577
        %1699 = vmatpush.bf16.msra.mxu0 %v1573
        %1700 = vmatpush.bf16.msra.mxu0 %v1569
        %1701 = vmatpush.bf16.msra.mxu0 %v1565
        %1702 = vmatpush.bf16.msra.mxu0 %v1561
        %1703 = vmatmul.bf16.gmra.mxu0 %v1271
        %v1704 = vpop.f32.mrf.mxu0
        %v1705 = vadd.f32 %v1692, %v1704
        %v1706 = vpop.f32.mrf.mxu0
        %1707 = vdwg.mxu0
        %1708 = vmatpush.bf16.msra.mxu0 %v1558
        %1709 = vmatpush.bf16.msra.mxu0 %v1554
        %1710 = vmatpush.bf16.msra.mxu0 %v1550
        %1711 = vmatpush.bf16.msra.mxu0 %v1546
        %1712 = vmatpush.bf16.msra.mxu0 %v1542
        %1713 = vmatpush.bf16.msra.mxu0 %v1538
        %1714 = vmatpush.bf16.msra.mxu0 %v1534
        %1715 = vmatpush.bf16.msra.mxu0 %v1530
        %1716 = vmatmul.bf16.gmra.mxu0 %v1270
        %v1717 = vpop.f32.mrf.mxu0
        %v1718 = vadd.f32 0.0, %v1717
        %v1719 = vpop.f32.mrf.mxu0
        %1720 = vdwg.mxu0
        %1721 = vmatpush.bf16.msra.mxu0 %v1590
        %1722 = vmatpush.bf16.msra.mxu0 %v1586
        %1723 = vmatpush.bf16.msra.mxu0 %v1582
        %1724 = vmatpush.bf16.msra.mxu0 %v1578
        %1725 = vmatpush.bf16.msra.mxu0 %v1574
        %1726 = vmatpush.bf16.msra.mxu0 %v1570
        %1727 = vmatpush.bf16.msra.mxu0 %v1566
        %1728 = vmatpush.bf16.msra.mxu0 %v1562
        %1729 = vmatmul.bf16.gmra.mxu0 %v1271
        %v1730 = vpop.f32.mrf.mxu0
        %v1731 = vadd.f32 %v1718, %v1730
        %v1732 = vpop.f32.mrf.mxu0
        %1733 = vdwg.mxu0
        %1734 = vmatpush.bf16.msra.mxu0 %v1559
        %1735 = vmatpush.bf16.msra.mxu0 %v1555
        %1736 = vmatpush.bf16.msra.mxu0 %v1551
        %1737 = vmatpush.bf16.msra.mxu0 %v1547
        %1738 = vmatpush.bf16.msra.mxu0 %v1543
        %1739 = vmatpush.bf16.msra.mxu0 %v1539
        %1740 = vmatpush.bf16.msra.mxu0 %v1535
        %1741 = vmatpush.bf16.msra.mxu0 %v1531
        %1742 = vmatmul.bf16.gmra.mxu0 %v1270
        %v1743 = vpop.f32.mrf.mxu0
        %v1744 = vadd.f32 0.0, %v1743
        %v1745 = vpop.f32.mrf.mxu0
        %1746 = vdwg.mxu0
        %1747 = vmatpush.bf16.msra.mxu0 %v1591
        %1748 = vmatpush.bf16.msra.mxu0 %v1587
        %1749 = vmatpush.bf16.msra.mxu0 %v1583
        %1750 = vmatpush.bf16.msra.mxu0 %v1579
        %1751 = vmatpush.bf16.msra.mxu0 %v1575
        %1752 = vmatpush.bf16.msra.mxu0 %v1571
        %1753 = vmatpush.bf16.msra.mxu0 %v1567
        %1754 = vmatpush.bf16.msra.mxu0 %v1563
        %1755 = vmatmul.bf16.gmra.mxu0 %v1271
        %v1756 = vpop.f32.mrf.mxu0
        %v1757 = vadd.f32 %v1744, %v1756
        %v1758 = vpop.f32.mrf.mxu0
        %1759 = vdwg.mxu0
        %v1760 = vld [vmem:[%s5] sm:$0xf]
        %v1761 = vld [vmem:[%s6] sm:$0xf]
        %v1762 = vsel %vm1182, %v1679, 0.0
        %v1763 = vrot.slane %v1762, 4
        %v1764 = vadd.f32 %v1762, %v1763
        %v1765 = vrot.slane %v1764, 2
        %v1766 = vadd.f32 %v1764, %v1765
        %v1767 = vrot.slane %v1766, 1
        %v1768 = vadd.f32 %v1766, %v1767
        %v1769 = vsel %vm1182, %v1705, 0.0
        %v1770 = vrot.slane %v1769, 4
        %v1771 = vadd.f32 %v1769, %v1770
        %v1772 = vrot.slane %v1771, 2
        %v1773 = vadd.f32 %v1771, %v1772
        %v1774 = vrot.slane %v1773, 1
        %v1775 = vadd.f32 %v1773, %v1774
        %v1776 = vsel %vm1182, %v1731, 0.0
        %v1777 = vrot.slane %v1776, 4
        %v1778 = vadd.f32 %v1776, %v1777
        %v1779 = vrot.slane %v1778, 2
        %v1780 = vadd.f32 %v1778, %v1779
        %v1781 = vrot.slane %v1780, 1
        %v1782 = vadd.f32 %v1780, %v1781
        %v1783 = vsel %vm1182, %v1757, 0.0
        %v1784 = vrot.slane %v1783, 4
        %v1785 = vadd.f32 %v1783, %v1784
        %v1786 = vrot.slane %v1785, 2
        %v1787 = vadd.f32 %v1785, %v1786
        %v1788 = vrot.slane %v1787, 1
        %v1789 = vadd.f32 %v1787, %v1788
        %v1790 = vmul.f32 %v1768, %v1203
        %v1791 = vmul.f32 %v1775, %v1203
        %v1792 = vmul.f32 %v1782, %v1203
        %v1793 = vmul.f32 %v1789, %v1203
        %v1794 = vsub.f32 %v1679, %v1790
        %v1795 = vsub.f32 %v1705, %v1791
        %v1796 = vsub.f32 %v1731, %v1792
        %v1797 = vsub.f32 %v1757, %v1793
        %v1798 = vmul.f32 %v1794, %v1794
        %v1799 = vmul.f32 %v1795, %v1795
        %v1800 = vmul.f32 %v1796, %v1796
        %v1801 = vmul.f32 %v1797, %v1797
        %v1802 = vsel %vm1182, %v1798, 0.0
        %v1803 = vrot.slane %v1802, 4
        %v1804 = vadd.f32 %v1802, %v1803
        %v1805 = vrot.slane %v1804, 2
        %v1806 = vadd.f32 %v1804, %v1805
        %v1807 = vrot.slane %v1806, 1
        %v1808 = vadd.f32 %v1806, %v1807
        %v1809 = vsel %vm1182, %v1799, 0.0
        %v1810 = vrot.slane %v1809, 4
        %v1811 = vadd.f32 %v1809, %v1810
        %v1812 = vrot.slane %v1811, 2
        %v1813 = vadd.f32 %v1811, %v1812
        %v1814 = vrot.slane %v1813, 1
        %v1815 = vadd.f32 %v1813, %v1814
        %v1816 = vsel %vm1182, %v1800, 0.0
        %v1817 = vrot.slane %v1816, 4
        %v1818 = vadd.f32 %v1816, %v1817
        %v1819 = vrot.slane %v1818, 2
        %v1820 = vadd.f32 %v1818, %v1819
        %v1821 = vrot.slane %v1820, 1
        %v1822 = vadd.f32 %v1820, %v1821
        %v1823 = vsel %vm1182, %v1801, 0.0
        %v1824 = vrot.slane %v1823, 4
        %v1825 = vadd.f32 %v1823, %v1824
        %v1826 = vrot.slane %v1825, 2
        %v1827 = vadd.f32 %v1825, %v1826
        %v1828 = vrot.slane %v1827, 1
        %v1829 = vadd.f32 %v1827, %v1828
        %v1830 = vmul.f32 %v1808, %v1203
        %v1831 = vmul.f32 %v1815, %v1203
        %v1832 = vmul.f32 %v1822, %v1203
        %v1833 = vmul.f32 %v1829, %v1203
        %v1834 = vadd.f32 %v1830, 1e-05
        %v1835 = vadd.f32 %v1831, 1e-05
        %v1836 = vadd.f32 %v1832, 1e-05
        %v1837 = vadd.f32 %v1833, 1e-05
        %v1838 = vrsqrt.pop %v1834
        %v1839 = vmul.f32 %v1838, %v1834
        %v1840 = vmul.f32 %v1839, %v1838
        %v1841 = vmul.f32 0.5, %v1840
        %v1842 = vsub.f32 1.5, %v1841
        %v1843 = vmul.f32 %v1838, %v1842
        %vm1844 = vweird.f32 %v1834
        %vm1845 = vweird.f32 %v1838
        %vm1846 = vmor %vm1844, %vm1845
        %v1847 = vsel %vm1846, %v1838, %v1843
        %v1848 = vrsqrt.pop %v1835
        %v1849 = vmul.f32 %v1848, %v1835
        %v1850 = vmul.f32 %v1849, %v1848
        %v1851 = vmul.f32 0.5, %v1850
        %v1852 = vsub.f32 1.5, %v1851
        %v1853 = vmul.f32 %v1848, %v1852
        %vm1854 = vweird.f32 %v1835
        %vm1855 = vweird.f32 %v1848
        %vm1856 = vmor %vm1854, %vm1855
        %v1857 = vsel %vm1856, %v1848, %v1853
        %v1858 = vrsqrt.pop %v1836
        %v1859 = vmul.f32 %v1858, %v1836
        %v1860 = vmul.f32 %v1859, %v1858
        %v1861 = vmul.f32 0.5, %v1860
        %v1862 = vsub.f32 1.5, %v1861
        %v1863 = vmul.f32 %v1858, %v1862
        %vm1864 = vweird.f32 %v1836
        %vm1865 = vweird.f32 %v1858
        %vm1866 = vmor %vm1864, %vm1865
        %v1867 = vsel %vm1866, %v1858, %v1863
        %v1868 = vrsqrt.pop %v1837
        %v1869 = vmul.f32 %v1868, %v1837
        %v1870 = vmul.f32 %v1869, %v1868
        %v1871 = vmul.f32 0.5, %v1870
        %v1872 = vsub.f32 1.5, %v1871
        %v1873 = vmul.f32 %v1868, %v1872
        %vm1874 = vweird.f32 %v1837
        %vm1875 = vweird.f32 %v1868
        %vm1876 = vmor %vm1874, %vm1875
        %v1877 = vsel %vm1876, %v1868, %v1873
        %v1878 = vmul.f32 %v1794, %v1847
        %v1879 = vmul.f32 %v1795, %v1857
        %v1880 = vmul.f32 %v1796, %v1867
        %v1881 = vmul.f32 %v1797, %v1877
        %v1883 = vperm.slane %v1760, 0
        %v1884 = vperm.slane %v1760, 1
        %v1885 = vperm.slane %v1760, 2
        %v1886 = vperm.slane %v1760, 3
        %v1891 = vmul.f32 %v1878, %v1883
        %v1892 = vmul.f32 %v1879, %v1884
        %v1893 = vmul.f32 %v1880, %v1885
        %v1894 = vmul.f32 %v1881, %v1886
        %v1896 = vperm.slane %v1761, 0
        %v1897 = vperm.slane %v1761, 1
        %v1898 = vperm.slane %v1761, 2
        %v1899 = vperm.slane %v1761, 3
        %v1904 = vadd.f32 %v1891, %v1896
        %v1905 = vadd.f32 %v1892, %v1897
        %v1906 = vadd.f32 %v1893, %v1898
        %v1907 = vadd.f32 %v1894, %v1899
        %vm1908 = vcmp.ge.f32.partialorder %v1904, 0.0
        %vm1909 = vcmp.ge.f32.partialorder %v1905, 0.0
        %vm1910 = vcmp.ge.f32.partialorder %v1906, 0.0
        %vm1911 = vcmp.ge.f32.partialorder %v1907, 0.0
        %v1912 = vmul.f32 %v1904, 0.01
        %v1913 = vmul.f32 %v1905, 0.01
        %v1914 = vmul.f32 %v1906, 0.01
        %v1915 = vmul.f32 %v1907, 0.01
        %v1916 = vsel %vm1908, %v1904, %v1912
        %v1917 = vsel %vm1909, %v1905, %v1913
        %v1918 = vsel %vm1910, %v1906, %v1914
        %v1919 = vsel %vm1911, %v1907, %v1915
        %v1920 = vpack.c.bf16 %v1916, %v1916
        %v1921 = vpack.c.bf16 %v1917, %v1917
        %v1922 = vpack.c.bf16 %v1918, %v1918
        %v1923 = vpack.c.bf16 %v1919, %v1919
        %v1924 = vld [vmem:[%s631] sm:$0xf]
        %v1925 = vld [vmem:[%s631 + $0x4] sm:$0xf]
        %v1926 = vld [vmem:[%s631 + $0x8] sm:$0xf]
        %v1927 = vld [vmem:[%s631 + $0xc] sm:$0xf]
        %v1928 = vld [vmem:[%s631 + $0x10] sm:$0xf]
        %v1929 = vld [vmem:[%s631 + $0x14] sm:$0xf]
        %v1930 = vld [vmem:[%s631 + $0x18] sm:$0xf]
        %v1931 = vld [vmem:[%s631 + $0x1c] sm:$0xf]
        %v1932 = vld [vmem:[%s631 + $0x20] sm:$0xf]
        %v1933 = vld [vmem:[%s631 + $0x24] sm:$0xf]
        %v1934 = vld [vmem:[%s631 + $0x28] sm:$0xf]
        %v1935 = vld [vmem:[%s631 + $0x2c] sm:$0xf]
        %v1936 = vld [vmem:[%s631 + $0x30] sm:$0xf]
        %v1937 = vld [vmem:[%s631 + $0x34] sm:$0xf]
        %v1938 = vld [vmem:[%s631 + $0x38] sm:$0xf]
        %v1939 = vld [vmem:[%s631 + $0x3c] sm:$0xf]
        %v1940 = vld [vmem:[%s631 + $0x40] sm:$0xf]
        %v1941 = vld [vmem:[%s631 + $0x44] sm:$0xf]
        %v1942 = vld [vmem:[%s631 + $0x48] sm:$0xf]
        %v1943 = vld [vmem:[%s631 + $0x4c] sm:$0xf]
        %v1944 = vld [vmem:[%s631 + $0x50] sm:$0xf]
        %v1945 = vld [vmem:[%s631 + $0x54] sm:$0xf]
        %v1946 = vld [vmem:[%s631 + $0x58] sm:$0xf]
        %v1947 = vld [vmem:[%s631 + $0x5c] sm:$0xf]
        %v1948 = vld [vmem:[%s631 + $0x60] sm:$0xf]
        %v1949 = vld [vmem:[%s631 + $0x64] sm:$0xf]
        %v1950 = vld [vmem:[%s631 + $0x68] sm:$0xf]
        %v1951 = vld [vmem:[%s631 + $0x6c] sm:$0xf]
        %v1952 = vld [vmem:[%s631 + $0x70] sm:$0xf]
        %v1953 = vld [vmem:[%s631 + $0x74] sm:$0xf]
        %v1954 = vld [vmem:[%s631 + $0x78] sm:$0xf]
        %v1955 = vld [vmem:[%s631 + $0x7c] sm:$0xf]
        %v1956 = vld [vmem:[%s631 + $0x80] sm:$0xf]
        %v1957 = vld [vmem:[%s631 + $0x84] sm:$0xf]
        %v1958 = vld [vmem:[%s631 + $0x88] sm:$0xf]
        %v1959 = vld [vmem:[%s631 + $0x8c] sm:$0xf]
        %v1960 = vld [vmem:[%s631 + $0x90] sm:$0xf]
        %v1961 = vld [vmem:[%s631 + $0x94] sm:$0xf]
        %v1962 = vld [vmem:[%s631 + $0x98] sm:$0xf]
        %v1963 = vld [vmem:[%s631 + $0x9c] sm:$0xf]
        %v1964 = vld [vmem:[%s631 + $0xa0] sm:$0xf]
        %v1965 = vld [vmem:[%s631 + $0xa4] sm:$0xf]
        %v1966 = vld [vmem:[%s631 + $0xa8] sm:$0xf]
        %v1967 = vld [vmem:[%s631 + $0xac] sm:$0xf]
        %v1968 = vld [vmem:[%s631 + $0xb0] sm:$0xf]
        %v1969 = vld [vmem:[%s631 + $0xb4] sm:$0xf]
        %v1970 = vld [vmem:[%s631 + $0xb8] sm:$0xf]
        %v1971 = vld [vmem:[%s631 + $0xbc] sm:$0xf]
        %v1972 = vld [vmem:[%s631 + $0xc0] sm:$0xf]
        %v1973 = vld [vmem:[%s631 + $0xc4] sm:$0xf]
        %v1974 = vld [vmem:[%s631 + $0xc8] sm:$0xf]
        %v1975 = vld [vmem:[%s631 + $0xcc] sm:$0xf]
        %v1976 = vld [vmem:[%s631 + $0xd0] sm:$0xf]
        %v1977 = vld [vmem:[%s631 + $0xd4] sm:$0xf]
        %v1978 = vld [vmem:[%s631 + $0xd8] sm:$0xf]
        %v1979 = vld [vmem:[%s631 + $0xdc] sm:$0xf]
        %v1980 = vld [vmem:[%s631 + $0xe0] sm:$0xf]
        %v1981 = vld [vmem:[%s631 + $0xe4] sm:$0xf]
        %v1982 = vld [vmem:[%s631 + $0xe8] sm:$0xf]
        %v1983 = vld [vmem:[%s631 + $0xec] sm:$0xf]
        %v1984 = vld [vmem:[%s631 + $0xf0] sm:$0xf]
        %v1985 = vld [vmem:[%s631 + $0xf4] sm:$0xf]
        %v1986 = vld [vmem:[%s631 + $0xf8] sm:$0xf]
        %v1987 = vld [vmem:[%s631 + $0xfc] sm:$0xf]
        %v2052 = vunpack.c.l.b16 %v1924
        %v2053 = vunpack.c.l.b16 %v1925
        %v2054 = vunpack.c.l.b16 %v1926
        %v2055 = vunpack.c.l.b16 %v1927
        %v2056 = vunpack.c.l.b16 %v1928
        %v2057 = vunpack.c.l.b16 %v1929
        %v2058 = vunpack.c.l.b16 %v1930
        %v2059 = vunpack.c.l.b16 %v1931
        %v2060 = vunpack.c.l.b16 %v1932
        %v2061 = vunpack.c.l.b16 %v1933
        %v2062 = vunpack.c.l.b16 %v1934
        %v2063 = vunpack.c.l.b16 %v1935
        %v2064 = vunpack.c.l.b16 %v1936
        %v2065 = vunpack.c.l.b16 %v1937
        %v2066 = vunpack.c.l.b16 %v1938
        %v2067 = vunpack.c.l.b16 %v1939
        %v2068 = vunpack.c.l.b16 %v1940
        %v2069 = vunpack.c.l.b16 %v1941
        %v2070 = vunpack.c.l.b16 %v1942
        %v2071 = vunpack.c.l.b16 %v1943
        %v2072 = vunpack.c.l.b16 %v1944
        %v2073 = vunpack.c.l.b16 %v1945
        %v2074 = vunpack.c.l.b16 %v1946
        %v2075 = vunpack.c.l.b16 %v1947
        %v2076 = vunpack.c.l.b16 %v1948
        %v2077 = vunpack.c.l.b16 %v1949
        %v2078 = vunpack.c.l.b16 %v1950
        %v2079 = vunpack.c.l.b16 %v1951
        %v2080 = vunpack.c.l.b16 %v1952
        %v2081 = vunpack.c.l.b16 %v1953
        %v2082 = vunpack.c.l.b16 %v1954
        %v2083 = vunpack.c.l.b16 %v1955
        %v2084 = vunpack.c.l.b16 %v1956
        %v2085 = vunpack.c.l.b16 %v1957
        %v2086 = vunpack.c.l.b16 %v1958
        %v2087 = vunpack.c.l.b16 %v1959
        %v2088 = vunpack.c.l.b16 %v1960
        %v2089 = vunpack.c.l.b16 %v1961
        %v2090 = vunpack.c.l.b16 %v1962
        %v2091 = vunpack.c.l.b16 %v1963
        %v2092 = vunpack.c.l.b16 %v1964
        %v2093 = vunpack.c.l.b16 %v1965
        %v2094 = vunpack.c.l.b16 %v1966
        %v2095 = vunpack.c.l.b16 %v1967
        %v2096 = vunpack.c.l.b16 %v1968
        %v2097 = vunpack.c.l.b16 %v1969
        %v2098 = vunpack.c.l.b16 %v1970
        %v2099 = vunpack.c.l.b16 %v1971
        %v2100 = vunpack.c.l.b16 %v1972
        %v2101 = vunpack.c.l.b16 %v1973
        %v2102 = vunpack.c.l.b16 %v1974
        %v2103 = vunpack.c.l.b16 %v1975
        %v2104 = vunpack.c.l.b16 %v1976
        %v2105 = vunpack.c.l.b16 %v1977
        %v2106 = vunpack.c.l.b16 %v1978
        %v2107 = vunpack.c.l.b16 %v1979
        %v2108 = vunpack.c.l.b16 %v1980
        %v2109 = vunpack.c.l.b16 %v1981
        %v2110 = vunpack.c.l.b16 %v1982
        %v2111 = vunpack.c.l.b16 %v1983
        %v2112 = vunpack.c.l.b16 %v1984
        %v2113 = vunpack.c.l.b16 %v1985
        %v2114 = vunpack.c.l.b16 %v1986
        %v2115 = vunpack.c.l.b16 %v1987
        %v2116 = vpack.c.b16 %v2053, %v2052
        %v2117 = vpack.c.b16 %v2055, %v2054
        %v2118 = vpack.c.b16 %v2057, %v2056
        %v2119 = vpack.c.b16 %v2059, %v2058
        %v2120 = vpack.c.b16 %v2061, %v2060
        %v2121 = vpack.c.b16 %v2063, %v2062
        %v2122 = vpack.c.b16 %v2065, %v2064
        %v2123 = vpack.c.b16 %v2067, %v2066
        %v2124 = vpack.c.b16 %v2069, %v2068
        %v2125 = vpack.c.b16 %v2071, %v2070
        %v2126 = vpack.c.b16 %v2073, %v2072
        %v2127 = vpack.c.b16 %v2075, %v2074
        %v2128 = vpack.c.b16 %v2077, %v2076
        %v2129 = vpack.c.b16 %v2079, %v2078
        %v2130 = vpack.c.b16 %v2081, %v2080
        %v2131 = vpack.c.b16 %v2083, %v2082
        %v2132 = vpack.c.b16 %v2085, %v2084
        %v2133 = vpack.c.b16 %v2087, %v2086
        %v2134 = vpack.c.b16 %v2089, %v2088
        %v2135 = vpack.c.b16 %v2091, %v2090
        %v2136 = vpack.c.b16 %v2093, %v2092
        %v2137 = vpack.c.b16 %v2095, %v2094
        %v2138 = vpack.c.b16 %v2097, %v2096
        %v2139 = vpack.c.b16 %v2099, %v2098
        %v2140 = vpack.c.b16 %v2101, %v2100
        %v2141 = vpack.c.b16 %v2103, %v2102
        %v2142 = vpack.c.b16 %v2105, %v2104
        %v2143 = vpack.c.b16 %v2107, %v2106
        %v2144 = vpack.c.b16 %v2109, %v2108
        %v2145 = vpack.c.b16 %v2111, %v2110
        %v2146 = vpack.c.b16 %v2113, %v2112
        %v2147 = vpack.c.b16 %v2115, %v2114
        %2180 = vmatpush.bf16.msra.mxu0 %v2123
        %2181 = vmatpush.bf16.msra.mxu0 %v2122
        %2182 = vmatpush.bf16.msra.mxu0 %v2121
        %2183 = vmatpush.bf16.msra.mxu0 %v2120
        %2184 = vmatpush.bf16.msra.mxu0 %v2119
        %2185 = vmatpush.bf16.msra.mxu0 %v2118
        %2186 = vmatpush.bf16.msra.mxu0 %v2117
        %2187 = vmatpush.bf16.msra.mxu0 %v2116
        %2188 = vmatmul.bf16.gmra.mxu0 %v1920
        %v2189 = vpop.f32.mrf.mxu0
        %v2190 = vadd.f32 0.0, %v2189
        %v2191 = vpop.f32.mrf.mxu0
        %2192 = vdwg.mxu0
        %2193 = vmatpush.bf16.msra.mxu0 %v2131
        %2194 = vmatpush.bf16.msra.mxu0 %v2130
        %2195 = vmatpush.bf16.msra.mxu0 %v2129
        %2196 = vmatpush.bf16.msra.mxu0 %v2128
        %2197 = vmatpush.bf16.msra.mxu0 %v2127
        %2198 = vmatpush.bf16.msra.mxu0 %v2126
        %2199 = vmatpush.bf16.msra.mxu0 %v2125
        %2200 = vmatpush.bf16.msra.mxu0 %v2124
        %2201 = vmatmul.bf16.gmra.mxu0 %v1921
        %v2202 = vpop.f32.mrf.mxu0
        %v2203 = vadd.f32 %v2190, %v2202
        %v2204 = vpop.f32.mrf.mxu0
        %2205 = vdwg.mxu0
        %2206 = vmatpush.bf16.msra.mxu0 %v2139
        %2207 = vmatpush.bf16.msra.mxu0 %v2138
        %2208 = vmatpush.bf16.msra.mxu0 %v2137
        %2209 = vmatpush.bf16.msra.mxu0 %v2136
        %2210 = vmatpush.bf16.msra.mxu0 %v2135
        %2211 = vmatpush.bf16.msra.mxu0 %v2134
        %2212 = vmatpush.bf16.msra.mxu0 %v2133
        %2213 = vmatpush.bf16.msra.mxu0 %v2132
        %2214 = vmatmul.bf16.gmra.mxu0 %v1922
        %v2215 = vpop.f32.mrf.mxu0
        %v2216 = vadd.f32 %v2203, %v2215
        %v2217 = vpop.f32.mrf.mxu0
        %2218 = vdwg.mxu0
        %2219 = vmatpush.bf16.msra.mxu0 %v2147
        %2220 = vmatpush.bf16.msra.mxu0 %v2146
        %2221 = vmatpush.bf16.msra.mxu0 %v2145
        %2222 = vmatpush.bf16.msra.mxu0 %v2144
        %2223 = vmatpush.bf16.msra.mxu0 %v2143
        %2224 = vmatpush.bf16.msra.mxu0 %v2142
        %2225 = vmatpush.bf16.msra.mxu0 %v2141
        %2226 = vmatpush.bf16.msra.mxu0 %v2140
        %2227 = vmatmul.bf16.gmra.mxu0 %v1923
        %v2228 = vpop.f32.mrf.mxu0
        %v2229 = vadd.f32 %v2216, %v2228
        %v2230 = vpop.f32.mrf.mxu0
        %2231 = vdwg.mxu0
        %v2232 = vld [vmem:[%s673] sm:$0x1]
        %v2233 = vld [vmem:[%s676] sm:$0x1]
        %v2234 = vsel %vm1182, %v2229, 0.0
        %v2235 = vrot.slane %v2234, 4
        %v2236 = vadd.f32 %v2234, %v2235
        %v2237 = vrot.slane %v2236, 2
        %v2238 = vadd.f32 %v2236, %v2237
        %v2239 = vrot.slane %v2238, 1
        %v2240 = vadd.f32 %v2238, %v2239
        %v2241 = vmul.f32 %v2240, %v1203
        %v2242 = vsub.f32 %v2229, %v2241
        %v2243 = vmul.f32 %v2242, %v2242
        %v2244 = vsel %vm1182, %v2243, 0.0
        %v2245 = vrot.slane %v2244, 4
        %v2246 = vadd.f32 %v2244, %v2245
        %v2247 = vrot.slane %v2246, 2
        %v2248 = vadd.f32 %v2246, %v2247
        %v2249 = vrot.slane %v2248, 1
        %v2250 = vadd.f32 %v2248, %v2249
        %v2251 = vmul.f32 %v2250, %v1203
        %v2252 = vadd.f32 %v2251, 1e-05
        %v2253 = vrsqrt.pop %v2252
        %v2254 = vmul.f32 %v2253, %v2252
        %v2255 = vmul.f32 %v2254, %v2253
        %v2256 = vmul.f32 0.5, %v2255
        %v2257 = vsub.f32 1.5, %v2256
        %v2258 = vmul.f32 %v2253, %v2257
        %vm2259 = vweird.f32 %v2252
        %vm2260 = vweird.f32 %v2253
        %vm2261 = vmor %vm2259, %vm2260
        %v2262 = vsel %vm2261, %v2253, %v2258
        %v2263 = vmul.f32 %v2242, %v2262
        %v2265 = vperm.slane %v2232, 0
        %v2267 = vmul.f32 %v2263, %v2265
        %v2269 = vperm.slane %v2233, 0
        %v2271 = vadd.f32 %v2267, %v2269
        %vm2272 = vcmp.ge.f32.partialorder %v2271, 0.0
        %v2273 = vmul.f32 %v2271, 0.01
        %v2274 = vsel %vm2272, %v2271, %v2273
        %2275 = vst [vmem:[%s680] sm:$0x3] %v2274
        %p2276 = scmp.lt.s32.totalorder %s21, 7
        %s2277 = scalar_select %p2276, %s21, 7
        %s2278 = smul.addr %s2277, 2
        %s2279 = scalar_lea.vmem %s10, %s2278
        // Predicated region
        $region102: #{_lambda_.11} parent=96 // pred_check
          %p2280 = pneg %p264
        $region103: #{_lambda_.11} parent=96 // pred_check_branch
          %2282 = sbr.rel (%p2280) target = $region105
        $region104: #{_lambda_.11} parent=96 // pred_region
          _
        $region105: #{_lambda_.11} parent=96 // pred_fallthru
          _
      $region97: #{_lambda_.11} parent=5 // pred_fallthru
        _
      %p2283 = scmp.le.s32.totalorder 2, %s16
      // Predicated region
      $region106: #{_lambda_.11} parent=5 // pred_check
        %p2284 = pneg %p2283
      $region107: #{_lambda_.11} parent=5 // pred_check_branch
        %2286 = sbr.rel (%p2284) target = $region109
      $region108: #{_lambda_.11} parent=5 // pred_region
        %s2287 = ssub.s32 %s16, 2
        // Predicated region
        $region110: #{_lambda_.11} parent=108 // pred_check
          %p2288 = pneg %p270
        $region111: #{_lambda_.11} parent=108 // pred_check_branch
          %2290 = sbr.rel (%p2288) target = $region113
        $region112: #{_lambda_.11} parent=108 // pred_region
          %p2291 = scmp.lt.s32.totalorder %s22, 7
          %s2292 = scalar_select %p2291, %s22, 7
          %s2293 = smul.addr %s2292, 2
          %s2294 = scalar_lea.vmem %s10, %s2293
        $region113: #{_lambda_.11} parent=108 // pred_fallthru
          _
      $region109: #{_lambda_.11} parent=5 // pred_fallthru
        _
    $region6: #{_lambda_.11} parent=1 // loop_footer
      %s20 = sadd.s32 1, %s16
    $region7: #{_lambda_.11} parent=1 // loop_footer_branch
      %15 = sbr.rel target = $region3
    $region8: #{_lambda_.11} parent=1 // loop_exit
      _

</llo_original>
